<compile_context>
chip_gen: v7x
topology: tpu7x:2x2x1
jax: 0.10.0
libtpu: 0.0.40
codegen_flags: <defaults>
</compile_context>

<pallas_src>
import functools

import jax
import jax.numpy as jnp
from jax import lax
from jax.experimental import pallas as pl
from jax.experimental.pallas import tpu as pltpu

C_IN, C_OUT = 3, 2
KH, KW = 3, 4
CONV_PAD = 1
POOL_K, POOL_S, POOL_PAD = 2, 2, 1
LANE = 128

# Masking invalid (pool-padding) positions with 0 instead of -inf is only
# valid because sigmoid(.) > 0 strictly AND every pool window contains at
# least one valid element, which requires POOL_PAD < POOL_K.
assert POOL_PAD < POOL_K


def _conv_sigmoid_pool_kernel(x_ref, m_ref, w_ref, b_ref, o_ref, *, H_POOL, W_POOL):
    """Batch-last (lane-dense) fused conv + sigmoid + 2x2 max-pool.

    x_ref: (C_IN*4, HPH, WPH, B)      VMEM space-to-depth padded input block
    m_ref: (4, H_POOL, W_POOL, 1)     VMEM 0/1 pool-validity masks (resident)
    w_ref: (C_OUT*C_IN*KH*KW,)        SMEM flattened conv weights
    b_ref: (C_OUT,)                   SMEM conv bias
    o_ref: (C_OUT, H_POOL, W_POOL, B) VMEM pooled output block
    """
    f32 = jnp.float32
    B = x_ref.shape[-1]

    # Per-(co, ri, rj) parity accumulators, initialized with the bias.
    acc = [[[jnp.full((H_POOL, W_POOL, B), b_ref[co], f32)
             for _rj in range(2)] for _ri in range(2)] for co in range(C_OUT)]

    # Slab-major loop: iterate over the distinct input slabs (one per
    # (parity-channel, row-offset, col-offset)); load each slab once per
    # input channel and immediately apply every (co, ri, rj, kh, kw) madd
    # that consumes it.  Only one slab is live at a time.
    for ci in range(C_IN):
        for tr in range(KH + 1):                       # tr = ri + kh in [0, KH]
            rows = [(ri, tr - ri) for ri in range(2) if 0 <= tr - ri < KH]
            pr, orr = tr % 2, tr // 2
            for tc in range(KW + 1):                   # tc = rj + kw in [0, KW]
                cols = [(rj, tc - rj) for rj in range(2) if 0 <= tc - rj < KW]
                pc, oc = tc % 2, tc // 2
                ch = (ci * 2 + pr) * 2 + pc
                # Static slice: offsets live on leading / sublane axes, never
                # the lane axis -> plain addressing, no lane shuffles.
                s = x_ref[ch, pl.ds(orr, H_POOL), pl.ds(oc, W_POOL), :]
                for (ri, kh) in rows:
                    for (rj, kw) in cols:
                        for co in range(C_OUT):
                            # Scalar weight rides the vector-scalar madd path;
                            # each (weight, slab) pair is bound to exactly one
                            # multiply here (no redundant splat chains).
                            w_s = w_ref[((co * C_IN + ci) * KH + kh) * KW + kw]
                            acc[co][ri][rj] = acc[co][ri][rj] + w_s * s

    # sigmoid -> 0/1 mask (safe -inf substitute) -> max over the 4 parities
    # == 2x2 / stride-2 / pad-1 max pool.  Lane-dense full-width stores.
    pooled = [None] * C_OUT
    for ri in range(2):
        for rj in range(2):
            m = m_ref[2 * ri + rj]                     # (H_POOL, W_POOL, 1)
            for co in range(C_OUT):
                v = jax.nn.sigmoid(acc[co][ri][rj]) * m
                pooled[co] = v if pooled[co] is None else jnp.maximum(pooled[co], v)
    for co in range(C_OUT):
        o_ref[co] = pooled[co]


def model_forward(x, w, b, *, b_tile=None):
    """x: (N, 3, H, W) f32, w: (2, 3, 3, 4) f32, b: (2,) -> (N, 2, H_POOL, W_POOL)."""
    N, C, H, W = x.shape
    assert C == C_IN

    H_OUT = H + 2 * CONV_PAD - KH + 1              # = H
    W_OUT = W + 2 * CONV_PAD - KW + 1              # = W - 1
    H_POOL = (H_OUT + 2 * POOL_PAD - POOL_K) // POOL_S + 1
    W_POOL = (W_OUT + 2 * POOL_PAD - POOL_K) // POOL_S + 1
    HPH = H_POOL + 1        # per-parity rows incl. halo for (ri+kh)//2 in {0,1}
    WPH = W_POOL + 2        # per-parity cols incl. halo for (rj+kw)//2 in {0,1,2}
    HPAD, WPAD = 2 * HPH, 2 * WPH

    # ---- batch (lane) tile sizing against a cross-generation VMEM budget ----
    # Per-lane bytes: double-buffered input + output blocks, 8 accumulators,
    # one live slab and headroom temporaries.
    bytes_per_lane = 4 * (2 * C_IN * 4 * HPH * WPH
                          + 2 * C_OUT * H_POOL * W_POOL
                          + 12 * H_POOL * W_POOL)
    vmem_budget = 40 << 20        # conservative: fits v5e/v6e and v7x's 64 MiB
    if b_tile is None:
        fit = max(1, vmem_budget // bytes_per_lane)
        if N >= LANE:
            # Lane-dense tile, multiple of 128 so every non-final block is legal
            # and every store is an unmasked full-width vst.
            b_tile = int(min(512, max(LANE, (fit // LANE) * LANE)))
            # TODO(synk): for very large images where even 128 lanes exceed the
            # VMEM budget, add an H-tiling grid axis (1-row halo per parity)
            # rather than shrinking the lane tile.
        else:
            b_tile = N            # small-batch / test path: one full-extent block
    NP = -(-N // b_tile) * b_tile

    x32 = x.astype(jnp.float32)
    if NP > N:
        x32 = jnp.pad(x32, ((0, NP - N), (0, 0), (0, 0), (0, 0)))
    # Pad so X[:, :, 2+h, 2+w] = x[:, :, h, w]; the border covers both the conv
    # zero padding and the pool padding halo.
    x_pad = jnp.pad(x32, ((0, 0), (0, 0), (2, HPAD - 2 - H), (2, WPAD - 2 - W)))

    # 2x2 space-to-depth + batch-last layout (wrapper-side layout plumbing):
    #   x_s2d[(ci*2+pr)*2+pc, a, b_, n] = x_pad[n, ci, 2a+pr, 2b_+pc]
    # Innermost contiguous extent in HBM is NP*4 bytes -> bandwidth-bound DMA.
    x_s2d = (x_pad.reshape(NP, C_IN, HPH, 2, WPH, 2)
             .transpose(1, 3, 5, 2, 4, 0)
             .reshape(C_IN * 4, HPH, WPH, NP))

    # 0/1 validity masks per parity (hoisted out of the kernel; grid-resident;
    # lane extent 1, broadcast over the batch lanes in-kernel).
    ii = jnp.arange(H_POOL)
    jj = jnp.arange(W_POOL)
    masks = []
    for ri in range(2):
        r = 2 * ii + ri
        rv = (r >= 1) & (r <= H_OUT)
        for rj in range(2):
            c = 2 * jj + rj
            cv = (c >= 1) & (c <= W_OUT)
            masks.append((rv[:, None] & cv[None, :]).astype(jnp.float32))
    mask_arr = jnp.stack(masks)[..., None]          # (4, H_POOL, W_POOL, 1)

    w_flat = w.reshape(-1).astype(jnp.float32)
    b32 = b.astype(jnp.float32)

    kernel = functools.partial(_conv_sigmoid_pool_kernel,
                               H_POOL=H_POOL, W_POOL=W_POOL)

    out = pl.pallas_call(
        kernel,
        out_shape=jax.ShapeDtypeStruct((C_OUT, H_POOL, W_POOL, NP), jnp.float32),
        grid=(NP // b_tile,),
        in_specs=[
            pl.BlockSpec((C_IN * 4, HPH, WPH, b_tile), lambda n: (0, 0, 0, n)),
            pl.BlockSpec((4, H_POOL, W_POOL, 1), lambda n: (0, 0, 0, 0)),
            pl.BlockSpec(memory_space=pltpu.MemorySpace.SMEM),
            pl.BlockSpec(memory_space=pltpu.MemorySpace.SMEM),
        ],
        out_specs=pl.BlockSpec((C_OUT, H_POOL, W_POOL, b_tile),
                               lambda n: (0, 0, 0, n)),
        compiler_params=pltpu.CompilerParams(
            dimension_semantics=("parallel",),
            vmem_limit_bytes=48 * 1024 * 1024),
    )(x_s2d, mask_arr, w_flat, b32)

    # Back to NCHW; drop batch padding (wrapper-side layout plumbing).
    return out.transpose(3, 0, 1, 2)[:N]


def reference(x, w, b):
    conv = lax.conv_general_dilated(
        x, w, window_strides=(1, 1),
        padding=((CONV_PAD, CONV_PAD), (CONV_PAD, CONV_PAD)),
        dimension_numbers=("NCHW", "OIHW", "NCHW"))
    v1 = jax.nn.sigmoid(conv + b[None, :, None, None])
    v2 = lax.reduce_window(
        v1, -jnp.inf, lax.max,
        window_dimensions=(1, 1, POOL_K, POOL_K),
        window_strides=(1, 1, POOL_S, POOL_S),
        padding=((0, 0), (0, 0), (POOL_PAD, POOL_PAD), (POOL_PAD, POOL_PAD)))
    return v2


if __name__ == "__main__":
    key = jax.random.PRNGKey(0)
    kx, kw, kb = jax.random.split(key, 3)

    # Small shapes consistent with the module (Conv2d needs 3 input channels).
    x = jax.random.normal(kx, (2, C_IN, 16, 16), dtype=jnp.float32)

    # Deterministic parameter init (PyTorch-style uniform(-1/sqrt(fan_in), ..)).
    fan_in = C_IN * KH * KW
    bound = 1.0 / (fan_in ** 0.5)
    w = jax.random.uniform(kw, (C_OUT, C_IN, KH, KW), dtype=jnp.float32,
                           minval=-bound, maxval=bound)
    b = jax.random.uniform(kb, (C_OUT,), dtype=jnp.float32,
                           minval=-bound, maxval=bound)

    fwd = jax.jit(model_forward)
    out = jax.block_until_ready(fwd(x, w, b))

    ref = reference(x, w, b)
    assert out.shape == ref.shape == (2, C_OUT, 9, 8), (out.shape, ref.shape)
    max_err = float(jnp.max(jnp.abs(out - ref)))
    assert jnp.allclose(out, ref, atol=1e-5, rtol=1e-5), max_err

    print("KERNEL_OK")
</pallas_src>

<mosaic_0001>
module attributes {stable_mosaic.version = 11 : i64} {
  func.func @_conv_sigmoid_pool_kernel(%arg0: i32, %arg1: memref<12x10x10x2xf32, #tpu.memory_space<vmem>>, %arg2: memref<4x9x8x1xf32, #tpu.memory_space<vmem>>, %arg3: memref<72xf32, #tpu.memory_space<smem>>, %arg4: memref<2xf32, #tpu.memory_space<smem>>, %arg5: memref<2x9x8x2xf32, #tpu.memory_space<vmem>>) attributes {dimension_semantics = [#tpu.dimension_semantics<parallel>], iteration_bounds = array<i64: 1>, scalar_prefetch = 0 : i64, scratch_operands = 0 : i64, tpu.core_type = #tpu.core_type<tc>, window_params = [{transform_indices = @transform_0, window_bounds = array<i64: 12, 10, 10, 2>}, {pipeline_mode = #tpu.pipeline_mode<synchronous>, transform_indices = @transform_1, window_bounds = array<i64: 4, 9, 8, 1>}, {transform_indices = @transform_2, window_bounds = array<i64: 72>}, {transform_indices = @transform_3, window_bounds = array<i64: 2>}, {transform_indices = @transform_4, window_bounds = array<i64: 2, 9, 8, 2>}]} {
    %c0 = arith.constant 0 : index
    %0 = memref.load %arg4[%c0] : memref<2xf32, #tpu.memory_space<smem>>
    %1 = vector.broadcast %0 : f32 to vector<9x8x2xf32>
    %c0_0 = arith.constant 0 : index
    %2 = memref.load %arg4[%c0_0] : memref<2xf32, #tpu.memory_space<smem>>
    %3 = vector.broadcast %2 : f32 to vector<9x8x2xf32>
    %c0_1 = arith.constant 0 : index
    %4 = memref.load %arg4[%c0_1] : memref<2xf32, #tpu.memory_space<smem>>
    %5 = vector.broadcast %4 : f32 to vector<9x8x2xf32>
    %c0_2 = arith.constant 0 : index
    %6 = memref.load %arg4[%c0_2] : memref<2xf32, #tpu.memory_space<smem>>
    %7 = vector.broadcast %6 : f32 to vector<9x8x2xf32>
    %c1 = arith.constant 1 : index
    %8 = memref.load %arg4[%c1] : memref<2xf32, #tpu.memory_space<smem>>
    %9 = vector.broadcast %8 : f32 to vector<9x8x2xf32>
    %c1_3 = arith.constant 1 : index
    %10 = memref.load %arg4[%c1_3] : memref<2xf32, #tpu.memory_space<smem>>
    %11 = vector.broadcast %10 : f32 to vector<9x8x2xf32>
    %c1_4 = arith.constant 1 : index
    %12 = memref.load %arg4[%c1_4] : memref<2xf32, #tpu.memory_space<smem>>
    %13 = vector.broadcast %12 : f32 to vector<9x8x2xf32>
    %c1_5 = arith.constant 1 : index
    %14 = memref.load %arg4[%c1_5] : memref<2xf32, #tpu.memory_space<smem>>
    %15 = vector.broadcast %14 : f32 to vector<9x8x2xf32>
    %c0_6 = arith.constant 0 : index
    %c0_7 = arith.constant 0 : index
    %c0_8 = arith.constant 0 : index
    %c0_9 = arith.constant 0 : index
    %16 = vector.load %arg1[%c0_6, %c0_7, %c0_8, %c0_9] : memref<12x10x10x2xf32, #tpu.memory_space<vmem>>, vector<1x9x8x2xf32>
    %17 = vector.shape_cast %16 : vector<1x9x8x2xf32> to vector<9x8x2xf32>
    %c0_10 = arith.constant 0 : index
    %18 = memref.load %arg3[%c0_10] : memref<72xf32, #tpu.memory_space<smem>>
    %19 = vector.broadcast %18 : f32 to vector<9x8x2xf32>
    %20 = arith.mulf %19, %17 : vector<9x8x2xf32>
    %21 = arith.addf %1, %20 : vector<9x8x2xf32>
    %c36 = arith.constant 36 : index
    %22 = memref.load %arg3[%c36] : memref<72xf32, #tpu.memory_space<smem>>
    %23 = vector.broadcast %22 : f32 to vector<9x8x2xf32>
    %24 = arith.mulf %23, %17 : vector<9x8x2xf32>
    %25 = arith.addf %9, %24 : vector<9x8x2xf32>
    %c1_11 = arith.constant 1 : index
    %c0_12 = arith.constant 0 : index
    %c0_13 = arith.constant 0 : index
    %c0_14 = arith.constant 0 : index
    %26 = vector.load %arg1[%c1_11, %c0_12, %c0_13, %c0_14] : memref<12x10x10x2xf32, #tpu.memory_space<vmem>>, vector<1x9x8x2xf32>
    %27 = vector.shape_cast %26 : vector<1x9x8x2xf32> to vector<9x8x2xf32>
    %c1_15 = arith.constant 1 : index
    %28 = memref.load %arg3[%c1_15] : memref<72xf32, #tpu.memory_space<smem>>
    %29 = vector.broadcast %28 : f32 to vector<9x8x2xf32>
    %30 = arith.mulf %29, %27 : vector<9x8x2xf32>
    %31 = arith.addf %21, %30 : vector<9x8x2xf32>
    %c37 = arith.constant 37 : index
    %32 = memref.load %arg3[%c37] : memref<72xf32, #tpu.memory_space<smem>>
    %33 = vector.broadcast %32 : f32 to vector<9x8x2xf32>
    %34 = arith.mulf %33, %27 : vector<9x8x2xf32>
    %35 = arith.addf %25, %34 : vector<9x8x2xf32>
    %c0_16 = arith.constant 0 : index
    %36 = memref.load %arg3[%c0_16] : memref<72xf32, #tpu.memory_space<smem>>
    %37 = vector.broadcast %36 : f32 to vector<9x8x2xf32>
    %38 = arith.mulf %37, %27 : vector<9x8x2xf32>
    %39 = arith.addf %3, %38 : vector<9x8x2xf32>
    %c36_17 = arith.constant 36 : index
    %40 = memref.load %arg3[%c36_17] : memref<72xf32, #tpu.memory_space<smem>>
    %41 = vector.broadcast %40 : f32 to vector<9x8x2xf32>
    %42 = arith.mulf %41, %27 : vector<9x8x2xf32>
    %43 = arith.addf %11, %42 : vector<9x8x2xf32>
    %c0_18 = arith.constant 0 : index
    %c0_19 = arith.constant 0 : index
    %c1_20 = arith.constant 1 : index
    %c0_21 = arith.constant 0 : index
    %44 = vector.load %arg1[%c0_18, %c0_19, %c1_20, %c0_21] : memref<12x10x10x2xf32, #tpu.memory_space<vmem>>, vector<1x9x8x2xf32>
    %45 = vector.shape_cast %44 : vector<1x9x8x2xf32> to vector<9x8x2xf32>
    %c2 = arith.constant 2 : index
    %46 = memref.load %arg3[%c2] : memref<72xf32, #tpu.memory_space<smem>>
    %47 = vector.broadcast %46 : f32 to vector<9x8x2xf32>
    %48 = arith.mulf %47, %45 : vector<9x8x2xf32>
    %49 = arith.addf %31, %48 : vector<9x8x2xf32>
    %c38 = arith.constant 38 : index
    %50 = memref.load %arg3[%c38] : memref<72xf32, #tpu.memory_space<smem>>
    %51 = vector.broadcast %50 : f32 to vector<9x8x2xf32>
    %52 = arith.mulf %51, %45 : vector<9x8x2xf32>
    %53 = arith.addf %35, %52 : vector<9x8x2xf32>
    %c1_22 = arith.constant 1 : index
    %54 = memref.load %arg3[%c1_22] : memref<72xf32, #tpu.memory_space<smem>>
    %55 = vector.broadcast %54 : f32 to vector<9x8x2xf32>
    %56 = arith.mulf %55, %45 : vector<9x8x2xf32>
    %57 = arith.addf %39, %56 : vector<9x8x2xf32>
    %c37_23 = arith.constant 37 : index
    %58 = memref.load %arg3[%c37_23] : memref<72xf32, #tpu.memory_space<smem>>
    %59 = vector.broadcast %58 : f32 to vector<9x8x2xf32>
    %60 = arith.mulf %59, %45 : vector<9x8x2xf32>
    %61 = arith.addf %43, %60 : vector<9x8x2xf32>
    %c1_24 = arith.constant 1 : index
    %c0_25 = arith.constant 0 : index
    %c1_26 = arith.constant 1 : index
    %c0_27 = arith.constant 0 : index
    %62 = vector.load %arg1[%c1_24, %c0_25, %c1_26, %c0_27] : memref<12x10x10x2xf32, #tpu.memory_space<vmem>>, vector<1x9x8x2xf32>
    %63 = vector.shape_cast %62 : vector<1x9x8x2xf32> to vector<9x8x2xf32>
    %c3 = arith.constant 3 : index
    %64 = memref.load %arg3[%c3] : memref<72xf32, #tpu.memory_space<smem>>
    %65 = vector.broadcast %64 : f32 to vector<9x8x2xf32>
    %66 = arith.mulf %65, %63 : vector<9x8x2xf32>
    %67 = arith.addf %49, %66 : vector<9x8x2xf32>
    %c39 = arith.constant 39 : index
    %68 = memref.load %arg3[%c39] : memref<72xf32, #tpu.memory_space<smem>>
    %69 = vector.broadcast %68 : f32 to vector<9x8x2xf32>
    %70 = arith.mulf %69, %63 : vector<9x8x2xf32>
    %71 = arith.addf %53, %70 : vector<9x8x2xf32>
    %c2_28 = arith.constant 2 : index
    %72 = memref.load %arg3[%c2_28] : memref<72xf32, #tpu.memory_space<smem>>
    %73 = vector.broadcast %72 : f32 to vector<9x8x2xf32>
    %74 = arith.mulf %73, %63 : vector<9x8x2xf32>
    %75 = arith.addf %57, %74 : vector<9x8x2xf32>
    %c38_29 = arith.constant 38 : index
    %76 = memref.load %arg3[%c38_29] : memref<72xf32, #tpu.memory_space<smem>>
    %77 = vector.broadcast %76 : f32 to vector<9x8x2xf32>
    %78 = arith.mulf %77, %63 : vector<9x8x2xf32>
    %79 = arith.addf %61, %78 : vector<9x8x2xf32>
    %c0_30 = arith.constant 0 : index
    %c0_31 = arith.constant 0 : index
    %c2_32 = arith.constant 2 : index
    %c0_33 = arith.constant 0 : index
    %80 = vector.load %arg1[%c0_30, %c0_31, %c2_32, %c0_33] : memref<12x10x10x2xf32, #tpu.memory_space<vmem>>, vector<1x9x8x2xf32>
    %81 = vector.shape_cast %80 : vector<1x9x8x2xf32> to vector<9x8x2xf32>
    %c3_34 = arith.constant 3 : index
    %82 = memref.load %arg3[%c3_34] : memref<72xf32, #tpu.memory_space<smem>>
    %83 = vector.broadcast %82 : f32 to vector<9x8x2xf32>
    %84 = arith.mulf %83, %81 : vector<9x8x2xf32>
    %85 = arith.addf %75, %84 : vector<9x8x2xf32>
    %c39_35 = arith.constant 39 : index
    %86 = memref.load %arg3[%c39_35] : memref<72xf32, #tpu.memory_space<smem>>
    %87 = vector.broadcast %86 : f32 to vector<9x8x2xf32>
    %88 = arith.mulf %87, %81 : vector<9x8x2xf32>
    %89 = arith.addf %79, %88 : vector<9x8x2xf32>
    %c2_36 = arith.constant 2 : index
    %c0_37 = arith.constant 0 : index
    %c0_38 = arith.constant 0 : index
    %c0_39 = arith.constant 0 : index
    %90 = vector.load %arg1[%c2_36, %c0_37, %c0_38, %c0_39] : memref<12x10x10x2xf32, #tpu.memory_space<vmem>>, vector<1x9x8x2xf32>
    %91 = vector.shape_cast %90 : vector<1x9x8x2xf32> to vector<9x8x2xf32>
    %c4 = arith.constant 4 : index
    %92 = memref.load %arg3[%c4] : memref<72xf32, #tpu.memory_space<smem>>
    %93 = vector.broadcast %92 : f32 to vector<9x8x2xf32>
    %94 = arith.mulf %93, %91 : vector<9x8x2xf32>
    %95 = arith.addf %67, %94 : vector<9x8x2xf32>
    %c40 = arith.constant 40 : index
    %96 = memref.load %arg3[%c40] : memref<72xf32, #tpu.memory_space<smem>>
    %97 = vector.broadcast %96 : f32 to vector<9x8x2xf32>
    %98 = arith.mulf %97, %91 : vector<9x8x2xf32>
    %99 = arith.addf %71, %98 : vector<9x8x2xf32>
    %c0_40 = arith.constant 0 : index
    %100 = memref.load %arg3[%c0_40] : memref<72xf32, #tpu.memory_space<smem>>
    %101 = vector.broadcast %100 : f32 to vector<9x8x2xf32>
    %102 = arith.mulf %101, %91 : vector<9x8x2xf32>
    %103 = arith.addf %5, %102 : vector<9x8x2xf32>
    %c36_41 = arith.constant 36 : index
    %104 = memref.load %arg3[%c36_41] : memref<72xf32, #tpu.memory_space<smem>>
    %105 = vector.broadcast %104 : f32 to vector<9x8x2xf32>
    %106 = arith.mulf %105, %91 : vector<9x8x2xf32>
    %107 = arith.addf %13, %106 : vector<9x8x2xf32>
    %c3_42 = arith.constant 3 : index
    %c0_43 = arith.constant 0 : index
    %c0_44 = arith.constant 0 : index
    %c0_45 = arith.constant 0 : index
    %108 = vector.load %arg1[%c3_42, %c0_43, %c0_44, %c0_45] : memref<12x10x10x2xf32, #tpu.memory_space<vmem>>, vector<1x9x8x2xf32>
    %109 = vector.shape_cast %108 : vector<1x9x8x2xf32> to vector<9x8x2xf32>
    %c5 = arith.constant 5 : index
    %110 = memref.load %arg3[%c5] : memref<72xf32, #tpu.memory_space<smem>>
    %111 = vector.broadcast %110 : f32 to vector<9x8x2xf32>
    %112 = arith.mulf %111, %109 : vector<9x8x2xf32>
    %113 = arith.addf %95, %112 : vector<9x8x2xf32>
    %c41 = arith.constant 41 : index
    %114 = memref.load %arg3[%c41] : memref<72xf32, #tpu.memory_space<smem>>
    %115 = vector.broadcast %114 : f32 to vector<9x8x2xf32>
    %116 = arith.mulf %115, %109 : vector<9x8x2xf32>
    %117 = arith.addf %99, %116 : vector<9x8x2xf32>
    %c4_46 = arith.constant 4 : index
    %118 = memref.load %arg3[%c4_46] : memref<72xf32, #tpu.memory_space<smem>>
    %119 = vector.broadcast %118 : f32 to vector<9x8x2xf32>
    %120 = arith.mulf %119, %109 : vector<9x8x2xf32>
    %121 = arith.addf %85, %120 : vector<9x8x2xf32>
    %c40_47 = arith.constant 40 : index
    %122 = memref.load %arg3[%c40_47] : memref<72xf32, #tpu.memory_space<smem>>
    %123 = vector.broadcast %122 : f32 to vector<9x8x2xf32>
    %124 = arith.mulf %123, %109 : vector<9x8x2xf32>
    %125 = arith.addf %89, %124 : vector<9x8x2xf32>
    %c1_48 = arith.constant 1 : index
    %126 = memref.load %arg3[%c1_48] : memref<72xf32, #tpu.memory_space<smem>>
    %127 = vector.broadcast %126 : f32 to vector<9x8x2xf32>
    %128 = arith.mulf %127, %109 : vector<9x8x2xf32>
    %129 = arith.addf %103, %128 : vector<9x8x2xf32>
    %c37_49 = arith.constant 37 : index
    %130 = memref.load %arg3[%c37_49] : memref<72xf32, #tpu.memory_space<smem>>
    %131 = vector.broadcast %130 : f32 to vector<9x8x2xf32>
    %132 = arith.mulf %131, %109 : vector<9x8x2xf32>
    %133 = arith.addf %107, %132 : vector<9x8x2xf32>
    %c0_50 = arith.constant 0 : index
    %134 = memref.load %arg3[%c0_50] : memref<72xf32, #tpu.memory_space<smem>>
    %135 = vector.broadcast %134 : f32 to vector<9x8x2xf32>
    %136 = arith.mulf %135, %109 : vector<9x8x2xf32>
    %137 = arith.addf %7, %136 : vector<9x8x2xf32>
    %c36_51 = arith.constant 36 : index
    %138 = memref.load %arg3[%c36_51] : memref<72xf32, #tpu.memory_space<smem>>
    %139 = vector.broadcast %138 : f32 to vector<9x8x2xf32>
    %140 = arith.mulf %139, %109 : vector<9x8x2xf32>
    %141 = arith.addf %15, %140 : vector<9x8x2xf32>
    %c2_52 = arith.constant 2 : index
    %c0_53 = arith.constant 0 : index
    %c1_54 = arith.constant 1 : index
    %c0_55 = arith.constant 0 : index
    %142 = vector.load %arg1[%c2_52, %c0_53, %c1_54, %c0_55] : memref<12x10x10x2xf32, #tpu.memory_space<vmem>>, vector<1x9x8x2xf32>
    %143 = vector.shape_cast %142 : vector<1x9x8x2xf32> to vector<9x8x2xf32>
    %c6 = arith.constant 6 : index
    %144 = memref.load %arg3[%c6] : memref<72xf32, #tpu.memory_space<smem>>
    %145 = vector.broadcast %144 : f32 to vector<9x8x2xf32>
    %146 = arith.mulf %145, %143 : vector<9x8x2xf32>
    %147 = arith.addf %113, %146 : vector<9x8x2xf32>
    %c42 = arith.constant 42 : index
    %148 = memref.load %arg3[%c42] : memref<72xf32, #tpu.memory_space<smem>>
    %149 = vector.broadcast %148 : f32 to vector<9x8x2xf32>
    %150 = arith.mulf %149, %143 : vector<9x8x2xf32>
    %151 = arith.addf %117, %150 : vector<9x8x2xf32>
    %c5_56 = arith.constant 5 : index
    %152 = memref.load %arg3[%c5_56] : memref<72xf32, #tpu.memory_space<smem>>
    %153 = vector.broadcast %152 : f32 to vector<9x8x2xf32>
    %154 = arith.mulf %153, %143 : vector<9x8x2xf32>
    %155 = arith.addf %121, %154 : vector<9x8x2xf32>
    %c41_57 = arith.constant 41 : index
    %156 = memref.load %arg3[%c41_57] : memref<72xf32, #tpu.memory_space<smem>>
    %157 = vector.broadcast %156 : f32 to vector<9x8x2xf32>
    %158 = arith.mulf %157, %143 : vector<9x8x2xf32>
    %159 = arith.addf %125, %158 : vector<9x8x2xf32>
    %c2_58 = arith.constant 2 : index
    %160 = memref.load %arg3[%c2_58] : memref<72xf32, #tpu.memory_space<smem>>
    %161 = vector.broadcast %160 : f32 to vector<9x8x2xf32>
    %162 = arith.mulf %161, %143 : vector<9x8x2xf32>
    %163 = arith.addf %129, %162 : vector<9x8x2xf32>
    %c38_59 = arith.constant 38 : index
    %164 = memref.load %arg3[%c38_59] : memref<72xf32, #tpu.memory_space<smem>>
    %165 = vector.broadcast %164 : f32 to vector<9x8x2xf32>
    %166 = arith.mulf %165, %143 : vector<9x8x2xf32>
    %167 = arith.addf %133, %166 : vector<9x8x2xf32>
    %c1_60 = arith.constant 1 : index
    %168 = memref.load %arg3[%c1_60] : memref<72xf32, #tpu.memory_space<smem>>
    %169 = vector.broadcast %168 : f32 to vector<9x8x2xf32>
    %170 = arith.mulf %169, %143 : vector<9x8x2xf32>
    %171 = arith.addf %137, %170 : vector<9x8x2xf32>
    %c37_61 = arith.constant 37 : index
    %172 = memref.load %arg3[%c37_61] : memref<72xf32, #tpu.memory_space<smem>>
    %173 = vector.broadcast %172 : f32 to vector<9x8x2xf32>
    %174 = arith.mulf %173, %143 : vector<9x8x2xf32>
    %175 = arith.addf %141, %174 : vector<9x8x2xf32>
    %c3_62 = arith.constant 3 : index
    %c0_63 = arith.constant 0 : index
    %c1_64 = arith.constant 1 : index
    %c0_65 = arith.constant 0 : index
    %176 = vector.load %arg1[%c3_62, %c0_63, %c1_64, %c0_65] : memref<12x10x10x2xf32, #tpu.memory_space<vmem>>, vector<1x9x8x2xf32>
    %177 = vector.shape_cast %176 : vector<1x9x8x2xf32> to vector<9x8x2xf32>
    %c7 = arith.constant 7 : index
    %178 = memref.load %arg3[%c7] : memref<72xf32, #tpu.memory_space<smem>>
    %179 = vector.broadcast %178 : f32 to vector<9x8x2xf32>
    %180 = arith.mulf %179, %177 : vector<9x8x2xf32>
    %181 = arith.addf %147, %180 : vector<9x8x2xf32>
    %c43 = arith.constant 43 : index
    %182 = memref.load %arg3[%c43] : memref<72xf32, #tpu.memory_space<smem>>
    %183 = vector.broadcast %182 : f32 to vector<9x8x2xf32>
    %184 = arith.mulf %183, %177 : vector<9x8x2xf32>
    %185 = arith.addf %151, %184 : vector<9x8x2xf32>
    %c6_66 = arith.constant 6 : index
    %186 = memref.load %arg3[%c6_66] : memref<72xf32, #tpu.memory_space<smem>>
    %187 = vector.broadcast %186 : f32 to vector<9x8x2xf32>
    %188 = arith.mulf %187, %177 : vector<9x8x2xf32>
    %189 = arith.addf %155, %188 : vector<9x8x2xf32>
    %c42_67 = arith.constant 42 : index
    %190 = memref.load %arg3[%c42_67] : memref<72xf32, #tpu.memory_space<smem>>
    %191 = vector.broadcast %190 : f32 to vector<9x8x2xf32>
    %192 = arith.mulf %191, %177 : vector<9x8x2xf32>
    %193 = arith.addf %159, %192 : vector<9x8x2xf32>
    %c3_68 = arith.constant 3 : index
    %194 = memref.load %arg3[%c3_68] : memref<72xf32, #tpu.memory_space<smem>>
    %195 = vector.broadcast %194 : f32 to vector<9x8x2xf32>
    %196 = arith.mulf %195, %177 : vector<9x8x2xf32>
    %197 = arith.addf %163, %196 : vector<9x8x2xf32>
    %c39_69 = arith.constant 39 : index
    %198 = memref.load %arg3[%c39_69] : memref<72xf32, #tpu.memory_space<smem>>
    %199 = vector.broadcast %198 : f32 to vector<9x8x2xf32>
    %200 = arith.mulf %199, %177 : vector<9x8x2xf32>
    %201 = arith.addf %167, %200 : vector<9x8x2xf32>
    %c2_70 = arith.constant 2 : index
    %202 = memref.load %arg3[%c2_70] : memref<72xf32, #tpu.memory_space<smem>>
    %203 = vector.broadcast %202 : f32 to vector<9x8x2xf32>
    %204 = arith.mulf %203, %177 : vector<9x8x2xf32>
    %205 = arith.addf %171, %204 : vector<9x8x2xf32>
    %c38_71 = arith.constant 38 : index
    %206 = memref.load %arg3[%c38_71] : memref<72xf32, #tpu.memory_space<smem>>
    %207 = vector.broadcast %206 : f32 to vector<9x8x2xf32>
    %208 = arith.mulf %207, %177 : vector<9x8x2xf32>
    %209 = arith.addf %175, %208 : vector<9x8x2xf32>
    %c2_72 = arith.constant 2 : index
    %c0_73 = arith.constant 0 : index
    %c2_74 = arith.constant 2 : index
    %c0_75 = arith.constant 0 : index
    %210 = vector.load %arg1[%c2_72, %c0_73, %c2_74, %c0_75] : memref<12x10x10x2xf32, #tpu.memory_space<vmem>>, vector<1x9x8x2xf32>
    %211 = vector.shape_cast %210 : vector<1x9x8x2xf32> to vector<9x8x2xf32>
    %c7_76 = arith.constant 7 : index
    %212 = memref.load %arg3[%c7_76] : memref<72xf32, #tpu.memory_space<smem>>
    %213 = vector.broadcast %212 : f32 to vector<9x8x2xf32>
    %214 = arith.mulf %213, %211 : vector<9x8x2xf32>
    %215 = arith.addf %189, %214 : vector<9x8x2xf32>
    %c43_77 = arith.constant 43 : index
    %216 = memref.load %arg3[%c43_77] : memref<72xf32, #tpu.memory_space<smem>>
    %217 = vector.broadcast %216 : f32 to vector<9x8x2xf32>
    %218 = arith.mulf %217, %211 : vector<9x8x2xf32>
    %219 = arith.addf %193, %218 : vector<9x8x2xf32>
    %c3_78 = arith.constant 3 : index
    %220 = memref.load %arg3[%c3_78] : memref<72xf32, #tpu.memory_space<smem>>
    %221 = vector.broadcast %220 : f32 to vector<9x8x2xf32>
    %222 = arith.mulf %221, %211 : vector<9x8x2xf32>
    %223 = arith.addf %205, %222 : vector<9x8x2xf32>
    %c39_79 = arith.constant 39 : index
    %224 = memref.load %arg3[%c39_79] : memref<72xf32, #tpu.memory_space<smem>>
    %225 = vector.broadcast %224 : f32 to vector<9x8x2xf32>
    %226 = arith.mulf %225, %211 : vector<9x8x2xf32>
    %227 = arith.addf %209, %226 : vector<9x8x2xf32>
    %c0_80 = arith.constant 0 : index
    %c1_81 = arith.constant 1 : index
    %c0_82 = arith.constant 0 : index
    %c0_83 = arith.constant 0 : index
    %228 = vector.load %arg1[%c0_80, %c1_81, %c0_82, %c0_83] : memref<12x10x10x2xf32, #tpu.memory_space<vmem>>, vector<1x9x8x2xf32>
    %229 = vector.shape_cast %228 : vector<1x9x8x2xf32> to vector<9x8x2xf32>
    %c8 = arith.constant 8 : index
    %230 = memref.load %arg3[%c8] : memref<72xf32, #tpu.memory_space<smem>>
    %231 = vector.broadcast %230 : f32 to vector<9x8x2xf32>
    %232 = arith.mulf %231, %229 : vector<9x8x2xf32>
    %233 = arith.addf %181, %232 : vector<9x8x2xf32>
    %c44 = arith.constant 44 : index
    %234 = memref.load %arg3[%c44] : memref<72xf32, #tpu.memory_space<smem>>
    %235 = vector.broadcast %234 : f32 to vector<9x8x2xf32>
    %236 = arith.mulf %235, %229 : vector<9x8x2xf32>
    %237 = arith.addf %185, %236 : vector<9x8x2xf32>
    %c4_84 = arith.constant 4 : index
    %238 = memref.load %arg3[%c4_84] : memref<72xf32, #tpu.memory_space<smem>>
    %239 = vector.broadcast %238 : f32 to vector<9x8x2xf32>
    %240 = arith.mulf %239, %229 : vector<9x8x2xf32>
    %241 = arith.addf %197, %240 : vector<9x8x2xf32>
    %c40_85 = arith.constant 40 : index
    %242 = memref.load %arg3[%c40_85] : memref<72xf32, #tpu.memory_space<smem>>
    %243 = vector.broadcast %242 : f32 to vector<9x8x2xf32>
    %244 = arith.mulf %243, %229 : vector<9x8x2xf32>
    %245 = arith.addf %201, %244 : vector<9x8x2xf32>
    %c1_86 = arith.constant 1 : index
    %c1_87 = arith.constant 1 : index
    %c0_88 = arith.constant 0 : index
    %c0_89 = arith.constant 0 : index
    %246 = vector.load %arg1[%c1_86, %c1_87, %c0_88, %c0_89] : memref<12x10x10x2xf32, #tpu.memory_space<vmem>>, vector<1x9x8x2xf32>
    %247 = vector.shape_cast %246 : vector<1x9x8x2xf32> to vector<9x8x2xf32>
    %c9 = arith.constant 9 : index
    %248 = memref.load %arg3[%c9] : memref<72xf32, #tpu.memory_space<smem>>
    %249 = vector.broadcast %248 : f32 to vector<9x8x2xf32>
    %250 = arith.mulf %249, %247 : vector<9x8x2xf32>
    %251 = arith.addf %233, %250 : vector<9x8x2xf32>
    %c45 = arith.constant 45 : index
    %252 = memref.load %arg3[%c45] : memref<72xf32, #tpu.memory_space<smem>>
    %253 = vector.broadcast %252 : f32 to vector<9x8x2xf32>
    %254 = arith.mulf %253, %247 : vector<9x8x2xf32>
    %255 = arith.addf %237, %254 : vector<9x8x2xf32>
    %c8_90 = arith.constant 8 : index
    %256 = memref.load %arg3[%c8_90] : memref<72xf32, #tpu.memory_space<smem>>
    %257 = vector.broadcast %256 : f32 to vector<9x8x2xf32>
    %258 = arith.mulf %257, %247 : vector<9x8x2xf32>
    %259 = arith.addf %215, %258 : vector<9x8x2xf32>
    %c44_91 = arith.constant 44 : index
    %260 = memref.load %arg3[%c44_91] : memref<72xf32, #tpu.memory_space<smem>>
    %261 = vector.broadcast %260 : f32 to vector<9x8x2xf32>
    %262 = arith.mulf %261, %247 : vector<9x8x2xf32>
    %263 = arith.addf %219, %262 : vector<9x8x2xf32>
    %c5_92 = arith.constant 5 : index
    %264 = memref.load %arg3[%c5_92] : memref<72xf32, #tpu.memory_space<smem>>
    %265 = vector.broadcast %264 : f32 to vector<9x8x2xf32>
    %266 = arith.mulf %265, %247 : vector<9x8x2xf32>
    %267 = arith.addf %241, %266 : vector<9x8x2xf32>
    %c41_93 = arith.constant 41 : index
    %268 = memref.load %arg3[%c41_93] : memref<72xf32, #tpu.memory_space<smem>>
    %269 = vector.broadcast %268 : f32 to vector<9x8x2xf32>
    %270 = arith.mulf %269, %247 : vector<9x8x2xf32>
    %271 = arith.addf %245, %270 : vector<9x8x2xf32>
    %c4_94 = arith.constant 4 : index
    %272 = memref.load %arg3[%c4_94] : memref<72xf32, #tpu.memory_space<smem>>
    %273 = vector.broadcast %272 : f32 to vector<9x8x2xf32>
    %274 = arith.mulf %273, %247 : vector<9x8x2xf32>
    %275 = arith.addf %223, %274 : vector<9x8x2xf32>
    %c40_95 = arith.constant 40 : index
    %276 = memref.load %arg3[%c40_95] : memref<72xf32, #tpu.memory_space<smem>>
    %277 = vector.broadcast %276 : f32 to vector<9x8x2xf32>
    %278 = arith.mulf %277, %247 : vector<9x8x2xf32>
    %279 = arith.addf %227, %278 : vector<9x8x2xf32>
    %c0_96 = arith.constant 0 : index
    %c1_97 = arith.constant 1 : index
    %c1_98 = arith.constant 1 : index
    %c0_99 = arith.constant 0 : index
    %280 = vector.load %arg1[%c0_96, %c1_97, %c1_98, %c0_99] : memref<12x10x10x2xf32, #tpu.memory_space<vmem>>, vector<1x9x8x2xf32>
    %281 = vector.shape_cast %280 : vector<1x9x8x2xf32> to vector<9x8x2xf32>
    %c10 = arith.constant 10 : index
    %282 = memref.load %arg3[%c10] : memref<72xf32, #tpu.memory_space<smem>>
    %283 = vector.broadcast %282 : f32 to vector<9x8x2xf32>
    %284 = arith.mulf %283, %281 : vector<9x8x2xf32>
    %285 = arith.addf %251, %284 : vector<9x8x2xf32>
    %c46 = arith.constant 46 : index
    %286 = memref.load %arg3[%c46] : memref<72xf32, #tpu.memory_space<smem>>
    %287 = vector.broadcast %286 : f32 to vector<9x8x2xf32>
    %288 = arith.mulf %287, %281 : vector<9x8x2xf32>
    %289 = arith.addf %255, %288 : vector<9x8x2xf32>
    %c9_100 = arith.constant 9 : index
    %290 = memref.load %arg3[%c9_100] : memref<72xf32, #tpu.memory_space<smem>>
    %291 = vector.broadcast %290 : f32 to vector<9x8x2xf32>
    %292 = arith.mulf %291, %281 : vector<9x8x2xf32>
    %293 = arith.addf %259, %292 : vector<9x8x2xf32>
    %c45_101 = arith.constant 45 : index
    %294 = memref.load %arg3[%c45_101] : memref<72xf32, #tpu.memory_space<smem>>
    %295 = vector.broadcast %294 : f32 to vector<9x8x2xf32>
    %296 = arith.mulf %295, %281 : vector<9x8x2xf32>
    %297 = arith.addf %263, %296 : vector<9x8x2xf32>
    %c6_102 = arith.constant 6 : index
    %298 = memref.load %arg3[%c6_102] : memref<72xf32, #tpu.memory_space<smem>>
    %299 = vector.broadcast %298 : f32 to vector<9x8x2xf32>
    %300 = arith.mulf %299, %281 : vector<9x8x2xf32>
    %301 = arith.addf %267, %300 : vector<9x8x2xf32>
    %c42_103 = arith.constant 42 : index
    %302 = memref.load %arg3[%c42_103] : memref<72xf32, #tpu.memory_space<smem>>
    %303 = vector.broadcast %302 : f32 to vector<9x8x2xf32>
    %304 = arith.mulf %303, %281 : vector<9x8x2xf32>
    %305 = arith.addf %271, %304 : vector<9x8x2xf32>
    %c5_104 = arith.constant 5 : index
    %306 = memref.load %arg3[%c5_104] : memref<72xf32, #tpu.memory_space<smem>>
    %307 = vector.broadcast %306 : f32 to vector<9x8x2xf32>
    %308 = arith.mulf %307, %281 : vector<9x8x2xf32>
    %309 = arith.addf %275, %308 : vector<9x8x2xf32>
    %c41_105 = arith.constant 41 : index
    %310 = memref.load %arg3[%c41_105] : memref<72xf32, #tpu.memory_space<smem>>
    %311 = vector.broadcast %310 : f32 to vector<9x8x2xf32>
    %312 = arith.mulf %311, %281 : vector<9x8x2xf32>
    %313 = arith.addf %279, %312 : vector<9x8x2xf32>
    %c1_106 = arith.constant 1 : index
    %c1_107 = arith.constant 1 : index
    %c1_108 = arith.constant 1 : index
    %c0_109 = arith.constant 0 : index
    %314 = vector.load %arg1[%c1_106, %c1_107, %c1_108, %c0_109] : memref<12x10x10x2xf32, #tpu.memory_space<vmem>>, vector<1x9x8x2xf32>
    %315 = vector.shape_cast %314 : vector<1x9x8x2xf32> to vector<9x8x2xf32>
    %c11 = arith.constant 11 : index
    %316 = memref.load %arg3[%c11] : memref<72xf32, #tpu.memory_space<smem>>
    %317 = vector.broadcast %316 : f32 to vector<9x8x2xf32>
    %318 = arith.mulf %317, %315 : vector<9x8x2xf32>
    %319 = arith.addf %285, %318 : vector<9x8x2xf32>
    %c47 = arith.constant 47 : index
    %320 = memref.load %arg3[%c47] : memref<72xf32, #tpu.memory_space<smem>>
    %321 = vector.broadcast %320 : f32 to vector<9x8x2xf32>
    %322 = arith.mulf %321, %315 : vector<9x8x2xf32>
    %323 = arith.addf %289, %322 : vector<9x8x2xf32>
    %c10_110 = arith.constant 10 : index
    %324 = memref.load %arg3[%c10_110] : memref<72xf32, #tpu.memory_space<smem>>
    %325 = vector.broadcast %324 : f32 to vector<9x8x2xf32>
    %326 = arith.mulf %325, %315 : vector<9x8x2xf32>
    %327 = arith.addf %293, %326 : vector<9x8x2xf32>
    %c46_111 = arith.constant 46 : index
    %328 = memref.load %arg3[%c46_111] : memref<72xf32, #tpu.memory_space<smem>>
    %329 = vector.broadcast %328 : f32 to vector<9x8x2xf32>
    %330 = arith.mulf %329, %315 : vector<9x8x2xf32>
    %331 = arith.addf %297, %330 : vector<9x8x2xf32>
    %c7_112 = arith.constant 7 : index
    %332 = memref.load %arg3[%c7_112] : memref<72xf32, #tpu.memory_space<smem>>
    %333 = vector.broadcast %332 : f32 to vector<9x8x2xf32>
    %334 = arith.mulf %333, %315 : vector<9x8x2xf32>
    %335 = arith.addf %301, %334 : vector<9x8x2xf32>
    %c43_113 = arith.constant 43 : index
    %336 = memref.load %arg3[%c43_113] : memref<72xf32, #tpu.memory_space<smem>>
    %337 = vector.broadcast %336 : f32 to vector<9x8x2xf32>
    %338 = arith.mulf %337, %315 : vector<9x8x2xf32>
    %339 = arith.addf %305, %338 : vector<9x8x2xf32>
    %c6_114 = arith.constant 6 : index
    %340 = memref.load %arg3[%c6_114] : memref<72xf32, #tpu.memory_space<smem>>
    %341 = vector.broadcast %340 : f32 to vector<9x8x2xf32>
    %342 = arith.mulf %341, %315 : vector<9x8x2xf32>
    %343 = arith.addf %309, %342 : vector<9x8x2xf32>
    %c42_115 = arith.constant 42 : index
    %344 = memref.load %arg3[%c42_115] : memref<72xf32, #tpu.memory_space<smem>>
    %345 = vector.broadcast %344 : f32 to vector<9x8x2xf32>
    %346 = arith.mulf %345, %315 : vector<9x8x2xf32>
    %347 = arith.addf %313, %346 : vector<9x8x2xf32>
    %c0_116 = arith.constant 0 : index
    %c1_117 = arith.constant 1 : index
    %c2_118 = arith.constant 2 : index
    %c0_119 = arith.constant 0 : index
    %348 = vector.load %arg1[%c0_116, %c1_117, %c2_118, %c0_119] : memref<12x10x10x2xf32, #tpu.memory_space<vmem>>, vector<1x9x8x2xf32>
    %349 = vector.shape_cast %348 : vector<1x9x8x2xf32> to vector<9x8x2xf32>
    %c11_120 = arith.constant 11 : index
    %350 = memref.load %arg3[%c11_120] : memref<72xf32, #tpu.memory_space<smem>>
    %351 = vector.broadcast %350 : f32 to vector<9x8x2xf32>
    %352 = arith.mulf %351, %349 : vector<9x8x2xf32>
    %353 = arith.addf %327, %352 : vector<9x8x2xf32>
    %c47_121 = arith.constant 47 : index
    %354 = memref.load %arg3[%c47_121] : memref<72xf32, #tpu.memory_space<smem>>
    %355 = vector.broadcast %354 : f32 to vector<9x8x2xf32>
    %356 = arith.mulf %355, %349 : vector<9x8x2xf32>
    %357 = arith.addf %331, %356 : vector<9x8x2xf32>
    %c7_122 = arith.constant 7 : index
    %358 = memref.load %arg3[%c7_122] : memref<72xf32, #tpu.memory_space<smem>>
    %359 = vector.broadcast %358 : f32 to vector<9x8x2xf32>
    %360 = arith.mulf %359, %349 : vector<9x8x2xf32>
    %361 = arith.addf %343, %360 : vector<9x8x2xf32>
    %c43_123 = arith.constant 43 : index
    %362 = memref.load %arg3[%c43_123] : memref<72xf32, #tpu.memory_space<smem>>
    %363 = vector.broadcast %362 : f32 to vector<9x8x2xf32>
    %364 = arith.mulf %363, %349 : vector<9x8x2xf32>
    %365 = arith.addf %347, %364 : vector<9x8x2xf32>
    %c2_124 = arith.constant 2 : index
    %c1_125 = arith.constant 1 : index
    %c0_126 = arith.constant 0 : index
    %c0_127 = arith.constant 0 : index
    %366 = vector.load %arg1[%c2_124, %c1_125, %c0_126, %c0_127] : memref<12x10x10x2xf32, #tpu.memory_space<vmem>>, vector<1x9x8x2xf32>
    %367 = vector.shape_cast %366 : vector<1x9x8x2xf32> to vector<9x8x2xf32>
    %c8_128 = arith.constant 8 : index
    %368 = memref.load %arg3[%c8_128] : memref<72xf32, #tpu.memory_space<smem>>
    %369 = vector.broadcast %368 : f32 to vector<9x8x2xf32>
    %370 = arith.mulf %369, %367 : vector<9x8x2xf32>
    %371 = arith.addf %335, %370 : vector<9x8x2xf32>
    %c44_129 = arith.constant 44 : index
    %372 = memref.load %arg3[%c44_129] : memref<72xf32, #tpu.memory_space<smem>>
    %373 = vector.broadcast %372 : f32 to vector<9x8x2xf32>
    %374 = arith.mulf %373, %367 : vector<9x8x2xf32>
    %375 = arith.addf %339, %374 : vector<9x8x2xf32>
    %c3_130 = arith.constant 3 : index
    %c1_131 = arith.constant 1 : index
    %c0_132 = arith.constant 0 : index
    %c0_133 = arith.constant 0 : index
    %376 = vector.load %arg1[%c3_130, %c1_131, %c0_132, %c0_133] : memref<12x10x10x2xf32, #tpu.memory_space<vmem>>, vector<1x9x8x2xf32>
    %377 = vector.shape_cast %376 : vector<1x9x8x2xf32> to vector<9x8x2xf32>
    %c9_134 = arith.constant 9 : index
    %378 = memref.load %arg3[%c9_134] : memref<72xf32, #tpu.memory_space<smem>>
    %379 = vector.broadcast %378 : f32 to vector<9x8x2xf32>
    %380 = arith.mulf %379, %377 : vector<9x8x2xf32>
    %381 = arith.addf %371, %380 : vector<9x8x2xf32>
    %c45_135 = arith.constant 45 : index
    %382 = memref.load %arg3[%c45_135] : memref<72xf32, #tpu.memory_space<smem>>
    %383 = vector.broadcast %382 : f32 to vector<9x8x2xf32>
    %384 = arith.mulf %383, %377 : vector<9x8x2xf32>
    %385 = arith.addf %375, %384 : vector<9x8x2xf32>
    %c8_136 = arith.constant 8 : index
    %386 = memref.load %arg3[%c8_136] : memref<72xf32, #tpu.memory_space<smem>>
    %387 = vector.broadcast %386 : f32 to vector<9x8x2xf32>
    %388 = arith.mulf %387, %377 : vector<9x8x2xf32>
    %389 = arith.addf %361, %388 : vector<9x8x2xf32>
    %c44_137 = arith.constant 44 : index
    %390 = memref.load %arg3[%c44_137] : memref<72xf32, #tpu.memory_space<smem>>
    %391 = vector.broadcast %390 : f32 to vector<9x8x2xf32>
    %392 = arith.mulf %391, %377 : vector<9x8x2xf32>
    %393 = arith.addf %365, %392 : vector<9x8x2xf32>
    %c2_138 = arith.constant 2 : index
    %c1_139 = arith.constant 1 : index
    %c1_140 = arith.constant 1 : index
    %c0_141 = arith.constant 0 : index
    %394 = vector.load %arg1[%c2_138, %c1_139, %c1_140, %c0_141] : memref<12x10x10x2xf32, #tpu.memory_space<vmem>>, vector<1x9x8x2xf32>
    %395 = vector.shape_cast %394 : vector<1x9x8x2xf32> to vector<9x8x2xf32>
    %c10_142 = arith.constant 10 : index
    %396 = memref.load %arg3[%c10_142] : memref<72xf32, #tpu.memory_space<smem>>
    %397 = vector.broadcast %396 : f32 to vector<9x8x2xf32>
    %398 = arith.mulf %397, %395 : vector<9x8x2xf32>
    %399 = arith.addf %381, %398 : vector<9x8x2xf32>
    %c46_143 = arith.constant 46 : index
    %400 = memref.load %arg3[%c46_143] : memref<72xf32, #tpu.memory_space<smem>>
    %401 = vector.broadcast %400 : f32 to vector<9x8x2xf32>
    %402 = arith.mulf %401, %395 : vector<9x8x2xf32>
    %403 = arith.addf %385, %402 : vector<9x8x2xf32>
    %c9_144 = arith.constant 9 : index
    %404 = memref.load %arg3[%c9_144] : memref<72xf32, #tpu.memory_space<smem>>
    %405 = vector.broadcast %404 : f32 to vector<9x8x2xf32>
    %406 = arith.mulf %405, %395 : vector<9x8x2xf32>
    %407 = arith.addf %389, %406 : vector<9x8x2xf32>
    %c45_145 = arith.constant 45 : index
    %408 = memref.load %arg3[%c45_145] : memref<72xf32, #tpu.memory_space<smem>>
    %409 = vector.broadcast %408 : f32 to vector<9x8x2xf32>
    %410 = arith.mulf %409, %395 : vector<9x8x2xf32>
    %411 = arith.addf %393, %410 : vector<9x8x2xf32>
    %c3_146 = arith.constant 3 : index
    %c1_147 = arith.constant 1 : index
    %c1_148 = arith.constant 1 : index
    %c0_149 = arith.constant 0 : index
    %412 = vector.load %arg1[%c3_146, %c1_147, %c1_148, %c0_149] : memref<12x10x10x2xf32, #tpu.memory_space<vmem>>, vector<1x9x8x2xf32>
    %413 = vector.shape_cast %412 : vector<1x9x8x2xf32> to vector<9x8x2xf32>
    %c11_150 = arith.constant 11 : index
    %414 = memref.load %arg3[%c11_150] : memref<72xf32, #tpu.memory_space<smem>>
    %415 = vector.broadcast %414 : f32 to vector<9x8x2xf32>
    %416 = arith.mulf %415, %413 : vector<9x8x2xf32>
    %417 = arith.addf %399, %416 : vector<9x8x2xf32>
    %c47_151 = arith.constant 47 : index
    %418 = memref.load %arg3[%c47_151] : memref<72xf32, #tpu.memory_space<smem>>
    %419 = vector.broadcast %418 : f32 to vector<9x8x2xf32>
    %420 = arith.mulf %419, %413 : vector<9x8x2xf32>
    %421 = arith.addf %403, %420 : vector<9x8x2xf32>
    %c10_152 = arith.constant 10 : index
    %422 = memref.load %arg3[%c10_152] : memref<72xf32, #tpu.memory_space<smem>>
    %423 = vector.broadcast %422 : f32 to vector<9x8x2xf32>
    %424 = arith.mulf %423, %413 : vector<9x8x2xf32>
    %425 = arith.addf %407, %424 : vector<9x8x2xf32>
    %c46_153 = arith.constant 46 : index
    %426 = memref.load %arg3[%c46_153] : memref<72xf32, #tpu.memory_space<smem>>
    %427 = vector.broadcast %426 : f32 to vector<9x8x2xf32>
    %428 = arith.mulf %427, %413 : vector<9x8x2xf32>
    %429 = arith.addf %411, %428 : vector<9x8x2xf32>
    %c2_154 = arith.constant 2 : index
    %c1_155 = arith.constant 1 : index
    %c2_156 = arith.constant 2 : index
    %c0_157 = arith.constant 0 : index
    %430 = vector.load %arg1[%c2_154, %c1_155, %c2_156, %c0_157] : memref<12x10x10x2xf32, #tpu.memory_space<vmem>>, vector<1x9x8x2xf32>
    %431 = vector.shape_cast %430 : vector<1x9x8x2xf32> to vector<9x8x2xf32>
    %c11_158 = arith.constant 11 : index
    %432 = memref.load %arg3[%c11_158] : memref<72xf32, #tpu.memory_space<smem>>
    %433 = vector.broadcast %432 : f32 to vector<9x8x2xf32>
    %434 = arith.mulf %433, %431 : vector<9x8x2xf32>
    %435 = arith.addf %425, %434 : vector<9x8x2xf32>
    %c47_159 = arith.constant 47 : index
    %436 = memref.load %arg3[%c47_159] : memref<72xf32, #tpu.memory_space<smem>>
    %437 = vector.broadcast %436 : f32 to vector<9x8x2xf32>
    %438 = arith.mulf %437, %431 : vector<9x8x2xf32>
    %439 = arith.addf %429, %438 : vector<9x8x2xf32>
    %c4_160 = arith.constant 4 : index
    %c0_161 = arith.constant 0 : index
    %c0_162 = arith.constant 0 : index
    %c0_163 = arith.constant 0 : index
    %440 = vector.load %arg1[%c4_160, %c0_161, %c0_162, %c0_163] : memref<12x10x10x2xf32, #tpu.memory_space<vmem>>, vector<1x9x8x2xf32>
    %441 = vector.shape_cast %440 : vector<1x9x8x2xf32> to vector<9x8x2xf32>
    %c12 = arith.constant 12 : index
    %442 = memref.load %arg3[%c12] : memref<72xf32, #tpu.memory_space<smem>>
    %443 = vector.broadcast %442 : f32 to vector<9x8x2xf32>
    %444 = arith.mulf %443, %441 : vector<9x8x2xf32>
    %445 = arith.addf %319, %444 : vector<9x8x2xf32>
    %c48 = arith.constant 48 : index
    %446 = memref.load %arg3[%c48] : memref<72xf32, #tpu.memory_space<smem>>
    %447 = vector.broadcast %446 : f32 to vector<9x8x2xf32>
    %448 = arith.mulf %447, %441 : vector<9x8x2xf32>
    %449 = arith.addf %323, %448 : vector<9x8x2xf32>
    %c5_164 = arith.constant 5 : index
    %c0_165 = arith.constant 0 : index
    %c0_166 = arith.constant 0 : index
    %c0_167 = arith.constant 0 : index
    %450 = vector.load %arg1[%c5_164, %c0_165, %c0_166, %c0_167] : memref<12x10x10x2xf32, #tpu.memory_space<vmem>>, vector<1x9x8x2xf32>
    %451 = vector.shape_cast %450 : vector<1x9x8x2xf32> to vector<9x8x2xf32>
    %c13 = arith.constant 13 : index
    %452 = memref.load %arg3[%c13] : memref<72xf32, #tpu.memory_space<smem>>
    %453 = vector.broadcast %452 : f32 to vector<9x8x2xf32>
    %454 = arith.mulf %453, %451 : vector<9x8x2xf32>
    %455 = arith.addf %445, %454 : vector<9x8x2xf32>
    %c49 = arith.constant 49 : index
    %456 = memref.load %arg3[%c49] : memref<72xf32, #tpu.memory_space<smem>>
    %457 = vector.broadcast %456 : f32 to vector<9x8x2xf32>
    %458 = arith.mulf %457, %451 : vector<9x8x2xf32>
    %459 = arith.addf %449, %458 : vector<9x8x2xf32>
    %c12_168 = arith.constant 12 : index
    %460 = memref.load %arg3[%c12_168] : memref<72xf32, #tpu.memory_space<smem>>
    %461 = vector.broadcast %460 : f32 to vector<9x8x2xf32>
    %462 = arith.mulf %461, %451 : vector<9x8x2xf32>
    %463 = arith.addf %353, %462 : vector<9x8x2xf32>
    %c48_169 = arith.constant 48 : index
    %464 = memref.load %arg3[%c48_169] : memref<72xf32, #tpu.memory_space<smem>>
    %465 = vector.broadcast %464 : f32 to vector<9x8x2xf32>
    %466 = arith.mulf %465, %451 : vector<9x8x2xf32>
    %467 = arith.addf %357, %466 : vector<9x8x2xf32>
    %c4_170 = arith.constant 4 : index
    %c0_171 = arith.constant 0 : index
    %c1_172 = arith.constant 1 : index
    %c0_173 = arith.constant 0 : index
    %468 = vector.load %arg1[%c4_170, %c0_171, %c1_172, %c0_173] : memref<12x10x10x2xf32, #tpu.memory_space<vmem>>, vector<1x9x8x2xf32>
    %469 = vector.shape_cast %468 : vector<1x9x8x2xf32> to vector<9x8x2xf32>
    %c14 = arith.constant 14 : index
    %470 = memref.load %arg3[%c14] : memref<72xf32, #tpu.memory_space<smem>>
    %471 = vector.broadcast %470 : f32 to vector<9x8x2xf32>
    %472 = arith.mulf %471, %469 : vector<9x8x2xf32>
    %473 = arith.addf %455, %472 : vector<9x8x2xf32>
    %c50 = arith.constant 50 : index
    %474 = memref.load %arg3[%c50] : memref<72xf32, #tpu.memory_space<smem>>
    %475 = vector.broadcast %474 : f32 to vector<9x8x2xf32>
    %476 = arith.mulf %475, %469 : vector<9x8x2xf32>
    %477 = arith.addf %459, %476 : vector<9x8x2xf32>
    %c13_174 = arith.constant 13 : index
    %478 = memref.load %arg3[%c13_174] : memref<72xf32, #tpu.memory_space<smem>>
    %479 = vector.broadcast %478 : f32 to vector<9x8x2xf32>
    %480 = arith.mulf %479, %469 : vector<9x8x2xf32>
    %481 = arith.addf %463, %480 : vector<9x8x2xf32>
    %c49_175 = arith.constant 49 : index
    %482 = memref.load %arg3[%c49_175] : memref<72xf32, #tpu.memory_space<smem>>
    %483 = vector.broadcast %482 : f32 to vector<9x8x2xf32>
    %484 = arith.mulf %483, %469 : vector<9x8x2xf32>
    %485 = arith.addf %467, %484 : vector<9x8x2xf32>
    %c5_176 = arith.constant 5 : index
    %c0_177 = arith.constant 0 : index
    %c1_178 = arith.constant 1 : index
    %c0_179 = arith.constant 0 : index
    %486 = vector.load %arg1[%c5_176, %c0_177, %c1_178, %c0_179] : memref<12x10x10x2xf32, #tpu.memory_space<vmem>>, vector<1x9x8x2xf32>
    %487 = vector.shape_cast %486 : vector<1x9x8x2xf32> to vector<9x8x2xf32>
    %c15 = arith.constant 15 : index
    %488 = memref.load %arg3[%c15] : memref<72xf32, #tpu.memory_space<smem>>
    %489 = vector.broadcast %488 : f32 to vector<9x8x2xf32>
    %490 = arith.mulf %489, %487 : vector<9x8x2xf32>
    %491 = arith.addf %473, %490 : vector<9x8x2xf32>
    %c51 = arith.constant 51 : index
    %492 = memref.load %arg3[%c51] : memref<72xf32, #tpu.memory_space<smem>>
    %493 = vector.broadcast %492 : f32 to vector<9x8x2xf32>
    %494 = arith.mulf %493, %487 : vector<9x8x2xf32>
    %495 = arith.addf %477, %494 : vector<9x8x2xf32>
    %c14_180 = arith.constant 14 : index
    %496 = memref.load %arg3[%c14_180] : memref<72xf32, #tpu.memory_space<smem>>
    %497 = vector.broadcast %496 : f32 to vector<9x8x2xf32>
    %498 = arith.mulf %497, %487 : vector<9x8x2xf32>
    %499 = arith.addf %481, %498 : vector<9x8x2xf32>
    %c50_181 = arith.constant 50 : index
    %500 = memref.load %arg3[%c50_181] : memref<72xf32, #tpu.memory_space<smem>>
    %501 = vector.broadcast %500 : f32 to vector<9x8x2xf32>
    %502 = arith.mulf %501, %487 : vector<9x8x2xf32>
    %503 = arith.addf %485, %502 : vector<9x8x2xf32>
    %c4_182 = arith.constant 4 : index
    %c0_183 = arith.constant 0 : index
    %c2_184 = arith.constant 2 : index
    %c0_185 = arith.constant 0 : index
    %504 = vector.load %arg1[%c4_182, %c0_183, %c2_184, %c0_185] : memref<12x10x10x2xf32, #tpu.memory_space<vmem>>, vector<1x9x8x2xf32>
    %505 = vector.shape_cast %504 : vector<1x9x8x2xf32> to vector<9x8x2xf32>
    %c15_186 = arith.constant 15 : index
    %506 = memref.load %arg3[%c15_186] : memref<72xf32, #tpu.memory_space<smem>>
    %507 = vector.broadcast %506 : f32 to vector<9x8x2xf32>
    %508 = arith.mulf %507, %505 : vector<9x8x2xf32>
    %509 = arith.addf %499, %508 : vector<9x8x2xf32>
    %c51_187 = arith.constant 51 : index
    %510 = memref.load %arg3[%c51_187] : memref<72xf32, #tpu.memory_space<smem>>
    %511 = vector.broadcast %510 : f32 to vector<9x8x2xf32>
    %512 = arith.mulf %511, %505 : vector<9x8x2xf32>
    %513 = arith.addf %503, %512 : vector<9x8x2xf32>
    %c6_188 = arith.constant 6 : index
    %c0_189 = arith.constant 0 : index
    %c0_190 = arith.constant 0 : index
    %c0_191 = arith.constant 0 : index
    %514 = vector.load %arg1[%c6_188, %c0_189, %c0_190, %c0_191] : memref<12x10x10x2xf32, #tpu.memory_space<vmem>>, vector<1x9x8x2xf32>
    %515 = vector.shape_cast %514 : vector<1x9x8x2xf32> to vector<9x8x2xf32>
    %c16 = arith.constant 16 : index
    %516 = memref.load %arg3[%c16] : memref<72xf32, #tpu.memory_space<smem>>
    %517 = vector.broadcast %516 : f32 to vector<9x8x2xf32>
    %518 = arith.mulf %517, %515 : vector<9x8x2xf32>
    %519 = arith.addf %491, %518 : vector<9x8x2xf32>
    %c52 = arith.constant 52 : index
    %520 = memref.load %arg3[%c52] : memref<72xf32, #tpu.memory_space<smem>>
    %521 = vector.broadcast %520 : f32 to vector<9x8x2xf32>
    %522 = arith.mulf %521, %515 : vector<9x8x2xf32>
    %523 = arith.addf %495, %522 : vector<9x8x2xf32>
    %c12_192 = arith.constant 12 : index
    %524 = memref.load %arg3[%c12_192] : memref<72xf32, #tpu.memory_space<smem>>
    %525 = vector.broadcast %524 : f32 to vector<9x8x2xf32>
    %526 = arith.mulf %525, %515 : vector<9x8x2xf32>
    %527 = arith.addf %417, %526 : vector<9x8x2xf32>
    %c48_193 = arith.constant 48 : index
    %528 = memref.load %arg3[%c48_193] : memref<72xf32, #tpu.memory_space<smem>>
    %529 = vector.broadcast %528 : f32 to vector<9x8x2xf32>
    %530 = arith.mulf %529, %515 : vector<9x8x2xf32>
    %531 = arith.addf %421, %530 : vector<9x8x2xf32>
    %c7_194 = arith.constant 7 : index
    %c0_195 = arith.constant 0 : index
    %c0_196 = arith.constant 0 : index
    %c0_197 = arith.constant 0 : index
    %532 = vector.load %arg1[%c7_194, %c0_195, %c0_196, %c0_197] : memref<12x10x10x2xf32, #tpu.memory_space<vmem>>, vector<1x9x8x2xf32>
    %533 = vector.shape_cast %532 : vector<1x9x8x2xf32> to vector<9x8x2xf32>
    %c17 = arith.constant 17 : index
    %534 = memref.load %arg3[%c17] : memref<72xf32, #tpu.memory_space<smem>>
    %535 = vector.broadcast %534 : f32 to vector<9x8x2xf32>
    %536 = arith.mulf %535, %533 : vector<9x8x2xf32>
    %537 = arith.addf %519, %536 : vector<9x8x2xf32>
    %c53 = arith.constant 53 : index
    %538 = memref.load %arg3[%c53] : memref<72xf32, #tpu.memory_space<smem>>
    %539 = vector.broadcast %538 : f32 to vector<9x8x2xf32>
    %540 = arith.mulf %539, %533 : vector<9x8x2xf32>
    %541 = arith.addf %523, %540 : vector<9x8x2xf32>
    %c16_198 = arith.constant 16 : index
    %542 = memref.load %arg3[%c16_198] : memref<72xf32, #tpu.memory_space<smem>>
    %543 = vector.broadcast %542 : f32 to vector<9x8x2xf32>
    %544 = arith.mulf %543, %533 : vector<9x8x2xf32>
    %545 = arith.addf %509, %544 : vector<9x8x2xf32>
    %c52_199 = arith.constant 52 : index
    %546 = memref.load %arg3[%c52_199] : memref<72xf32, #tpu.memory_space<smem>>
    %547 = vector.broadcast %546 : f32 to vector<9x8x2xf32>
    %548 = arith.mulf %547, %533 : vector<9x8x2xf32>
    %549 = arith.addf %513, %548 : vector<9x8x2xf32>
    %c13_200 = arith.constant 13 : index
    %550 = memref.load %arg3[%c13_200] : memref<72xf32, #tpu.memory_space<smem>>
    %551 = vector.broadcast %550 : f32 to vector<9x8x2xf32>
    %552 = arith.mulf %551, %533 : vector<9x8x2xf32>
    %553 = arith.addf %527, %552 : vector<9x8x2xf32>
    %c49_201 = arith.constant 49 : index
    %554 = memref.load %arg3[%c49_201] : memref<72xf32, #tpu.memory_space<smem>>
    %555 = vector.broadcast %554 : f32 to vector<9x8x2xf32>
    %556 = arith.mulf %555, %533 : vector<9x8x2xf32>
    %557 = arith.addf %531, %556 : vector<9x8x2xf32>
    %c12_202 = arith.constant 12 : index
    %558 = memref.load %arg3[%c12_202] : memref<72xf32, #tpu.memory_space<smem>>
    %559 = vector.broadcast %558 : f32 to vector<9x8x2xf32>
    %560 = arith.mulf %559, %533 : vector<9x8x2xf32>
    %561 = arith.addf %435, %560 : vector<9x8x2xf32>
    %c48_203 = arith.constant 48 : index
    %562 = memref.load %arg3[%c48_203] : memref<72xf32, #tpu.memory_space<smem>>
    %563 = vector.broadcast %562 : f32 to vector<9x8x2xf32>
    %564 = arith.mulf %563, %533 : vector<9x8x2xf32>
    %565 = arith.addf %439, %564 : vector<9x8x2xf32>
    %c6_204 = arith.constant 6 : index
    %c0_205 = arith.constant 0 : index
    %c1_206 = arith.constant 1 : index
    %c0_207 = arith.constant 0 : index
    %566 = vector.load %arg1[%c6_204, %c0_205, %c1_206, %c0_207] : memref<12x10x10x2xf32, #tpu.memory_space<vmem>>, vector<1x9x8x2xf32>
    %567 = vector.shape_cast %566 : vector<1x9x8x2xf32> to vector<9x8x2xf32>
    %c18 = arith.constant 18 : index
    %568 = memref.load %arg3[%c18] : memref<72xf32, #tpu.memory_space<smem>>
    %569 = vector.broadcast %568 : f32 to vector<9x8x2xf32>
    %570 = arith.mulf %569, %567 : vector<9x8x2xf32>
    %571 = arith.addf %537, %570 : vector<9x8x2xf32>
    %c54 = arith.constant 54 : index
    %572 = memref.load %arg3[%c54] : memref<72xf32, #tpu.memory_space<smem>>
    %573 = vector.broadcast %572 : f32 to vector<9x8x2xf32>
    %574 = arith.mulf %573, %567 : vector<9x8x2xf32>
    %575 = arith.addf %541, %574 : vector<9x8x2xf32>
    %c17_208 = arith.constant 17 : index
    %576 = memref.load %arg3[%c17_208] : memref<72xf32, #tpu.memory_space<smem>>
    %577 = vector.broadcast %576 : f32 to vector<9x8x2xf32>
    %578 = arith.mulf %577, %567 : vector<9x8x2xf32>
    %579 = arith.addf %545, %578 : vector<9x8x2xf32>
    %c53_209 = arith.constant 53 : index
    %580 = memref.load %arg3[%c53_209] : memref<72xf32, #tpu.memory_space<smem>>
    %581 = vector.broadcast %580 : f32 to vector<9x8x2xf32>
    %582 = arith.mulf %581, %567 : vector<9x8x2xf32>
    %583 = arith.addf %549, %582 : vector<9x8x2xf32>
    %c14_210 = arith.constant 14 : index
    %584 = memref.load %arg3[%c14_210] : memref<72xf32, #tpu.memory_space<smem>>
    %585 = vector.broadcast %584 : f32 to vector<9x8x2xf32>
    %586 = arith.mulf %585, %567 : vector<9x8x2xf32>
    %587 = arith.addf %553, %586 : vector<9x8x2xf32>
    %c50_211 = arith.constant 50 : index
    %588 = memref.load %arg3[%c50_211] : memref<72xf32, #tpu.memory_space<smem>>
    %589 = vector.broadcast %588 : f32 to vector<9x8x2xf32>
    %590 = arith.mulf %589, %567 : vector<9x8x2xf32>
    %591 = arith.addf %557, %590 : vector<9x8x2xf32>
    %c13_212 = arith.constant 13 : index
    %592 = memref.load %arg3[%c13_212] : memref<72xf32, #tpu.memory_space<smem>>
    %593 = vector.broadcast %592 : f32 to vector<9x8x2xf32>
    %594 = arith.mulf %593, %567 : vector<9x8x2xf32>
    %595 = arith.addf %561, %594 : vector<9x8x2xf32>
    %c49_213 = arith.constant 49 : index
    %596 = memref.load %arg3[%c49_213] : memref<72xf32, #tpu.memory_space<smem>>
    %597 = vector.broadcast %596 : f32 to vector<9x8x2xf32>
    %598 = arith.mulf %597, %567 : vector<9x8x2xf32>
    %599 = arith.addf %565, %598 : vector<9x8x2xf32>
    %c7_214 = arith.constant 7 : index
    %c0_215 = arith.constant 0 : index
    %c1_216 = arith.constant 1 : index
    %c0_217 = arith.constant 0 : index
    %600 = vector.load %arg1[%c7_214, %c0_215, %c1_216, %c0_217] : memref<12x10x10x2xf32, #tpu.memory_space<vmem>>, vector<1x9x8x2xf32>
    %601 = vector.shape_cast %600 : vector<1x9x8x2xf32> to vector<9x8x2xf32>
    %c19 = arith.constant 19 : index
    %602 = memref.load %arg3[%c19] : memref<72xf32, #tpu.memory_space<smem>>
    %603 = vector.broadcast %602 : f32 to vector<9x8x2xf32>
    %604 = arith.mulf %603, %601 : vector<9x8x2xf32>
    %605 = arith.addf %571, %604 : vector<9x8x2xf32>
    %c55 = arith.constant 55 : index
    %606 = memref.load %arg3[%c55] : memref<72xf32, #tpu.memory_space<smem>>
    %607 = vector.broadcast %606 : f32 to vector<9x8x2xf32>
    %608 = arith.mulf %607, %601 : vector<9x8x2xf32>
    %609 = arith.addf %575, %608 : vector<9x8x2xf32>
    %c18_218 = arith.constant 18 : index
    %610 = memref.load %arg3[%c18_218] : memref<72xf32, #tpu.memory_space<smem>>
    %611 = vector.broadcast %610 : f32 to vector<9x8x2xf32>
    %612 = arith.mulf %611, %601 : vector<9x8x2xf32>
    %613 = arith.addf %579, %612 : vector<9x8x2xf32>
    %c54_219 = arith.constant 54 : index
    %614 = memref.load %arg3[%c54_219] : memref<72xf32, #tpu.memory_space<smem>>
    %615 = vector.broadcast %614 : f32 to vector<9x8x2xf32>
    %616 = arith.mulf %615, %601 : vector<9x8x2xf32>
    %617 = arith.addf %583, %616 : vector<9x8x2xf32>
    %c15_220 = arith.constant 15 : index
    %618 = memref.load %arg3[%c15_220] : memref<72xf32, #tpu.memory_space<smem>>
    %619 = vector.broadcast %618 : f32 to vector<9x8x2xf32>
    %620 = arith.mulf %619, %601 : vector<9x8x2xf32>
    %621 = arith.addf %587, %620 : vector<9x8x2xf32>
    %c51_221 = arith.constant 51 : index
    %622 = memref.load %arg3[%c51_221] : memref<72xf32, #tpu.memory_space<smem>>
    %623 = vector.broadcast %622 : f32 to vector<9x8x2xf32>
    %624 = arith.mulf %623, %601 : vector<9x8x2xf32>
    %625 = arith.addf %591, %624 : vector<9x8x2xf32>
    %c14_222 = arith.constant 14 : index
    %626 = memref.load %arg3[%c14_222] : memref<72xf32, #tpu.memory_space<smem>>
    %627 = vector.broadcast %626 : f32 to vector<9x8x2xf32>
    %628 = arith.mulf %627, %601 : vector<9x8x2xf32>
    %629 = arith.addf %595, %628 : vector<9x8x2xf32>
    %c50_223 = arith.constant 50 : index
    %630 = memref.load %arg3[%c50_223] : memref<72xf32, #tpu.memory_space<smem>>
    %631 = vector.broadcast %630 : f32 to vector<9x8x2xf32>
    %632 = arith.mulf %631, %601 : vector<9x8x2xf32>
    %633 = arith.addf %599, %632 : vector<9x8x2xf32>
    %c6_224 = arith.constant 6 : index
    %c0_225 = arith.constant 0 : index
    %c2_226 = arith.constant 2 : index
    %c0_227 = arith.constant 0 : index
    %634 = vector.load %arg1[%c6_224, %c0_225, %c2_226, %c0_227] : memref<12x10x10x2xf32, #tpu.memory_space<vmem>>, vector<1x9x8x2xf32>
    %635 = vector.shape_cast %634 : vector<1x9x8x2xf32> to vector<9x8x2xf32>
    %c19_228 = arith.constant 19 : index
    %636 = memref.load %arg3[%c19_228] : memref<72xf32, #tpu.memory_space<smem>>
    %637 = vector.broadcast %636 : f32 to vector<9x8x2xf32>
    %638 = arith.mulf %637, %635 : vector<9x8x2xf32>
    %639 = arith.addf %613, %638 : vector<9x8x2xf32>
    %c55_229 = arith.constant 55 : index
    %640 = memref.load %arg3[%c55_229] : memref<72xf32, #tpu.memory_space<smem>>
    %641 = vector.broadcast %640 : f32 to vector<9x8x2xf32>
    %642 = arith.mulf %641, %635 : vector<9x8x2xf32>
    %643 = arith.addf %617, %642 : vector<9x8x2xf32>
    %c15_230 = arith.constant 15 : index
    %644 = memref.load %arg3[%c15_230] : memref<72xf32, #tpu.memory_space<smem>>
    %645 = vector.broadcast %644 : f32 to vector<9x8x2xf32>
    %646 = arith.mulf %645, %635 : vector<9x8x2xf32>
    %647 = arith.addf %629, %646 : vector<9x8x2xf32>
    %c51_231 = arith.constant 51 : index
    %648 = memref.load %arg3[%c51_231] : memref<72xf32, #tpu.memory_space<smem>>
    %649 = vector.broadcast %648 : f32 to vector<9x8x2xf32>
    %650 = arith.mulf %649, %635 : vector<9x8x2xf32>
    %651 = arith.addf %633, %650 : vector<9x8x2xf32>
    %c4_232 = arith.constant 4 : index
    %c1_233 = arith.constant 1 : index
    %c0_234 = arith.constant 0 : index
    %c0_235 = arith.constant 0 : index
    %652 = vector.load %arg1[%c4_232, %c1_233, %c0_234, %c0_235] : memref<12x10x10x2xf32, #tpu.memory_space<vmem>>, vector<1x9x8x2xf32>
    %653 = vector.shape_cast %652 : vector<1x9x8x2xf32> to vector<9x8x2xf32>
    %c20 = arith.constant 20 : index
    %654 = memref.load %arg3[%c20] : memref<72xf32, #tpu.memory_space<smem>>
    %655 = vector.broadcast %654 : f32 to vector<9x8x2xf32>
    %656 = arith.mulf %655, %653 : vector<9x8x2xf32>
    %657 = arith.addf %605, %656 : vector<9x8x2xf32>
    %c56 = arith.constant 56 : index
    %658 = memref.load %arg3[%c56] : memref<72xf32, #tpu.memory_space<smem>>
    %659 = vector.broadcast %658 : f32 to vector<9x8x2xf32>
    %660 = arith.mulf %659, %653 : vector<9x8x2xf32>
    %661 = arith.addf %609, %660 : vector<9x8x2xf32>
    %c16_236 = arith.constant 16 : index
    %662 = memref.load %arg3[%c16_236] : memref<72xf32, #tpu.memory_space<smem>>
    %663 = vector.broadcast %662 : f32 to vector<9x8x2xf32>
    %664 = arith.mulf %663, %653 : vector<9x8x2xf32>
    %665 = arith.addf %621, %664 : vector<9x8x2xf32>
    %c52_237 = arith.constant 52 : index
    %666 = memref.load %arg3[%c52_237] : memref<72xf32, #tpu.memory_space<smem>>
    %667 = vector.broadcast %666 : f32 to vector<9x8x2xf32>
    %668 = arith.mulf %667, %653 : vector<9x8x2xf32>
    %669 = arith.addf %625, %668 : vector<9x8x2xf32>
    %c5_238 = arith.constant 5 : index
    %c1_239 = arith.constant 1 : index
    %c0_240 = arith.constant 0 : index
    %c0_241 = arith.constant 0 : index
    %670 = vector.load %arg1[%c5_238, %c1_239, %c0_240, %c0_241] : memref<12x10x10x2xf32, #tpu.memory_space<vmem>>, vector<1x9x8x2xf32>
    %671 = vector.shape_cast %670 : vector<1x9x8x2xf32> to vector<9x8x2xf32>
    %c21 = arith.constant 21 : index
    %672 = memref.load %arg3[%c21] : memref<72xf32, #tpu.memory_space<smem>>
    %673 = vector.broadcast %672 : f32 to vector<9x8x2xf32>
    %674 = arith.mulf %673, %671 : vector<9x8x2xf32>
    %675 = arith.addf %657, %674 : vector<9x8x2xf32>
    %c57 = arith.constant 57 : index
    %676 = memref.load %arg3[%c57] : memref<72xf32, #tpu.memory_space<smem>>
    %677 = vector.broadcast %676 : f32 to vector<9x8x2xf32>
    %678 = arith.mulf %677, %671 : vector<9x8x2xf32>
    %679 = arith.addf %661, %678 : vector<9x8x2xf32>
    %c20_242 = arith.constant 20 : index
    %680 = memref.load %arg3[%c20_242] : memref<72xf32, #tpu.memory_space<smem>>
    %681 = vector.broadcast %680 : f32 to vector<9x8x2xf32>
    %682 = arith.mulf %681, %671 : vector<9x8x2xf32>
    %683 = arith.addf %639, %682 : vector<9x8x2xf32>
    %c56_243 = arith.constant 56 : index
    %684 = memref.load %arg3[%c56_243] : memref<72xf32, #tpu.memory_space<smem>>
    %685 = vector.broadcast %684 : f32 to vector<9x8x2xf32>
    %686 = arith.mulf %685, %671 : vector<9x8x2xf32>
    %687 = arith.addf %643, %686 : vector<9x8x2xf32>
    %c17_244 = arith.constant 17 : index
    %688 = memref.load %arg3[%c17_244] : memref<72xf32, #tpu.memory_space<smem>>
    %689 = vector.broadcast %688 : f32 to vector<9x8x2xf32>
    %690 = arith.mulf %689, %671 : vector<9x8x2xf32>
    %691 = arith.addf %665, %690 : vector<9x8x2xf32>
    %c53_245 = arith.constant 53 : index
    %692 = memref.load %arg3[%c53_245] : memref<72xf32, #tpu.memory_space<smem>>
    %693 = vector.broadcast %692 : f32 to vector<9x8x2xf32>
    %694 = arith.mulf %693, %671 : vector<9x8x2xf32>
    %695 = arith.addf %669, %694 : vector<9x8x2xf32>
    %c16_246 = arith.constant 16 : index
    %696 = memref.load %arg3[%c16_246] : memref<72xf32, #tpu.memory_space<smem>>
    %697 = vector.broadcast %696 : f32 to vector<9x8x2xf32>
    %698 = arith.mulf %697, %671 : vector<9x8x2xf32>
    %699 = arith.addf %647, %698 : vector<9x8x2xf32>
    %c52_247 = arith.constant 52 : index
    %700 = memref.load %arg3[%c52_247] : memref<72xf32, #tpu.memory_space<smem>>
    %701 = vector.broadcast %700 : f32 to vector<9x8x2xf32>
    %702 = arith.mulf %701, %671 : vector<9x8x2xf32>
    %703 = arith.addf %651, %702 : vector<9x8x2xf32>
    %c4_248 = arith.constant 4 : index
    %c1_249 = arith.constant 1 : index
    %c1_250 = arith.constant 1 : index
    %c0_251 = arith.constant 0 : index
    %704 = vector.load %arg1[%c4_248, %c1_249, %c1_250, %c0_251] : memref<12x10x10x2xf32, #tpu.memory_space<vmem>>, vector<1x9x8x2xf32>
    %705 = vector.shape_cast %704 : vector<1x9x8x2xf32> to vector<9x8x2xf32>
    %c22 = arith.constant 22 : index
    %706 = memref.load %arg3[%c22] : memref<72xf32, #tpu.memory_space<smem>>
    %707 = vector.broadcast %706 : f32 to vector<9x8x2xf32>
    %708 = arith.mulf %707, %705 : vector<9x8x2xf32>
    %709 = arith.addf %675, %708 : vector<9x8x2xf32>
    %c58 = arith.constant 58 : index
    %710 = memref.load %arg3[%c58] : memref<72xf32, #tpu.memory_space<smem>>
    %711 = vector.broadcast %710 : f32 to vector<9x8x2xf32>
    %712 = arith.mulf %711, %705 : vector<9x8x2xf32>
    %713 = arith.addf %679, %712 : vector<9x8x2xf32>
    %c21_252 = arith.constant 21 : index
    %714 = memref.load %arg3[%c21_252] : memref<72xf32, #tpu.memory_space<smem>>
    %715 = vector.broadcast %714 : f32 to vector<9x8x2xf32>
    %716 = arith.mulf %715, %705 : vector<9x8x2xf32>
    %717 = arith.addf %683, %716 : vector<9x8x2xf32>
    %c57_253 = arith.constant 57 : index
    %718 = memref.load %arg3[%c57_253] : memref<72xf32, #tpu.memory_space<smem>>
    %719 = vector.broadcast %718 : f32 to vector<9x8x2xf32>
    %720 = arith.mulf %719, %705 : vector<9x8x2xf32>
    %721 = arith.addf %687, %720 : vector<9x8x2xf32>
    %c18_254 = arith.constant 18 : index
    %722 = memref.load %arg3[%c18_254] : memref<72xf32, #tpu.memory_space<smem>>
    %723 = vector.broadcast %722 : f32 to vector<9x8x2xf32>
    %724 = arith.mulf %723, %705 : vector<9x8x2xf32>
    %725 = arith.addf %691, %724 : vector<9x8x2xf32>
    %c54_255 = arith.constant 54 : index
    %726 = memref.load %arg3[%c54_255] : memref<72xf32, #tpu.memory_space<smem>>
    %727 = vector.broadcast %726 : f32 to vector<9x8x2xf32>
    %728 = arith.mulf %727, %705 : vector<9x8x2xf32>
    %729 = arith.addf %695, %728 : vector<9x8x2xf32>
    %c17_256 = arith.constant 17 : index
    %730 = memref.load %arg3[%c17_256] : memref<72xf32, #tpu.memory_space<smem>>
    %731 = vector.broadcast %730 : f32 to vector<9x8x2xf32>
    %732 = arith.mulf %731, %705 : vector<9x8x2xf32>
    %733 = arith.addf %699, %732 : vector<9x8x2xf32>
    %c53_257 = arith.constant 53 : index
    %734 = memref.load %arg3[%c53_257] : memref<72xf32, #tpu.memory_space<smem>>
    %735 = vector.broadcast %734 : f32 to vector<9x8x2xf32>
    %736 = arith.mulf %735, %705 : vector<9x8x2xf32>
    %737 = arith.addf %703, %736 : vector<9x8x2xf32>
    %c5_258 = arith.constant 5 : index
    %c1_259 = arith.constant 1 : index
    %c1_260 = arith.constant 1 : index
    %c0_261 = arith.constant 0 : index
    %738 = vector.load %arg1[%c5_258, %c1_259, %c1_260, %c0_261] : memref<12x10x10x2xf32, #tpu.memory_space<vmem>>, vector<1x9x8x2xf32>
    %739 = vector.shape_cast %738 : vector<1x9x8x2xf32> to vector<9x8x2xf32>
    %c23 = arith.constant 23 : index
    %740 = memref.load %arg3[%c23] : memref<72xf32, #tpu.memory_space<smem>>
    %741 = vector.broadcast %740 : f32 to vector<9x8x2xf32>
    %742 = arith.mulf %741, %739 : vector<9x8x2xf32>
    %743 = arith.addf %709, %742 : vector<9x8x2xf32>
    %c59 = arith.constant 59 : index
    %744 = memref.load %arg3[%c59] : memref<72xf32, #tpu.memory_space<smem>>
    %745 = vector.broadcast %744 : f32 to vector<9x8x2xf32>
    %746 = arith.mulf %745, %739 : vector<9x8x2xf32>
    %747 = arith.addf %713, %746 : vector<9x8x2xf32>
    %c22_262 = arith.constant 22 : index
    %748 = memref.load %arg3[%c22_262] : memref<72xf32, #tpu.memory_space<smem>>
    %749 = vector.broadcast %748 : f32 to vector<9x8x2xf32>
    %750 = arith.mulf %749, %739 : vector<9x8x2xf32>
    %751 = arith.addf %717, %750 : vector<9x8x2xf32>
    %c58_263 = arith.constant 58 : index
    %752 = memref.load %arg3[%c58_263] : memref<72xf32, #tpu.memory_space<smem>>
    %753 = vector.broadcast %752 : f32 to vector<9x8x2xf32>
    %754 = arith.mulf %753, %739 : vector<9x8x2xf32>
    %755 = arith.addf %721, %754 : vector<9x8x2xf32>
    %c19_264 = arith.constant 19 : index
    %756 = memref.load %arg3[%c19_264] : memref<72xf32, #tpu.memory_space<smem>>
    %757 = vector.broadcast %756 : f32 to vector<9x8x2xf32>
    %758 = arith.mulf %757, %739 : vector<9x8x2xf32>
    %759 = arith.addf %725, %758 : vector<9x8x2xf32>
    %c55_265 = arith.constant 55 : index
    %760 = memref.load %arg3[%c55_265] : memref<72xf32, #tpu.memory_space<smem>>
    %761 = vector.broadcast %760 : f32 to vector<9x8x2xf32>
    %762 = arith.mulf %761, %739 : vector<9x8x2xf32>
    %763 = arith.addf %729, %762 : vector<9x8x2xf32>
    %c18_266 = arith.constant 18 : index
    %764 = memref.load %arg3[%c18_266] : memref<72xf32, #tpu.memory_space<smem>>
    %765 = vector.broadcast %764 : f32 to vector<9x8x2xf32>
    %766 = arith.mulf %765, %739 : vector<9x8x2xf32>
    %767 = arith.addf %733, %766 : vector<9x8x2xf32>
    %c54_267 = arith.constant 54 : index
    %768 = memref.load %arg3[%c54_267] : memref<72xf32, #tpu.memory_space<smem>>
    %769 = vector.broadcast %768 : f32 to vector<9x8x2xf32>
    %770 = arith.mulf %769, %739 : vector<9x8x2xf32>
    %771 = arith.addf %737, %770 : vector<9x8x2xf32>
    %c4_268 = arith.constant 4 : index
    %c1_269 = arith.constant 1 : index
    %c2_270 = arith.constant 2 : index
    %c0_271 = arith.constant 0 : index
    %772 = vector.load %arg1[%c4_268, %c1_269, %c2_270, %c0_271] : memref<12x10x10x2xf32, #tpu.memory_space<vmem>>, vector<1x9x8x2xf32>
    %773 = vector.shape_cast %772 : vector<1x9x8x2xf32> to vector<9x8x2xf32>
    %c23_272 = arith.constant 23 : index
    %774 = memref.load %arg3[%c23_272] : memref<72xf32, #tpu.memory_space<smem>>
    %775 = vector.broadcast %774 : f32 to vector<9x8x2xf32>
    %776 = arith.mulf %775, %773 : vector<9x8x2xf32>
    %777 = arith.addf %751, %776 : vector<9x8x2xf32>
    %c59_273 = arith.constant 59 : index
    %778 = memref.load %arg3[%c59_273] : memref<72xf32, #tpu.memory_space<smem>>
    %779 = vector.broadcast %778 : f32 to vector<9x8x2xf32>
    %780 = arith.mulf %779, %773 : vector<9x8x2xf32>
    %781 = arith.addf %755, %780 : vector<9x8x2xf32>
    %c19_274 = arith.constant 19 : index
    %782 = memref.load %arg3[%c19_274] : memref<72xf32, #tpu.memory_space<smem>>
    %783 = vector.broadcast %782 : f32 to vector<9x8x2xf32>
    %784 = arith.mulf %783, %773 : vector<9x8x2xf32>
    %785 = arith.addf %767, %784 : vector<9x8x2xf32>
    %c55_275 = arith.constant 55 : index
    %786 = memref.load %arg3[%c55_275] : memref<72xf32, #tpu.memory_space<smem>>
    %787 = vector.broadcast %786 : f32 to vector<9x8x2xf32>
    %788 = arith.mulf %787, %773 : vector<9x8x2xf32>
    %789 = arith.addf %771, %788 : vector<9x8x2xf32>
    %c6_276 = arith.constant 6 : index
    %c1_277 = arith.constant 1 : index
    %c0_278 = arith.constant 0 : index
    %c0_279 = arith.constant 0 : index
    %790 = vector.load %arg1[%c6_276, %c1_277, %c0_278, %c0_279] : memref<12x10x10x2xf32, #tpu.memory_space<vmem>>, vector<1x9x8x2xf32>
    %791 = vector.shape_cast %790 : vector<1x9x8x2xf32> to vector<9x8x2xf32>
    %c20_280 = arith.constant 20 : index
    %792 = memref.load %arg3[%c20_280] : memref<72xf32, #tpu.memory_space<smem>>
    %793 = vector.broadcast %792 : f32 to vector<9x8x2xf32>
    %794 = arith.mulf %793, %791 : vector<9x8x2xf32>
    %795 = arith.addf %759, %794 : vector<9x8x2xf32>
    %c56_281 = arith.constant 56 : index
    %796 = memref.load %arg3[%c56_281] : memref<72xf32, #tpu.memory_space<smem>>
    %797 = vector.broadcast %796 : f32 to vector<9x8x2xf32>
    %798 = arith.mulf %797, %791 : vector<9x8x2xf32>
    %799 = arith.addf %763, %798 : vector<9x8x2xf32>
    %c7_282 = arith.constant 7 : index
    %c1_283 = arith.constant 1 : index
    %c0_284 = arith.constant 0 : index
    %c0_285 = arith.constant 0 : index
    %800 = vector.load %arg1[%c7_282, %c1_283, %c0_284, %c0_285] : memref<12x10x10x2xf32, #tpu.memory_space<vmem>>, vector<1x9x8x2xf32>
    %801 = vector.shape_cast %800 : vector<1x9x8x2xf32> to vector<9x8x2xf32>
    %c21_286 = arith.constant 21 : index
    %802 = memref.load %arg3[%c21_286] : memref<72xf32, #tpu.memory_space<smem>>
    %803 = vector.broadcast %802 : f32 to vector<9x8x2xf32>
    %804 = arith.mulf %803, %801 : vector<9x8x2xf32>
    %805 = arith.addf %795, %804 : vector<9x8x2xf32>
    %c57_287 = arith.constant 57 : index
    %806 = memref.load %arg3[%c57_287] : memref<72xf32, #tpu.memory_space<smem>>
    %807 = vector.broadcast %806 : f32 to vector<9x8x2xf32>
    %808 = arith.mulf %807, %801 : vector<9x8x2xf32>
    %809 = arith.addf %799, %808 : vector<9x8x2xf32>
    %c20_288 = arith.constant 20 : index
    %810 = memref.load %arg3[%c20_288] : memref<72xf32, #tpu.memory_space<smem>>
    %811 = vector.broadcast %810 : f32 to vector<9x8x2xf32>
    %812 = arith.mulf %811, %801 : vector<9x8x2xf32>
    %813 = arith.addf %785, %812 : vector<9x8x2xf32>
    %c56_289 = arith.constant 56 : index
    %814 = memref.load %arg3[%c56_289] : memref<72xf32, #tpu.memory_space<smem>>
    %815 = vector.broadcast %814 : f32 to vector<9x8x2xf32>
    %816 = arith.mulf %815, %801 : vector<9x8x2xf32>
    %817 = arith.addf %789, %816 : vector<9x8x2xf32>
    %c6_290 = arith.constant 6 : index
    %c1_291 = arith.constant 1 : index
    %c1_292 = arith.constant 1 : index
    %c0_293 = arith.constant 0 : index
    %818 = vector.load %arg1[%c6_290, %c1_291, %c1_292, %c0_293] : memref<12x10x10x2xf32, #tpu.memory_space<vmem>>, vector<1x9x8x2xf32>
    %819 = vector.shape_cast %818 : vector<1x9x8x2xf32> to vector<9x8x2xf32>
    %c22_294 = arith.constant 22 : index
    %820 = memref.load %arg3[%c22_294] : memref<72xf32, #tpu.memory_space<smem>>
    %821 = vector.broadcast %820 : f32 to vector<9x8x2xf32>
    %822 = arith.mulf %821, %819 : vector<9x8x2xf32>
    %823 = arith.addf %805, %822 : vector<9x8x2xf32>
    %c58_295 = arith.constant 58 : index
    %824 = memref.load %arg3[%c58_295] : memref<72xf32, #tpu.memory_space<smem>>
    %825 = vector.broadcast %824 : f32 to vector<9x8x2xf32>
    %826 = arith.mulf %825, %819 : vector<9x8x2xf32>
    %827 = arith.addf %809, %826 : vector<9x8x2xf32>
    %c21_296 = arith.constant 21 : index
    %828 = memref.load %arg3[%c21_296] : memref<72xf32, #tpu.memory_space<smem>>
    %829 = vector.broadcast %828 : f32 to vector<9x8x2xf32>
    %830 = arith.mulf %829, %819 : vector<9x8x2xf32>
    %831 = arith.addf %813, %830 : vector<9x8x2xf32>
    %c57_297 = arith.constant 57 : index
    %832 = memref.load %arg3[%c57_297] : memref<72xf32, #tpu.memory_space<smem>>
    %833 = vector.broadcast %832 : f32 to vector<9x8x2xf32>
    %834 = arith.mulf %833, %819 : vector<9x8x2xf32>
    %835 = arith.addf %817, %834 : vector<9x8x2xf32>
    %c7_298 = arith.constant 7 : index
    %c1_299 = arith.constant 1 : index
    %c1_300 = arith.constant 1 : index
    %c0_301 = arith.constant 0 : index
    %836 = vector.load %arg1[%c7_298, %c1_299, %c1_300, %c0_301] : memref<12x10x10x2xf32, #tpu.memory_space<vmem>>, vector<1x9x8x2xf32>
    %837 = vector.shape_cast %836 : vector<1x9x8x2xf32> to vector<9x8x2xf32>
    %c23_302 = arith.constant 23 : index
    %838 = memref.load %arg3[%c23_302] : memref<72xf32, #tpu.memory_space<smem>>
    %839 = vector.broadcast %838 : f32 to vector<9x8x2xf32>
    %840 = arith.mulf %839, %837 : vector<9x8x2xf32>
    %841 = arith.addf %823, %840 : vector<9x8x2xf32>
    %c59_303 = arith.constant 59 : index
    %842 = memref.load %arg3[%c59_303] : memref<72xf32, #tpu.memory_space<smem>>
    %843 = vector.broadcast %842 : f32 to vector<9x8x2xf32>
    %844 = arith.mulf %843, %837 : vector<9x8x2xf32>
    %845 = arith.addf %827, %844 : vector<9x8x2xf32>
    %c22_304 = arith.constant 22 : index
    %846 = memref.load %arg3[%c22_304] : memref<72xf32, #tpu.memory_space<smem>>
    %847 = vector.broadcast %846 : f32 to vector<9x8x2xf32>
    %848 = arith.mulf %847, %837 : vector<9x8x2xf32>
    %849 = arith.addf %831, %848 : vector<9x8x2xf32>
    %c58_305 = arith.constant 58 : index
    %850 = memref.load %arg3[%c58_305] : memref<72xf32, #tpu.memory_space<smem>>
    %851 = vector.broadcast %850 : f32 to vector<9x8x2xf32>
    %852 = arith.mulf %851, %837 : vector<9x8x2xf32>
    %853 = arith.addf %835, %852 : vector<9x8x2xf32>
    %c6_306 = arith.constant 6 : index
    %c1_307 = arith.constant 1 : index
    %c2_308 = arith.constant 2 : index
    %c0_309 = arith.constant 0 : index
    %854 = vector.load %arg1[%c6_306, %c1_307, %c2_308, %c0_309] : memref<12x10x10x2xf32, #tpu.memory_space<vmem>>, vector<1x9x8x2xf32>
    %855 = vector.shape_cast %854 : vector<1x9x8x2xf32> to vector<9x8x2xf32>
    %c23_310 = arith.constant 23 : index
    %856 = memref.load %arg3[%c23_310] : memref<72xf32, #tpu.memory_space<smem>>
    %857 = vector.broadcast %856 : f32 to vector<9x8x2xf32>
    %858 = arith.mulf %857, %855 : vector<9x8x2xf32>
    %859 = arith.addf %849, %858 : vector<9x8x2xf32>
    %c59_311 = arith.constant 59 : index
    %860 = memref.load %arg3[%c59_311] : memref<72xf32, #tpu.memory_space<smem>>
    %861 = vector.broadcast %860 : f32 to vector<9x8x2xf32>
    %862 = arith.mulf %861, %855 : vector<9x8x2xf32>
    %863 = arith.addf %853, %862 : vector<9x8x2xf32>
    %c8_312 = arith.constant 8 : index
    %c0_313 = arith.constant 0 : index
    %c0_314 = arith.constant 0 : index
    %c0_315 = arith.constant 0 : index
    %864 = vector.load %arg1[%c8_312, %c0_313, %c0_314, %c0_315] : memref<12x10x10x2xf32, #tpu.memory_space<vmem>>, vector<1x9x8x2xf32>
    %865 = vector.shape_cast %864 : vector<1x9x8x2xf32> to vector<9x8x2xf32>
    %c24 = arith.constant 24 : index
    %866 = memref.load %arg3[%c24] : memref<72xf32, #tpu.memory_space<smem>>
    %867 = vector.broadcast %866 : f32 to vector<9x8x2xf32>
    %868 = arith.mulf %867, %865 : vector<9x8x2xf32>
    %869 = arith.addf %743, %868 : vector<9x8x2xf32>
    %c60 = arith.constant 60 : index
    %870 = memref.load %arg3[%c60] : memref<72xf32, #tpu.memory_space<smem>>
    %871 = vector.broadcast %870 : f32 to vector<9x8x2xf32>
    %872 = arith.mulf %871, %865 : vector<9x8x2xf32>
    %873 = arith.addf %747, %872 : vector<9x8x2xf32>
    %c9_316 = arith.constant 9 : index
    %c0_317 = arith.constant 0 : index
    %c0_318 = arith.constant 0 : index
    %c0_319 = arith.constant 0 : index
    %874 = vector.load %arg1[%c9_316, %c0_317, %c0_318, %c0_319] : memref<12x10x10x2xf32, #tpu.memory_space<vmem>>, vector<1x9x8x2xf32>
    %875 = vector.shape_cast %874 : vector<1x9x8x2xf32> to vector<9x8x2xf32>
    %c25 = arith.constant 25 : index
    %876 = memref.load %arg3[%c25] : memref<72xf32, #tpu.memory_space<smem>>
    %877 = vector.broadcast %876 : f32 to vector<9x8x2xf32>
    %878 = arith.mulf %877, %875 : vector<9x8x2xf32>
    %879 = arith.addf %869, %878 : vector<9x8x2xf32>
    %c61 = arith.constant 61 : index
    %880 = memref.load %arg3[%c61] : memref<72xf32, #tpu.memory_space<smem>>
    %881 = vector.broadcast %880 : f32 to vector<9x8x2xf32>
    %882 = arith.mulf %881, %875 : vector<9x8x2xf32>
    %883 = arith.addf %873, %882 : vector<9x8x2xf32>
    %c24_320 = arith.constant 24 : index
    %884 = memref.load %arg3[%c24_320] : memref<72xf32, #tpu.memory_space<smem>>
    %885 = vector.broadcast %884 : f32 to vector<9x8x2xf32>
    %886 = arith.mulf %885, %875 : vector<9x8x2xf32>
    %887 = arith.addf %777, %886 : vector<9x8x2xf32>
    %c60_321 = arith.constant 60 : index
    %888 = memref.load %arg3[%c60_321] : memref<72xf32, #tpu.memory_space<smem>>
    %889 = vector.broadcast %888 : f32 to vector<9x8x2xf32>
    %890 = arith.mulf %889, %875 : vector<9x8x2xf32>
    %891 = arith.addf %781, %890 : vector<9x8x2xf32>
    %c8_322 = arith.constant 8 : index
    %c0_323 = arith.constant 0 : index
    %c1_324 = arith.constant 1 : index
    %c0_325 = arith.constant 0 : index
    %892 = vector.load %arg1[%c8_322, %c0_323, %c1_324, %c0_325] : memref<12x10x10x2xf32, #tpu.memory_space<vmem>>, vector<1x9x8x2xf32>
    %893 = vector.shape_cast %892 : vector<1x9x8x2xf32> to vector<9x8x2xf32>
    %c26 = arith.constant 26 : index
    %894 = memref.load %arg3[%c26] : memref<72xf32, #tpu.memory_space<smem>>
    %895 = vector.broadcast %894 : f32 to vector<9x8x2xf32>
    %896 = arith.mulf %895, %893 : vector<9x8x2xf32>
    %897 = arith.addf %879, %896 : vector<9x8x2xf32>
    %c62 = arith.constant 62 : index
    %898 = memref.load %arg3[%c62] : memref<72xf32, #tpu.memory_space<smem>>
    %899 = vector.broadcast %898 : f32 to vector<9x8x2xf32>
    %900 = arith.mulf %899, %893 : vector<9x8x2xf32>
    %901 = arith.addf %883, %900 : vector<9x8x2xf32>
    %c25_326 = arith.constant 25 : index
    %902 = memref.load %arg3[%c25_326] : memref<72xf32, #tpu.memory_space<smem>>
    %903 = vector.broadcast %902 : f32 to vector<9x8x2xf32>
    %904 = arith.mulf %903, %893 : vector<9x8x2xf32>
    %905 = arith.addf %887, %904 : vector<9x8x2xf32>
    %c61_327 = arith.constant 61 : index
    %906 = memref.load %arg3[%c61_327] : memref<72xf32, #tpu.memory_space<smem>>
    %907 = vector.broadcast %906 : f32 to vector<9x8x2xf32>
    %908 = arith.mulf %907, %893 : vector<9x8x2xf32>
    %909 = arith.addf %891, %908 : vector<9x8x2xf32>
    %c9_328 = arith.constant 9 : index
    %c0_329 = arith.constant 0 : index
    %c1_330 = arith.constant 1 : index
    %c0_331 = arith.constant 0 : index
    %910 = vector.load %arg1[%c9_328, %c0_329, %c1_330, %c0_331] : memref<12x10x10x2xf32, #tpu.memory_space<vmem>>, vector<1x9x8x2xf32>
    %911 = vector.shape_cast %910 : vector<1x9x8x2xf32> to vector<9x8x2xf32>
    %c27 = arith.constant 27 : index
    %912 = memref.load %arg3[%c27] : memref<72xf32, #tpu.memory_space<smem>>
    %913 = vector.broadcast %912 : f32 to vector<9x8x2xf32>
    %914 = arith.mulf %913, %911 : vector<9x8x2xf32>
    %915 = arith.addf %897, %914 : vector<9x8x2xf32>
    %c63 = arith.constant 63 : index
    %916 = memref.load %arg3[%c63] : memref<72xf32, #tpu.memory_space<smem>>
    %917 = vector.broadcast %916 : f32 to vector<9x8x2xf32>
    %918 = arith.mulf %917, %911 : vector<9x8x2xf32>
    %919 = arith.addf %901, %918 : vector<9x8x2xf32>
    %c26_332 = arith.constant 26 : index
    %920 = memref.load %arg3[%c26_332] : memref<72xf32, #tpu.memory_space<smem>>
    %921 = vector.broadcast %920 : f32 to vector<9x8x2xf32>
    %922 = arith.mulf %921, %911 : vector<9x8x2xf32>
    %923 = arith.addf %905, %922 : vector<9x8x2xf32>
    %c62_333 = arith.constant 62 : index
    %924 = memref.load %arg3[%c62_333] : memref<72xf32, #tpu.memory_space<smem>>
    %925 = vector.broadcast %924 : f32 to vector<9x8x2xf32>
    %926 = arith.mulf %925, %911 : vector<9x8x2xf32>
    %927 = arith.addf %909, %926 : vector<9x8x2xf32>
    %c8_334 = arith.constant 8 : index
    %c0_335 = arith.constant 0 : index
    %c2_336 = arith.constant 2 : index
    %c0_337 = arith.constant 0 : index
    %928 = vector.load %arg1[%c8_334, %c0_335, %c2_336, %c0_337] : memref<12x10x10x2xf32, #tpu.memory_space<vmem>>, vector<1x9x8x2xf32>
    %929 = vector.shape_cast %928 : vector<1x9x8x2xf32> to vector<9x8x2xf32>
    %c27_338 = arith.constant 27 : index
    %930 = memref.load %arg3[%c27_338] : memref<72xf32, #tpu.memory_space<smem>>
    %931 = vector.broadcast %930 : f32 to vector<9x8x2xf32>
    %932 = arith.mulf %931, %929 : vector<9x8x2xf32>
    %933 = arith.addf %923, %932 : vector<9x8x2xf32>
    %c63_339 = arith.constant 63 : index
    %934 = memref.load %arg3[%c63_339] : memref<72xf32, #tpu.memory_space<smem>>
    %935 = vector.broadcast %934 : f32 to vector<9x8x2xf32>
    %936 = arith.mulf %935, %929 : vector<9x8x2xf32>
    %937 = arith.addf %927, %936 : vector<9x8x2xf32>
    %c10_340 = arith.constant 10 : index
    %c0_341 = arith.constant 0 : index
    %c0_342 = arith.constant 0 : index
    %c0_343 = arith.constant 0 : index
    %938 = vector.load %arg1[%c10_340, %c0_341, %c0_342, %c0_343] : memref<12x10x10x2xf32, #tpu.memory_space<vmem>>, vector<1x9x8x2xf32>
    %939 = vector.shape_cast %938 : vector<1x9x8x2xf32> to vector<9x8x2xf32>
    %c28 = arith.constant 28 : index
    %940 = memref.load %arg3[%c28] : memref<72xf32, #tpu.memory_space<smem>>
    %941 = vector.broadcast %940 : f32 to vector<9x8x2xf32>
    %942 = arith.mulf %941, %939 : vector<9x8x2xf32>
    %943 = arith.addf %915, %942 : vector<9x8x2xf32>
    %c64 = arith.constant 64 : index
    %944 = memref.load %arg3[%c64] : memref<72xf32, #tpu.memory_space<smem>>
    %945 = vector.broadcast %944 : f32 to vector<9x8x2xf32>
    %946 = arith.mulf %945, %939 : vector<9x8x2xf32>
    %947 = arith.addf %919, %946 : vector<9x8x2xf32>
    %c24_344 = arith.constant 24 : index
    %948 = memref.load %arg3[%c24_344] : memref<72xf32, #tpu.memory_space<smem>>
    %949 = vector.broadcast %948 : f32 to vector<9x8x2xf32>
    %950 = arith.mulf %949, %939 : vector<9x8x2xf32>
    %951 = arith.addf %841, %950 : vector<9x8x2xf32>
    %c60_345 = arith.constant 60 : index
    %952 = memref.load %arg3[%c60_345] : memref<72xf32, #tpu.memory_space<smem>>
    %953 = vector.broadcast %952 : f32 to vector<9x8x2xf32>
    %954 = arith.mulf %953, %939 : vector<9x8x2xf32>
    %955 = arith.addf %845, %954 : vector<9x8x2xf32>
    %c11_346 = arith.constant 11 : index
    %c0_347 = arith.constant 0 : index
    %c0_348 = arith.constant 0 : index
    %c0_349 = arith.constant 0 : index
    %956 = vector.load %arg1[%c11_346, %c0_347, %c0_348, %c0_349] : memref<12x10x10x2xf32, #tpu.memory_space<vmem>>, vector<1x9x8x2xf32>
    %957 = vector.shape_cast %956 : vector<1x9x8x2xf32> to vector<9x8x2xf32>
    %c29 = arith.constant 29 : index
    %958 = memref.load %arg3[%c29] : memref<72xf32, #tpu.memory_space<smem>>
    %959 = vector.broadcast %958 : f32 to vector<9x8x2xf32>
    %960 = arith.mulf %959, %957 : vector<9x8x2xf32>
    %961 = arith.addf %943, %960 : vector<9x8x2xf32>
    %c65 = arith.constant 65 : index
    %962 = memref.load %arg3[%c65] : memref<72xf32, #tpu.memory_space<smem>>
    %963 = vector.broadcast %962 : f32 to vector<9x8x2xf32>
    %964 = arith.mulf %963, %957 : vector<9x8x2xf32>
    %965 = arith.addf %947, %964 : vector<9x8x2xf32>
    %c28_350 = arith.constant 28 : index
    %966 = memref.load %arg3[%c28_350] : memref<72xf32, #tpu.memory_space<smem>>
    %967 = vector.broadcast %966 : f32 to vector<9x8x2xf32>
    %968 = arith.mulf %967, %957 : vector<9x8x2xf32>
    %969 = arith.addf %933, %968 : vector<9x8x2xf32>
    %c64_351 = arith.constant 64 : index
    %970 = memref.load %arg3[%c64_351] : memref<72xf32, #tpu.memory_space<smem>>
    %971 = vector.broadcast %970 : f32 to vector<9x8x2xf32>
    %972 = arith.mulf %971, %957 : vector<9x8x2xf32>
    %973 = arith.addf %937, %972 : vector<9x8x2xf32>
    %c25_352 = arith.constant 25 : index
    %974 = memref.load %arg3[%c25_352] : memref<72xf32, #tpu.memory_space<smem>>
    %975 = vector.broadcast %974 : f32 to vector<9x8x2xf32>
    %976 = arith.mulf %975, %957 : vector<9x8x2xf32>
    %977 = arith.addf %951, %976 : vector<9x8x2xf32>
    %c61_353 = arith.constant 61 : index
    %978 = memref.load %arg3[%c61_353] : memref<72xf32, #tpu.memory_space<smem>>
    %979 = vector.broadcast %978 : f32 to vector<9x8x2xf32>
    %980 = arith.mulf %979, %957 : vector<9x8x2xf32>
    %981 = arith.addf %955, %980 : vector<9x8x2xf32>
    %c24_354 = arith.constant 24 : index
    %982 = memref.load %arg3[%c24_354] : memref<72xf32, #tpu.memory_space<smem>>
    %983 = vector.broadcast %982 : f32 to vector<9x8x2xf32>
    %984 = arith.mulf %983, %957 : vector<9x8x2xf32>
    %985 = arith.addf %859, %984 : vector<9x8x2xf32>
    %c60_355 = arith.constant 60 : index
    %986 = memref.load %arg3[%c60_355] : memref<72xf32, #tpu.memory_space<smem>>
    %987 = vector.broadcast %986 : f32 to vector<9x8x2xf32>
    %988 = arith.mulf %987, %957 : vector<9x8x2xf32>
    %989 = arith.addf %863, %988 : vector<9x8x2xf32>
    %c10_356 = arith.constant 10 : index
    %c0_357 = arith.constant 0 : index
    %c1_358 = arith.constant 1 : index
    %c0_359 = arith.constant 0 : index
    %990 = vector.load %arg1[%c10_356, %c0_357, %c1_358, %c0_359] : memref<12x10x10x2xf32, #tpu.memory_space<vmem>>, vector<1x9x8x2xf32>
    %991 = vector.shape_cast %990 : vector<1x9x8x2xf32> to vector<9x8x2xf32>
    %c30 = arith.constant 30 : index
    %992 = memref.load %arg3[%c30] : memref<72xf32, #tpu.memory_space<smem>>
    %993 = vector.broadcast %992 : f32 to vector<9x8x2xf32>
    %994 = arith.mulf %993, %991 : vector<9x8x2xf32>
    %995 = arith.addf %961, %994 : vector<9x8x2xf32>
    %c66 = arith.constant 66 : index
    %996 = memref.load %arg3[%c66] : memref<72xf32, #tpu.memory_space<smem>>
    %997 = vector.broadcast %996 : f32 to vector<9x8x2xf32>
    %998 = arith.mulf %997, %991 : vector<9x8x2xf32>
    %999 = arith.addf %965, %998 : vector<9x8x2xf32>
    %c29_360 = arith.constant 29 : index
    %1000 = memref.load %arg3[%c29_360] : memref<72xf32, #tpu.memory_space<smem>>
    %1001 = vector.broadcast %1000 : f32 to vector<9x8x2xf32>
    %1002 = arith.mulf %1001, %991 : vector<9x8x2xf32>
    %1003 = arith.addf %969, %1002 : vector<9x8x2xf32>
    %c65_361 = arith.constant 65 : index
    %1004 = memref.load %arg3[%c65_361] : memref<72xf32, #tpu.memory_space<smem>>
    %1005 = vector.broadcast %1004 : f32 to vector<9x8x2xf32>
    %1006 = arith.mulf %1005, %991 : vector<9x8x2xf32>
    %1007 = arith.addf %973, %1006 : vector<9x8x2xf32>
    %c26_362 = arith.constant 26 : index
    %1008 = memref.load %arg3[%c26_362] : memref<72xf32, #tpu.memory_space<smem>>
    %1009 = vector.broadcast %1008 : f32 to vector<9x8x2xf32>
    %1010 = arith.mulf %1009, %991 : vector<9x8x2xf32>
    %1011 = arith.addf %977, %1010 : vector<9x8x2xf32>
    %c62_363 = arith.constant 62 : index
    %1012 = memref.load %arg3[%c62_363] : memref<72xf32, #tpu.memory_space<smem>>
    %1013 = vector.broadcast %1012 : f32 to vector<9x8x2xf32>
    %1014 = arith.mulf %1013, %991 : vector<9x8x2xf32>
    %1015 = arith.addf %981, %1014 : vector<9x8x2xf32>
    %c25_364 = arith.constant 25 : index
    %1016 = memref.load %arg3[%c25_364] : memref<72xf32, #tpu.memory_space<smem>>
    %1017 = vector.broadcast %1016 : f32 to vector<9x8x2xf32>
    %1018 = arith.mulf %1017, %991 : vector<9x8x2xf32>
    %1019 = arith.addf %985, %1018 : vector<9x8x2xf32>
    %c61_365 = arith.constant 61 : index
    %1020 = memref.load %arg3[%c61_365] : memref<72xf32, #tpu.memory_space<smem>>
    %1021 = vector.broadcast %1020 : f32 to vector<9x8x2xf32>
    %1022 = arith.mulf %1021, %991 : vector<9x8x2xf32>
    %1023 = arith.addf %989, %1022 : vector<9x8x2xf32>
    %c11_366 = arith.constant 11 : index
    %c0_367 = arith.constant 0 : index
    %c1_368 = arith.constant 1 : index
    %c0_369 = arith.constant 0 : index
    %1024 = vector.load %arg1[%c11_366, %c0_367, %c1_368, %c0_369] : memref<12x10x10x2xf32, #tpu.memory_space<vmem>>, vector<1x9x8x2xf32>
    %1025 = vector.shape_cast %1024 : vector<1x9x8x2xf32> to vector<9x8x2xf32>
    %c31 = arith.constant 31 : index
    %1026 = memref.load %arg3[%c31] : memref<72xf32, #tpu.memory_space<smem>>
    %1027 = vector.broadcast %1026 : f32 to vector<9x8x2xf32>
    %1028 = arith.mulf %1027, %1025 : vector<9x8x2xf32>
    %1029 = arith.addf %995, %1028 : vector<9x8x2xf32>
    %c67 = arith.constant 67 : index
    %1030 = memref.load %arg3[%c67] : memref<72xf32, #tpu.memory_space<smem>>
    %1031 = vector.broadcast %1030 : f32 to vector<9x8x2xf32>
    %1032 = arith.mulf %1031, %1025 : vector<9x8x2xf32>
    %1033 = arith.addf %999, %1032 : vector<9x8x2xf32>
    %c30_370 = arith.constant 30 : index
    %1034 = memref.load %arg3[%c30_370] : memref<72xf32, #tpu.memory_space<smem>>
    %1035 = vector.broadcast %1034 : f32 to vector<9x8x2xf32>
    %1036 = arith.mulf %1035, %1025 : vector<9x8x2xf32>
    %1037 = arith.addf %1003, %1036 : vector<9x8x2xf32>
    %c66_371 = arith.constant 66 : index
    %1038 = memref.load %arg3[%c66_371] : memref<72xf32, #tpu.memory_space<smem>>
    %1039 = vector.broadcast %1038 : f32 to vector<9x8x2xf32>
    %1040 = arith.mulf %1039, %1025 : vector<9x8x2xf32>
    %1041 = arith.addf %1007, %1040 : vector<9x8x2xf32>
    %c27_372 = arith.constant 27 : index
    %1042 = memref.load %arg3[%c27_372] : memref<72xf32, #tpu.memory_space<smem>>
    %1043 = vector.broadcast %1042 : f32 to vector<9x8x2xf32>
    %1044 = arith.mulf %1043, %1025 : vector<9x8x2xf32>
    %1045 = arith.addf %1011, %1044 : vector<9x8x2xf32>
    %c63_373 = arith.constant 63 : index
    %1046 = memref.load %arg3[%c63_373] : memref<72xf32, #tpu.memory_space<smem>>
    %1047 = vector.broadcast %1046 : f32 to vector<9x8x2xf32>
    %1048 = arith.mulf %1047, %1025 : vector<9x8x2xf32>
    %1049 = arith.addf %1015, %1048 : vector<9x8x2xf32>
    %c26_374 = arith.constant 26 : index
    %1050 = memref.load %arg3[%c26_374] : memref<72xf32, #tpu.memory_space<smem>>
    %1051 = vector.broadcast %1050 : f32 to vector<9x8x2xf32>
    %1052 = arith.mulf %1051, %1025 : vector<9x8x2xf32>
    %1053 = arith.addf %1019, %1052 : vector<9x8x2xf32>
    %c62_375 = arith.constant 62 : index
    %1054 = memref.load %arg3[%c62_375] : memref<72xf32, #tpu.memory_space<smem>>
    %1055 = vector.broadcast %1054 : f32 to vector<9x8x2xf32>
    %1056 = arith.mulf %1055, %1025 : vector<9x8x2xf32>
    %1057 = arith.addf %1023, %1056 : vector<9x8x2xf32>
    %c10_376 = arith.constant 10 : index
    %c0_377 = arith.constant 0 : index
    %c2_378 = arith.constant 2 : index
    %c0_379 = arith.constant 0 : index
    %1058 = vector.load %arg1[%c10_376, %c0_377, %c2_378, %c0_379] : memref<12x10x10x2xf32, #tpu.memory_space<vmem>>, vector<1x9x8x2xf32>
    %1059 = vector.shape_cast %1058 : vector<1x9x8x2xf32> to vector<9x8x2xf32>
    %c31_380 = arith.constant 31 : index
    %1060 = memref.load %arg3[%c31_380] : memref<72xf32, #tpu.memory_space<smem>>
    %1061 = vector.broadcast %1060 : f32 to vector<9x8x2xf32>
    %1062 = arith.mulf %1061, %1059 : vector<9x8x2xf32>
    %1063 = arith.addf %1037, %1062 : vector<9x8x2xf32>
    %c67_381 = arith.constant 67 : index
    %1064 = memref.load %arg3[%c67_381] : memref<72xf32, #tpu.memory_space<smem>>
    %1065 = vector.broadcast %1064 : f32 to vector<9x8x2xf32>
    %1066 = arith.mulf %1065, %1059 : vector<9x8x2xf32>
    %1067 = arith.addf %1041, %1066 : vector<9x8x2xf32>
    %c27_382 = arith.constant 27 : index
    %1068 = memref.load %arg3[%c27_382] : memref<72xf32, #tpu.memory_space<smem>>
    %1069 = vector.broadcast %1068 : f32 to vector<9x8x2xf32>
    %1070 = arith.mulf %1069, %1059 : vector<9x8x2xf32>
    %1071 = arith.addf %1053, %1070 : vector<9x8x2xf32>
    %c63_383 = arith.constant 63 : index
    %1072 = memref.load %arg3[%c63_383] : memref<72xf32, #tpu.memory_space<smem>>
    %1073 = vector.broadcast %1072 : f32 to vector<9x8x2xf32>
    %1074 = arith.mulf %1073, %1059 : vector<9x8x2xf32>
    %1075 = arith.addf %1057, %1074 : vector<9x8x2xf32>
    %c8_384 = arith.constant 8 : index
    %c1_385 = arith.constant 1 : index
    %c0_386 = arith.constant 0 : index
    %c0_387 = arith.constant 0 : index
    %1076 = vector.load %arg1[%c8_384, %c1_385, %c0_386, %c0_387] : memref<12x10x10x2xf32, #tpu.memory_space<vmem>>, vector<1x9x8x2xf32>
    %1077 = vector.shape_cast %1076 : vector<1x9x8x2xf32> to vector<9x8x2xf32>
    %c32 = arith.constant 32 : index
    %1078 = memref.load %arg3[%c32] : memref<72xf32, #tpu.memory_space<smem>>
    %1079 = vector.broadcast %1078 : f32 to vector<9x8x2xf32>
    %1080 = arith.mulf %1079, %1077 : vector<9x8x2xf32>
    %1081 = arith.addf %1029, %1080 : vector<9x8x2xf32>
    %c68 = arith.constant 68 : index
    %1082 = memref.load %arg3[%c68] : memref<72xf32, #tpu.memory_space<smem>>
    %1083 = vector.broadcast %1082 : f32 to vector<9x8x2xf32>
    %1084 = arith.mulf %1083, %1077 : vector<9x8x2xf32>
    %1085 = arith.addf %1033, %1084 : vector<9x8x2xf32>
    %c28_388 = arith.constant 28 : index
    %1086 = memref.load %arg3[%c28_388] : memref<72xf32, #tpu.memory_space<smem>>
    %1087 = vector.broadcast %1086 : f32 to vector<9x8x2xf32>
    %1088 = arith.mulf %1087, %1077 : vector<9x8x2xf32>
    %1089 = arith.addf %1045, %1088 : vector<9x8x2xf32>
    %c64_389 = arith.constant 64 : index
    %1090 = memref.load %arg3[%c64_389] : memref<72xf32, #tpu.memory_space<smem>>
    %1091 = vector.broadcast %1090 : f32 to vector<9x8x2xf32>
    %1092 = arith.mulf %1091, %1077 : vector<9x8x2xf32>
    %1093 = arith.addf %1049, %1092 : vector<9x8x2xf32>
    %c9_390 = arith.constant 9 : index
    %c1_391 = arith.constant 1 : index
    %c0_392 = arith.constant 0 : index
    %c0_393 = arith.constant 0 : index
    %1094 = vector.load %arg1[%c9_390, %c1_391, %c0_392, %c0_393] : memref<12x10x10x2xf32, #tpu.memory_space<vmem>>, vector<1x9x8x2xf32>
    %1095 = vector.shape_cast %1094 : vector<1x9x8x2xf32> to vector<9x8x2xf32>
    %c33 = arith.constant 33 : index
    %1096 = memref.load %arg3[%c33] : memref<72xf32, #tpu.memory_space<smem>>
    %1097 = vector.broadcast %1096 : f32 to vector<9x8x2xf32>
    %1098 = arith.mulf %1097, %1095 : vector<9x8x2xf32>
    %1099 = arith.addf %1081, %1098 : vector<9x8x2xf32>
    %c69 = arith.constant 69 : index
    %1100 = memref.load %arg3[%c69] : memref<72xf32, #tpu.memory_space<smem>>
    %1101 = vector.broadcast %1100 : f32 to vector<9x8x2xf32>
    %1102 = arith.mulf %1101, %1095 : vector<9x8x2xf32>
    %1103 = arith.addf %1085, %1102 : vector<9x8x2xf32>
    %c32_394 = arith.constant 32 : index
    %1104 = memref.load %arg3[%c32_394] : memref<72xf32, #tpu.memory_space<smem>>
    %1105 = vector.broadcast %1104 : f32 to vector<9x8x2xf32>
    %1106 = arith.mulf %1105, %1095 : vector<9x8x2xf32>
    %1107 = arith.addf %1063, %1106 : vector<9x8x2xf32>
    %c68_395 = arith.constant 68 : index
    %1108 = memref.load %arg3[%c68_395] : memref<72xf32, #tpu.memory_space<smem>>
    %1109 = vector.broadcast %1108 : f32 to vector<9x8x2xf32>
    %1110 = arith.mulf %1109, %1095 : vector<9x8x2xf32>
    %1111 = arith.addf %1067, %1110 : vector<9x8x2xf32>
    %c29_396 = arith.constant 29 : index
    %1112 = memref.load %arg3[%c29_396] : memref<72xf32, #tpu.memory_space<smem>>
    %1113 = vector.broadcast %1112 : f32 to vector<9x8x2xf32>
    %1114 = arith.mulf %1113, %1095 : vector<9x8x2xf32>
    %1115 = arith.addf %1089, %1114 : vector<9x8x2xf32>
    %c65_397 = arith.constant 65 : index
    %1116 = memref.load %arg3[%c65_397] : memref<72xf32, #tpu.memory_space<smem>>
    %1117 = vector.broadcast %1116 : f32 to vector<9x8x2xf32>
    %1118 = arith.mulf %1117, %1095 : vector<9x8x2xf32>
    %1119 = arith.addf %1093, %1118 : vector<9x8x2xf32>
    %c28_398 = arith.constant 28 : index
    %1120 = memref.load %arg3[%c28_398] : memref<72xf32, #tpu.memory_space<smem>>
    %1121 = vector.broadcast %1120 : f32 to vector<9x8x2xf32>
    %1122 = arith.mulf %1121, %1095 : vector<9x8x2xf32>
    %1123 = arith.addf %1071, %1122 : vector<9x8x2xf32>
    %c64_399 = arith.constant 64 : index
    %1124 = memref.load %arg3[%c64_399] : memref<72xf32, #tpu.memory_space<smem>>
    %1125 = vector.broadcast %1124 : f32 to vector<9x8x2xf32>
    %1126 = arith.mulf %1125, %1095 : vector<9x8x2xf32>
    %1127 = arith.addf %1075, %1126 : vector<9x8x2xf32>
    %c8_400 = arith.constant 8 : index
    %c1_401 = arith.constant 1 : index
    %c1_402 = arith.constant 1 : index
    %c0_403 = arith.constant 0 : index
    %1128 = vector.load %arg1[%c8_400, %c1_401, %c1_402, %c0_403] : memref<12x10x10x2xf32, #tpu.memory_space<vmem>>, vector<1x9x8x2xf32>
    %1129 = vector.shape_cast %1128 : vector<1x9x8x2xf32> to vector<9x8x2xf32>
    %c34 = arith.constant 34 : index
    %1130 = memref.load %arg3[%c34] : memref<72xf32, #tpu.memory_space<smem>>
    %1131 = vector.broadcast %1130 : f32 to vector<9x8x2xf32>
    %1132 = arith.mulf %1131, %1129 : vector<9x8x2xf32>
    %1133 = arith.addf %1099, %1132 : vector<9x8x2xf32>
    %c70 = arith.constant 70 : index
    %1134 = memref.load %arg3[%c70] : memref<72xf32, #tpu.memory_space<smem>>
    %1135 = vector.broadcast %1134 : f32 to vector<9x8x2xf32>
    %1136 = arith.mulf %1135, %1129 : vector<9x8x2xf32>
    %1137 = arith.addf %1103, %1136 : vector<9x8x2xf32>
    %c33_404 = arith.constant 33 : index
    %1138 = memref.load %arg3[%c33_404] : memref<72xf32, #tpu.memory_space<smem>>
    %1139 = vector.broadcast %1138 : f32 to vector<9x8x2xf32>
    %1140 = arith.mulf %1139, %1129 : vector<9x8x2xf32>
    %1141 = arith.addf %1107, %1140 : vector<9x8x2xf32>
    %c69_405 = arith.constant 69 : index
    %1142 = memref.load %arg3[%c69_405] : memref<72xf32, #tpu.memory_space<smem>>
    %1143 = vector.broadcast %1142 : f32 to vector<9x8x2xf32>
    %1144 = arith.mulf %1143, %1129 : vector<9x8x2xf32>
    %1145 = arith.addf %1111, %1144 : vector<9x8x2xf32>
    %c30_406 = arith.constant 30 : index
    %1146 = memref.load %arg3[%c30_406] : memref<72xf32, #tpu.memory_space<smem>>
    %1147 = vector.broadcast %1146 : f32 to vector<9x8x2xf32>
    %1148 = arith.mulf %1147, %1129 : vector<9x8x2xf32>
    %1149 = arith.addf %1115, %1148 : vector<9x8x2xf32>
    %c66_407 = arith.constant 66 : index
    %1150 = memref.load %arg3[%c66_407] : memref<72xf32, #tpu.memory_space<smem>>
    %1151 = vector.broadcast %1150 : f32 to vector<9x8x2xf32>
    %1152 = arith.mulf %1151, %1129 : vector<9x8x2xf32>
    %1153 = arith.addf %1119, %1152 : vector<9x8x2xf32>
    %c29_408 = arith.constant 29 : index
    %1154 = memref.load %arg3[%c29_408] : memref<72xf32, #tpu.memory_space<smem>>
    %1155 = vector.broadcast %1154 : f32 to vector<9x8x2xf32>
    %1156 = arith.mulf %1155, %1129 : vector<9x8x2xf32>
    %1157 = arith.addf %1123, %1156 : vector<9x8x2xf32>
    %c65_409 = arith.constant 65 : index
    %1158 = memref.load %arg3[%c65_409] : memref<72xf32, #tpu.memory_space<smem>>
    %1159 = vector.broadcast %1158 : f32 to vector<9x8x2xf32>
    %1160 = arith.mulf %1159, %1129 : vector<9x8x2xf32>
    %1161 = arith.addf %1127, %1160 : vector<9x8x2xf32>
    %c9_410 = arith.constant 9 : index
    %c1_411 = arith.constant 1 : index
    %c1_412 = arith.constant 1 : index
    %c0_413 = arith.constant 0 : index
    %1162 = vector.load %arg1[%c9_410, %c1_411, %c1_412, %c0_413] : memref<12x10x10x2xf32, #tpu.memory_space<vmem>>, vector<1x9x8x2xf32>
    %1163 = vector.shape_cast %1162 : vector<1x9x8x2xf32> to vector<9x8x2xf32>
    %c35 = arith.constant 35 : index
    %1164 = memref.load %arg3[%c35] : memref<72xf32, #tpu.memory_space<smem>>
    %1165 = vector.broadcast %1164 : f32 to vector<9x8x2xf32>
    %1166 = arith.mulf %1165, %1163 : vector<9x8x2xf32>
    %1167 = arith.addf %1133, %1166 : vector<9x8x2xf32>
    %c71 = arith.constant 71 : index
    %1168 = memref.load %arg3[%c71] : memref<72xf32, #tpu.memory_space<smem>>
    %1169 = vector.broadcast %1168 : f32 to vector<9x8x2xf32>
    %1170 = arith.mulf %1169, %1163 : vector<9x8x2xf32>
    %1171 = arith.addf %1137, %1170 : vector<9x8x2xf32>
    %c34_414 = arith.constant 34 : index
    %1172 = memref.load %arg3[%c34_414] : memref<72xf32, #tpu.memory_space<smem>>
    %1173 = vector.broadcast %1172 : f32 to vector<9x8x2xf32>
    %1174 = arith.mulf %1173, %1163 : vector<9x8x2xf32>
    %1175 = arith.addf %1141, %1174 : vector<9x8x2xf32>
    %c70_415 = arith.constant 70 : index
    %1176 = memref.load %arg3[%c70_415] : memref<72xf32, #tpu.memory_space<smem>>
    %1177 = vector.broadcast %1176 : f32 to vector<9x8x2xf32>
    %1178 = arith.mulf %1177, %1163 : vector<9x8x2xf32>
    %1179 = arith.addf %1145, %1178 : vector<9x8x2xf32>
    %c31_416 = arith.constant 31 : index
    %1180 = memref.load %arg3[%c31_416] : memref<72xf32, #tpu.memory_space<smem>>
    %1181 = vector.broadcast %1180 : f32 to vector<9x8x2xf32>
    %1182 = arith.mulf %1181, %1163 : vector<9x8x2xf32>
    %1183 = arith.addf %1149, %1182 : vector<9x8x2xf32>
    %c67_417 = arith.constant 67 : index
    %1184 = memref.load %arg3[%c67_417] : memref<72xf32, #tpu.memory_space<smem>>
    %1185 = vector.broadcast %1184 : f32 to vector<9x8x2xf32>
    %1186 = arith.mulf %1185, %1163 : vector<9x8x2xf32>
    %1187 = arith.addf %1153, %1186 : vector<9x8x2xf32>
    %c30_418 = arith.constant 30 : index
    %1188 = memref.load %arg3[%c30_418] : memref<72xf32, #tpu.memory_space<smem>>
    %1189 = vector.broadcast %1188 : f32 to vector<9x8x2xf32>
    %1190 = arith.mulf %1189, %1163 : vector<9x8x2xf32>
    %1191 = arith.addf %1157, %1190 : vector<9x8x2xf32>
    %c66_419 = arith.constant 66 : index
    %1192 = memref.load %arg3[%c66_419] : memref<72xf32, #tpu.memory_space<smem>>
    %1193 = vector.broadcast %1192 : f32 to vector<9x8x2xf32>
    %1194 = arith.mulf %1193, %1163 : vector<9x8x2xf32>
    %1195 = arith.addf %1161, %1194 : vector<9x8x2xf32>
    %c8_420 = arith.constant 8 : index
    %c1_421 = arith.constant 1 : index
    %c2_422 = arith.constant 2 : index
    %c0_423 = arith.constant 0 : index
    %1196 = vector.load %arg1[%c8_420, %c1_421, %c2_422, %c0_423] : memref<12x10x10x2xf32, #tpu.memory_space<vmem>>, vector<1x9x8x2xf32>
    %1197 = vector.shape_cast %1196 : vector<1x9x8x2xf32> to vector<9x8x2xf32>
    %c35_424 = arith.constant 35 : index
    %1198 = memref.load %arg3[%c35_424] : memref<72xf32, #tpu.memory_space<smem>>
    %1199 = vector.broadcast %1198 : f32 to vector<9x8x2xf32>
    %1200 = arith.mulf %1199, %1197 : vector<9x8x2xf32>
    %1201 = arith.addf %1175, %1200 : vector<9x8x2xf32>
    %c71_425 = arith.constant 71 : index
    %1202 = memref.load %arg3[%c71_425] : memref<72xf32, #tpu.memory_space<smem>>
    %1203 = vector.broadcast %1202 : f32 to vector<9x8x2xf32>
    %1204 = arith.mulf %1203, %1197 : vector<9x8x2xf32>
    %1205 = arith.addf %1179, %1204 : vector<9x8x2xf32>
    %c31_426 = arith.constant 31 : index
    %1206 = memref.load %arg3[%c31_426] : memref<72xf32, #tpu.memory_space<smem>>
    %1207 = vector.broadcast %1206 : f32 to vector<9x8x2xf32>
    %1208 = arith.mulf %1207, %1197 : vector<9x8x2xf32>
    %1209 = arith.addf %1191, %1208 : vector<9x8x2xf32>
    %c67_427 = arith.constant 67 : index
    %1210 = memref.load %arg3[%c67_427] : memref<72xf32, #tpu.memory_space<smem>>
    %1211 = vector.broadcast %1210 : f32 to vector<9x8x2xf32>
    %1212 = arith.mulf %1211, %1197 : vector<9x8x2xf32>
    %1213 = arith.addf %1195, %1212 : vector<9x8x2xf32>
    %c10_428 = arith.constant 10 : index
    %c1_429 = arith.constant 1 : index
    %c0_430 = arith.constant 0 : index
    %c0_431 = arith.constant 0 : index
    %1214 = vector.load %arg1[%c10_428, %c1_429, %c0_430, %c0_431] : memref<12x10x10x2xf32, #tpu.memory_space<vmem>>, vector<1x9x8x2xf32>
    %1215 = vector.shape_cast %1214 : vector<1x9x8x2xf32> to vector<9x8x2xf32>
    %c32_432 = arith.constant 32 : index
    %1216 = memref.load %arg3[%c32_432] : memref<72xf32, #tpu.memory_space<smem>>
    %1217 = vector.broadcast %1216 : f32 to vector<9x8x2xf32>
    %1218 = arith.mulf %1217, %1215 : vector<9x8x2xf32>
    %1219 = arith.addf %1183, %1218 : vector<9x8x2xf32>
    %c68_433 = arith.constant 68 : index
    %1220 = memref.load %arg3[%c68_433] : memref<72xf32, #tpu.memory_space<smem>>
    %1221 = vector.broadcast %1220 : f32 to vector<9x8x2xf32>
    %1222 = arith.mulf %1221, %1215 : vector<9x8x2xf32>
    %1223 = arith.addf %1187, %1222 : vector<9x8x2xf32>
    %c11_434 = arith.constant 11 : index
    %c1_435 = arith.constant 1 : index
    %c0_436 = arith.constant 0 : index
    %c0_437 = arith.constant 0 : index
    %1224 = vector.load %arg1[%c11_434, %c1_435, %c0_436, %c0_437] : memref<12x10x10x2xf32, #tpu.memory_space<vmem>>, vector<1x9x8x2xf32>
    %1225 = vector.shape_cast %1224 : vector<1x9x8x2xf32> to vector<9x8x2xf32>
    %c33_438 = arith.constant 33 : index
    %1226 = memref.load %arg3[%c33_438] : memref<72xf32, #tpu.memory_space<smem>>
    %1227 = vector.broadcast %1226 : f32 to vector<9x8x2xf32>
    %1228 = arith.mulf %1227, %1225 : vector<9x8x2xf32>
    %1229 = arith.addf %1219, %1228 : vector<9x8x2xf32>
    %c69_439 = arith.constant 69 : index
    %1230 = memref.load %arg3[%c69_439] : memref<72xf32, #tpu.memory_space<smem>>
    %1231 = vector.broadcast %1230 : f32 to vector<9x8x2xf32>
    %1232 = arith.mulf %1231, %1225 : vector<9x8x2xf32>
    %1233 = arith.addf %1223, %1232 : vector<9x8x2xf32>
    %c32_440 = arith.constant 32 : index
    %1234 = memref.load %arg3[%c32_440] : memref<72xf32, #tpu.memory_space<smem>>
    %1235 = vector.broadcast %1234 : f32 to vector<9x8x2xf32>
    %1236 = arith.mulf %1235, %1225 : vector<9x8x2xf32>
    %1237 = arith.addf %1209, %1236 : vector<9x8x2xf32>
    %c68_441 = arith.constant 68 : index
    %1238 = memref.load %arg3[%c68_441] : memref<72xf32, #tpu.memory_space<smem>>
    %1239 = vector.broadcast %1238 : f32 to vector<9x8x2xf32>
    %1240 = arith.mulf %1239, %1225 : vector<9x8x2xf32>
    %1241 = arith.addf %1213, %1240 : vector<9x8x2xf32>
    %c10_442 = arith.constant 10 : index
    %c1_443 = arith.constant 1 : index
    %c1_444 = arith.constant 1 : index
    %c0_445 = arith.constant 0 : index
    %1242 = vector.load %arg1[%c10_442, %c1_443, %c1_444, %c0_445] : memref<12x10x10x2xf32, #tpu.memory_space<vmem>>, vector<1x9x8x2xf32>
    %1243 = vector.shape_cast %1242 : vector<1x9x8x2xf32> to vector<9x8x2xf32>
    %c34_446 = arith.constant 34 : index
    %1244 = memref.load %arg3[%c34_446] : memref<72xf32, #tpu.memory_space<smem>>
    %1245 = vector.broadcast %1244 : f32 to vector<9x8x2xf32>
    %1246 = arith.mulf %1245, %1243 : vector<9x8x2xf32>
    %1247 = arith.addf %1229, %1246 : vector<9x8x2xf32>
    %c70_447 = arith.constant 70 : index
    %1248 = memref.load %arg3[%c70_447] : memref<72xf32, #tpu.memory_space<smem>>
    %1249 = vector.broadcast %1248 : f32 to vector<9x8x2xf32>
    %1250 = arith.mulf %1249, %1243 : vector<9x8x2xf32>
    %1251 = arith.addf %1233, %1250 : vector<9x8x2xf32>
    %c33_448 = arith.constant 33 : index
    %1252 = memref.load %arg3[%c33_448] : memref<72xf32, #tpu.memory_space<smem>>
    %1253 = vector.broadcast %1252 : f32 to vector<9x8x2xf32>
    %1254 = arith.mulf %1253, %1243 : vector<9x8x2xf32>
    %1255 = arith.addf %1237, %1254 : vector<9x8x2xf32>
    %c69_449 = arith.constant 69 : index
    %1256 = memref.load %arg3[%c69_449] : memref<72xf32, #tpu.memory_space<smem>>
    %1257 = vector.broadcast %1256 : f32 to vector<9x8x2xf32>
    %1258 = arith.mulf %1257, %1243 : vector<9x8x2xf32>
    %1259 = arith.addf %1241, %1258 : vector<9x8x2xf32>
    %c11_450 = arith.constant 11 : index
    %c1_451 = arith.constant 1 : index
    %c1_452 = arith.constant 1 : index
    %c0_453 = arith.constant 0 : index
    %1260 = vector.load %arg1[%c11_450, %c1_451, %c1_452, %c0_453] : memref<12x10x10x2xf32, #tpu.memory_space<vmem>>, vector<1x9x8x2xf32>
    %1261 = vector.shape_cast %1260 : vector<1x9x8x2xf32> to vector<9x8x2xf32>
    %c35_454 = arith.constant 35 : index
    %1262 = memref.load %arg3[%c35_454] : memref<72xf32, #tpu.memory_space<smem>>
    %1263 = vector.broadcast %1262 : f32 to vector<9x8x2xf32>
    %1264 = arith.mulf %1263, %1261 : vector<9x8x2xf32>
    %1265 = arith.addf %1247, %1264 : vector<9x8x2xf32>
    %c71_455 = arith.constant 71 : index
    %1266 = memref.load %arg3[%c71_455] : memref<72xf32, #tpu.memory_space<smem>>
    %1267 = vector.broadcast %1266 : f32 to vector<9x8x2xf32>
    %1268 = arith.mulf %1267, %1261 : vector<9x8x2xf32>
    %1269 = arith.addf %1251, %1268 : vector<9x8x2xf32>
    %c34_456 = arith.constant 34 : index
    %1270 = memref.load %arg3[%c34_456] : memref<72xf32, #tpu.memory_space<smem>>
    %1271 = vector.broadcast %1270 : f32 to vector<9x8x2xf32>
    %1272 = arith.mulf %1271, %1261 : vector<9x8x2xf32>
    %1273 = arith.addf %1255, %1272 : vector<9x8x2xf32>
    %c70_457 = arith.constant 70 : index
    %1274 = memref.load %arg3[%c70_457] : memref<72xf32, #tpu.memory_space<smem>>
    %1275 = vector.broadcast %1274 : f32 to vector<9x8x2xf32>
    %1276 = arith.mulf %1275, %1261 : vector<9x8x2xf32>
    %1277 = arith.addf %1259, %1276 : vector<9x8x2xf32>
    %c10_458 = arith.constant 10 : index
    %c1_459 = arith.constant 1 : index
    %c2_460 = arith.constant 2 : index
    %c0_461 = arith.constant 0 : index
    %1278 = vector.load %arg1[%c10_458, %c1_459, %c2_460, %c0_461] : memref<12x10x10x2xf32, #tpu.memory_space<vmem>>, vector<1x9x8x2xf32>
    %1279 = vector.shape_cast %1278 : vector<1x9x8x2xf32> to vector<9x8x2xf32>
    %c35_462 = arith.constant 35 : index
    %1280 = memref.load %arg3[%c35_462] : memref<72xf32, #tpu.memory_space<smem>>
    %1281 = vector.broadcast %1280 : f32 to vector<9x8x2xf32>
    %1282 = arith.mulf %1281, %1279 : vector<9x8x2xf32>
    %1283 = arith.addf %1273, %1282 : vector<9x8x2xf32>
    %c71_463 = arith.constant 71 : index
    %1284 = memref.load %arg3[%c71_463] : memref<72xf32, #tpu.memory_space<smem>>
    %1285 = vector.broadcast %1284 : f32 to vector<9x8x2xf32>
    %1286 = arith.mulf %1285, %1279 : vector<9x8x2xf32>
    %1287 = arith.addf %1277, %1286 : vector<9x8x2xf32>
    %c0_464 = arith.constant 0 : index
    %c0_465 = arith.constant 0 : index
    %c0_466 = arith.constant 0 : index
    %c0_467 = arith.constant 0 : index
    %1288 = vector.load %arg2[%c0_464, %c0_465, %c0_466, %c0_467] : memref<4x9x8x1xf32, #tpu.memory_space<vmem>>, vector<1x9x8x1xf32>
    %1289 = vector.shape_cast %1288 : vector<1x9x8x1xf32> to vector<9x8x1xf32>
    %1290 = arith.negf %1167 : vector<9x8x2xf32>
    %1291 = math.exp %1290 : vector<9x8x2xf32>
    %cst = arith.constant 1.000000e+00 : f32
    %1292 = vector.broadcast %cst : f32 to vector<9x8x2xf32>
    %1293 = arith.addf %1292, %1291 : vector<9x8x2xf32>
    %1294 = arith.divf %1292, %1293 : vector<9x8x2xf32>
    %1295 = vector.broadcast %1289 : vector<9x8x1xf32> to vector<9x8x2xf32>
    %1296 = arith.mulf %1294, %1295 : vector<9x8x2xf32>
    %1297 = arith.negf %1171 : vector<9x8x2xf32>
    %1298 = math.exp %1297 : vector<9x8x2xf32>
    %cst_468 = arith.constant 1.000000e+00 : f32
    %1299 = vector.broadcast %cst_468 : f32 to vector<9x8x2xf32>
    %1300 = arith.addf %1299, %1298 : vector<9x8x2xf32>
    %1301 = arith.divf %1299, %1300 : vector<9x8x2xf32>
    %1302 = vector.broadcast %1289 : vector<9x8x1xf32> to vector<9x8x2xf32>
    %1303 = arith.mulf %1301, %1302 : vector<9x8x2xf32>
    %c1_469 = arith.constant 1 : index
    %c0_470 = arith.constant 0 : index
    %c0_471 = arith.constant 0 : index
    %c0_472 = arith.constant 0 : index
    %1304 = vector.load %arg2[%c1_469, %c0_470, %c0_471, %c0_472] : memref<4x9x8x1xf32, #tpu.memory_space<vmem>>, vector<1x9x8x1xf32>
    %1305 = vector.shape_cast %1304 : vector<1x9x8x1xf32> to vector<9x8x1xf32>
    %1306 = arith.negf %1201 : vector<9x8x2xf32>
    %1307 = math.exp %1306 : vector<9x8x2xf32>
    %cst_473 = arith.constant 1.000000e+00 : f32
    %1308 = vector.broadcast %cst_473 : f32 to vector<9x8x2xf32>
    %1309 = arith.addf %1308, %1307 : vector<9x8x2xf32>
    %1310 = arith.divf %1308, %1309 : vector<9x8x2xf32>
    %1311 = vector.broadcast %1305 : vector<9x8x1xf32> to vector<9x8x2xf32>
    %1312 = arith.mulf %1310, %1311 : vector<9x8x2xf32>
    %1313 = arith.maximumf %1296, %1312 : vector<9x8x2xf32>
    %1314 = arith.negf %1205 : vector<9x8x2xf32>
    %1315 = math.exp %1314 : vector<9x8x2xf32>
    %cst_474 = arith.constant 1.000000e+00 : f32
    %1316 = vector.broadcast %cst_474 : f32 to vector<9x8x2xf32>
    %1317 = arith.addf %1316, %1315 : vector<9x8x2xf32>
    %1318 = arith.divf %1316, %1317 : vector<9x8x2xf32>
    %1319 = vector.broadcast %1305 : vector<9x8x1xf32> to vector<9x8x2xf32>
    %1320 = arith.mulf %1318, %1319 : vector<9x8x2xf32>
    %1321 = arith.maximumf %1303, %1320 : vector<9x8x2xf32>
    %c2_475 = arith.constant 2 : index
    %c0_476 = arith.constant 0 : index
    %c0_477 = arith.constant 0 : index
    %c0_478 = arith.constant 0 : index
    %1322 = vector.load %arg2[%c2_475, %c0_476, %c0_477, %c0_478] : memref<4x9x8x1xf32, #tpu.memory_space<vmem>>, vector<1x9x8x1xf32>
    %1323 = vector.shape_cast %1322 : vector<1x9x8x1xf32> to vector<9x8x1xf32>
    %1324 = arith.negf %1265 : vector<9x8x2xf32>
    %1325 = math.exp %1324 : vector<9x8x2xf32>
    %cst_479 = arith.constant 1.000000e+00 : f32
    %1326 = vector.broadcast %cst_479 : f32 to vector<9x8x2xf32>
    %1327 = arith.addf %1326, %1325 : vector<9x8x2xf32>
    %1328 = arith.divf %1326, %1327 : vector<9x8x2xf32>
    %1329 = vector.broadcast %1323 : vector<9x8x1xf32> to vector<9x8x2xf32>
    %1330 = arith.mulf %1328, %1329 : vector<9x8x2xf32>
    %1331 = arith.maximumf %1313, %1330 : vector<9x8x2xf32>
    %1332 = arith.negf %1269 : vector<9x8x2xf32>
    %1333 = math.exp %1332 : vector<9x8x2xf32>
    %cst_480 = arith.constant 1.000000e+00 : f32
    %1334 = vector.broadcast %cst_480 : f32 to vector<9x8x2xf32>
    %1335 = arith.addf %1334, %1333 : vector<9x8x2xf32>
    %1336 = arith.divf %1334, %1335 : vector<9x8x2xf32>
    %1337 = vector.broadcast %1323 : vector<9x8x1xf32> to vector<9x8x2xf32>
    %1338 = arith.mulf %1336, %1337 : vector<9x8x2xf32>
    %1339 = arith.maximumf %1321, %1338 : vector<9x8x2xf32>
    %c3_481 = arith.constant 3 : index
    %c0_482 = arith.constant 0 : index
    %c0_483 = arith.constant 0 : index
    %c0_484 = arith.constant 0 : index
    %1340 = vector.load %arg2[%c3_481, %c0_482, %c0_483, %c0_484] : memref<4x9x8x1xf32, #tpu.memory_space<vmem>>, vector<1x9x8x1xf32>
    %1341 = vector.shape_cast %1340 : vector<1x9x8x1xf32> to vector<9x8x1xf32>
    %1342 = arith.negf %1283 : vector<9x8x2xf32>
    %1343 = math.exp %1342 : vector<9x8x2xf32>
    %cst_485 = arith.constant 1.000000e+00 : f32
    %1344 = vector.broadcast %cst_485 : f32 to vector<9x8x2xf32>
    %1345 = arith.addf %1344, %1343 : vector<9x8x2xf32>
    %1346 = arith.divf %1344, %1345 : vector<9x8x2xf32>
    %1347 = vector.broadcast %1341 : vector<9x8x1xf32> to vector<9x8x2xf32>
    %1348 = arith.mulf %1346, %1347 : vector<9x8x2xf32>
    %1349 = arith.maximumf %1331, %1348 : vector<9x8x2xf32>
    %1350 = arith.negf %1287 : vector<9x8x2xf32>
    %1351 = math.exp %1350 : vector<9x8x2xf32>
    %cst_486 = arith.constant 1.000000e+00 : f32
    %1352 = vector.broadcast %cst_486 : f32 to vector<9x8x2xf32>
    %1353 = arith.addf %1352, %1351 : vector<9x8x2xf32>
    %1354 = arith.divf %1352, %1353 : vector<9x8x2xf32>
    %1355 = vector.broadcast %1341 : vector<9x8x1xf32> to vector<9x8x2xf32>
    %1356 = arith.mulf %1354, %1355 : vector<9x8x2xf32>
    %1357 = arith.maximumf %1339, %1356 : vector<9x8x2xf32>
    %c0_487 = arith.constant 0 : index
    %c0_488 = arith.constant 0 : index
    %c0_489 = arith.constant 0 : index
    %c0_490 = arith.constant 0 : index
    %1358 = vector.load %arg5[%c0_487, %c0_488, %c0_489, %c0_490] : memref<2x9x8x2xf32, #tpu.memory_space<vmem>>, vector<1x9x8x2xf32>
    %1359 = vector.shape_cast %1358 : vector<1x9x8x2xf32> to vector<9x8x2xf32>
    %1360 = vector.shape_cast %1349 : vector<9x8x2xf32> to vector<1x9x8x2xf32>
    tpu.vector_store %arg5[%c0_487, %c0_488, %c0_489, %c0_490], %1360 {strides = array<i32>} : memref<2x9x8x2xf32, #tpu.memory_space<vmem>>, vector<1x9x8x2xf32>,
    %c1_491 = arith.constant 1 : index
    %c0_492 = arith.constant 0 : index
    %c0_493 = arith.constant 0 : index
    %c0_494 = arith.constant 0 : index
    %1361 = vector.load %arg5[%c1_491, %c0_492, %c0_493, %c0_494] : memref<2x9x8x2xf32, #tpu.memory_space<vmem>>, vector<1x9x8x2xf32>
    %1362 = vector.shape_cast %1361 : vector<1x9x8x2xf32> to vector<9x8x2xf32>
    %1363 = vector.shape_cast %1357 : vector<9x8x2xf32> to vector<1x9x8x2xf32>
    tpu.vector_store %arg5[%c1_491, %c0_492, %c0_493, %c0_494], %1363 {strides = array<i32>} : memref<2x9x8x2xf32, #tpu.memory_space<vmem>>, vector<1x9x8x2xf32>,
    return
  }
  func.func @transform_0(%arg0: i32) -> (i32, i32, i32, i32) {
    %c0_i32 = arith.constant 0 : i32
    %c0_i32_0 = arith.constant 0 : i32
    %c0_i32_1 = arith.constant 0 : i32
    %c0_i32_2 = arith.constant 0 : i32
    return %c0_i32, %c0_i32_0, %c0_i32_1, %arg0 : i32, i32, i32, i32
  }
  func.func @transform_1(%arg0: i32) -> (i32, i32, i32, i32) {
    %c0_i32 = arith.constant 0 : i32
    %c0_i32_0 = arith.constant 0 : i32
    %c0_i32_1 = arith.constant 0 : i32
    %c0_i32_2 = arith.constant 0 : i32
    %c0_i32_3 = arith.constant 0 : i32
    return %c0_i32, %c0_i32_0, %c0_i32_1, %c0_i32_2 : i32, i32, i32, i32
  }
  func.func @transform_2(%arg0: i32) -> i32 {
    %c0_i32 = arith.constant 0 : i32
    %c0_i32_0 = arith.constant 0 : i32
    return %c0_i32 : i32
  }
  func.func @transform_3(%arg0: i32) -> i32 {
    %c0_i32 = arith.constant 0 : i32
    %c0_i32_0 = arith.constant 0 : i32
    return %c0_i32 : i32
  }
  func.func @transform_4(%arg0: i32) -> (i32, i32, i32, i32) {
    %c0_i32 = arith.constant 0 : i32
    %c0_i32_0 = arith.constant 0 : i32
    %c0_i32_1 = arith.constant 0 : i32
    %c0_i32_2 = arith.constant 0 : i32
    return %c0_i32, %c0_i32_0, %c0_i32_1, %arg0 : i32, i32, i32, i32
  }
}

</mosaic_0001>

<llo_original>
// kernel: model_forward.1
$region0: #{model_forward.1}
  #allocation0 [shape = 'u32[]', space=smem, size = 0x4, offset = 0x4, fixed_abs, tag = 'smem constant byte address 0x4 - core index']
  #allocation1 [shape = 'u32[144,128]{1,0:T(1,128)}', space=vmem, size = 0x12000, scoped, tag = 'internal scratch']
  %s0 = inlined_call_operand.vmem [shape: f32[12,10,10,2], index: 0, kind: input, shape index: {}]
  %s1 = inlined_call_operand.vmem [shape: f32[4,9,8,1], index: 1, kind: input, shape index: {}]
  %s2 = inlined_call_operand.vmem [shape: f32[72], index: 2, kind: input, shape index: {}]
  %s3 = inlined_call_operand.vmem [shape: f32[2], index: 3, kind: input, shape index: {}]
  %s4 = inlined_call_operand.vmem [shape: f32[2,9,8,2], index: 4, kind: output, shape index: {}]
  %s5 = sld [smem:[#allocation0]]
  $region34: #{model_forward.1} parent=0
    _
  %s7 = ssub.s32 1, %s5
  %s8 = scalar_select 0, %s7, %s5
  $region1: #{model_forward.1} parent=0
    #allocation2 [shape = 'u8[512]{0}', space=smem, size = 0x200, scoped, tag = 'input window, operand 2, single buffered']
    #allocation3 [shape = 's32[1]{0}', space=sflag, size = 0x4, scoped, tag = 'scoped memory for model_forward.1']
    #allocation4 [shape = 'u8[512]{0}', space=smem, size = 0x200, scoped, tag = 'input window, operand 3, single buffered']
    #allocation5 [shape = 's32[1]{0}', space=sflag, size = 0x4, scoped, tag = 'scoped memory for model_forward.1']
    %9 = vsyncpa [#allocation3], 0
    %10 = vsyncpa [#allocation5], 0
    // Predicated region
    $region2: #{model_forward.1} parent=1 // pred_check
      _
    $region3: #{model_forward.1} parent=1 // pred_check_branch
      %12 = sbr.rel (0) target = $region5
    $region4: #{model_forward.1} parent=1 // pred_region
      _
    $region5: #{model_forward.1} parent=1 // pred_fallthru
      _
    // Predicated region
    $region6: #{model_forward.1} parent=1 // pred_check
      _
    $region7: #{model_forward.1} parent=1 // pred_check_branch
      %14 = sbr.rel (0) target = $region9
    $region8: #{model_forward.1} parent=1 // pred_region
      _
    $region9: #{model_forward.1} parent=1 // pred_fallthru
      _
    // Predicated region
    $region10: #{model_forward.1} parent=1 // pred_check
      _
    $region11: #{model_forward.1} parent=1 // pred_check_branch
      %16 = sbr.rel (0) target = $region13
    $region12: #{model_forward.1} parent=1 // pred_region
      %s18 = ssub.s32 16, 16
      %19 = vsyncadd [#allocation3], %s18
      %s21 = sshll.u32 %s2, 4
      %s22 = int_to_ptr.vmem [resolvable:$true] %s21
      %24 = dma.vmem_to_smem %s22, 16, [#allocation2], [#allocation3]
    $region13: #{model_forward.1} parent=1 // pred_fallthru
      _
    // Predicated region
    $region14: #{model_forward.1} parent=1 // pred_check
      _
    $region15: #{model_forward.1} parent=1 // pred_check_branch
      %26 = sbr.rel (0) target = $region17
    $region16: #{model_forward.1} parent=1 // pred_region
      %s28 = ssub.s32 16, 16
      %29 = vsyncadd [#allocation5], %s28
      %s31 = sshll.u32 %s3, 4
      %s32 = int_to_ptr.vmem [resolvable:$true] %s31
      %34 = dma.vmem_to_smem %s32, 16, [#allocation4], [#allocation5]
    $region17: #{model_forward.1} parent=1 // pred_fallthru
      _
    // Predicated region
    $region18: #{model_forward.1} parent=1 // pred_check
      _
    $region19: #{model_forward.1} parent=1 // pred_check_branch
      %36 = sbr.rel (0) target = $region21
    $region20: #{model_forward.1} parent=1 // pred_region
      %37 = dma.done [#allocation3], 16
    $region21: #{model_forward.1} parent=1 // pred_fallthru
      _
    // Predicated region
    $region22: #{model_forward.1} parent=1 // pred_check
      _
    $region23: #{model_forward.1} parent=1 // pred_check_branch
      %39 = sbr.rel (0) target = $region25
    $region24: #{model_forward.1} parent=1 // pred_region
      %40 = dma.done [#allocation5], 16
    $region25: #{model_forward.1} parent=1 // pred_fallthru
      _
    %41 = sfence
    %s42 = sld [smem:[#allocation4]]
    %v43 = vstv %s42
    %s44 = sld [smem:[#allocation4 + $0x1]]
    %v45 = vstv %s44
    %v46 = vld [vmem:[%s0] sm:$0xff]
    %v47 = vld [vmem:[%s0 + $0x10] sm:$0xff]
    %v48 = vld [vmem:[%s0 + $0x20] sm:$0xff]
    %v49 = vld [vmem:[%s0 + $0x30] sm:$0xff]
    %v50 = vld [vmem:[%s0 + $0x40] sm:$0xff]
    %v51 = vld [vmem:[%s0 + $0x50] sm:$0xff]
    %v52 = vld [vmem:[%s0 + $0x60] sm:$0xff]
    %v53 = vld [vmem:[%s0 + $0x70] sm:$0xff]
    %v54 = vld [vmem:[%s0 + $0x80] sm:$0xff]
    %s55 = sld [smem:[#allocation2]]
    %v56 = vstv %s55
    %v57 = vmul.f32 %v56, %v46
    %v58 = vmul.f32 %v56, %v47
    %v59 = vmul.f32 %v56, %v48
    %v60 = vmul.f32 %v56, %v49
    %v61 = vmul.f32 %v56, %v50
    %v62 = vmul.f32 %v56, %v51
    %v63 = vmul.f32 %v56, %v52
    %v64 = vmul.f32 %v56, %v53
    %v65 = vmul.f32 %v56, %v54
    %v66 = vadd.f32 %v43, %v57
    %v67 = vadd.f32 %v43, %v58
    %v68 = vadd.f32 %v43, %v59
    %v69 = vadd.f32 %v43, %v60
    %v70 = vadd.f32 %v43, %v61
    %v71 = vadd.f32 %v43, %v62
    %v72 = vadd.f32 %v43, %v63
    %v73 = vadd.f32 %v43, %v64
    %v74 = vadd.f32 %v43, %v65
    %s75 = sld [smem:[#allocation2 + $0x24]]
    %v76 = vstv %s75
    %v77 = vmul.f32 %v76, %v46
    %v78 = vmul.f32 %v76, %v47
    %v79 = vmul.f32 %v76, %v48
    %v80 = vmul.f32 %v76, %v49
    %v81 = vmul.f32 %v76, %v50
    %v82 = vmul.f32 %v76, %v51
    %v83 = vmul.f32 %v76, %v52
    %v84 = vmul.f32 %v76, %v53
    %v85 = vmul.f32 %v76, %v54
    %v86 = vadd.f32 %v45, %v77
    %v87 = vadd.f32 %v45, %v78
    %v88 = vadd.f32 %v45, %v79
    %v89 = vadd.f32 %v45, %v80
    %v90 = vadd.f32 %v45, %v81
    %v91 = vadd.f32 %v45, %v82
    %v92 = vadd.f32 %v45, %v83
    %v93 = vadd.f32 %v45, %v84
    %v94 = vadd.f32 %v45, %v85
    %s95 = scalar_lea.vmem %s0, 160
    %v96 = vld [vmem:[%s95] sm:$0xff]
    %v97 = vld [vmem:[%s95 + $0x10] sm:$0xff]
    %v98 = vld [vmem:[%s95 + $0x20] sm:$0xff]
    %v99 = vld [vmem:[%s95 + $0x30] sm:$0xff]
    %v100 = vld [vmem:[%s95 + $0x40] sm:$0xff]
    %v101 = vld [vmem:[%s95 + $0x50] sm:$0xff]
    %v102 = vld [vmem:[%s95 + $0x60] sm:$0xff]
    %v103 = vld [vmem:[%s95 + $0x70] sm:$0xff]
    %v104 = vld [vmem:[%s95 + $0x80] sm:$0xff]
    %s105 = sld [smem:[#allocation2 + $0x1]]
    %v106 = vstv %s105
    %v107 = vmul.f32 %v106, %v96
    %v108 = vmul.f32 %v106, %v97
    %v109 = vmul.f32 %v106, %v98
    %v110 = vmul.f32 %v106, %v99
    %v111 = vmul.f32 %v106, %v100
    %v112 = vmul.f32 %v106, %v101
    %v113 = vmul.f32 %v106, %v102
    %v114 = vmul.f32 %v106, %v103
    %v115 = vmul.f32 %v106, %v104
    %v116 = vadd.f32 %v66, %v107
    %v117 = vadd.f32 %v67, %v108
    %v118 = vadd.f32 %v68, %v109
    %v119 = vadd.f32 %v69, %v110
    %v120 = vadd.f32 %v70, %v111
    %v121 = vadd.f32 %v71, %v112
    %v122 = vadd.f32 %v72, %v113
    %v123 = vadd.f32 %v73, %v114
    %v124 = vadd.f32 %v74, %v115
    %s125 = sld [smem:[#allocation2 + $0x25]]
    %v126 = vstv %s125
    %v127 = vmul.f32 %v126, %v96
    %v128 = vmul.f32 %v126, %v97
    %v129 = vmul.f32 %v126, %v98
    %v130 = vmul.f32 %v126, %v99
    %v131 = vmul.f32 %v126, %v100
    %v132 = vmul.f32 %v126, %v101
    %v133 = vmul.f32 %v126, %v102
    %v134 = vmul.f32 %v126, %v103
    %v135 = vmul.f32 %v126, %v104
    %v136 = vadd.f32 %v86, %v127
    %v137 = vadd.f32 %v87, %v128
    %v138 = vadd.f32 %v88, %v129
    %v139 = vadd.f32 %v89, %v130
    %v140 = vadd.f32 %v90, %v131
    %v141 = vadd.f32 %v91, %v132
    %v142 = vadd.f32 %v92, %v133
    %v143 = vadd.f32 %v93, %v134
    %v144 = vadd.f32 %v94, %v135
    %v145 = vmul.f32 %v56, %v96
    %v146 = vmul.f32 %v56, %v97
    %v147 = vmul.f32 %v56, %v98
    %v148 = vmul.f32 %v56, %v99
    %v149 = vmul.f32 %v56, %v100
    %v150 = vmul.f32 %v56, %v101
    %v151 = vmul.f32 %v56, %v102
    %v152 = vmul.f32 %v56, %v103
    %v153 = vmul.f32 %v56, %v104
    %v154 = vadd.f32 %v43, %v145
    %v155 = vadd.f32 %v43, %v146
    %v156 = vadd.f32 %v43, %v147
    %v157 = vadd.f32 %v43, %v148
    %v158 = vadd.f32 %v43, %v149
    %v159 = vadd.f32 %v43, %v150
    %v160 = vadd.f32 %v43, %v151
    %v161 = vadd.f32 %v43, %v152
    %v162 = vadd.f32 %v43, %v153
    %v163 = vmul.f32 %v76, %v96
    %v164 = vmul.f32 %v76, %v97
    %v165 = vmul.f32 %v76, %v98
    %v166 = vmul.f32 %v76, %v99
    %v167 = vmul.f32 %v76, %v100
    %v168 = vmul.f32 %v76, %v101
    %v169 = vmul.f32 %v76, %v102
    %v170 = vmul.f32 %v76, %v103
    %v171 = vmul.f32 %v76, %v104
    %v172 = vadd.f32 %v45, %v163
    %v173 = vadd.f32 %v45, %v164
    %v174 = vadd.f32 %v45, %v165
    %v175 = vadd.f32 %v45, %v166
    %v176 = vadd.f32 %v45, %v167
    %v177 = vadd.f32 %v45, %v168
    %v178 = vadd.f32 %v45, %v169
    %v179 = vadd.f32 %v45, %v170
    %v180 = vadd.f32 %v45, %v171
    %v181 = vld [vmem:[%s0 + $0x1] sm:$0xff]
    %v182 = vld [vmem:[%s0 + $0x11] sm:$0xff]
    %v183 = vld [vmem:[%s0 + $0x21] sm:$0xff]
    %v184 = vld [vmem:[%s0 + $0x31] sm:$0xff]
    %v185 = vld [vmem:[%s0 + $0x41] sm:$0xff]
    %v186 = vld [vmem:[%s0 + $0x51] sm:$0xff]
    %v187 = vld [vmem:[%s0 + $0x61] sm:$0xff]
    %v188 = vld [vmem:[%s0 + $0x71] sm:$0xff]
    %v189 = vld [vmem:[%s0 + $0x81] sm:$0xff]
    %s190 = sld [smem:[#allocation2 + $0x2]]
    %v191 = vstv %s190
    %v192 = vmul.f32 %v191, %v181
    %v193 = vmul.f32 %v191, %v182
    %v194 = vmul.f32 %v191, %v183
    %v195 = vmul.f32 %v191, %v184
    %v196 = vmul.f32 %v191, %v185
    %v197 = vmul.f32 %v191, %v186
    %v198 = vmul.f32 %v191, %v187
    %v199 = vmul.f32 %v191, %v188
    %v200 = vmul.f32 %v191, %v189
    %v201 = vadd.f32 %v116, %v192
    %v202 = vadd.f32 %v117, %v193
    %v203 = vadd.f32 %v118, %v194
    %v204 = vadd.f32 %v119, %v195
    %v205 = vadd.f32 %v120, %v196
    %v206 = vadd.f32 %v121, %v197
    %v207 = vadd.f32 %v122, %v198
    %v208 = vadd.f32 %v123, %v199
    %v209 = vadd.f32 %v124, %v200
    %s210 = sld [smem:[#allocation2 + $0x26]]
    %v211 = vstv %s210
    %v212 = vmul.f32 %v211, %v181
    %v213 = vmul.f32 %v211, %v182
    %v214 = vmul.f32 %v211, %v183
    %v215 = vmul.f32 %v211, %v184
    %v216 = vmul.f32 %v211, %v185
    %v217 = vmul.f32 %v211, %v186
    %v218 = vmul.f32 %v211, %v187
    %v219 = vmul.f32 %v211, %v188
    %v220 = vmul.f32 %v211, %v189
    %v221 = vadd.f32 %v136, %v212
    %v222 = vadd.f32 %v137, %v213
    %v223 = vadd.f32 %v138, %v214
    %v224 = vadd.f32 %v139, %v215
    %v225 = vadd.f32 %v140, %v216
    %v226 = vadd.f32 %v141, %v217
    %v227 = vadd.f32 %v142, %v218
    %v228 = vadd.f32 %v143, %v219
    %v229 = vadd.f32 %v144, %v220
    %v230 = vmul.f32 %v106, %v181
    %v231 = vmul.f32 %v106, %v182
    %v232 = vmul.f32 %v106, %v183
    %v233 = vmul.f32 %v106, %v184
    %v234 = vmul.f32 %v106, %v185
    %v235 = vmul.f32 %v106, %v186
    %v236 = vmul.f32 %v106, %v187
    %v237 = vmul.f32 %v106, %v188
    %v238 = vmul.f32 %v106, %v189
    %v239 = vadd.f32 %v154, %v230
    %v240 = vadd.f32 %v155, %v231
    %v241 = vadd.f32 %v156, %v232
    %v242 = vadd.f32 %v157, %v233
    %v243 = vadd.f32 %v158, %v234
    %v244 = vadd.f32 %v159, %v235
    %v245 = vadd.f32 %v160, %v236
    %v246 = vadd.f32 %v161, %v237
    %v247 = vadd.f32 %v162, %v238
    %v248 = vmul.f32 %v126, %v181
    %v249 = vmul.f32 %v126, %v182
    %v250 = vmul.f32 %v126, %v183
    %v251 = vmul.f32 %v126, %v184
    %v252 = vmul.f32 %v126, %v185
    %v253 = vmul.f32 %v126, %v186
    %v254 = vmul.f32 %v126, %v187
    %v255 = vmul.f32 %v126, %v188
    %v256 = vmul.f32 %v126, %v189
    %v257 = vadd.f32 %v172, %v248
    %v258 = vadd.f32 %v173, %v249
    %v259 = vadd.f32 %v174, %v250
    %v260 = vadd.f32 %v175, %v251
    %v261 = vadd.f32 %v176, %v252
    %v262 = vadd.f32 %v177, %v253
    %v263 = vadd.f32 %v178, %v254
    %v264 = vadd.f32 %v179, %v255
    %v265 = vadd.f32 %v180, %v256
    %v266 = vld [vmem:[%s95 + $0x1] sm:$0xff]
    %v267 = vld [vmem:[%s95 + $0x11] sm:$0xff]
    %v268 = vld [vmem:[%s95 + $0x21] sm:$0xff]
    %v269 = vld [vmem:[%s95 + $0x31] sm:$0xff]
    %v270 = vld [vmem:[%s95 + $0x41] sm:$0xff]
    %v271 = vld [vmem:[%s95 + $0x51] sm:$0xff]
    %v272 = vld [vmem:[%s95 + $0x61] sm:$0xff]
    %v273 = vld [vmem:[%s95 + $0x71] sm:$0xff]
    %v274 = vld [vmem:[%s95 + $0x81] sm:$0xff]
    %s275 = sld [smem:[#allocation2 + $0x3]]
    %v276 = vstv %s275
    %v277 = vmul.f32 %v276, %v266
    %v278 = vmul.f32 %v276, %v267
    %v279 = vmul.f32 %v276, %v268
    %v280 = vmul.f32 %v276, %v269
    %v281 = vmul.f32 %v276, %v270
    %v282 = vmul.f32 %v276, %v271
    %v283 = vmul.f32 %v276, %v272
    %v284 = vmul.f32 %v276, %v273
    %v285 = vmul.f32 %v276, %v274
    %v286 = vadd.f32 %v201, %v277
    %v287 = vadd.f32 %v202, %v278
    %v288 = vadd.f32 %v203, %v279
    %v289 = vadd.f32 %v204, %v280
    %v290 = vadd.f32 %v205, %v281
    %v291 = vadd.f32 %v206, %v282
    %v292 = vadd.f32 %v207, %v283
    %v293 = vadd.f32 %v208, %v284
    %v294 = vadd.f32 %v209, %v285
    %s295 = sld [smem:[#allocation2 + $0x27]]
    %v296 = vstv %s295
    %v297 = vmul.f32 %v296, %v266
    %v298 = vmul.f32 %v296, %v267
    %v299 = vmul.f32 %v296, %v268
    %v300 = vmul.f32 %v296, %v269
    %v301 = vmul.f32 %v296, %v270
    %v302 = vmul.f32 %v296, %v271
    %v303 = vmul.f32 %v296, %v272
    %v304 = vmul.f32 %v296, %v273
    %v305 = vmul.f32 %v296, %v274
    %v306 = vadd.f32 %v221, %v297
    %v307 = vadd.f32 %v222, %v298
    %v308 = vadd.f32 %v223, %v299
    %v309 = vadd.f32 %v224, %v300
    %v310 = vadd.f32 %v225, %v301
    %v311 = vadd.f32 %v226, %v302
    %v312 = vadd.f32 %v227, %v303
    %v313 = vadd.f32 %v228, %v304
    %v314 = vadd.f32 %v229, %v305
    %v315 = vmul.f32 %v191, %v266
    %v316 = vmul.f32 %v191, %v267
    %v317 = vmul.f32 %v191, %v268
    %v318 = vmul.f32 %v191, %v269
    %v319 = vmul.f32 %v191, %v270
    %v320 = vmul.f32 %v191, %v271
    %v321 = vmul.f32 %v191, %v272
    %v322 = vmul.f32 %v191, %v273
    %v323 = vmul.f32 %v191, %v274
    %v324 = vadd.f32 %v239, %v315
    %v325 = vadd.f32 %v240, %v316
    %v326 = vadd.f32 %v241, %v317
    %v327 = vadd.f32 %v242, %v318
    %v328 = vadd.f32 %v243, %v319
    %v329 = vadd.f32 %v244, %v320
    %v330 = vadd.f32 %v245, %v321
    %v331 = vadd.f32 %v246, %v322
    %v332 = vadd.f32 %v247, %v323
    %v333 = vmul.f32 %v211, %v266
    %v334 = vmul.f32 %v211, %v267
    %v335 = vmul.f32 %v211, %v268
    %v336 = vmul.f32 %v211, %v269
    %v337 = vmul.f32 %v211, %v270
    %v338 = vmul.f32 %v211, %v271
    %v339 = vmul.f32 %v211, %v272
    %v340 = vmul.f32 %v211, %v273
    %v341 = vmul.f32 %v211, %v274
    %v342 = vadd.f32 %v257, %v333
    %v343 = vadd.f32 %v258, %v334
    %v344 = vadd.f32 %v259, %v335
    %v345 = vadd.f32 %v260, %v336
    %v346 = vadd.f32 %v261, %v337
    %v347 = vadd.f32 %v262, %v338
    %v348 = vadd.f32 %v263, %v339
    %v349 = vadd.f32 %v264, %v340
    %v350 = vadd.f32 %v265, %v341
    %v351 = vld [vmem:[%s0 + $0x2] sm:$0xff]
    %v352 = vld [vmem:[%s0 + $0x12] sm:$0xff]
    %v353 = vld [vmem:[%s0 + $0x22] sm:$0xff]
    %v354 = vld [vmem:[%s0 + $0x32] sm:$0xff]
    %v355 = vld [vmem:[%s0 + $0x42] sm:$0xff]
    %v356 = vld [vmem:[%s0 + $0x52] sm:$0xff]
    %v357 = vld [vmem:[%s0 + $0x62] sm:$0xff]
    %v358 = vld [vmem:[%s0 + $0x72] sm:$0xff]
    %v359 = vld [vmem:[%s0 + $0x82] sm:$0xff]
    %v360 = vmul.f32 %v276, %v351
    %v361 = vmul.f32 %v276, %v352
    %v362 = vmul.f32 %v276, %v353
    %v363 = vmul.f32 %v276, %v354
    %v364 = vmul.f32 %v276, %v355
    %v365 = vmul.f32 %v276, %v356
    %v366 = vmul.f32 %v276, %v357
    %v367 = vmul.f32 %v276, %v358
    %v368 = vmul.f32 %v276, %v359
    %v369 = vadd.f32 %v324, %v360
    %v370 = vadd.f32 %v325, %v361
    %v371 = vadd.f32 %v326, %v362
    %v372 = vadd.f32 %v327, %v363
    %v373 = vadd.f32 %v328, %v364
    %v374 = vadd.f32 %v329, %v365
    %v375 = vadd.f32 %v330, %v366
    %v376 = vadd.f32 %v331, %v367
    %v377 = vadd.f32 %v332, %v368
    %v378 = vmul.f32 %v296, %v351
    %v379 = vmul.f32 %v296, %v352
    %v380 = vmul.f32 %v296, %v353
    %v381 = vmul.f32 %v296, %v354
    %v382 = vmul.f32 %v296, %v355
    %v383 = vmul.f32 %v296, %v356
    %v384 = vmul.f32 %v296, %v357
    %v385 = vmul.f32 %v296, %v358
    %v386 = vmul.f32 %v296, %v359
    %v387 = vadd.f32 %v342, %v378
    %v388 = vadd.f32 %v343, %v379
    %v389 = vadd.f32 %v344, %v380
    %v390 = vadd.f32 %v345, %v381
    %v391 = vadd.f32 %v346, %v382
    %v392 = vadd.f32 %v347, %v383
    %v393 = vadd.f32 %v348, %v384
    %v394 = vadd.f32 %v349, %v385
    %v395 = vadd.f32 %v350, %v386
    %s396 = scalar_lea.vmem %s0, 320
    %v397 = vld [vmem:[%s396] sm:$0xff]
    %v398 = vld [vmem:[%s396 + $0x10] sm:$0xff]
    %v399 = vld [vmem:[%s396 + $0x20] sm:$0xff]
    %v400 = vld [vmem:[%s396 + $0x30] sm:$0xff]
    %v401 = vld [vmem:[%s396 + $0x40] sm:$0xff]
    %v402 = vld [vmem:[%s396 + $0x50] sm:$0xff]
    %v403 = vld [vmem:[%s396 + $0x60] sm:$0xff]
    %v404 = vld [vmem:[%s396 + $0x70] sm:$0xff]
    %v405 = vld [vmem:[%s396 + $0x80] sm:$0xff]
    %s406 = sld [smem:[#allocation2 + $0x4]]
    %v407 = vstv %s406
    %v408 = vmul.f32 %v407, %v397
    %v409 = vmul.f32 %v407, %v398
    %v410 = vmul.f32 %v407, %v399
    %v411 = vmul.f32 %v407, %v400
    %v412 = vmul.f32 %v407, %v401
    %v413 = vmul.f32 %v407, %v402
    %v414 = vmul.f32 %v407, %v403
    %v415 = vmul.f32 %v407, %v404
    %v416 = vmul.f32 %v407, %v405
    %v417 = vadd.f32 %v286, %v408
    %v418 = vadd.f32 %v287, %v409
    %v419 = vadd.f32 %v288, %v410
    %v420 = vadd.f32 %v289, %v411
    %v421 = vadd.f32 %v290, %v412
    %v422 = vadd.f32 %v291, %v413
    %v423 = vadd.f32 %v292, %v414
    %v424 = vadd.f32 %v293, %v415
    %v425 = vadd.f32 %v294, %v416
    %s426 = sld [smem:[#allocation2 + $0x28]]
    %v427 = vstv %s426
    %v428 = vmul.f32 %v427, %v397
    %v429 = vmul.f32 %v427, %v398
    %v430 = vmul.f32 %v427, %v399
    %v431 = vmul.f32 %v427, %v400
    %v432 = vmul.f32 %v427, %v401
    %v433 = vmul.f32 %v427, %v402
    %v434 = vmul.f32 %v427, %v403
    %v435 = vmul.f32 %v427, %v404
    %v436 = vmul.f32 %v427, %v405
    %v437 = vadd.f32 %v306, %v428
    %v438 = vadd.f32 %v307, %v429
    %v439 = vadd.f32 %v308, %v430
    %v440 = vadd.f32 %v309, %v431
    %v441 = vadd.f32 %v310, %v432
    %v442 = vadd.f32 %v311, %v433
    %v443 = vadd.f32 %v312, %v434
    %v444 = vadd.f32 %v313, %v435
    %v445 = vadd.f32 %v314, %v436
    %v446 = vmul.f32 %v56, %v397
    %v447 = vmul.f32 %v56, %v398
    %v448 = vmul.f32 %v56, %v399
    %v449 = vmul.f32 %v56, %v400
    %v450 = vmul.f32 %v56, %v401
    %v451 = vmul.f32 %v56, %v402
    %v452 = vmul.f32 %v56, %v403
    %v453 = vmul.f32 %v56, %v404
    %v454 = vmul.f32 %v56, %v405
    %v455 = vadd.f32 %v43, %v446
    %v456 = vadd.f32 %v43, %v447
    %v457 = vadd.f32 %v43, %v448
    %v458 = vadd.f32 %v43, %v449
    %v459 = vadd.f32 %v43, %v450
    %v460 = vadd.f32 %v43, %v451
    %v461 = vadd.f32 %v43, %v452
    %v462 = vadd.f32 %v43, %v453
    %v463 = vadd.f32 %v43, %v454
    %v464 = vmul.f32 %v76, %v397
    %v465 = vmul.f32 %v76, %v398
    %v466 = vmul.f32 %v76, %v399
    %v467 = vmul.f32 %v76, %v400
    %v468 = vmul.f32 %v76, %v401
    %v469 = vmul.f32 %v76, %v402
    %v470 = vmul.f32 %v76, %v403
    %v471 = vmul.f32 %v76, %v404
    %v472 = vmul.f32 %v76, %v405
    %v473 = vadd.f32 %v45, %v464
    %v474 = vadd.f32 %v45, %v465
    %v475 = vadd.f32 %v45, %v466
    %v476 = vadd.f32 %v45, %v467
    %v477 = vadd.f32 %v45, %v468
    %v478 = vadd.f32 %v45, %v469
    %v479 = vadd.f32 %v45, %v470
    %v480 = vadd.f32 %v45, %v471
    %v481 = vadd.f32 %v45, %v472
    %s482 = scalar_lea.vmem %s0, 480
    %v483 = vld [vmem:[%s482] sm:$0xff]
    %v484 = vld [vmem:[%s482 + $0x10] sm:$0xff]
    %v485 = vld [vmem:[%s482 + $0x20] sm:$0xff]
    %v486 = vld [vmem:[%s482 + $0x30] sm:$0xff]
    %v487 = vld [vmem:[%s482 + $0x40] sm:$0xff]
    %v488 = vld [vmem:[%s482 + $0x50] sm:$0xff]
    %v489 = vld [vmem:[%s482 + $0x60] sm:$0xff]
    %v490 = vld [vmem:[%s482 + $0x70] sm:$0xff]
    %v491 = vld [vmem:[%s482 + $0x80] sm:$0xff]
    %s492 = sld [smem:[#allocation2 + $0x5]]
    %v493 = vstv %s492
    %v494 = vmul.f32 %v493, %v483
    %v495 = vmul.f32 %v493, %v484
    %v496 = vmul.f32 %v493, %v485
    %v497 = vmul.f32 %v493, %v486
    %v498 = vmul.f32 %v493, %v487
    %v499 = vmul.f32 %v493, %v488
    %v500 = vmul.f32 %v493, %v489
    %v501 = vmul.f32 %v493, %v490
    %v502 = vmul.f32 %v493, %v491
    %v503 = vadd.f32 %v417, %v494
    %v504 = vadd.f32 %v418, %v495
    %v505 = vadd.f32 %v419, %v496
    %v506 = vadd.f32 %v420, %v497
    %v507 = vadd.f32 %v421, %v498
    %v508 = vadd.f32 %v422, %v499
    %v509 = vadd.f32 %v423, %v500
    %v510 = vadd.f32 %v424, %v501
    %v511 = vadd.f32 %v425, %v502
    %s512 = sld [smem:[#allocation2 + $0x29]]
    %v513 = vstv %s512
    %v514 = vmul.f32 %v513, %v483
    %v515 = vmul.f32 %v513, %v484
    %v516 = vmul.f32 %v513, %v485
    %v517 = vmul.f32 %v513, %v486
    %v518 = vmul.f32 %v513, %v487
    %v519 = vmul.f32 %v513, %v488
    %v520 = vmul.f32 %v513, %v489
    %v521 = vmul.f32 %v513, %v490
    %v522 = vmul.f32 %v513, %v491
    %v523 = vadd.f32 %v437, %v514
    %v524 = vadd.f32 %v438, %v515
    %v525 = vadd.f32 %v439, %v516
    %v526 = vadd.f32 %v440, %v517
    %v527 = vadd.f32 %v441, %v518
    %v528 = vadd.f32 %v442, %v519
    %v529 = vadd.f32 %v443, %v520
    %v530 = vadd.f32 %v444, %v521
    %v531 = vadd.f32 %v445, %v522
    %v532 = vmul.f32 %v407, %v483
    %v533 = vmul.f32 %v407, %v484
    %v534 = vmul.f32 %v407, %v485
    %v535 = vmul.f32 %v407, %v486
    %v536 = vmul.f32 %v407, %v487
    %v537 = vmul.f32 %v407, %v488
    %v538 = vmul.f32 %v407, %v489
    %v539 = vmul.f32 %v407, %v490
    %v540 = vmul.f32 %v407, %v491
    %v541 = vadd.f32 %v369, %v532
    %v542 = vadd.f32 %v370, %v533
    %v543 = vadd.f32 %v371, %v534
    %v544 = vadd.f32 %v372, %v535
    %v545 = vadd.f32 %v373, %v536
    %v546 = vadd.f32 %v374, %v537
    %v547 = vadd.f32 %v375, %v538
    %v548 = vadd.f32 %v376, %v539
    %v549 = vadd.f32 %v377, %v540
    %v550 = vmul.f32 %v427, %v483
    %v551 = vmul.f32 %v427, %v484
    %v552 = vmul.f32 %v427, %v485
    %v553 = vmul.f32 %v427, %v486
    %v554 = vmul.f32 %v427, %v487
    %v555 = vmul.f32 %v427, %v488
    %v556 = vmul.f32 %v427, %v489
    %v557 = vmul.f32 %v427, %v490
    %v558 = vmul.f32 %v427, %v491
    %v559 = vadd.f32 %v387, %v550
    %v560 = vadd.f32 %v388, %v551
    %v561 = vadd.f32 %v389, %v552
    %v562 = vadd.f32 %v390, %v553
    %v563 = vadd.f32 %v391, %v554
    %v564 = vadd.f32 %v392, %v555
    %v565 = vadd.f32 %v393, %v556
    %v566 = vadd.f32 %v394, %v557
    %v567 = vadd.f32 %v395, %v558
    %v568 = vmul.f32 %v106, %v483
    %v569 = vmul.f32 %v106, %v484
    %v570 = vmul.f32 %v106, %v485
    %v571 = vmul.f32 %v106, %v486
    %v572 = vmul.f32 %v106, %v487
    %v573 = vmul.f32 %v106, %v488
    %v574 = vmul.f32 %v106, %v489
    %v575 = vmul.f32 %v106, %v490
    %v576 = vmul.f32 %v106, %v491
    %v577 = vadd.f32 %v455, %v568
    %v578 = vadd.f32 %v456, %v569
    %v579 = vadd.f32 %v457, %v570
    %v580 = vadd.f32 %v458, %v571
    %v581 = vadd.f32 %v459, %v572
    %v582 = vadd.f32 %v460, %v573
    %v583 = vadd.f32 %v461, %v574
    %v584 = vadd.f32 %v462, %v575
    %v585 = vadd.f32 %v463, %v576
    %v586 = vmul.f32 %v126, %v483
    %v587 = vmul.f32 %v126, %v484
    %v588 = vmul.f32 %v126, %v485
    %v589 = vmul.f32 %v126, %v486
    %v590 = vmul.f32 %v126, %v487
    %v591 = vmul.f32 %v126, %v488
    %v592 = vmul.f32 %v126, %v489
    %v593 = vmul.f32 %v126, %v490
    %v594 = vmul.f32 %v126, %v491
    %v595 = vadd.f32 %v473, %v586
    %v596 = vadd.f32 %v474, %v587
    %v597 = vadd.f32 %v475, %v588
    %v598 = vadd.f32 %v476, %v589
    %v599 = vadd.f32 %v477, %v590
    %v600 = vadd.f32 %v478, %v591
    %v601 = vadd.f32 %v479, %v592
    %v602 = vadd.f32 %v480, %v593
    %v603 = vadd.f32 %v481, %v594
    %v604 = vmul.f32 %v56, %v483
    %v605 = vmul.f32 %v56, %v484
    %v606 = vmul.f32 %v56, %v485
    %v607 = vmul.f32 %v56, %v486
    %v608 = vmul.f32 %v56, %v487
    %v609 = vmul.f32 %v56, %v488
    %v610 = vmul.f32 %v56, %v489
    %v611 = vmul.f32 %v56, %v490
    %v612 = vmul.f32 %v56, %v491
    %v613 = vadd.f32 %v43, %v604
    %v614 = vadd.f32 %v43, %v605
    %v615 = vadd.f32 %v43, %v606
    %v616 = vadd.f32 %v43, %v607
    %v617 = vadd.f32 %v43, %v608
    %v618 = vadd.f32 %v43, %v609
    %v619 = vadd.f32 %v43, %v610
    %v620 = vadd.f32 %v43, %v611
    %v621 = vadd.f32 %v43, %v612
    %v622 = vmul.f32 %v76, %v483
    %v623 = vmul.f32 %v76, %v484
    %v624 = vmul.f32 %v76, %v485
    %v625 = vmul.f32 %v76, %v486
    %v626 = vmul.f32 %v76, %v487
    %v627 = vmul.f32 %v76, %v488
    %v628 = vmul.f32 %v76, %v489
    %v629 = vmul.f32 %v76, %v490
    %v630 = vmul.f32 %v76, %v491
    %v631 = vadd.f32 %v45, %v622
    %v632 = vadd.f32 %v45, %v623
    %v633 = vadd.f32 %v45, %v624
    %v634 = vadd.f32 %v45, %v625
    %v635 = vadd.f32 %v45, %v626
    %v636 = vadd.f32 %v45, %v627
    %v637 = vadd.f32 %v45, %v628
    %v638 = vadd.f32 %v45, %v629
    %v639 = vadd.f32 %v45, %v630
    %v640 = vld [vmem:[%s396 + $0x1] sm:$0xff]
    %v641 = vld [vmem:[%s396 + $0x11] sm:$0xff]
    %v642 = vld [vmem:[%s396 + $0x21] sm:$0xff]
    %v643 = vld [vmem:[%s396 + $0x31] sm:$0xff]
    %v644 = vld [vmem:[%s396 + $0x41] sm:$0xff]
    %v645 = vld [vmem:[%s396 + $0x51] sm:$0xff]
    %v646 = vld [vmem:[%s396 + $0x61] sm:$0xff]
    %v647 = vld [vmem:[%s396 + $0x71] sm:$0xff]
    %v648 = vld [vmem:[%s396 + $0x81] sm:$0xff]
    %s649 = sld [smem:[#allocation2 + $0x6]]
    %v650 = vstv %s649
    %v651 = vmul.f32 %v650, %v640
    %v652 = vmul.f32 %v650, %v641
    %v653 = vmul.f32 %v650, %v642
    %v654 = vmul.f32 %v650, %v643
    %v655 = vmul.f32 %v650, %v644
    %v656 = vmul.f32 %v650, %v645
    %v657 = vmul.f32 %v650, %v646
    %v658 = vmul.f32 %v650, %v647
    %v659 = vmul.f32 %v650, %v648
    %v660 = vadd.f32 %v503, %v651
    %v661 = vadd.f32 %v504, %v652
    %v662 = vadd.f32 %v505, %v653
    %v663 = vadd.f32 %v506, %v654
    %v664 = vadd.f32 %v507, %v655
    %v665 = vadd.f32 %v508, %v656
    %v666 = vadd.f32 %v509, %v657
    %v667 = vadd.f32 %v510, %v658
    %v668 = vadd.f32 %v511, %v659
    %s669 = sld [smem:[#allocation2 + $0x2a]]
    %v670 = vstv %s669
    %v671 = vmul.f32 %v670, %v640
    %v672 = vmul.f32 %v670, %v641
    %v673 = vmul.f32 %v670, %v642
    %v674 = vmul.f32 %v670, %v643
    %v675 = vmul.f32 %v670, %v644
    %v676 = vmul.f32 %v670, %v645
    %v677 = vmul.f32 %v670, %v646
    %v678 = vmul.f32 %v670, %v647
    %v679 = vmul.f32 %v670, %v648
    %v680 = vadd.f32 %v523, %v671
    %v681 = vadd.f32 %v524, %v672
    %v682 = vadd.f32 %v525, %v673
    %v683 = vadd.f32 %v526, %v674
    %v684 = vadd.f32 %v527, %v675
    %v685 = vadd.f32 %v528, %v676
    %v686 = vadd.f32 %v529, %v677
    %v687 = vadd.f32 %v530, %v678
    %v688 = vadd.f32 %v531, %v679
    %v689 = vmul.f32 %v493, %v640
    %v690 = vmul.f32 %v493, %v641
    %v691 = vmul.f32 %v493, %v642
    %v692 = vmul.f32 %v493, %v643
    %v693 = vmul.f32 %v493, %v644
    %v694 = vmul.f32 %v493, %v645
    %v695 = vmul.f32 %v493, %v646
    %v696 = vmul.f32 %v493, %v647
    %v697 = vmul.f32 %v493, %v648
    %v698 = vadd.f32 %v541, %v689
    %v699 = vadd.f32 %v542, %v690
    %v700 = vadd.f32 %v543, %v691
    %v701 = vadd.f32 %v544, %v692
    %v702 = vadd.f32 %v545, %v693
    %v703 = vadd.f32 %v546, %v694
    %v704 = vadd.f32 %v547, %v695
    %v705 = vadd.f32 %v548, %v696
    %v706 = vadd.f32 %v549, %v697
    %v707 = vmul.f32 %v513, %v640
    %v708 = vmul.f32 %v513, %v641
    %v709 = vmul.f32 %v513, %v642
    %v710 = vmul.f32 %v513, %v643
    %v711 = vmul.f32 %v513, %v644
    %v712 = vmul.f32 %v513, %v645
    %v713 = vmul.f32 %v513, %v646
    %v714 = vmul.f32 %v513, %v647
    %v715 = vmul.f32 %v513, %v648
    %v716 = vadd.f32 %v559, %v707
    %v717 = vadd.f32 %v560, %v708
    %v718 = vadd.f32 %v561, %v709
    %v719 = vadd.f32 %v562, %v710
    %v720 = vadd.f32 %v563, %v711
    %v721 = vadd.f32 %v564, %v712
    %v722 = vadd.f32 %v565, %v713
    %v723 = vadd.f32 %v566, %v714
    %v724 = vadd.f32 %v567, %v715
    %v725 = vmul.f32 %v191, %v640
    %v726 = vmul.f32 %v191, %v641
    %v727 = vmul.f32 %v191, %v642
    %v728 = vmul.f32 %v191, %v643
    %v729 = vmul.f32 %v191, %v644
    %v730 = vmul.f32 %v191, %v645
    %v731 = vmul.f32 %v191, %v646
    %v732 = vmul.f32 %v191, %v647
    %v733 = vmul.f32 %v191, %v648
    %v734 = vadd.f32 %v577, %v725
    %v735 = vadd.f32 %v578, %v726
    %v736 = vadd.f32 %v579, %v727
    %v737 = vadd.f32 %v580, %v728
    %v738 = vadd.f32 %v581, %v729
    %v739 = vadd.f32 %v582, %v730
    %v740 = vadd.f32 %v583, %v731
    %v741 = vadd.f32 %v584, %v732
    %v742 = vadd.f32 %v585, %v733
    %v743 = vmul.f32 %v211, %v640
    %v744 = vmul.f32 %v211, %v641
    %v745 = vmul.f32 %v211, %v642
    %v746 = vmul.f32 %v211, %v643
    %v747 = vmul.f32 %v211, %v644
    %v748 = vmul.f32 %v211, %v645
    %v749 = vmul.f32 %v211, %v646
    %v750 = vmul.f32 %v211, %v647
    %v751 = vmul.f32 %v211, %v648
    %v752 = vadd.f32 %v595, %v743
    %v753 = vadd.f32 %v596, %v744
    %v754 = vadd.f32 %v597, %v745
    %v755 = vadd.f32 %v598, %v746
    %v756 = vadd.f32 %v599, %v747
    %v757 = vadd.f32 %v600, %v748
    %v758 = vadd.f32 %v601, %v749
    %v759 = vadd.f32 %v602, %v750
    %v760 = vadd.f32 %v603, %v751
    %v761 = vmul.f32 %v106, %v640
    %v762 = vmul.f32 %v106, %v641
    %v763 = vmul.f32 %v106, %v642
    %v764 = vmul.f32 %v106, %v643
    %v765 = vmul.f32 %v106, %v644
    %v766 = vmul.f32 %v106, %v645
    %v767 = vmul.f32 %v106, %v646
    %v768 = vmul.f32 %v106, %v647
    %v769 = vmul.f32 %v106, %v648
    %v770 = vadd.f32 %v613, %v761
    %v771 = vadd.f32 %v614, %v762
    %v772 = vadd.f32 %v615, %v763
    %v773 = vadd.f32 %v616, %v764
    %v774 = vadd.f32 %v617, %v765
    %v775 = vadd.f32 %v618, %v766
    %v776 = vadd.f32 %v619, %v767
    %v777 = vadd.f32 %v620, %v768
    %v778 = vadd.f32 %v621, %v769
    %v779 = vmul.f32 %v126, %v640
    %v780 = vmul.f32 %v126, %v641
    %v781 = vmul.f32 %v126, %v642
    %v782 = vmul.f32 %v126, %v643
    %v783 = vmul.f32 %v126, %v644
    %v784 = vmul.f32 %v126, %v645
    %v785 = vmul.f32 %v126, %v646
    %v786 = vmul.f32 %v126, %v647
    %v787 = vmul.f32 %v126, %v648
    %v788 = vadd.f32 %v631, %v779
    %v789 = vadd.f32 %v632, %v780
    %v790 = vadd.f32 %v633, %v781
    %v791 = vadd.f32 %v634, %v782
    %v792 = vadd.f32 %v635, %v783
    %v793 = vadd.f32 %v636, %v784
    %v794 = vadd.f32 %v637, %v785
    %v795 = vadd.f32 %v638, %v786
    %v796 = vadd.f32 %v639, %v787
    %v797 = vld [vmem:[%s482 + $0x1] sm:$0xff]
    %v798 = vld [vmem:[%s482 + $0x11] sm:$0xff]
    %v799 = vld [vmem:[%s482 + $0x21] sm:$0xff]
    %v800 = vld [vmem:[%s482 + $0x31] sm:$0xff]
    %v801 = vld [vmem:[%s482 + $0x41] sm:$0xff]
    %v802 = vld [vmem:[%s482 + $0x51] sm:$0xff]
    %v803 = vld [vmem:[%s482 + $0x61] sm:$0xff]
    %v804 = vld [vmem:[%s482 + $0x71] sm:$0xff]
    %v805 = vld [vmem:[%s482 + $0x81] sm:$0xff]
    %s806 = sld [smem:[#allocation2 + $0x7]]
    %v807 = vstv %s806
    %v808 = vmul.f32 %v807, %v797
    %v809 = vmul.f32 %v807, %v798
    %v810 = vmul.f32 %v807, %v799
    %v811 = vmul.f32 %v807, %v800
    %v812 = vmul.f32 %v807, %v801
    %v813 = vmul.f32 %v807, %v802
    %v814 = vmul.f32 %v807, %v803
    %v815 = vmul.f32 %v807, %v804
    %v816 = vmul.f32 %v807, %v805
    %v817 = vadd.f32 %v660, %v808
    %v818 = vadd.f32 %v661, %v809
    %v819 = vadd.f32 %v662, %v810
    %v820 = vadd.f32 %v663, %v811
    %v821 = vadd.f32 %v664, %v812
    %v822 = vadd.f32 %v665, %v813
    %v823 = vadd.f32 %v666, %v814
    %v824 = vadd.f32 %v667, %v815
    %v825 = vadd.f32 %v668, %v816
    %s826 = sld [smem:[#allocation2 + $0x2b]]
    %v827 = vstv %s826
    %v828 = vmul.f32 %v827, %v797
    %v829 = vmul.f32 %v827, %v798
    %v830 = vmul.f32 %v827, %v799
    %v831 = vmul.f32 %v827, %v800
    %v832 = vmul.f32 %v827, %v801
    %v833 = vmul.f32 %v827, %v802
    %v834 = vmul.f32 %v827, %v803
    %v835 = vmul.f32 %v827, %v804
    %v836 = vmul.f32 %v827, %v805
    %v837 = vadd.f32 %v680, %v828
    %v838 = vadd.f32 %v681, %v829
    %v839 = vadd.f32 %v682, %v830
    %v840 = vadd.f32 %v683, %v831
    %v841 = vadd.f32 %v684, %v832
    %v842 = vadd.f32 %v685, %v833
    %v843 = vadd.f32 %v686, %v834
    %v844 = vadd.f32 %v687, %v835
    %v845 = vadd.f32 %v688, %v836
    %v846 = vmul.f32 %v650, %v797
    %v847 = vmul.f32 %v650, %v798
    %v848 = vmul.f32 %v650, %v799
    %v849 = vmul.f32 %v650, %v800
    %v850 = vmul.f32 %v650, %v801
    %v851 = vmul.f32 %v650, %v802
    %v852 = vmul.f32 %v650, %v803
    %v853 = vmul.f32 %v650, %v804
    %v854 = vmul.f32 %v650, %v805
    %v855 = vadd.f32 %v698, %v846
    %v856 = vadd.f32 %v699, %v847
    %v857 = vadd.f32 %v700, %v848
    %v858 = vadd.f32 %v701, %v849
    %v859 = vadd.f32 %v702, %v850
    %v860 = vadd.f32 %v703, %v851
    %v861 = vadd.f32 %v704, %v852
    %v862 = vadd.f32 %v705, %v853
    %v863 = vadd.f32 %v706, %v854
    %v864 = vmul.f32 %v670, %v797
    %v865 = vmul.f32 %v670, %v798
    %v866 = vmul.f32 %v670, %v799
    %v867 = vmul.f32 %v670, %v800
    %v868 = vmul.f32 %v670, %v801
    %v869 = vmul.f32 %v670, %v802
    %v870 = vmul.f32 %v670, %v803
    %v871 = vmul.f32 %v670, %v804
    %v872 = vmul.f32 %v670, %v805
    %v873 = vadd.f32 %v716, %v864
    %v874 = vadd.f32 %v717, %v865
    %v875 = vadd.f32 %v718, %v866
    %v876 = vadd.f32 %v719, %v867
    %v877 = vadd.f32 %v720, %v868
    %v878 = vadd.f32 %v721, %v869
    %v879 = vadd.f32 %v722, %v870
    %v880 = vadd.f32 %v723, %v871
    %v881 = vadd.f32 %v724, %v872
    %v882 = vmul.f32 %v276, %v797
    %v883 = vmul.f32 %v276, %v798
    %v884 = vmul.f32 %v276, %v799
    %v885 = vmul.f32 %v276, %v800
    %v886 = vmul.f32 %v276, %v801
    %v887 = vmul.f32 %v276, %v802
    %v888 = vmul.f32 %v276, %v803
    %v889 = vmul.f32 %v276, %v804
    %v890 = vmul.f32 %v276, %v805
    %v891 = vadd.f32 %v734, %v882
    %v892 = vadd.f32 %v735, %v883
    %v893 = vadd.f32 %v736, %v884
    %v894 = vadd.f32 %v737, %v885
    %v895 = vadd.f32 %v738, %v886
    %v896 = vadd.f32 %v739, %v887
    %v897 = vadd.f32 %v740, %v888
    %v898 = vadd.f32 %v741, %v889
    %v899 = vadd.f32 %v742, %v890
    %v900 = vmul.f32 %v296, %v797
    %v901 = vmul.f32 %v296, %v798
    %v902 = vmul.f32 %v296, %v799
    %v903 = vmul.f32 %v296, %v800
    %v904 = vmul.f32 %v296, %v801
    %v905 = vmul.f32 %v296, %v802
    %v906 = vmul.f32 %v296, %v803
    %v907 = vmul.f32 %v296, %v804
    %v908 = vmul.f32 %v296, %v805
    %v909 = vadd.f32 %v752, %v900
    %v910 = vadd.f32 %v753, %v901
    %v911 = vadd.f32 %v754, %v902
    %v912 = vadd.f32 %v755, %v903
    %v913 = vadd.f32 %v756, %v904
    %v914 = vadd.f32 %v757, %v905
    %v915 = vadd.f32 %v758, %v906
    %v916 = vadd.f32 %v759, %v907
    %v917 = vadd.f32 %v760, %v908
    %v918 = vmul.f32 %v191, %v797
    %v919 = vmul.f32 %v191, %v798
    %v920 = vmul.f32 %v191, %v799
    %v921 = vmul.f32 %v191, %v800
    %v922 = vmul.f32 %v191, %v801
    %v923 = vmul.f32 %v191, %v802
    %v924 = vmul.f32 %v191, %v803
    %v925 = vmul.f32 %v191, %v804
    %v926 = vmul.f32 %v191, %v805
    %v927 = vadd.f32 %v770, %v918
    %v928 = vadd.f32 %v771, %v919
    %v929 = vadd.f32 %v772, %v920
    %v930 = vadd.f32 %v773, %v921
    %v931 = vadd.f32 %v774, %v922
    %v932 = vadd.f32 %v775, %v923
    %v933 = vadd.f32 %v776, %v924
    %v934 = vadd.f32 %v777, %v925
    %v935 = vadd.f32 %v778, %v926
    %v936 = vmul.f32 %v211, %v797
    %v937 = vmul.f32 %v211, %v798
    %v938 = vmul.f32 %v211, %v799
    %v939 = vmul.f32 %v211, %v800
    %v940 = vmul.f32 %v211, %v801
    %v941 = vmul.f32 %v211, %v802
    %v942 = vmul.f32 %v211, %v803
    %v943 = vmul.f32 %v211, %v804
    %v944 = vmul.f32 %v211, %v805
    %v945 = vadd.f32 %v788, %v936
    %v946 = vadd.f32 %v789, %v937
    %v947 = vadd.f32 %v790, %v938
    %v948 = vadd.f32 %v791, %v939
    %v949 = vadd.f32 %v792, %v940
    %v950 = vadd.f32 %v793, %v941
    %v951 = vadd.f32 %v794, %v942
    %v952 = vadd.f32 %v795, %v943
    %v953 = vadd.f32 %v796, %v944
    %v954 = vld [vmem:[%s396 + $0x2] sm:$0xff]
    %v955 = vld [vmem:[%s396 + $0x12] sm:$0xff]
    %v956 = vld [vmem:[%s396 + $0x22] sm:$0xff]
    %v957 = vld [vmem:[%s396 + $0x32] sm:$0xff]
    %v958 = vld [vmem:[%s396 + $0x42] sm:$0xff]
    %v959 = vld [vmem:[%s396 + $0x52] sm:$0xff]
    %v960 = vld [vmem:[%s396 + $0x62] sm:$0xff]
    %v961 = vld [vmem:[%s396 + $0x72] sm:$0xff]
    %v962 = vld [vmem:[%s396 + $0x82] sm:$0xff]
    %v963 = vmul.f32 %v807, %v954
    %v964 = vmul.f32 %v807, %v955
    %v965 = vmul.f32 %v807, %v956
    %v966 = vmul.f32 %v807, %v957
    %v967 = vmul.f32 %v807, %v958
    %v968 = vmul.f32 %v807, %v959
    %v969 = vmul.f32 %v807, %v960
    %v970 = vmul.f32 %v807, %v961
    %v971 = vmul.f32 %v807, %v962
    %v972 = vadd.f32 %v855, %v963
    %v973 = vadd.f32 %v856, %v964
    %v974 = vadd.f32 %v857, %v965
    %v975 = vadd.f32 %v858, %v966
    %v976 = vadd.f32 %v859, %v967
    %v977 = vadd.f32 %v860, %v968
    %v978 = vadd.f32 %v861, %v969
    %v979 = vadd.f32 %v862, %v970
    %v980 = vadd.f32 %v863, %v971
    %v981 = vmul.f32 %v827, %v954
    %v982 = vmul.f32 %v827, %v955
    %v983 = vmul.f32 %v827, %v956
    %v984 = vmul.f32 %v827, %v957
    %v985 = vmul.f32 %v827, %v958
    %v986 = vmul.f32 %v827, %v959
    %v987 = vmul.f32 %v827, %v960
    %v988 = vmul.f32 %v827, %v961
    %v989 = vmul.f32 %v827, %v962
    %v990 = vadd.f32 %v873, %v981
    %v991 = vadd.f32 %v874, %v982
    %v992 = vadd.f32 %v875, %v983
    %v993 = vadd.f32 %v876, %v984
    %v994 = vadd.f32 %v877, %v985
    %v995 = vadd.f32 %v878, %v986
    %v996 = vadd.f32 %v879, %v987
    %v997 = vadd.f32 %v880, %v988
    %v998 = vadd.f32 %v881, %v989
    %v999 = vmul.f32 %v276, %v954
    %v1000 = vmul.f32 %v276, %v955
    %v1001 = vmul.f32 %v276, %v956
    %v1002 = vmul.f32 %v276, %v957
    %v1003 = vmul.f32 %v276, %v958
    %v1004 = vmul.f32 %v276, %v959
    %v1005 = vmul.f32 %v276, %v960
    %v1006 = vmul.f32 %v276, %v961
    %v1007 = vmul.f32 %v276, %v962
    %v1008 = vadd.f32 %v927, %v999
    %v1009 = vadd.f32 %v928, %v1000
    %v1010 = vadd.f32 %v929, %v1001
    %v1011 = vadd.f32 %v930, %v1002
    %v1012 = vadd.f32 %v931, %v1003
    %v1013 = vadd.f32 %v932, %v1004
    %v1014 = vadd.f32 %v933, %v1005
    %v1015 = vadd.f32 %v934, %v1006
    %v1016 = vadd.f32 %v935, %v1007
    %v1017 = vmul.f32 %v296, %v954
    %v1018 = vmul.f32 %v296, %v955
    %v1019 = vmul.f32 %v296, %v956
    %v1020 = vmul.f32 %v296, %v957
    %v1021 = vmul.f32 %v296, %v958
    %v1022 = vmul.f32 %v296, %v959
    %v1023 = vmul.f32 %v296, %v960
    %v1024 = vmul.f32 %v296, %v961
    %v1025 = vmul.f32 %v296, %v962
    %v1026 = vadd.f32 %v945, %v1017
    %v1027 = vadd.f32 %v946, %v1018
    %v1028 = vadd.f32 %v947, %v1019
    %v1029 = vadd.f32 %v948, %v1020
    %v1030 = vadd.f32 %v949, %v1021
    %v1031 = vadd.f32 %v950, %v1022
    %v1032 = vadd.f32 %v951, %v1023
    %v1033 = vadd.f32 %v952, %v1024
    %v1034 = vadd.f32 %v953, %v1025
    %s1035 = scalar_lea.vmem %s0, 16
    %v1036 = vld [vmem:[%s1035] sm:$0xff]
    %v1037 = vld [vmem:[%s1035 + $0x10] sm:$0xff]
    %v1038 = vld [vmem:[%s1035 + $0x20] sm:$0xff]
    %v1039 = vld [vmem:[%s1035 + $0x30] sm:$0xff]
    %v1040 = vld [vmem:[%s1035 + $0x40] sm:$0xff]
    %v1041 = vld [vmem:[%s1035 + $0x50] sm:$0xff]
    %v1042 = vld [vmem:[%s1035 + $0x60] sm:$0xff]
    %v1043 = vld [vmem:[%s1035 + $0x70] sm:$0xff]
    %v1044 = vld [vmem:[%s1035 + $0x80] sm:$0xff]
    %s1045 = sld [smem:[#allocation2 + $0x8]]
    %v1046 = vstv %s1045
    %v1047 = vmul.f32 %v1046, %v1036
    %v1048 = vmul.f32 %v1046, %v1037
    %v1049 = vmul.f32 %v1046, %v1038
    %v1050 = vmul.f32 %v1046, %v1039
    %v1051 = vmul.f32 %v1046, %v1040
    %v1052 = vmul.f32 %v1046, %v1041
    %v1053 = vmul.f32 %v1046, %v1042
    %v1054 = vmul.f32 %v1046, %v1043
    %v1055 = vmul.f32 %v1046, %v1044
    %v1056 = vadd.f32 %v817, %v1047
    %v1057 = vadd.f32 %v818, %v1048
    %v1058 = vadd.f32 %v819, %v1049
    %v1059 = vadd.f32 %v820, %v1050
    %v1060 = vadd.f32 %v821, %v1051
    %v1061 = vadd.f32 %v822, %v1052
    %v1062 = vadd.f32 %v823, %v1053
    %v1063 = vadd.f32 %v824, %v1054
    %v1064 = vadd.f32 %v825, %v1055
    %s1065 = sld [smem:[#allocation2 + $0x2c]]
    %v1066 = vstv %s1065
    %v1067 = vmul.f32 %v1066, %v1036
    %v1068 = vmul.f32 %v1066, %v1037
    %v1069 = vmul.f32 %v1066, %v1038
    %v1070 = vmul.f32 %v1066, %v1039
    %v1071 = vmul.f32 %v1066, %v1040
    %v1072 = vmul.f32 %v1066, %v1041
    %v1073 = vmul.f32 %v1066, %v1042
    %v1074 = vmul.f32 %v1066, %v1043
    %v1075 = vmul.f32 %v1066, %v1044
    %v1076 = vadd.f32 %v837, %v1067
    %v1077 = vadd.f32 %v838, %v1068
    %v1078 = vadd.f32 %v839, %v1069
    %v1079 = vadd.f32 %v840, %v1070
    %v1080 = vadd.f32 %v841, %v1071
    %v1081 = vadd.f32 %v842, %v1072
    %v1082 = vadd.f32 %v843, %v1073
    %v1083 = vadd.f32 %v844, %v1074
    %v1084 = vadd.f32 %v845, %v1075
    %v1085 = vmul.f32 %v407, %v1036
    %v1086 = vmul.f32 %v407, %v1037
    %v1087 = vmul.f32 %v407, %v1038
    %v1088 = vmul.f32 %v407, %v1039
    %v1089 = vmul.f32 %v407, %v1040
    %v1090 = vmul.f32 %v407, %v1041
    %v1091 = vmul.f32 %v407, %v1042
    %v1092 = vmul.f32 %v407, %v1043
    %v1093 = vmul.f32 %v407, %v1044
    %v1094 = vadd.f32 %v891, %v1085
    %v1095 = vadd.f32 %v892, %v1086
    %v1096 = vadd.f32 %v893, %v1087
    %v1097 = vadd.f32 %v894, %v1088
    %v1098 = vadd.f32 %v895, %v1089
    %v1099 = vadd.f32 %v896, %v1090
    %v1100 = vadd.f32 %v897, %v1091
    %v1101 = vadd.f32 %v898, %v1092
    %v1102 = vadd.f32 %v899, %v1093
    %v1103 = vmul.f32 %v427, %v1036
    %v1104 = vmul.f32 %v427, %v1037
    %v1105 = vmul.f32 %v427, %v1038
    %v1106 = vmul.f32 %v427, %v1039
    %v1107 = vmul.f32 %v427, %v1040
    %v1108 = vmul.f32 %v427, %v1041
    %v1109 = vmul.f32 %v427, %v1042
    %v1110 = vmul.f32 %v427, %v1043
    %v1111 = vmul.f32 %v427, %v1044
    %v1112 = vadd.f32 %v909, %v1103
    %v1113 = vadd.f32 %v910, %v1104
    %v1114 = vadd.f32 %v911, %v1105
    %v1115 = vadd.f32 %v912, %v1106
    %v1116 = vadd.f32 %v913, %v1107
    %v1117 = vadd.f32 %v914, %v1108
    %v1118 = vadd.f32 %v915, %v1109
    %v1119 = vadd.f32 %v916, %v1110
    %v1120 = vadd.f32 %v917, %v1111
    %s1121 = scalar_lea.vmem %s0, 176
    %v1122 = vld [vmem:[%s1121] sm:$0xff]
    %v1123 = vld [vmem:[%s1121 + $0x10] sm:$0xff]
    %v1124 = vld [vmem:[%s1121 + $0x20] sm:$0xff]
    %v1125 = vld [vmem:[%s1121 + $0x30] sm:$0xff]
    %v1126 = vld [vmem:[%s1121 + $0x40] sm:$0xff]
    %v1127 = vld [vmem:[%s1121 + $0x50] sm:$0xff]
    %v1128 = vld [vmem:[%s1121 + $0x60] sm:$0xff]
    %v1129 = vld [vmem:[%s1121 + $0x70] sm:$0xff]
    %v1130 = vld [vmem:[%s1121 + $0x80] sm:$0xff]
    %s1131 = sld [smem:[#allocation2 + $0x9]]
    %v1132 = vstv %s1131
    %v1133 = vmul.f32 %v1132, %v1122
    %v1134 = vmul.f32 %v1132, %v1123
    %v1135 = vmul.f32 %v1132, %v1124
    %v1136 = vmul.f32 %v1132, %v1125
    %v1137 = vmul.f32 %v1132, %v1126
    %v1138 = vmul.f32 %v1132, %v1127
    %v1139 = vmul.f32 %v1132, %v1128
    %v1140 = vmul.f32 %v1132, %v1129
    %v1141 = vmul.f32 %v1132, %v1130
    %v1142 = vadd.f32 %v1056, %v1133
    %v1143 = vadd.f32 %v1057, %v1134
    %v1144 = vadd.f32 %v1058, %v1135
    %v1145 = vadd.f32 %v1059, %v1136
    %v1146 = vadd.f32 %v1060, %v1137
    %v1147 = vadd.f32 %v1061, %v1138
    %v1148 = vadd.f32 %v1062, %v1139
    %v1149 = vadd.f32 %v1063, %v1140
    %v1150 = vadd.f32 %v1064, %v1141
    %s1151 = sld [smem:[#allocation2 + $0x2d]]
    %v1152 = vstv %s1151
    %v1153 = vmul.f32 %v1152, %v1122
    %v1154 = vmul.f32 %v1152, %v1123
    %v1155 = vmul.f32 %v1152, %v1124
    %v1156 = vmul.f32 %v1152, %v1125
    %v1157 = vmul.f32 %v1152, %v1126
    %v1158 = vmul.f32 %v1152, %v1127
    %v1159 = vmul.f32 %v1152, %v1128
    %v1160 = vmul.f32 %v1152, %v1129
    %v1161 = vmul.f32 %v1152, %v1130
    %v1162 = vadd.f32 %v1076, %v1153
    %v1163 = vadd.f32 %v1077, %v1154
    %v1164 = vadd.f32 %v1078, %v1155
    %v1165 = vadd.f32 %v1079, %v1156
    %v1166 = vadd.f32 %v1080, %v1157
    %v1167 = vadd.f32 %v1081, %v1158
    %v1168 = vadd.f32 %v1082, %v1159
    %v1169 = vadd.f32 %v1083, %v1160
    %v1170 = vadd.f32 %v1084, %v1161
    %v1171 = vmul.f32 %v1046, %v1122
    %v1172 = vmul.f32 %v1046, %v1123
    %v1173 = vmul.f32 %v1046, %v1124
    %v1174 = vmul.f32 %v1046, %v1125
    %v1175 = vmul.f32 %v1046, %v1126
    %v1176 = vmul.f32 %v1046, %v1127
    %v1177 = vmul.f32 %v1046, %v1128
    %v1178 = vmul.f32 %v1046, %v1129
    %v1179 = vmul.f32 %v1046, %v1130
    %v1180 = vadd.f32 %v972, %v1171
    %v1181 = vadd.f32 %v973, %v1172
    %v1182 = vadd.f32 %v974, %v1173
    %v1183 = vadd.f32 %v975, %v1174
    %v1184 = vadd.f32 %v976, %v1175
    %v1185 = vadd.f32 %v977, %v1176
    %v1186 = vadd.f32 %v978, %v1177
    %v1187 = vadd.f32 %v979, %v1178
    %v1188 = vadd.f32 %v980, %v1179
    %v1189 = vmul.f32 %v1066, %v1122
    %v1190 = vmul.f32 %v1066, %v1123
    %v1191 = vmul.f32 %v1066, %v1124
    %v1192 = vmul.f32 %v1066, %v1125
    %v1193 = vmul.f32 %v1066, %v1126
    %v1194 = vmul.f32 %v1066, %v1127
    %v1195 = vmul.f32 %v1066, %v1128
    %v1196 = vmul.f32 %v1066, %v1129
    %v1197 = vmul.f32 %v1066, %v1130
    %v1198 = vadd.f32 %v990, %v1189
    %v1199 = vadd.f32 %v991, %v1190
    %v1200 = vadd.f32 %v992, %v1191
    %v1201 = vadd.f32 %v993, %v1192
    %v1202 = vadd.f32 %v994, %v1193
    %v1203 = vadd.f32 %v995, %v1194
    %v1204 = vadd.f32 %v996, %v1195
    %v1205 = vadd.f32 %v997, %v1196
    %v1206 = vadd.f32 %v998, %v1197
    %v1207 = vmul.f32 %v493, %v1122
    %v1208 = vmul.f32 %v493, %v1123
    %v1209 = vmul.f32 %v493, %v1124
    %v1210 = vmul.f32 %v493, %v1125
    %v1211 = vmul.f32 %v493, %v1126
    %v1212 = vmul.f32 %v493, %v1127
    %v1213 = vmul.f32 %v493, %v1128
    %v1214 = vmul.f32 %v493, %v1129
    %v1215 = vmul.f32 %v493, %v1130
    %v1216 = vadd.f32 %v1094, %v1207
    %v1217 = vadd.f32 %v1095, %v1208
    %v1218 = vadd.f32 %v1096, %v1209
    %v1219 = vadd.f32 %v1097, %v1210
    %v1220 = vadd.f32 %v1098, %v1211
    %v1221 = vadd.f32 %v1099, %v1212
    %v1222 = vadd.f32 %v1100, %v1213
    %v1223 = vadd.f32 %v1101, %v1214
    %v1224 = vadd.f32 %v1102, %v1215
    %v1225 = vmul.f32 %v513, %v1122
    %v1226 = vmul.f32 %v513, %v1123
    %v1227 = vmul.f32 %v513, %v1124
    %v1228 = vmul.f32 %v513, %v1125
    %v1229 = vmul.f32 %v513, %v1126
    %v1230 = vmul.f32 %v513, %v1127
    %v1231 = vmul.f32 %v513, %v1128
    %v1232 = vmul.f32 %v513, %v1129
    %v1233 = vmul.f32 %v513, %v1130
    %v1234 = vadd.f32 %v1112, %v1225
    %v1235 = vadd.f32 %v1113, %v1226
    %v1236 = vadd.f32 %v1114, %v1227
    %v1237 = vadd.f32 %v1115, %v1228
    %v1238 = vadd.f32 %v1116, %v1229
    %v1239 = vadd.f32 %v1117, %v1230
    %v1240 = vadd.f32 %v1118, %v1231
    %v1241 = vadd.f32 %v1119, %v1232
    %v1242 = vadd.f32 %v1120, %v1233
    %v1243 = vmul.f32 %v407, %v1122
    %v1244 = vmul.f32 %v407, %v1123
    %v1245 = vmul.f32 %v407, %v1124
    %v1246 = vmul.f32 %v407, %v1125
    %v1247 = vmul.f32 %v407, %v1126
    %v1248 = vmul.f32 %v407, %v1127
    %v1249 = vmul.f32 %v407, %v1128
    %v1250 = vmul.f32 %v407, %v1129
    %v1251 = vmul.f32 %v407, %v1130
    %v1252 = vadd.f32 %v1008, %v1243
    %v1253 = vadd.f32 %v1009, %v1244
    %v1254 = vadd.f32 %v1010, %v1245
    %v1255 = vadd.f32 %v1011, %v1246
    %v1256 = vadd.f32 %v1012, %v1247
    %v1257 = vadd.f32 %v1013, %v1248
    %v1258 = vadd.f32 %v1014, %v1249
    %v1259 = vadd.f32 %v1015, %v1250
    %v1260 = vadd.f32 %v1016, %v1251
    %v1261 = vmul.f32 %v427, %v1122
    %v1262 = vmul.f32 %v427, %v1123
    %v1263 = vmul.f32 %v427, %v1124
    %v1264 = vmul.f32 %v427, %v1125
    %v1265 = vmul.f32 %v427, %v1126
    %v1266 = vmul.f32 %v427, %v1127
    %v1267 = vmul.f32 %v427, %v1128
    %v1268 = vmul.f32 %v427, %v1129
    %v1269 = vmul.f32 %v427, %v1130
    %v1270 = vadd.f32 %v1026, %v1261
    %v1271 = vadd.f32 %v1027, %v1262
    %v1272 = vadd.f32 %v1028, %v1263
    %v1273 = vadd.f32 %v1029, %v1264
    %v1274 = vadd.f32 %v1030, %v1265
    %v1275 = vadd.f32 %v1031, %v1266
    %v1276 = vadd.f32 %v1032, %v1267
    %v1277 = vadd.f32 %v1033, %v1268
    %v1278 = vadd.f32 %v1034, %v1269
    %v1279 = vld [vmem:[%s1035 + $0x1] sm:$0xff]
    %v1280 = vld [vmem:[%s1035 + $0x11] sm:$0xff]
    %v1281 = vld [vmem:[%s1035 + $0x21] sm:$0xff]
    %v1282 = vld [vmem:[%s1035 + $0x31] sm:$0xff]
    %v1283 = vld [vmem:[%s1035 + $0x41] sm:$0xff]
    %v1284 = vld [vmem:[%s1035 + $0x51] sm:$0xff]
    %v1285 = vld [vmem:[%s1035 + $0x61] sm:$0xff]
    %v1286 = vld [vmem:[%s1035 + $0x71] sm:$0xff]
    %v1287 = vld [vmem:[%s1035 + $0x81] sm:$0xff]
    %s1288 = sld [smem:[#allocation2 + $0xa]]
    %v1289 = vstv %s1288
    %v1290 = vmul.f32 %v1289, %v1279
    %v1291 = vmul.f32 %v1289, %v1280
    %v1292 = vmul.f32 %v1289, %v1281
    %v1293 = vmul.f32 %v1289, %v1282
    %v1294 = vmul.f32 %v1289, %v1283
    %v1295 = vmul.f32 %v1289, %v1284
    %v1296 = vmul.f32 %v1289, %v1285
    %v1297 = vmul.f32 %v1289, %v1286
    %v1298 = vmul.f32 %v1289, %v1287
    %v1299 = vadd.f32 %v1142, %v1290
    %v1300 = vadd.f32 %v1143, %v1291
    %v1301 = vadd.f32 %v1144, %v1292
    %v1302 = vadd.f32 %v1145, %v1293
    %v1303 = vadd.f32 %v1146, %v1294
    %v1304 = vadd.f32 %v1147, %v1295
    %v1305 = vadd.f32 %v1148, %v1296
    %v1306 = vadd.f32 %v1149, %v1297
    %v1307 = vadd.f32 %v1150, %v1298
    %s1308 = sld [smem:[#allocation2 + $0x2e]]
    %v1309 = vstv %s1308
    %v1310 = vmul.f32 %v1309, %v1279
    %v1311 = vmul.f32 %v1309, %v1280
    %v1312 = vmul.f32 %v1309, %v1281
    %v1313 = vmul.f32 %v1309, %v1282
    %v1314 = vmul.f32 %v1309, %v1283
    %v1315 = vmul.f32 %v1309, %v1284
    %v1316 = vmul.f32 %v1309, %v1285
    %v1317 = vmul.f32 %v1309, %v1286
    %v1318 = vmul.f32 %v1309, %v1287
    %v1319 = vadd.f32 %v1162, %v1310
    %v1320 = vadd.f32 %v1163, %v1311
    %v1321 = vadd.f32 %v1164, %v1312
    %v1322 = vadd.f32 %v1165, %v1313
    %v1323 = vadd.f32 %v1166, %v1314
    %v1324 = vadd.f32 %v1167, %v1315
    %v1325 = vadd.f32 %v1168, %v1316
    %v1326 = vadd.f32 %v1169, %v1317
    %v1327 = vadd.f32 %v1170, %v1318
    %v1328 = vmul.f32 %v1132, %v1279
    %v1329 = vmul.f32 %v1132, %v1280
    %v1330 = vmul.f32 %v1132, %v1281
    %v1331 = vmul.f32 %v1132, %v1282
    %v1332 = vmul.f32 %v1132, %v1283
    %v1333 = vmul.f32 %v1132, %v1284
    %v1334 = vmul.f32 %v1132, %v1285
    %v1335 = vmul.f32 %v1132, %v1286
    %v1336 = vmul.f32 %v1132, %v1287
    %v1337 = vadd.f32 %v1180, %v1328
    %v1338 = vadd.f32 %v1181, %v1329
    %v1339 = vadd.f32 %v1182, %v1330
    %v1340 = vadd.f32 %v1183, %v1331
    %v1341 = vadd.f32 %v1184, %v1332
    %v1342 = vadd.f32 %v1185, %v1333
    %v1343 = vadd.f32 %v1186, %v1334
    %v1344 = vadd.f32 %v1187, %v1335
    %v1345 = vadd.f32 %v1188, %v1336
    %v1346 = vmul.f32 %v1152, %v1279
    %v1347 = vmul.f32 %v1152, %v1280
    %v1348 = vmul.f32 %v1152, %v1281
    %v1349 = vmul.f32 %v1152, %v1282
    %v1350 = vmul.f32 %v1152, %v1283
    %v1351 = vmul.f32 %v1152, %v1284
    %v1352 = vmul.f32 %v1152, %v1285
    %v1353 = vmul.f32 %v1152, %v1286
    %v1354 = vmul.f32 %v1152, %v1287
    %v1355 = vadd.f32 %v1198, %v1346
    %v1356 = vadd.f32 %v1199, %v1347
    %v1357 = vadd.f32 %v1200, %v1348
    %v1358 = vadd.f32 %v1201, %v1349
    %v1359 = vadd.f32 %v1202, %v1350
    %v1360 = vadd.f32 %v1203, %v1351
    %v1361 = vadd.f32 %v1204, %v1352
    %v1362 = vadd.f32 %v1205, %v1353
    %v1363 = vadd.f32 %v1206, %v1354
    %v1364 = vmul.f32 %v650, %v1279
    %v1365 = vmul.f32 %v650, %v1280
    %v1366 = vmul.f32 %v650, %v1281
    %v1367 = vmul.f32 %v650, %v1282
    %v1368 = vmul.f32 %v650, %v1283
    %v1369 = vmul.f32 %v650, %v1284
    %v1370 = vmul.f32 %v650, %v1285
    %v1371 = vmul.f32 %v650, %v1286
    %v1372 = vmul.f32 %v650, %v1287
    %v1373 = vadd.f32 %v1216, %v1364
    %v1374 = vadd.f32 %v1217, %v1365
    %v1375 = vadd.f32 %v1218, %v1366
    %v1376 = vadd.f32 %v1219, %v1367
    %v1377 = vadd.f32 %v1220, %v1368
    %v1378 = vadd.f32 %v1221, %v1369
    %v1379 = vadd.f32 %v1222, %v1370
    %v1380 = vadd.f32 %v1223, %v1371
    %v1381 = vadd.f32 %v1224, %v1372
    %v1382 = vmul.f32 %v670, %v1279
    %v1383 = vmul.f32 %v670, %v1280
    %v1384 = vmul.f32 %v670, %v1281
    %v1385 = vmul.f32 %v670, %v1282
    %v1386 = vmul.f32 %v670, %v1283
    %v1387 = vmul.f32 %v670, %v1284
    %v1388 = vmul.f32 %v670, %v1285
    %v1389 = vmul.f32 %v670, %v1286
    %v1390 = vmul.f32 %v670, %v1287
    %v1391 = vadd.f32 %v1234, %v1382
    %v1392 = vadd.f32 %v1235, %v1383
    %v1393 = vadd.f32 %v1236, %v1384
    %v1394 = vadd.f32 %v1237, %v1385
    %v1395 = vadd.f32 %v1238, %v1386
    %v1396 = vadd.f32 %v1239, %v1387
    %v1397 = vadd.f32 %v1240, %v1388
    %v1398 = vadd.f32 %v1241, %v1389
    %v1399 = vadd.f32 %v1242, %v1390
    %v1400 = vmul.f32 %v493, %v1279
    %v1401 = vmul.f32 %v493, %v1280
    %v1402 = vmul.f32 %v493, %v1281
    %v1403 = vmul.f32 %v493, %v1282
    %v1404 = vmul.f32 %v493, %v1283
    %v1405 = vmul.f32 %v493, %v1284
    %v1406 = vmul.f32 %v493, %v1285
    %v1407 = vmul.f32 %v493, %v1286
    %v1408 = vmul.f32 %v493, %v1287
    %v1409 = vadd.f32 %v1252, %v1400
    %v1410 = vadd.f32 %v1253, %v1401
    %v1411 = vadd.f32 %v1254, %v1402
    %v1412 = vadd.f32 %v1255, %v1403
    %v1413 = vadd.f32 %v1256, %v1404
    %v1414 = vadd.f32 %v1257, %v1405
    %v1415 = vadd.f32 %v1258, %v1406
    %v1416 = vadd.f32 %v1259, %v1407
    %v1417 = vadd.f32 %v1260, %v1408
    %v1418 = vmul.f32 %v513, %v1279
    %v1419 = vmul.f32 %v513, %v1280
    %v1420 = vmul.f32 %v513, %v1281
    %v1421 = vmul.f32 %v513, %v1282
    %v1422 = vmul.f32 %v513, %v1283
    %v1423 = vmul.f32 %v513, %v1284
    %v1424 = vmul.f32 %v513, %v1285
    %v1425 = vmul.f32 %v513, %v1286
    %v1426 = vmul.f32 %v513, %v1287
    %v1427 = vadd.f32 %v1270, %v1418
    %v1428 = vadd.f32 %v1271, %v1419
    %v1429 = vadd.f32 %v1272, %v1420
    %v1430 = vadd.f32 %v1273, %v1421
    %v1431 = vadd.f32 %v1274, %v1422
    %v1432 = vadd.f32 %v1275, %v1423
    %v1433 = vadd.f32 %v1276, %v1424
    %v1434 = vadd.f32 %v1277, %v1425
    %v1435 = vadd.f32 %v1278, %v1426
    %v1436 = vld [vmem:[%s1121 + $0x1] sm:$0xff]
    %v1437 = vld [vmem:[%s1121 + $0x11] sm:$0xff]
    %v1438 = vld [vmem:[%s1121 + $0x21] sm:$0xff]
    %v1439 = vld [vmem:[%s1121 + $0x31] sm:$0xff]
    %v1440 = vld [vmem:[%s1121 + $0x41] sm:$0xff]
    %v1441 = vld [vmem:[%s1121 + $0x51] sm:$0xff]
    %v1442 = vld [vmem:[%s1121 + $0x61] sm:$0xff]
    %v1443 = vld [vmem:[%s1121 + $0x71] sm:$0xff]
    %v1444 = vld [vmem:[%s1121 + $0x81] sm:$0xff]
    %s1445 = sld [smem:[#allocation2 + $0xb]]
    %v1446 = vstv %s1445
    %v1447 = vmul.f32 %v1446, %v1436
    %v1448 = vmul.f32 %v1446, %v1437
    %v1449 = vmul.f32 %v1446, %v1438
    %v1450 = vmul.f32 %v1446, %v1439
    %v1451 = vmul.f32 %v1446, %v1440
    %v1452 = vmul.f32 %v1446, %v1441
    %v1453 = vmul.f32 %v1446, %v1442
    %v1454 = vmul.f32 %v1446, %v1443
    %v1455 = vmul.f32 %v1446, %v1444
    %v1456 = vadd.f32 %v1299, %v1447
    %v1457 = vadd.f32 %v1300, %v1448
    %v1458 = vadd.f32 %v1301, %v1449
    %v1459 = vadd.f32 %v1302, %v1450
    %v1460 = vadd.f32 %v1303, %v1451
    %v1461 = vadd.f32 %v1304, %v1452
    %v1462 = vadd.f32 %v1305, %v1453
    %v1463 = vadd.f32 %v1306, %v1454
    %v1464 = vadd.f32 %v1307, %v1455
    %s1465 = sld [smem:[#allocation2 + $0x2f]]
    %v1466 = vstv %s1465
    %v1467 = vmul.f32 %v1466, %v1436
    %v1468 = vmul.f32 %v1466, %v1437
    %v1469 = vmul.f32 %v1466, %v1438
    %v1470 = vmul.f32 %v1466, %v1439
    %v1471 = vmul.f32 %v1466, %v1440
    %v1472 = vmul.f32 %v1466, %v1441
    %v1473 = vmul.f32 %v1466, %v1442
    %v1474 = vmul.f32 %v1466, %v1443
    %v1475 = vmul.f32 %v1466, %v1444
    %v1476 = vadd.f32 %v1319, %v1467
    %v1477 = vadd.f32 %v1320, %v1468
    %v1478 = vadd.f32 %v1321, %v1469
    %v1479 = vadd.f32 %v1322, %v1470
    %v1480 = vadd.f32 %v1323, %v1471
    %v1481 = vadd.f32 %v1324, %v1472
    %v1482 = vadd.f32 %v1325, %v1473
    %v1483 = vadd.f32 %v1326, %v1474
    %v1484 = vadd.f32 %v1327, %v1475
    %v1485 = vmul.f32 %v1289, %v1436
    %v1486 = vmul.f32 %v1289, %v1437
    %v1487 = vmul.f32 %v1289, %v1438
    %v1488 = vmul.f32 %v1289, %v1439
    %v1489 = vmul.f32 %v1289, %v1440
    %v1490 = vmul.f32 %v1289, %v1441
    %v1491 = vmul.f32 %v1289, %v1442
    %v1492 = vmul.f32 %v1289, %v1443
    %v1493 = vmul.f32 %v1289, %v1444
    %v1494 = vadd.f32 %v1337, %v1485
    %v1495 = vadd.f32 %v1338, %v1486
    %v1496 = vadd.f32 %v1339, %v1487
    %v1497 = vadd.f32 %v1340, %v1488
    %v1498 = vadd.f32 %v1341, %v1489
    %v1499 = vadd.f32 %v1342, %v1490
    %v1500 = vadd.f32 %v1343, %v1491
    %v1501 = vadd.f32 %v1344, %v1492
    %v1502 = vadd.f32 %v1345, %v1493
    %v1503 = vmul.f32 %v1309, %v1436
    %v1504 = vmul.f32 %v1309, %v1437
    %v1505 = vmul.f32 %v1309, %v1438
    %v1506 = vmul.f32 %v1309, %v1439
    %v1507 = vmul.f32 %v1309, %v1440
    %v1508 = vmul.f32 %v1309, %v1441
    %v1509 = vmul.f32 %v1309, %v1442
    %v1510 = vmul.f32 %v1309, %v1443
    %v1511 = vmul.f32 %v1309, %v1444
    %v1512 = vadd.f32 %v1355, %v1503
    %v1513 = vadd.f32 %v1356, %v1504
    %v1514 = vadd.f32 %v1357, %v1505
    %v1515 = vadd.f32 %v1358, %v1506
    %v1516 = vadd.f32 %v1359, %v1507
    %v1517 = vadd.f32 %v1360, %v1508
    %v1518 = vadd.f32 %v1361, %v1509
    %v1519 = vadd.f32 %v1362, %v1510
    %v1520 = vadd.f32 %v1363, %v1511
    %v1521 = vmul.f32 %v807, %v1436
    %v1522 = vmul.f32 %v807, %v1437
    %v1523 = vmul.f32 %v807, %v1438
    %v1524 = vmul.f32 %v807, %v1439
    %v1525 = vmul.f32 %v807, %v1440
    %v1526 = vmul.f32 %v807, %v1441
    %v1527 = vmul.f32 %v807, %v1442
    %v1528 = vmul.f32 %v807, %v1443
    %v1529 = vmul.f32 %v807, %v1444
    %v1530 = vadd.f32 %v1373, %v1521
    %v1531 = vadd.f32 %v1374, %v1522
    %v1532 = vadd.f32 %v1375, %v1523
    %v1533 = vadd.f32 %v1376, %v1524
    %v1534 = vadd.f32 %v1377, %v1525
    %v1535 = vadd.f32 %v1378, %v1526
    %v1536 = vadd.f32 %v1379, %v1527
    %v1537 = vadd.f32 %v1380, %v1528
    %v1538 = vadd.f32 %v1381, %v1529
    %v1539 = vmul.f32 %v827, %v1436
    %v1540 = vmul.f32 %v827, %v1437
    %v1541 = vmul.f32 %v827, %v1438
    %v1542 = vmul.f32 %v827, %v1439
    %v1543 = vmul.f32 %v827, %v1440
    %v1544 = vmul.f32 %v827, %v1441
    %v1545 = vmul.f32 %v827, %v1442
    %v1546 = vmul.f32 %v827, %v1443
    %v1547 = vmul.f32 %v827, %v1444
    %v1548 = vadd.f32 %v1391, %v1539
    %v1549 = vadd.f32 %v1392, %v1540
    %v1550 = vadd.f32 %v1393, %v1541
    %v1551 = vadd.f32 %v1394, %v1542
    %v1552 = vadd.f32 %v1395, %v1543
    %v1553 = vadd.f32 %v1396, %v1544
    %v1554 = vadd.f32 %v1397, %v1545
    %v1555 = vadd.f32 %v1398, %v1546
    %v1556 = vadd.f32 %v1399, %v1547
    %v1557 = vmul.f32 %v650, %v1436
    %v1558 = vmul.f32 %v650, %v1437
    %v1559 = vmul.f32 %v650, %v1438
    %v1560 = vmul.f32 %v650, %v1439
    %v1561 = vmul.f32 %v650, %v1440
    %v1562 = vmul.f32 %v650, %v1441
    %v1563 = vmul.f32 %v650, %v1442
    %v1564 = vmul.f32 %v650, %v1443
    %v1565 = vmul.f32 %v650, %v1444
    %v1566 = vadd.f32 %v1409, %v1557
    %v1567 = vadd.f32 %v1410, %v1558
    %v1568 = vadd.f32 %v1411, %v1559
    %v1569 = vadd.f32 %v1412, %v1560
    %v1570 = vadd.f32 %v1413, %v1561
    %v1571 = vadd.f32 %v1414, %v1562
    %v1572 = vadd.f32 %v1415, %v1563
    %v1573 = vadd.f32 %v1416, %v1564
    %v1574 = vadd.f32 %v1417, %v1565
    %v1575 = vmul.f32 %v670, %v1436
    %v1576 = vmul.f32 %v670, %v1437
    %v1577 = vmul.f32 %v670, %v1438
    %v1578 = vmul.f32 %v670, %v1439
    %v1579 = vmul.f32 %v670, %v1440
    %v1580 = vmul.f32 %v670, %v1441
    %v1581 = vmul.f32 %v670, %v1442
    %v1582 = vmul.f32 %v670, %v1443
    %v1583 = vmul.f32 %v670, %v1444
    %v1584 = vadd.f32 %v1427, %v1575
    %v1585 = vadd.f32 %v1428, %v1576
    %v1586 = vadd.f32 %v1429, %v1577
    %v1587 = vadd.f32 %v1430, %v1578
    %v1588 = vadd.f32 %v1431, %v1579
    %v1589 = vadd.f32 %v1432, %v1580
    %v1590 = vadd.f32 %v1433, %v1581
    %v1591 = vadd.f32 %v1434, %v1582
    %v1592 = vadd.f32 %v1435, %v1583
    %v1593 = vld [vmem:[%s1035 + $0x2] sm:$0xff]
    %v1594 = vld [vmem:[%s1035 + $0x12] sm:$0xff]
    %v1595 = vld [vmem:[%s1035 + $0x22] sm:$0xff]
    %v1596 = vld [vmem:[%s1035 + $0x32] sm:$0xff]
    %v1597 = vld [vmem:[%s1035 + $0x42] sm:$0xff]
    %v1598 = vld [vmem:[%s1035 + $0x52] sm:$0xff]
    %v1599 = vld [vmem:[%s1035 + $0x62] sm:$0xff]
    %v1600 = vld [vmem:[%s1035 + $0x72] sm:$0xff]
    %v1601 = vld [vmem:[%s1035 + $0x82] sm:$0xff]
    %v1602 = vmul.f32 %v1446, %v1593
    %v1603 = vmul.f32 %v1446, %v1594
    %v1604 = vmul.f32 %v1446, %v1595
    %v1605 = vmul.f32 %v1446, %v1596
    %v1606 = vmul.f32 %v1446, %v1597
    %v1607 = vmul.f32 %v1446, %v1598
    %v1608 = vmul.f32 %v1446, %v1599
    %v1609 = vmul.f32 %v1446, %v1600
    %v1610 = vmul.f32 %v1446, %v1601
    %v1611 = vadd.f32 %v1494, %v1602
    %v1612 = vadd.f32 %v1495, %v1603
    %v1613 = vadd.f32 %v1496, %v1604
    %v1614 = vadd.f32 %v1497, %v1605
    %v1615 = vadd.f32 %v1498, %v1606
    %v1616 = vadd.f32 %v1499, %v1607
    %v1617 = vadd.f32 %v1500, %v1608
    %v1618 = vadd.f32 %v1501, %v1609
    %v1619 = vadd.f32 %v1502, %v1610
    %v1620 = vmul.f32 %v1466, %v1593
    %v1621 = vmul.f32 %v1466, %v1594
    %v1622 = vmul.f32 %v1466, %v1595
    %v1623 = vmul.f32 %v1466, %v1596
    %v1624 = vmul.f32 %v1466, %v1597
    %v1625 = vmul.f32 %v1466, %v1598
    %v1626 = vmul.f32 %v1466, %v1599
    %v1627 = vmul.f32 %v1466, %v1600
    %v1628 = vmul.f32 %v1466, %v1601
    %v1629 = vadd.f32 %v1512, %v1620
    %v1630 = vadd.f32 %v1513, %v1621
    %v1631 = vadd.f32 %v1514, %v1622
    %v1632 = vadd.f32 %v1515, %v1623
    %v1633 = vadd.f32 %v1516, %v1624
    %v1634 = vadd.f32 %v1517, %v1625
    %v1635 = vadd.f32 %v1518, %v1626
    %v1636 = vadd.f32 %v1519, %v1627
    %v1637 = vadd.f32 %v1520, %v1628
    %v1638 = vmul.f32 %v807, %v1593
    %v1639 = vmul.f32 %v807, %v1594
    %v1640 = vmul.f32 %v807, %v1595
    %v1641 = vmul.f32 %v807, %v1596
    %v1642 = vmul.f32 %v807, %v1597
    %v1643 = vmul.f32 %v807, %v1598
    %v1644 = vmul.f32 %v807, %v1599
    %v1645 = vmul.f32 %v807, %v1600
    %v1646 = vmul.f32 %v807, %v1601
    %v1647 = vadd.f32 %v1566, %v1638
    %v1648 = vadd.f32 %v1567, %v1639
    %v1649 = vadd.f32 %v1568, %v1640
    %v1650 = vadd.f32 %v1569, %v1641
    %v1651 = vadd.f32 %v1570, %v1642
    %v1652 = vadd.f32 %v1571, %v1643
    %v1653 = vadd.f32 %v1572, %v1644
    %v1654 = vadd.f32 %v1573, %v1645
    %v1655 = vadd.f32 %v1574, %v1646
    %v1656 = vmul.f32 %v827, %v1593
    %v1657 = vmul.f32 %v827, %v1594
    %v1658 = vmul.f32 %v827, %v1595
    %v1659 = vmul.f32 %v827, %v1596
    %v1660 = vmul.f32 %v827, %v1597
    %v1661 = vmul.f32 %v827, %v1598
    %v1662 = vmul.f32 %v827, %v1599
    %v1663 = vmul.f32 %v827, %v1600
    %v1664 = vmul.f32 %v827, %v1601
    %v1665 = vadd.f32 %v1584, %v1656
    %v1666 = vadd.f32 %v1585, %v1657
    %v1667 = vadd.f32 %v1586, %v1658
    %v1668 = vadd.f32 %v1587, %v1659
    %v1669 = vadd.f32 %v1588, %v1660
    %v1670 = vadd.f32 %v1589, %v1661
    %v1671 = vadd.f32 %v1590, %v1662
    %v1672 = vadd.f32 %v1591, %v1663
    %v1673 = vadd.f32 %v1592, %v1664
    %s1674 = scalar_lea.vmem %s0, 336
    %v1675 = vld [vmem:[%s1674] sm:$0xff]
    %v1676 = vld [vmem:[%s1674 + $0x10] sm:$0xff]
    %v1677 = vld [vmem:[%s1674 + $0x20] sm:$0xff]
    %v1678 = vld [vmem:[%s1674 + $0x30] sm:$0xff]
    %v1679 = vld [vmem:[%s1674 + $0x40] sm:$0xff]
    %v1680 = vld [vmem:[%s1674 + $0x50] sm:$0xff]
    %v1681 = vld [vmem:[%s1674 + $0x60] sm:$0xff]
    %v1682 = vld [vmem:[%s1674 + $0x70] sm:$0xff]
    %v1683 = vld [vmem:[%s1674 + $0x80] sm:$0xff]
    %v1684 = vmul.f32 %v1046, %v1675
    %v1685 = vmul.f32 %v1046, %v1676
    %v1686 = vmul.f32 %v1046, %v1677
    %v1687 = vmul.f32 %v1046, %v1678
    %v1688 = vmul.f32 %v1046, %v1679
    %v1689 = vmul.f32 %v1046, %v1680
    %v1690 = vmul.f32 %v1046, %v1681
    %v1691 = vmul.f32 %v1046, %v1682
    %v1692 = vmul.f32 %v1046, %v1683
    %v1693 = vadd.f32 %v1530, %v1684
    %v1694 = vadd.f32 %v1531, %v1685
    %v1695 = vadd.f32 %v1532, %v1686
    %v1696 = vadd.f32 %v1533, %v1687
    %v1697 = vadd.f32 %v1534, %v1688
    %v1698 = vadd.f32 %v1535, %v1689
    %v1699 = vadd.f32 %v1536, %v1690
    %v1700 = vadd.f32 %v1537, %v1691
    %v1701 = vadd.f32 %v1538, %v1692
    %v1702 = vmul.f32 %v1066, %v1675
    %v1703 = vmul.f32 %v1066, %v1676
    %v1704 = vmul.f32 %v1066, %v1677
    %v1705 = vmul.f32 %v1066, %v1678
    %v1706 = vmul.f32 %v1066, %v1679
    %v1707 = vmul.f32 %v1066, %v1680
    %v1708 = vmul.f32 %v1066, %v1681
    %v1709 = vmul.f32 %v1066, %v1682
    %v1710 = vmul.f32 %v1066, %v1683
    %v1711 = vadd.f32 %v1548, %v1702
    %v1712 = vadd.f32 %v1549, %v1703
    %v1713 = vadd.f32 %v1550, %v1704
    %v1714 = vadd.f32 %v1551, %v1705
    %v1715 = vadd.f32 %v1552, %v1706
    %v1716 = vadd.f32 %v1553, %v1707
    %v1717 = vadd.f32 %v1554, %v1708
    %v1718 = vadd.f32 %v1555, %v1709
    %v1719 = vadd.f32 %v1556, %v1710
    %s1720 = scalar_lea.vmem %s0, 496
    %v1721 = vld [vmem:[%s1720] sm:$0xff]
    %v1722 = vld [vmem:[%s1720 + $0x10] sm:$0xff]
    %v1723 = vld [vmem:[%s1720 + $0x20] sm:$0xff]
    %v1724 = vld [vmem:[%s1720 + $0x30] sm:$0xff]
    %v1725 = vld [vmem:[%s1720 + $0x40] sm:$0xff]
    %v1726 = vld [vmem:[%s1720 + $0x50] sm:$0xff]
    %v1727 = vld [vmem:[%s1720 + $0x60] sm:$0xff]
    %v1728 = vld [vmem:[%s1720 + $0x70] sm:$0xff]
    %v1729 = vld [vmem:[%s1720 + $0x80] sm:$0xff]
    %v1730 = vmul.f32 %v1132, %v1721
    %v1731 = vmul.f32 %v1132, %v1722
    %v1732 = vmul.f32 %v1132, %v1723
    %v1733 = vmul.f32 %v1132, %v1724
    %v1734 = vmul.f32 %v1132, %v1725
    %v1735 = vmul.f32 %v1132, %v1726
    %v1736 = vmul.f32 %v1132, %v1727
    %v1737 = vmul.f32 %v1132, %v1728
    %v1738 = vmul.f32 %v1132, %v1729
    %v1739 = vadd.f32 %v1693, %v1730
    %v1740 = vadd.f32 %v1694, %v1731
    %v1741 = vadd.f32 %v1695, %v1732
    %v1742 = vadd.f32 %v1696, %v1733
    %v1743 = vadd.f32 %v1697, %v1734
    %v1744 = vadd.f32 %v1698, %v1735
    %v1745 = vadd.f32 %v1699, %v1736
    %v1746 = vadd.f32 %v1700, %v1737
    %v1747 = vadd.f32 %v1701, %v1738
    %v1748 = vmul.f32 %v1152, %v1721
    %v1749 = vmul.f32 %v1152, %v1722
    %v1750 = vmul.f32 %v1152, %v1723
    %v1751 = vmul.f32 %v1152, %v1724
    %v1752 = vmul.f32 %v1152, %v1725
    %v1753 = vmul.f32 %v1152, %v1726
    %v1754 = vmul.f32 %v1152, %v1727
    %v1755 = vmul.f32 %v1152, %v1728
    %v1756 = vmul.f32 %v1152, %v1729
    %v1757 = vadd.f32 %v1711, %v1748
    %v1758 = vadd.f32 %v1712, %v1749
    %v1759 = vadd.f32 %v1713, %v1750
    %v1760 = vadd.f32 %v1714, %v1751
    %v1761 = vadd.f32 %v1715, %v1752
    %v1762 = vadd.f32 %v1716, %v1753
    %v1763 = vadd.f32 %v1717, %v1754
    %v1764 = vadd.f32 %v1718, %v1755
    %v1765 = vadd.f32 %v1719, %v1756
    %v1766 = vmul.f32 %v1046, %v1721
    %v1767 = vmul.f32 %v1046, %v1722
    %v1768 = vmul.f32 %v1046, %v1723
    %v1769 = vmul.f32 %v1046, %v1724
    %v1770 = vmul.f32 %v1046, %v1725
    %v1771 = vmul.f32 %v1046, %v1726
    %v1772 = vmul.f32 %v1046, %v1727
    %v1773 = vmul.f32 %v1046, %v1728
    %v1774 = vmul.f32 %v1046, %v1729
    %v1775 = vadd.f32 %v1647, %v1766
    %v1776 = vadd.f32 %v1648, %v1767
    %v1777 = vadd.f32 %v1649, %v1768
    %v1778 = vadd.f32 %v1650, %v1769
    %v1779 = vadd.f32 %v1651, %v1770
    %v1780 = vadd.f32 %v1652, %v1771
    %v1781 = vadd.f32 %v1653, %v1772
    %v1782 = vadd.f32 %v1654, %v1773
    %v1783 = vadd.f32 %v1655, %v1774
    %v1784 = vmul.f32 %v1066, %v1721
    %v1785 = vmul.f32 %v1066, %v1722
    %v1786 = vmul.f32 %v1066, %v1723
    %v1787 = vmul.f32 %v1066, %v1724
    %v1788 = vmul.f32 %v1066, %v1725
    %v1789 = vmul.f32 %v1066, %v1726
    %v1790 = vmul.f32 %v1066, %v1727
    %v1791 = vmul.f32 %v1066, %v1728
    %v1792 = vmul.f32 %v1066, %v1729
    %v1793 = vadd.f32 %v1665, %v1784
    %v1794 = vadd.f32 %v1666, %v1785
    %v1795 = vadd.f32 %v1667, %v1786
    %v1796 = vadd.f32 %v1668, %v1787
    %v1797 = vadd.f32 %v1669, %v1788
    %v1798 = vadd.f32 %v1670, %v1789
    %v1799 = vadd.f32 %v1671, %v1790
    %v1800 = vadd.f32 %v1672, %v1791
    %v1801 = vadd.f32 %v1673, %v1792
    %v1802 = vld [vmem:[%s1674 + $0x1] sm:$0xff]
    %v1803 = vld [vmem:[%s1674 + $0x11] sm:$0xff]
    %v1804 = vld [vmem:[%s1674 + $0x21] sm:$0xff]
    %v1805 = vld [vmem:[%s1674 + $0x31] sm:$0xff]
    %v1806 = vld [vmem:[%s1674 + $0x41] sm:$0xff]
    %v1807 = vld [vmem:[%s1674 + $0x51] sm:$0xff]
    %v1808 = vld [vmem:[%s1674 + $0x61] sm:$0xff]
    %v1809 = vld [vmem:[%s1674 + $0x71] sm:$0xff]
    %v1810 = vld [vmem:[%s1674 + $0x81] sm:$0xff]
    %v1811 = vmul.f32 %v1289, %v1802
    %v1812 = vmul.f32 %v1289, %v1803
    %v1813 = vmul.f32 %v1289, %v1804
    %v1814 = vmul.f32 %v1289, %v1805
    %v1815 = vmul.f32 %v1289, %v1806
    %v1816 = vmul.f32 %v1289, %v1807
    %v1817 = vmul.f32 %v1289, %v1808
    %v1818 = vmul.f32 %v1289, %v1809
    %v1819 = vmul.f32 %v1289, %v1810
    %v1820 = vadd.f32 %v1739, %v1811
    %v1821 = vadd.f32 %v1740, %v1812
    %v1822 = vadd.f32 %v1741, %v1813
    %v1823 = vadd.f32 %v1742, %v1814
    %v1824 = vadd.f32 %v1743, %v1815
    %v1825 = vadd.f32 %v1744, %v1816
    %v1826 = vadd.f32 %v1745, %v1817
    %v1827 = vadd.f32 %v1746, %v1818
    %v1828 = vadd.f32 %v1747, %v1819
    %v1829 = vmul.f32 %v1309, %v1802
    %v1830 = vmul.f32 %v1309, %v1803
    %v1831 = vmul.f32 %v1309, %v1804
    %v1832 = vmul.f32 %v1309, %v1805
    %v1833 = vmul.f32 %v1309, %v1806
    %v1834 = vmul.f32 %v1309, %v1807
    %v1835 = vmul.f32 %v1309, %v1808
    %v1836 = vmul.f32 %v1309, %v1809
    %v1837 = vmul.f32 %v1309, %v1810
    %v1838 = vadd.f32 %v1757, %v1829
    %v1839 = vadd.f32 %v1758, %v1830
    %v1840 = vadd.f32 %v1759, %v1831
    %v1841 = vadd.f32 %v1760, %v1832
    %v1842 = vadd.f32 %v1761, %v1833
    %v1843 = vadd.f32 %v1762, %v1834
    %v1844 = vadd.f32 %v1763, %v1835
    %v1845 = vadd.f32 %v1764, %v1836
    %v1846 = vadd.f32 %v1765, %v1837
    %v1847 = vmul.f32 %v1132, %v1802
    %v1848 = vmul.f32 %v1132, %v1803
    %v1849 = vmul.f32 %v1132, %v1804
    %v1850 = vmul.f32 %v1132, %v1805
    %v1851 = vmul.f32 %v1132, %v1806
    %v1852 = vmul.f32 %v1132, %v1807
    %v1853 = vmul.f32 %v1132, %v1808
    %v1854 = vmul.f32 %v1132, %v1809
    %v1855 = vmul.f32 %v1132, %v1810
    %v1856 = vadd.f32 %v1775, %v1847
    %v1857 = vadd.f32 %v1776, %v1848
    %v1858 = vadd.f32 %v1777, %v1849
    %v1859 = vadd.f32 %v1778, %v1850
    %v1860 = vadd.f32 %v1779, %v1851
    %v1861 = vadd.f32 %v1780, %v1852
    %v1862 = vadd.f32 %v1781, %v1853
    %v1863 = vadd.f32 %v1782, %v1854
    %v1864 = vadd.f32 %v1783, %v1855
    %v1865 = vmul.f32 %v1152, %v1802
    %v1866 = vmul.f32 %v1152, %v1803
    %v1867 = vmul.f32 %v1152, %v1804
    %v1868 = vmul.f32 %v1152, %v1805
    %v1869 = vmul.f32 %v1152, %v1806
    %v1870 = vmul.f32 %v1152, %v1807
    %v1871 = vmul.f32 %v1152, %v1808
    %v1872 = vmul.f32 %v1152, %v1809
    %v1873 = vmul.f32 %v1152, %v1810
    %v1874 = vadd.f32 %v1793, %v1865
    %v1875 = vadd.f32 %v1794, %v1866
    %v1876 = vadd.f32 %v1795, %v1867
    %v1877 = vadd.f32 %v1796, %v1868
    %v1878 = vadd.f32 %v1797, %v1869
    %v1879 = vadd.f32 %v1798, %v1870
    %v1880 = vadd.f32 %v1799, %v1871
    %v1881 = vadd.f32 %v1800, %v1872
    %v1882 = vadd.f32 %v1801, %v1873
    %v1883 = vld [vmem:[%s1720 + $0x1] sm:$0xff]
    %v1884 = vld [vmem:[%s1720 + $0x11] sm:$0xff]
    %v1885 = vld [vmem:[%s1720 + $0x21] sm:$0xff]
    %v1886 = vld [vmem:[%s1720 + $0x31] sm:$0xff]
    %v1887 = vld [vmem:[%s1720 + $0x41] sm:$0xff]
    %v1888 = vld [vmem:[%s1720 + $0x51] sm:$0xff]
    %v1889 = vld [vmem:[%s1720 + $0x61] sm:$0xff]
    %v1890 = vld [vmem:[%s1720 + $0x71] sm:$0xff]
    %v1891 = vld [vmem:[%s1720 + $0x81] sm:$0xff]
    %v1892 = vmul.f32 %v1446, %v1883
    %v1893 = vmul.f32 %v1446, %v1884
    %v1894 = vmul.f32 %v1446, %v1885
    %v1895 = vmul.f32 %v1446, %v1886
    %v1896 = vmul.f32 %v1446, %v1887
    %v1897 = vmul.f32 %v1446, %v1888
    %v1898 = vmul.f32 %v1446, %v1889
    %v1899 = vmul.f32 %v1446, %v1890
    %v1900 = vmul.f32 %v1446, %v1891
    %v1901 = vadd.f32 %v1820, %v1892
    %v1902 = vadd.f32 %v1821, %v1893
    %v1903 = vadd.f32 %v1822, %v1894
    %v1904 = vadd.f32 %v1823, %v1895
    %v1905 = vadd.f32 %v1824, %v1896
    %v1906 = vadd.f32 %v1825, %v1897
    %v1907 = vadd.f32 %v1826, %v1898
    %v1908 = vadd.f32 %v1827, %v1899
    %v1909 = vadd.f32 %v1828, %v1900
    %v1910 = vmul.f32 %v1466, %v1883
    %v1911 = vmul.f32 %v1466, %v1884
    %v1912 = vmul.f32 %v1466, %v1885
    %v1913 = vmul.f32 %v1466, %v1886
    %v1914 = vmul.f32 %v1466, %v1887
    %v1915 = vmul.f32 %v1466, %v1888
    %v1916 = vmul.f32 %v1466, %v1889
    %v1917 = vmul.f32 %v1466, %v1890
    %v1918 = vmul.f32 %v1466, %v1891
    %v1919 = vadd.f32 %v1838, %v1910
    %v1920 = vadd.f32 %v1839, %v1911
    %v1921 = vadd.f32 %v1840, %v1912
    %v1922 = vadd.f32 %v1841, %v1913
    %v1923 = vadd.f32 %v1842, %v1914
    %v1924 = vadd.f32 %v1843, %v1915
    %v1925 = vadd.f32 %v1844, %v1916
    %v1926 = vadd.f32 %v1845, %v1917
    %v1927 = vadd.f32 %v1846, %v1918
    %v1928 = vmul.f32 %v1289, %v1883
    %v1929 = vmul.f32 %v1289, %v1884
    %v1930 = vmul.f32 %v1289, %v1885
    %v1931 = vmul.f32 %v1289, %v1886
    %v1932 = vmul.f32 %v1289, %v1887
    %v1933 = vmul.f32 %v1289, %v1888
    %v1934 = vmul.f32 %v1289, %v1889
    %v1935 = vmul.f32 %v1289, %v1890
    %v1936 = vmul.f32 %v1289, %v1891
    %v1937 = vadd.f32 %v1856, %v1928
    %v1938 = vadd.f32 %v1857, %v1929
    %v1939 = vadd.f32 %v1858, %v1930
    %v1940 = vadd.f32 %v1859, %v1931
    %v1941 = vadd.f32 %v1860, %v1932
    %v1942 = vadd.f32 %v1861, %v1933
    %v1943 = vadd.f32 %v1862, %v1934
    %v1944 = vadd.f32 %v1863, %v1935
    %v1945 = vadd.f32 %v1864, %v1936
    %v1946 = vmul.f32 %v1309, %v1883
    %v1947 = vmul.f32 %v1309, %v1884
    %v1948 = vmul.f32 %v1309, %v1885
    %v1949 = vmul.f32 %v1309, %v1886
    %v1950 = vmul.f32 %v1309, %v1887
    %v1951 = vmul.f32 %v1309, %v1888
    %v1952 = vmul.f32 %v1309, %v1889
    %v1953 = vmul.f32 %v1309, %v1890
    %v1954 = vmul.f32 %v1309, %v1891
    %v1955 = vadd.f32 %v1874, %v1946
    %v1956 = vadd.f32 %v1875, %v1947
    %v1957 = vadd.f32 %v1876, %v1948
    %v1958 = vadd.f32 %v1877, %v1949
    %v1959 = vadd.f32 %v1878, %v1950
    %v1960 = vadd.f32 %v1879, %v1951
    %v1961 = vadd.f32 %v1880, %v1952
    %v1962 = vadd.f32 %v1881, %v1953
    %v1963 = vadd.f32 %v1882, %v1954
    %v1964 = vld [vmem:[%s1674 + $0x2] sm:$0xff]
    %v1965 = vld [vmem:[%s1674 + $0x12] sm:$0xff]
    %v1966 = vld [vmem:[%s1674 + $0x22] sm:$0xff]
    %v1967 = vld [vmem:[%s1674 + $0x32] sm:$0xff]
    %v1968 = vld [vmem:[%s1674 + $0x42] sm:$0xff]
    %v1969 = vld [vmem:[%s1674 + $0x52] sm:$0xff]
    %v1970 = vld [vmem:[%s1674 + $0x62] sm:$0xff]
    %v1971 = vld [vmem:[%s1674 + $0x72] sm:$0xff]
    %v1972 = vld [vmem:[%s1674 + $0x82] sm:$0xff]
    %v1973 = vmul.f32 %v1446, %v1964
    %v1974 = vmul.f32 %v1446, %v1965
    %v1975 = vmul.f32 %v1446, %v1966
    %v1976 = vmul.f32 %v1446, %v1967
    %v1977 = vmul.f32 %v1446, %v1968
    %v1978 = vmul.f32 %v1446, %v1969
    %v1979 = vmul.f32 %v1446, %v1970
    %v1980 = vmul.f32 %v1446, %v1971
    %v1981 = vmul.f32 %v1446, %v1972
    %v1982 = vadd.f32 %v1937, %v1973
    %v1983 = vadd.f32 %v1938, %v1974
    %v1984 = vadd.f32 %v1939, %v1975
    %v1985 = vadd.f32 %v1940, %v1976
    %v1986 = vadd.f32 %v1941, %v1977
    %v1987 = vadd.f32 %v1942, %v1978
    %v1988 = vadd.f32 %v1943, %v1979
    %v1989 = vadd.f32 %v1944, %v1980
    %v1990 = vadd.f32 %v1945, %v1981
    %v1991 = vmul.f32 %v1466, %v1964
    %v1992 = vmul.f32 %v1466, %v1965
    %v1993 = vmul.f32 %v1466, %v1966
    %v1994 = vmul.f32 %v1466, %v1967
    %v1995 = vmul.f32 %v1466, %v1968
    %v1996 = vmul.f32 %v1466, %v1969
    %v1997 = vmul.f32 %v1466, %v1970
    %v1998 = vmul.f32 %v1466, %v1971
    %v1999 = vmul.f32 %v1466, %v1972
    %v2000 = vadd.f32 %v1955, %v1991
    %v2001 = vadd.f32 %v1956, %v1992
    %v2002 = vadd.f32 %v1957, %v1993
    %v2003 = vadd.f32 %v1958, %v1994
    %v2004 = vadd.f32 %v1959, %v1995
    %v2005 = vadd.f32 %v1960, %v1996
    %v2006 = vadd.f32 %v1961, %v1997
    %v2007 = vadd.f32 %v1962, %v1998
    %v2008 = vadd.f32 %v1963, %v1999
    %s2009 = scalar_lea.vmem %s0, 640
    %v2010 = vld [vmem:[%s2009] sm:$0xff]
    %v2011 = vld [vmem:[%s2009 + $0x10] sm:$0xff]
    %v2012 = vld [vmem:[%s2009 + $0x20] sm:$0xff]
    %v2013 = vld [vmem:[%s2009 + $0x30] sm:$0xff]
    %v2014 = vld [vmem:[%s2009 + $0x40] sm:$0xff]
    %v2015 = vld [vmem:[%s2009 + $0x50] sm:$0xff]
    %v2016 = vld [vmem:[%s2009 + $0x60] sm:$0xff]
    %v2017 = vld [vmem:[%s2009 + $0x70] sm:$0xff]
    %v2018 = vld [vmem:[%s2009 + $0x80] sm:$0xff]
    %s2019 = sld [smem:[#allocation2 + $0xc]]
    %v2020 = vstv %s2019
    %v2021 = vmul.f32 %v2020, %v2010
    %v2022 = vmul.f32 %v2020, %v2011
    %v2023 = vmul.f32 %v2020, %v2012
    %v2024 = vmul.f32 %v2020, %v2013
    %v2025 = vmul.f32 %v2020, %v2014
    %v2026 = vmul.f32 %v2020, %v2015
    %v2027 = vmul.f32 %v2020, %v2016
    %v2028 = vmul.f32 %v2020, %v2017
    %v2029 = vmul.f32 %v2020, %v2018
    %v2030 = vadd.f32 %v1456, %v2021
    %v2031 = vadd.f32 %v1457, %v2022
    %v2032 = vadd.f32 %v1458, %v2023
    %v2033 = vadd.f32 %v1459, %v2024
    %v2034 = vadd.f32 %v1460, %v2025
    %v2035 = vadd.f32 %v1461, %v2026
    %v2036 = vadd.f32 %v1462, %v2027
    %v2037 = vadd.f32 %v1463, %v2028
    %v2038 = vadd.f32 %v1464, %v2029
    %s2039 = sld [smem:[#allocation2 + $0x30]]
    %v2040 = vstv %s2039
    %v2041 = vmul.f32 %v2040, %v2010
    %v2042 = vmul.f32 %v2040, %v2011
    %v2043 = vmul.f32 %v2040, %v2012
    %v2044 = vmul.f32 %v2040, %v2013
    %v2045 = vmul.f32 %v2040, %v2014
    %v2046 = vmul.f32 %v2040, %v2015
    %v2047 = vmul.f32 %v2040, %v2016
    %v2048 = vmul.f32 %v2040, %v2017
    %v2049 = vmul.f32 %v2040, %v2018
    %v2050 = vadd.f32 %v1476, %v2041
    %v2051 = vadd.f32 %v1477, %v2042
    %v2052 = vadd.f32 %v1478, %v2043
    %v2053 = vadd.f32 %v1479, %v2044
    %v2054 = vadd.f32 %v1480, %v2045
    %v2055 = vadd.f32 %v1481, %v2046
    %v2056 = vadd.f32 %v1482, %v2047
    %v2057 = vadd.f32 %v1483, %v2048
    %v2058 = vadd.f32 %v1484, %v2049
    %s2059 = scalar_lea.vmem %s0, 800
    %v2060 = vld [vmem:[%s2059] sm:$0xff]
    %v2061 = vld [vmem:[%s2059 + $0x10] sm:$0xff]
    %v2062 = vld [vmem:[%s2059 + $0x20] sm:$0xff]
    %v2063 = vld [vmem:[%s2059 + $0x30] sm:$0xff]
    %v2064 = vld [vmem:[%s2059 + $0x40] sm:$0xff]
    %v2065 = vld [vmem:[%s2059 + $0x50] sm:$0xff]
    %v2066 = vld [vmem:[%s2059 + $0x60] sm:$0xff]
    %v2067 = vld [vmem:[%s2059 + $0x70] sm:$0xff]
    %v2068 = vld [vmem:[%s2059 + $0x80] sm:$0xff]
    %s2069 = sld [smem:[#allocation2 + $0xd]]
    %v2070 = vstv %s2069
    %v2071 = vmul.f32 %v2070, %v2060
    %v2072 = vmul.f32 %v2070, %v2061
    %v2073 = vmul.f32 %v2070, %v2062
    %v2074 = vmul.f32 %v2070, %v2063
    %v2075 = vmul.f32 %v2070, %v2064
    %v2076 = vmul.f32 %v2070, %v2065
    %v2077 = vmul.f32 %v2070, %v2066
    %v2078 = vmul.f32 %v2070, %v2067
    %v2079 = vmul.f32 %v2070, %v2068
    %v2080 = vadd.f32 %v2030, %v2071
    %v2081 = vadd.f32 %v2031, %v2072
    %v2082 = vadd.f32 %v2032, %v2073
    %v2083 = vadd.f32 %v2033, %v2074
    %v2084 = vadd.f32 %v2034, %v2075
    %v2085 = vadd.f32 %v2035, %v2076
    %v2086 = vadd.f32 %v2036, %v2077
    %v2087 = vadd.f32 %v2037, %v2078
    %v2088 = vadd.f32 %v2038, %v2079
    %s2089 = sld [smem:[#allocation2 + $0x31]]
    %v2090 = vstv %s2089
    %v2091 = vmul.f32 %v2090, %v2060
    %v2092 = vmul.f32 %v2090, %v2061
    %v2093 = vmul.f32 %v2090, %v2062
    %v2094 = vmul.f32 %v2090, %v2063
    %v2095 = vmul.f32 %v2090, %v2064
    %v2096 = vmul.f32 %v2090, %v2065
    %v2097 = vmul.f32 %v2090, %v2066
    %v2098 = vmul.f32 %v2090, %v2067
    %v2099 = vmul.f32 %v2090, %v2068
    %v2100 = vadd.f32 %v2050, %v2091
    %v2101 = vadd.f32 %v2051, %v2092
    %v2102 = vadd.f32 %v2052, %v2093
    %v2103 = vadd.f32 %v2053, %v2094
    %v2104 = vadd.f32 %v2054, %v2095
    %v2105 = vadd.f32 %v2055, %v2096
    %v2106 = vadd.f32 %v2056, %v2097
    %v2107 = vadd.f32 %v2057, %v2098
    %v2108 = vadd.f32 %v2058, %v2099
    %v2109 = vmul.f32 %v2020, %v2060
    %v2110 = vmul.f32 %v2020, %v2061
    %v2111 = vmul.f32 %v2020, %v2062
    %v2112 = vmul.f32 %v2020, %v2063
    %v2113 = vmul.f32 %v2020, %v2064
    %v2114 = vmul.f32 %v2020, %v2065
    %v2115 = vmul.f32 %v2020, %v2066
    %v2116 = vmul.f32 %v2020, %v2067
    %v2117 = vmul.f32 %v2020, %v2068
    %v2118 = vadd.f32 %v1611, %v2109
    %v2119 = vadd.f32 %v1612, %v2110
    %v2120 = vadd.f32 %v1613, %v2111
    %v2121 = vadd.f32 %v1614, %v2112
    %v2122 = vadd.f32 %v1615, %v2113
    %v2123 = vadd.f32 %v1616, %v2114
    %v2124 = vadd.f32 %v1617, %v2115
    %v2125 = vadd.f32 %v1618, %v2116
    %v2126 = vadd.f32 %v1619, %v2117
    %v2127 = vmul.f32 %v2040, %v2060
    %v2128 = vmul.f32 %v2040, %v2061
    %v2129 = vmul.f32 %v2040, %v2062
    %v2130 = vmul.f32 %v2040, %v2063
    %v2131 = vmul.f32 %v2040, %v2064
    %v2132 = vmul.f32 %v2040, %v2065
    %v2133 = vmul.f32 %v2040, %v2066
    %v2134 = vmul.f32 %v2040, %v2067
    %v2135 = vmul.f32 %v2040, %v2068
    %v2136 = vadd.f32 %v1629, %v2127
    %v2137 = vadd.f32 %v1630, %v2128
    %v2138 = vadd.f32 %v1631, %v2129
    %v2139 = vadd.f32 %v1632, %v2130
    %v2140 = vadd.f32 %v1633, %v2131
    %v2141 = vadd.f32 %v1634, %v2132
    %v2142 = vadd.f32 %v1635, %v2133
    %v2143 = vadd.f32 %v1636, %v2134
    %v2144 = vadd.f32 %v1637, %v2135
    %v2145 = vld [vmem:[%s2009 + $0x1] sm:$0xff]
    %v2146 = vld [vmem:[%s2009 + $0x11] sm:$0xff]
    %v2147 = vld [vmem:[%s2009 + $0x21] sm:$0xff]
    %v2148 = vld [vmem:[%s2009 + $0x31] sm:$0xff]
    %v2149 = vld [vmem:[%s2009 + $0x41] sm:$0xff]
    %v2150 = vld [vmem:[%s2009 + $0x51] sm:$0xff]
    %v2151 = vld [vmem:[%s2009 + $0x61] sm:$0xff]
    %v2152 = vld [vmem:[%s2009 + $0x71] sm:$0xff]
    %v2153 = vld [vmem:[%s2009 + $0x81] sm:$0xff]
    %s2154 = sld [smem:[#allocation2 + $0xe]]
    %v2155 = vstv %s2154
    %v2156 = vmul.f32 %v2155, %v2145
    %v2157 = vmul.f32 %v2155, %v2146
    %v2158 = vmul.f32 %v2155, %v2147
    %v2159 = vmul.f32 %v2155, %v2148
    %v2160 = vmul.f32 %v2155, %v2149
    %v2161 = vmul.f32 %v2155, %v2150
    %v2162 = vmul.f32 %v2155, %v2151
    %v2163 = vmul.f32 %v2155, %v2152
    %v2164 = vmul.f32 %v2155, %v2153
    %v2165 = vadd.f32 %v2080, %v2156
    %v2166 = vadd.f32 %v2081, %v2157
    %v2167 = vadd.f32 %v2082, %v2158
    %v2168 = vadd.f32 %v2083, %v2159
    %v2169 = vadd.f32 %v2084, %v2160
    %v2170 = vadd.f32 %v2085, %v2161
    %v2171 = vadd.f32 %v2086, %v2162
    %v2172 = vadd.f32 %v2087, %v2163
    %v2173 = vadd.f32 %v2088, %v2164
    %s2174 = sld [smem:[#allocation2 + $0x32]]
    %v2175 = vstv %s2174
    %v2176 = vmul.f32 %v2175, %v2145
    %v2177 = vmul.f32 %v2175, %v2146
    %v2178 = vmul.f32 %v2175, %v2147
    %v2179 = vmul.f32 %v2175, %v2148
    %v2180 = vmul.f32 %v2175, %v2149
    %v2181 = vmul.f32 %v2175, %v2150
    %v2182 = vmul.f32 %v2175, %v2151
    %v2183 = vmul.f32 %v2175, %v2152
    %v2184 = vmul.f32 %v2175, %v2153
    %v2185 = vadd.f32 %v2100, %v2176
    %v2186 = vadd.f32 %v2101, %v2177
    %v2187 = vadd.f32 %v2102, %v2178
    %v2188 = vadd.f32 %v2103, %v2179
    %v2189 = vadd.f32 %v2104, %v2180
    %v2190 = vadd.f32 %v2105, %v2181
    %v2191 = vadd.f32 %v2106, %v2182
    %v2192 = vadd.f32 %v2107, %v2183
    %v2193 = vadd.f32 %v2108, %v2184
    %v2194 = vmul.f32 %v2070, %v2145
    %v2195 = vmul.f32 %v2070, %v2146
    %v2196 = vmul.f32 %v2070, %v2147
    %v2197 = vmul.f32 %v2070, %v2148
    %v2198 = vmul.f32 %v2070, %v2149
    %v2199 = vmul.f32 %v2070, %v2150
    %v2200 = vmul.f32 %v2070, %v2151
    %v2201 = vmul.f32 %v2070, %v2152
    %v2202 = vmul.f32 %v2070, %v2153
    %v2203 = vadd.f32 %v2118, %v2194
    %v2204 = vadd.f32 %v2119, %v2195
    %v2205 = vadd.f32 %v2120, %v2196
    %v2206 = vadd.f32 %v2121, %v2197
    %v2207 = vadd.f32 %v2122, %v2198
    %v2208 = vadd.f32 %v2123, %v2199
    %v2209 = vadd.f32 %v2124, %v2200
    %v2210 = vadd.f32 %v2125, %v2201
    %v2211 = vadd.f32 %v2126, %v2202
    %v2212 = vmul.f32 %v2090, %v2145
    %v2213 = vmul.f32 %v2090, %v2146
    %v2214 = vmul.f32 %v2090, %v2147
    %v2215 = vmul.f32 %v2090, %v2148
    %v2216 = vmul.f32 %v2090, %v2149
    %v2217 = vmul.f32 %v2090, %v2150
    %v2218 = vmul.f32 %v2090, %v2151
    %v2219 = vmul.f32 %v2090, %v2152
    %v2220 = vmul.f32 %v2090, %v2153
    %v2221 = vadd.f32 %v2136, %v2212
    %v2222 = vadd.f32 %v2137, %v2213
    %v2223 = vadd.f32 %v2138, %v2214
    %v2224 = vadd.f32 %v2139, %v2215
    %v2225 = vadd.f32 %v2140, %v2216
    %v2226 = vadd.f32 %v2141, %v2217
    %v2227 = vadd.f32 %v2142, %v2218
    %v2228 = vadd.f32 %v2143, %v2219
    %v2229 = vadd.f32 %v2144, %v2220
    %v2230 = vld [vmem:[%s2059 + $0x1] sm:$0xff]
    %v2231 = vld [vmem:[%s2059 + $0x11] sm:$0xff]
    %v2232 = vld [vmem:[%s2059 + $0x21] sm:$0xff]
    %v2233 = vld [vmem:[%s2059 + $0x31] sm:$0xff]
    %v2234 = vld [vmem:[%s2059 + $0x41] sm:$0xff]
    %v2235 = vld [vmem:[%s2059 + $0x51] sm:$0xff]
    %v2236 = vld [vmem:[%s2059 + $0x61] sm:$0xff]
    %v2237 = vld [vmem:[%s2059 + $0x71] sm:$0xff]
    %v2238 = vld [vmem:[%s2059 + $0x81] sm:$0xff]
    %s2239 = sld [smem:[#allocation2 + $0xf]]
    %v2240 = vstv %s2239
    %v2241 = vmul.f32 %v2240, %v2230
    %v2242 = vmul.f32 %v2240, %v2231
    %v2243 = vmul.f32 %v2240, %v2232
    %v2244 = vmul.f32 %v2240, %v2233
    %v2245 = vmul.f32 %v2240, %v2234
    %v2246 = vmul.f32 %v2240, %v2235
    %v2247 = vmul.f32 %v2240, %v2236
    %v2248 = vmul.f32 %v2240, %v2237
    %v2249 = vmul.f32 %v2240, %v2238
    %v2250 = vadd.f32 %v2165, %v2241
    %v2251 = vadd.f32 %v2166, %v2242
    %v2252 = vadd.f32 %v2167, %v2243
    %v2253 = vadd.f32 %v2168, %v2244
    %v2254 = vadd.f32 %v2169, %v2245
    %v2255 = vadd.f32 %v2170, %v2246
    %v2256 = vadd.f32 %v2171, %v2247
    %v2257 = vadd.f32 %v2172, %v2248
    %v2258 = vadd.f32 %v2173, %v2249
    %s2259 = sld [smem:[#allocation2 + $0x33]]
    %v2260 = vstv %s2259
    %v2261 = vmul.f32 %v2260, %v2230
    %v2262 = vmul.f32 %v2260, %v2231
    %v2263 = vmul.f32 %v2260, %v2232
    %v2264 = vmul.f32 %v2260, %v2233
    %v2265 = vmul.f32 %v2260, %v2234
    %v2266 = vmul.f32 %v2260, %v2235
    %v2267 = vmul.f32 %v2260, %v2236
    %v2268 = vmul.f32 %v2260, %v2237
    %v2269 = vmul.f32 %v2260, %v2238
    %v2270 = vadd.f32 %v2185, %v2261
    %v2271 = vadd.f32 %v2186, %v2262
    %v2272 = vadd.f32 %v2187, %v2263
    %v2273 = vadd.f32 %v2188, %v2264
    %v2274 = vadd.f32 %v2189, %v2265
    %v2275 = vadd.f32 %v2190, %v2266
    %v2276 = vadd.f32 %v2191, %v2267
    %v2277 = vadd.f32 %v2192, %v2268
    %v2278 = vadd.f32 %v2193, %v2269
    %v2279 = vmul.f32 %v2155, %v2230
    %v2280 = vmul.f32 %v2155, %v2231
    %v2281 = vmul.f32 %v2155, %v2232
    %v2282 = vmul.f32 %v2155, %v2233
    %v2283 = vmul.f32 %v2155, %v2234
    %v2284 = vmul.f32 %v2155, %v2235
    %v2285 = vmul.f32 %v2155, %v2236
    %v2286 = vmul.f32 %v2155, %v2237
    %v2287 = vmul.f32 %v2155, %v2238
    %v2288 = vadd.f32 %v2203, %v2279
    %v2289 = vadd.f32 %v2204, %v2280
    %v2290 = vadd.f32 %v2205, %v2281
    %v2291 = vadd.f32 %v2206, %v2282
    %v2292 = vadd.f32 %v2207, %v2283
    %v2293 = vadd.f32 %v2208, %v2284
    %v2294 = vadd.f32 %v2209, %v2285
    %v2295 = vadd.f32 %v2210, %v2286
    %v2296 = vadd.f32 %v2211, %v2287
    %v2297 = vmul.f32 %v2175, %v2230
    %v2298 = vmul.f32 %v2175, %v2231
    %v2299 = vmul.f32 %v2175, %v2232
    %v2300 = vmul.f32 %v2175, %v2233
    %v2301 = vmul.f32 %v2175, %v2234
    %v2302 = vmul.f32 %v2175, %v2235
    %v2303 = vmul.f32 %v2175, %v2236
    %v2304 = vmul.f32 %v2175, %v2237
    %v2305 = vmul.f32 %v2175, %v2238
    %v2306 = vadd.f32 %v2221, %v2297
    %v2307 = vadd.f32 %v2222, %v2298
    %v2308 = vadd.f32 %v2223, %v2299
    %v2309 = vadd.f32 %v2224, %v2300
    %v2310 = vadd.f32 %v2225, %v2301
    %v2311 = vadd.f32 %v2226, %v2302
    %v2312 = vadd.f32 %v2227, %v2303
    %v2313 = vadd.f32 %v2228, %v2304
    %v2314 = vadd.f32 %v2229, %v2305
    %v2315 = vld [vmem:[%s2009 + $0x2] sm:$0xff]
    %v2316 = vld [vmem:[%s2009 + $0x12] sm:$0xff]
    %v2317 = vld [vmem:[%s2009 + $0x22] sm:$0xff]
    %v2318 = vld [vmem:[%s2009 + $0x32] sm:$0xff]
    %v2319 = vld [vmem:[%s2009 + $0x42] sm:$0xff]
    %v2320 = vld [vmem:[%s2009 + $0x52] sm:$0xff]
    %v2321 = vld [vmem:[%s2009 + $0x62] sm:$0xff]
    %v2322 = vld [vmem:[%s2009 + $0x72] sm:$0xff]
    %v2323 = vld [vmem:[%s2009 + $0x82] sm:$0xff]
    %v2324 = vmul.f32 %v2240, %v2315
    %v2325 = vmul.f32 %v2240, %v2316
    %v2326 = vmul.f32 %v2240, %v2317
    %v2327 = vmul.f32 %v2240, %v2318
    %v2328 = vmul.f32 %v2240, %v2319
    %v2329 = vmul.f32 %v2240, %v2320
    %v2330 = vmul.f32 %v2240, %v2321
    %v2331 = vmul.f32 %v2240, %v2322
    %v2332 = vmul.f32 %v2240, %v2323
    %v2333 = vadd.f32 %v2288, %v2324
    %v2334 = vadd.f32 %v2289, %v2325
    %v2335 = vadd.f32 %v2290, %v2326
    %v2336 = vadd.f32 %v2291, %v2327
    %v2337 = vadd.f32 %v2292, %v2328
    %v2338 = vadd.f32 %v2293, %v2329
    %v2339 = vadd.f32 %v2294, %v2330
    %v2340 = vadd.f32 %v2295, %v2331
    %v2341 = vadd.f32 %v2296, %v2332
    %v2342 = vmul.f32 %v2260, %v2315
    %v2343 = vmul.f32 %v2260, %v2316
    %v2344 = vmul.f32 %v2260, %v2317
    %v2345 = vmul.f32 %v2260, %v2318
    %v2346 = vmul.f32 %v2260, %v2319
    %v2347 = vmul.f32 %v2260, %v2320
    %v2348 = vmul.f32 %v2260, %v2321
    %v2349 = vmul.f32 %v2260, %v2322
    %v2350 = vmul.f32 %v2260, %v2323
    %v2351 = vadd.f32 %v2306, %v2342
    %v2352 = vadd.f32 %v2307, %v2343
    %v2353 = vadd.f32 %v2308, %v2344
    %v2354 = vadd.f32 %v2309, %v2345
    %v2355 = vadd.f32 %v2310, %v2346
    %v2356 = vadd.f32 %v2311, %v2347
    %v2357 = vadd.f32 %v2312, %v2348
    %v2358 = vadd.f32 %v2313, %v2349
    %v2359 = vadd.f32 %v2314, %v2350
    %s2360 = scalar_lea.vmem %s0, 960
    %v2361 = vld [vmem:[%s2360] sm:$0xff]
    %v2362 = vld [vmem:[%s2360 + $0x10] sm:$0xff]
    %v2363 = vld [vmem:[%s2360 + $0x20] sm:$0xff]
    %v2364 = vld [vmem:[%s2360 + $0x30] sm:$0xff]
    %v2365 = vld [vmem:[%s2360 + $0x40] sm:$0xff]
    %v2366 = vld [vmem:[%s2360 + $0x50] sm:$0xff]
    %v2367 = vld [vmem:[%s2360 + $0x60] sm:$0xff]
    %v2368 = vld [vmem:[%s2360 + $0x70] sm:$0xff]
    %v2369 = vld [vmem:[%s2360 + $0x80] sm:$0xff]
    %s2370 = sld [smem:[#allocation2 + $0x10]]
    %v2371 = vstv %s2370
    %v2372 = vmul.f32 %v2371, %v2361
    %v2373 = vmul.f32 %v2371, %v2362
    %v2374 = vmul.f32 %v2371, %v2363
    %v2375 = vmul.f32 %v2371, %v2364
    %v2376 = vmul.f32 %v2371, %v2365
    %v2377 = vmul.f32 %v2371, %v2366
    %v2378 = vmul.f32 %v2371, %v2367
    %v2379 = vmul.f32 %v2371, %v2368
    %v2380 = vmul.f32 %v2371, %v2369
    %v2381 = vadd.f32 %v2250, %v2372
    %v2382 = vadd.f32 %v2251, %v2373
    %v2383 = vadd.f32 %v2252, %v2374
    %v2384 = vadd.f32 %v2253, %v2375
    %v2385 = vadd.f32 %v2254, %v2376
    %v2386 = vadd.f32 %v2255, %v2377
    %v2387 = vadd.f32 %v2256, %v2378
    %v2388 = vadd.f32 %v2257, %v2379
    %v2389 = vadd.f32 %v2258, %v2380
    %s2390 = sld [smem:[#allocation2 + $0x34]]
    %v2391 = vstv %s2390
    %v2392 = vmul.f32 %v2391, %v2361
    %v2393 = vmul.f32 %v2391, %v2362
    %v2394 = vmul.f32 %v2391, %v2363
    %v2395 = vmul.f32 %v2391, %v2364
    %v2396 = vmul.f32 %v2391, %v2365
    %v2397 = vmul.f32 %v2391, %v2366
    %v2398 = vmul.f32 %v2391, %v2367
    %v2399 = vmul.f32 %v2391, %v2368
    %v2400 = vmul.f32 %v2391, %v2369
    %v2401 = vadd.f32 %v2270, %v2392
    %v2402 = vadd.f32 %v2271, %v2393
    %v2403 = vadd.f32 %v2272, %v2394
    %v2404 = vadd.f32 %v2273, %v2395
    %v2405 = vadd.f32 %v2274, %v2396
    %v2406 = vadd.f32 %v2275, %v2397
    %v2407 = vadd.f32 %v2276, %v2398
    %v2408 = vadd.f32 %v2277, %v2399
    %v2409 = vadd.f32 %v2278, %v2400
    %v2410 = vmul.f32 %v2020, %v2361
    %v2411 = vmul.f32 %v2020, %v2362
    %v2412 = vmul.f32 %v2020, %v2363
    %v2413 = vmul.f32 %v2020, %v2364
    %v2414 = vmul.f32 %v2020, %v2365
    %v2415 = vmul.f32 %v2020, %v2366
    %v2416 = vmul.f32 %v2020, %v2367
    %v2417 = vmul.f32 %v2020, %v2368
    %v2418 = vmul.f32 %v2020, %v2369
    %v2419 = vadd.f32 %v1901, %v2410
    %v2420 = vadd.f32 %v1902, %v2411
    %v2421 = vadd.f32 %v1903, %v2412
    %v2422 = vadd.f32 %v1904, %v2413
    %v2423 = vadd.f32 %v1905, %v2414
    %v2424 = vadd.f32 %v1906, %v2415
    %v2425 = vadd.f32 %v1907, %v2416
    %v2426 = vadd.f32 %v1908, %v2417
    %v2427 = vadd.f32 %v1909, %v2418
    %v2428 = vmul.f32 %v2040, %v2361
    %v2429 = vmul.f32 %v2040, %v2362
    %v2430 = vmul.f32 %v2040, %v2363
    %v2431 = vmul.f32 %v2040, %v2364
    %v2432 = vmul.f32 %v2040, %v2365
    %v2433 = vmul.f32 %v2040, %v2366
    %v2434 = vmul.f32 %v2040, %v2367
    %v2435 = vmul.f32 %v2040, %v2368
    %v2436 = vmul.f32 %v2040, %v2369
    %v2437 = vadd.f32 %v1919, %v2428
    %v2438 = vadd.f32 %v1920, %v2429
    %v2439 = vadd.f32 %v1921, %v2430
    %v2440 = vadd.f32 %v1922, %v2431
    %v2441 = vadd.f32 %v1923, %v2432
    %v2442 = vadd.f32 %v1924, %v2433
    %v2443 = vadd.f32 %v1925, %v2434
    %v2444 = vadd.f32 %v1926, %v2435
    %v2445 = vadd.f32 %v1927, %v2436
    %s2446 = scalar_lea.vmem %s0, 1120
    %v2447 = vld [vmem:[%s2446] sm:$0xff]
    %v2448 = vld [vmem:[%s2446 + $0x10] sm:$0xff]
    %v2449 = vld [vmem:[%s2446 + $0x20] sm:$0xff]
    %v2450 = vld [vmem:[%s2446 + $0x30] sm:$0xff]
    %v2451 = vld [vmem:[%s2446 + $0x40] sm:$0xff]
    %v2452 = vld [vmem:[%s2446 + $0x50] sm:$0xff]
    %v2453 = vld [vmem:[%s2446 + $0x60] sm:$0xff]
    %v2454 = vld [vmem:[%s2446 + $0x70] sm:$0xff]
    %v2455 = vld [vmem:[%s2446 + $0x80] sm:$0xff]
    %s2456 = sld [smem:[#allocation2 + $0x11]]
    %v2457 = vstv %s2456
    %v2458 = vmul.f32 %v2457, %v2447
    %v2459 = vmul.f32 %v2457, %v2448
    %v2460 = vmul.f32 %v2457, %v2449
    %v2461 = vmul.f32 %v2457, %v2450
    %v2462 = vmul.f32 %v2457, %v2451
    %v2463 = vmul.f32 %v2457, %v2452
    %v2464 = vmul.f32 %v2457, %v2453
    %v2465 = vmul.f32 %v2457, %v2454
    %v2466 = vmul.f32 %v2457, %v2455
    %v2467 = vadd.f32 %v2381, %v2458
    %v2468 = vadd.f32 %v2382, %v2459
    %v2469 = vadd.f32 %v2383, %v2460
    %v2470 = vadd.f32 %v2384, %v2461
    %v2471 = vadd.f32 %v2385, %v2462
    %v2472 = vadd.f32 %v2386, %v2463
    %v2473 = vadd.f32 %v2387, %v2464
    %v2474 = vadd.f32 %v2388, %v2465
    %v2475 = vadd.f32 %v2389, %v2466
    %s2476 = sld [smem:[#allocation2 + $0x35]]
    %v2477 = vstv %s2476
    %v2478 = vmul.f32 %v2477, %v2447
    %v2479 = vmul.f32 %v2477, %v2448
    %v2480 = vmul.f32 %v2477, %v2449
    %v2481 = vmul.f32 %v2477, %v2450
    %v2482 = vmul.f32 %v2477, %v2451
    %v2483 = vmul.f32 %v2477, %v2452
    %v2484 = vmul.f32 %v2477, %v2453
    %v2485 = vmul.f32 %v2477, %v2454
    %v2486 = vmul.f32 %v2477, %v2455
    %v2487 = vadd.f32 %v2401, %v2478
    %v2488 = vadd.f32 %v2402, %v2479
    %v2489 = vadd.f32 %v2403, %v2480
    %v2490 = vadd.f32 %v2404, %v2481
    %v2491 = vadd.f32 %v2405, %v2482
    %v2492 = vadd.f32 %v2406, %v2483
    %v2493 = vadd.f32 %v2407, %v2484
    %v2494 = vadd.f32 %v2408, %v2485
    %v2495 = vadd.f32 %v2409, %v2486
    %v2496 = vmul.f32 %v2371, %v2447
    %v2497 = vmul.f32 %v2371, %v2448
    %v2498 = vmul.f32 %v2371, %v2449
    %v2499 = vmul.f32 %v2371, %v2450
    %v2500 = vmul.f32 %v2371, %v2451
    %v2501 = vmul.f32 %v2371, %v2452
    %v2502 = vmul.f32 %v2371, %v2453
    %v2503 = vmul.f32 %v2371, %v2454
    %v2504 = vmul.f32 %v2371, %v2455
    %v2505 = vadd.f32 %v2333, %v2496
    %v2506 = vadd.f32 %v2334, %v2497
    %v2507 = vadd.f32 %v2335, %v2498
    %v2508 = vadd.f32 %v2336, %v2499
    %v2509 = vadd.f32 %v2337, %v2500
    %v2510 = vadd.f32 %v2338, %v2501
    %v2511 = vadd.f32 %v2339, %v2502
    %v2512 = vadd.f32 %v2340, %v2503
    %v2513 = vadd.f32 %v2341, %v2504
    %v2514 = vmul.f32 %v2391, %v2447
    %v2515 = vmul.f32 %v2391, %v2448
    %v2516 = vmul.f32 %v2391, %v2449
    %v2517 = vmul.f32 %v2391, %v2450
    %v2518 = vmul.f32 %v2391, %v2451
    %v2519 = vmul.f32 %v2391, %v2452
    %v2520 = vmul.f32 %v2391, %v2453
    %v2521 = vmul.f32 %v2391, %v2454
    %v2522 = vmul.f32 %v2391, %v2455
    %v2523 = vadd.f32 %v2351, %v2514
    %v2524 = vadd.f32 %v2352, %v2515
    %v2525 = vadd.f32 %v2353, %v2516
    %v2526 = vadd.f32 %v2354, %v2517
    %v2527 = vadd.f32 %v2355, %v2518
    %v2528 = vadd.f32 %v2356, %v2519
    %v2529 = vadd.f32 %v2357, %v2520
    %v2530 = vadd.f32 %v2358, %v2521
    %v2531 = vadd.f32 %v2359, %v2522
    %v2532 = vmul.f32 %v2070, %v2447
    %v2533 = vmul.f32 %v2070, %v2448
    %v2534 = vmul.f32 %v2070, %v2449
    %v2535 = vmul.f32 %v2070, %v2450
    %v2536 = vmul.f32 %v2070, %v2451
    %v2537 = vmul.f32 %v2070, %v2452
    %v2538 = vmul.f32 %v2070, %v2453
    %v2539 = vmul.f32 %v2070, %v2454
    %v2540 = vmul.f32 %v2070, %v2455
    %v2541 = vadd.f32 %v2419, %v2532
    %v2542 = vadd.f32 %v2420, %v2533
    %v2543 = vadd.f32 %v2421, %v2534
    %v2544 = vadd.f32 %v2422, %v2535
    %v2545 = vadd.f32 %v2423, %v2536
    %v2546 = vadd.f32 %v2424, %v2537
    %v2547 = vadd.f32 %v2425, %v2538
    %v2548 = vadd.f32 %v2426, %v2539
    %v2549 = vadd.f32 %v2427, %v2540
    %v2550 = vmul.f32 %v2090, %v2447
    %v2551 = vmul.f32 %v2090, %v2448
    %v2552 = vmul.f32 %v2090, %v2449
    %v2553 = vmul.f32 %v2090, %v2450
    %v2554 = vmul.f32 %v2090, %v2451
    %v2555 = vmul.f32 %v2090, %v2452
    %v2556 = vmul.f32 %v2090, %v2453
    %v2557 = vmul.f32 %v2090, %v2454
    %v2558 = vmul.f32 %v2090, %v2455
    %v2559 = vadd.f32 %v2437, %v2550
    %v2560 = vadd.f32 %v2438, %v2551
    %v2561 = vadd.f32 %v2439, %v2552
    %v2562 = vadd.f32 %v2440, %v2553
    %v2563 = vadd.f32 %v2441, %v2554
    %v2564 = vadd.f32 %v2442, %v2555
    %v2565 = vadd.f32 %v2443, %v2556
    %v2566 = vadd.f32 %v2444, %v2557
    %v2567 = vadd.f32 %v2445, %v2558
    %v2568 = vmul.f32 %v2020, %v2447
    %v2569 = vmul.f32 %v2020, %v2448
    %v2570 = vmul.f32 %v2020, %v2449
    %v2571 = vmul.f32 %v2020, %v2450
    %v2572 = vmul.f32 %v2020, %v2451
    %v2573 = vmul.f32 %v2020, %v2452
    %v2574 = vmul.f32 %v2020, %v2453
    %v2575 = vmul.f32 %v2020, %v2454
    %v2576 = vmul.f32 %v2020, %v2455
    %v2577 = vadd.f32 %v1982, %v2568
    %v2578 = vadd.f32 %v1983, %v2569
    %v2579 = vadd.f32 %v1984, %v2570
    %v2580 = vadd.f32 %v1985, %v2571
    %v2581 = vadd.f32 %v1986, %v2572
    %v2582 = vadd.f32 %v1987, %v2573
    %v2583 = vadd.f32 %v1988, %v2574
    %v2584 = vadd.f32 %v1989, %v2575
    %v2585 = vadd.f32 %v1990, %v2576
    %v2586 = vmul.f32 %v2040, %v2447
    %v2587 = vmul.f32 %v2040, %v2448
    %v2588 = vmul.f32 %v2040, %v2449
    %v2589 = vmul.f32 %v2040, %v2450
    %v2590 = vmul.f32 %v2040, %v2451
    %v2591 = vmul.f32 %v2040, %v2452
    %v2592 = vmul.f32 %v2040, %v2453
    %v2593 = vmul.f32 %v2040, %v2454
    %v2594 = vmul.f32 %v2040, %v2455
    %v2595 = vadd.f32 %v2000, %v2586
    %v2596 = vadd.f32 %v2001, %v2587
    %v2597 = vadd.f32 %v2002, %v2588
    %v2598 = vadd.f32 %v2003, %v2589
    %v2599 = vadd.f32 %v2004, %v2590
    %v2600 = vadd.f32 %v2005, %v2591
    %v2601 = vadd.f32 %v2006, %v2592
    %v2602 = vadd.f32 %v2007, %v2593
    %v2603 = vadd.f32 %v2008, %v2594
    %v2604 = vld [vmem:[%s2360 + $0x1] sm:$0xff]
    %v2605 = vld [vmem:[%s2360 + $0x11] sm:$0xff]
    %v2606 = vld [vmem:[%s2360 + $0x21] sm:$0xff]
    %v2607 = vld [vmem:[%s2360 + $0x31] sm:$0xff]
    %v2608 = vld [vmem:[%s2360 + $0x41] sm:$0xff]
    %v2609 = vld [vmem:[%s2360 + $0x51] sm:$0xff]
    %v2610 = vld [vmem:[%s2360 + $0x61] sm:$0xff]
    %v2611 = vld [vmem:[%s2360 + $0x71] sm:$0xff]
    %v2612 = vld [vmem:[%s2360 + $0x81] sm:$0xff]
    %s2613 = sld [smem:[#allocation2 + $0x12]]
    %v2614 = vstv %s2613
    %v2615 = vmul.f32 %v2614, %v2604
    %v2616 = vmul.f32 %v2614, %v2605
    %v2617 = vmul.f32 %v2614, %v2606
    %v2618 = vmul.f32 %v2614, %v2607
    %v2619 = vmul.f32 %v2614, %v2608
    %v2620 = vmul.f32 %v2614, %v2609
    %v2621 = vmul.f32 %v2614, %v2610
    %v2622 = vmul.f32 %v2614, %v2611
    %v2623 = vmul.f32 %v2614, %v2612
    %v2624 = vadd.f32 %v2467, %v2615
    %v2625 = vadd.f32 %v2468, %v2616
    %v2626 = vadd.f32 %v2469, %v2617
    %v2627 = vadd.f32 %v2470, %v2618
    %v2628 = vadd.f32 %v2471, %v2619
    %v2629 = vadd.f32 %v2472, %v2620
    %v2630 = vadd.f32 %v2473, %v2621
    %v2631 = vadd.f32 %v2474, %v2622
    %v2632 = vadd.f32 %v2475, %v2623
    %s2633 = sld [smem:[#allocation2 + $0x36]]
    %v2634 = vstv %s2633
    %v2635 = vmul.f32 %v2634, %v2604
    %v2636 = vmul.f32 %v2634, %v2605
    %v2637 = vmul.f32 %v2634, %v2606
    %v2638 = vmul.f32 %v2634, %v2607
    %v2639 = vmul.f32 %v2634, %v2608
    %v2640 = vmul.f32 %v2634, %v2609
    %v2641 = vmul.f32 %v2634, %v2610
    %v2642 = vmul.f32 %v2634, %v2611
    %v2643 = vmul.f32 %v2634, %v2612
    %v2644 = vadd.f32 %v2487, %v2635
    %v2645 = vadd.f32 %v2488, %v2636
    %v2646 = vadd.f32 %v2489, %v2637
    %v2647 = vadd.f32 %v2490, %v2638
    %v2648 = vadd.f32 %v2491, %v2639
    %v2649 = vadd.f32 %v2492, %v2640
    %v2650 = vadd.f32 %v2493, %v2641
    %v2651 = vadd.f32 %v2494, %v2642
    %v2652 = vadd.f32 %v2495, %v2643
    %v2653 = vmul.f32 %v2457, %v2604
    %v2654 = vmul.f32 %v2457, %v2605
    %v2655 = vmul.f32 %v2457, %v2606
    %v2656 = vmul.f32 %v2457, %v2607
    %v2657 = vmul.f32 %v2457, %v2608
    %v2658 = vmul.f32 %v2457, %v2609
    %v2659 = vmul.f32 %v2457, %v2610
    %v2660 = vmul.f32 %v2457, %v2611
    %v2661 = vmul.f32 %v2457, %v2612
    %v2662 = vadd.f32 %v2505, %v2653
    %v2663 = vadd.f32 %v2506, %v2654
    %v2664 = vadd.f32 %v2507, %v2655
    %v2665 = vadd.f32 %v2508, %v2656
    %v2666 = vadd.f32 %v2509, %v2657
    %v2667 = vadd.f32 %v2510, %v2658
    %v2668 = vadd.f32 %v2511, %v2659
    %v2669 = vadd.f32 %v2512, %v2660
    %v2670 = vadd.f32 %v2513, %v2661
    %v2671 = vmul.f32 %v2477, %v2604
    %v2672 = vmul.f32 %v2477, %v2605
    %v2673 = vmul.f32 %v2477, %v2606
    %v2674 = vmul.f32 %v2477, %v2607
    %v2675 = vmul.f32 %v2477, %v2608
    %v2676 = vmul.f32 %v2477, %v2609
    %v2677 = vmul.f32 %v2477, %v2610
    %v2678 = vmul.f32 %v2477, %v2611
    %v2679 = vmul.f32 %v2477, %v2612
    %v2680 = vadd.f32 %v2523, %v2671
    %v2681 = vadd.f32 %v2524, %v2672
    %v2682 = vadd.f32 %v2525, %v2673
    %v2683 = vadd.f32 %v2526, %v2674
    %v2684 = vadd.f32 %v2527, %v2675
    %v2685 = vadd.f32 %v2528, %v2676
    %v2686 = vadd.f32 %v2529, %v2677
    %v2687 = vadd.f32 %v2530, %v2678
    %v2688 = vadd.f32 %v2531, %v2679
    %v2689 = vmul.f32 %v2155, %v2604
    %v2690 = vmul.f32 %v2155, %v2605
    %v2691 = vmul.f32 %v2155, %v2606
    %v2692 = vmul.f32 %v2155, %v2607
    %v2693 = vmul.f32 %v2155, %v2608
    %v2694 = vmul.f32 %v2155, %v2609
    %v2695 = vmul.f32 %v2155, %v2610
    %v2696 = vmul.f32 %v2155, %v2611
    %v2697 = vmul.f32 %v2155, %v2612
    %v2698 = vadd.f32 %v2541, %v2689
    %v2699 = vadd.f32 %v2542, %v2690
    %v2700 = vadd.f32 %v2543, %v2691
    %v2701 = vadd.f32 %v2544, %v2692
    %v2702 = vadd.f32 %v2545, %v2693
    %v2703 = vadd.f32 %v2546, %v2694
    %v2704 = vadd.f32 %v2547, %v2695
    %v2705 = vadd.f32 %v2548, %v2696
    %v2706 = vadd.f32 %v2549, %v2697
    %v2707 = vmul.f32 %v2175, %v2604
    %v2708 = vmul.f32 %v2175, %v2605
    %v2709 = vmul.f32 %v2175, %v2606
    %v2710 = vmul.f32 %v2175, %v2607
    %v2711 = vmul.f32 %v2175, %v2608
    %v2712 = vmul.f32 %v2175, %v2609
    %v2713 = vmul.f32 %v2175, %v2610
    %v2714 = vmul.f32 %v2175, %v2611
    %v2715 = vmul.f32 %v2175, %v2612
    %v2716 = vadd.f32 %v2559, %v2707
    %v2717 = vadd.f32 %v2560, %v2708
    %v2718 = vadd.f32 %v2561, %v2709
    %v2719 = vadd.f32 %v2562, %v2710
    %v2720 = vadd.f32 %v2563, %v2711
    %v2721 = vadd.f32 %v2564, %v2712
    %v2722 = vadd.f32 %v2565, %v2713
    %v2723 = vadd.f32 %v2566, %v2714
    %v2724 = vadd.f32 %v2567, %v2715
    %v2725 = vmul.f32 %v2070, %v2604
    %v2726 = vmul.f32 %v2070, %v2605
    %v2727 = vmul.f32 %v2070, %v2606
    %v2728 = vmul.f32 %v2070, %v2607
    %v2729 = vmul.f32 %v2070, %v2608
    %v2730 = vmul.f32 %v2070, %v2609
    %v2731 = vmul.f32 %v2070, %v2610
    %v2732 = vmul.f32 %v2070, %v2611
    %v2733 = vmul.f32 %v2070, %v2612
    %v2734 = vadd.f32 %v2577, %v2725
    %v2735 = vadd.f32 %v2578, %v2726
    %v2736 = vadd.f32 %v2579, %v2727
    %v2737 = vadd.f32 %v2580, %v2728
    %v2738 = vadd.f32 %v2581, %v2729
    %v2739 = vadd.f32 %v2582, %v2730
    %v2740 = vadd.f32 %v2583, %v2731
    %v2741 = vadd.f32 %v2584, %v2732
    %v2742 = vadd.f32 %v2585, %v2733
    %v2743 = vmul.f32 %v2090, %v2604
    %v2744 = vmul.f32 %v2090, %v2605
    %v2745 = vmul.f32 %v2090, %v2606
    %v2746 = vmul.f32 %v2090, %v2607
    %v2747 = vmul.f32 %v2090, %v2608
    %v2748 = vmul.f32 %v2090, %v2609
    %v2749 = vmul.f32 %v2090, %v2610
    %v2750 = vmul.f32 %v2090, %v2611
    %v2751 = vmul.f32 %v2090, %v2612
    %v2752 = vadd.f32 %v2595, %v2743
    %v2753 = vadd.f32 %v2596, %v2744
    %v2754 = vadd.f32 %v2597, %v2745
    %v2755 = vadd.f32 %v2598, %v2746
    %v2756 = vadd.f32 %v2599, %v2747
    %v2757 = vadd.f32 %v2600, %v2748
    %v2758 = vadd.f32 %v2601, %v2749
    %v2759 = vadd.f32 %v2602, %v2750
    %v2760 = vadd.f32 %v2603, %v2751
    %v2761 = vld [vmem:[%s2446 + $0x1] sm:$0xff]
    %v2762 = vld [vmem:[%s2446 + $0x11] sm:$0xff]
    %v2763 = vld [vmem:[%s2446 + $0x21] sm:$0xff]
    %v2764 = vld [vmem:[%s2446 + $0x31] sm:$0xff]
    %v2765 = vld [vmem:[%s2446 + $0x41] sm:$0xff]
    %v2766 = vld [vmem:[%s2446 + $0x51] sm:$0xff]
    %v2767 = vld [vmem:[%s2446 + $0x61] sm:$0xff]
    %v2768 = vld [vmem:[%s2446 + $0x71] sm:$0xff]
    %v2769 = vld [vmem:[%s2446 + $0x81] sm:$0xff]
    %s2770 = sld [smem:[#allocation2 + $0x13]]
    %v2771 = vstv %s2770
    %v2772 = vmul.f32 %v2771, %v2761
    %v2773 = vmul.f32 %v2771, %v2762
    %v2774 = vmul.f32 %v2771, %v2763
    %v2775 = vmul.f32 %v2771, %v2764
    %v2776 = vmul.f32 %v2771, %v2765
    %v2777 = vmul.f32 %v2771, %v2766
    %v2778 = vmul.f32 %v2771, %v2767
    %v2779 = vmul.f32 %v2771, %v2768
    %v2780 = vmul.f32 %v2771, %v2769
    %v2781 = vadd.f32 %v2624, %v2772
    %v2782 = vadd.f32 %v2625, %v2773
    %v2783 = vadd.f32 %v2626, %v2774
    %v2784 = vadd.f32 %v2627, %v2775
    %v2785 = vadd.f32 %v2628, %v2776
    %v2786 = vadd.f32 %v2629, %v2777
    %v2787 = vadd.f32 %v2630, %v2778
    %v2788 = vadd.f32 %v2631, %v2779
    %v2789 = vadd.f32 %v2632, %v2780
    %s2790 = sld [smem:[#allocation2 + $0x37]]
    %v2791 = vstv %s2790
    %v2792 = vmul.f32 %v2791, %v2761
    %v2793 = vmul.f32 %v2791, %v2762
    %v2794 = vmul.f32 %v2791, %v2763
    %v2795 = vmul.f32 %v2791, %v2764
    %v2796 = vmul.f32 %v2791, %v2765
    %v2797 = vmul.f32 %v2791, %v2766
    %v2798 = vmul.f32 %v2791, %v2767
    %v2799 = vmul.f32 %v2791, %v2768
    %v2800 = vmul.f32 %v2791, %v2769
    %v2801 = vadd.f32 %v2644, %v2792
    %v2802 = vadd.f32 %v2645, %v2793
    %v2803 = vadd.f32 %v2646, %v2794
    %v2804 = vadd.f32 %v2647, %v2795
    %v2805 = vadd.f32 %v2648, %v2796
    %v2806 = vadd.f32 %v2649, %v2797
    %v2807 = vadd.f32 %v2650, %v2798
    %v2808 = vadd.f32 %v2651, %v2799
    %v2809 = vadd.f32 %v2652, %v2800
    %v2810 = vmul.f32 %v2614, %v2761
    %v2811 = vmul.f32 %v2614, %v2762
    %v2812 = vmul.f32 %v2614, %v2763
    %v2813 = vmul.f32 %v2614, %v2764
    %v2814 = vmul.f32 %v2614, %v2765
    %v2815 = vmul.f32 %v2614, %v2766
    %v2816 = vmul.f32 %v2614, %v2767
    %v2817 = vmul.f32 %v2614, %v2768
    %v2818 = vmul.f32 %v2614, %v2769
    %v2819 = vadd.f32 %v2662, %v2810
    %v2820 = vadd.f32 %v2663, %v2811
    %v2821 = vadd.f32 %v2664, %v2812
    %v2822 = vadd.f32 %v2665, %v2813
    %v2823 = vadd.f32 %v2666, %v2814
    %v2824 = vadd.f32 %v2667, %v2815
    %v2825 = vadd.f32 %v2668, %v2816
    %v2826 = vadd.f32 %v2669, %v2817
    %v2827 = vadd.f32 %v2670, %v2818
    %v2828 = vmul.f32 %v2634, %v2761
    %v2829 = vmul.f32 %v2634, %v2762
    %v2830 = vmul.f32 %v2634, %v2763
    %v2831 = vmul.f32 %v2634, %v2764
    %v2832 = vmul.f32 %v2634, %v2765
    %v2833 = vmul.f32 %v2634, %v2766
    %v2834 = vmul.f32 %v2634, %v2767
    %v2835 = vmul.f32 %v2634, %v2768
    %v2836 = vmul.f32 %v2634, %v2769
    %v2837 = vadd.f32 %v2680, %v2828
    %v2838 = vadd.f32 %v2681, %v2829
    %v2839 = vadd.f32 %v2682, %v2830
    %v2840 = vadd.f32 %v2683, %v2831
    %v2841 = vadd.f32 %v2684, %v2832
    %v2842 = vadd.f32 %v2685, %v2833
    %v2843 = vadd.f32 %v2686, %v2834
    %v2844 = vadd.f32 %v2687, %v2835
    %v2845 = vadd.f32 %v2688, %v2836
    %v2846 = vmul.f32 %v2240, %v2761
    %v2847 = vmul.f32 %v2240, %v2762
    %v2848 = vmul.f32 %v2240, %v2763
    %v2849 = vmul.f32 %v2240, %v2764
    %v2850 = vmul.f32 %v2240, %v2765
    %v2851 = vmul.f32 %v2240, %v2766
    %v2852 = vmul.f32 %v2240, %v2767
    %v2853 = vmul.f32 %v2240, %v2768
    %v2854 = vmul.f32 %v2240, %v2769
    %v2855 = vadd.f32 %v2698, %v2846
    %v2856 = vadd.f32 %v2699, %v2847
    %v2857 = vadd.f32 %v2700, %v2848
    %v2858 = vadd.f32 %v2701, %v2849
    %v2859 = vadd.f32 %v2702, %v2850
    %v2860 = vadd.f32 %v2703, %v2851
    %v2861 = vadd.f32 %v2704, %v2852
    %v2862 = vadd.f32 %v2705, %v2853
    %v2863 = vadd.f32 %v2706, %v2854
    %v2864 = vmul.f32 %v2260, %v2761
    %v2865 = vmul.f32 %v2260, %v2762
    %v2866 = vmul.f32 %v2260, %v2763
    %v2867 = vmul.f32 %v2260, %v2764
    %v2868 = vmul.f32 %v2260, %v2765
    %v2869 = vmul.f32 %v2260, %v2766
    %v2870 = vmul.f32 %v2260, %v2767
    %v2871 = vmul.f32 %v2260, %v2768
    %v2872 = vmul.f32 %v2260, %v2769
    %v2873 = vadd.f32 %v2716, %v2864
    %v2874 = vadd.f32 %v2717, %v2865
    %v2875 = vadd.f32 %v2718, %v2866
    %v2876 = vadd.f32 %v2719, %v2867
    %v2877 = vadd.f32 %v2720, %v2868
    %v2878 = vadd.f32 %v2721, %v2869
    %v2879 = vadd.f32 %v2722, %v2870
    %v2880 = vadd.f32 %v2723, %v2871
    %v2881 = vadd.f32 %v2724, %v2872
    %v2882 = vmul.f32 %v2155, %v2761
    %v2883 = vmul.f32 %v2155, %v2762
    %v2884 = vmul.f32 %v2155, %v2763
    %v2885 = vmul.f32 %v2155, %v2764
    %v2886 = vmul.f32 %v2155, %v2765
    %v2887 = vmul.f32 %v2155, %v2766
    %v2888 = vmul.f32 %v2155, %v2767
    %v2889 = vmul.f32 %v2155, %v2768
    %v2890 = vmul.f32 %v2155, %v2769
    %v2891 = vadd.f32 %v2734, %v2882
    %v2892 = vadd.f32 %v2735, %v2883
    %v2893 = vadd.f32 %v2736, %v2884
    %v2894 = vadd.f32 %v2737, %v2885
    %v2895 = vadd.f32 %v2738, %v2886
    %v2896 = vadd.f32 %v2739, %v2887
    %v2897 = vadd.f32 %v2740, %v2888
    %v2898 = vadd.f32 %v2741, %v2889
    %v2899 = vadd.f32 %v2742, %v2890
    %v2900 = vmul.f32 %v2175, %v2761
    %v2901 = vmul.f32 %v2175, %v2762
    %v2902 = vmul.f32 %v2175, %v2763
    %v2903 = vmul.f32 %v2175, %v2764
    %v2904 = vmul.f32 %v2175, %v2765
    %v2905 = vmul.f32 %v2175, %v2766
    %v2906 = vmul.f32 %v2175, %v2767
    %v2907 = vmul.f32 %v2175, %v2768
    %v2908 = vmul.f32 %v2175, %v2769
    %v2909 = vadd.f32 %v2752, %v2900
    %v2910 = vadd.f32 %v2753, %v2901
    %v2911 = vadd.f32 %v2754, %v2902
    %v2912 = vadd.f32 %v2755, %v2903
    %v2913 = vadd.f32 %v2756, %v2904
    %v2914 = vadd.f32 %v2757, %v2905
    %v2915 = vadd.f32 %v2758, %v2906
    %v2916 = vadd.f32 %v2759, %v2907
    %v2917 = vadd.f32 %v2760, %v2908
    %v2918 = vld [vmem:[%s2360 + $0x2] sm:$0xff]
    %v2919 = vld [vmem:[%s2360 + $0x12] sm:$0xff]
    %v2920 = vld [vmem:[%s2360 + $0x22] sm:$0xff]
    %v2921 = vld [vmem:[%s2360 + $0x32] sm:$0xff]
    %v2922 = vld [vmem:[%s2360 + $0x42] sm:$0xff]
    %v2923 = vld [vmem:[%s2360 + $0x52] sm:$0xff]
    %v2924 = vld [vmem:[%s2360 + $0x62] sm:$0xff]
    %v2925 = vld [vmem:[%s2360 + $0x72] sm:$0xff]
    %v2926 = vld [vmem:[%s2360 + $0x82] sm:$0xff]
    %v2927 = vmul.f32 %v2771, %v2918
    %v2928 = vmul.f32 %v2771, %v2919
    %v2929 = vmul.f32 %v2771, %v2920
    %v2930 = vmul.f32 %v2771, %v2921
    %v2931 = vmul.f32 %v2771, %v2922
    %v2932 = vmul.f32 %v2771, %v2923
    %v2933 = vmul.f32 %v2771, %v2924
    %v2934 = vmul.f32 %v2771, %v2925
    %v2935 = vmul.f32 %v2771, %v2926
    %v2936 = vadd.f32 %v2819, %v2927
    %v2937 = vadd.f32 %v2820, %v2928
    %v2938 = vadd.f32 %v2821, %v2929
    %v2939 = vadd.f32 %v2822, %v2930
    %v2940 = vadd.f32 %v2823, %v2931
    %v2941 = vadd.f32 %v2824, %v2932
    %v2942 = vadd.f32 %v2825, %v2933
    %v2943 = vadd.f32 %v2826, %v2934
    %v2944 = vadd.f32 %v2827, %v2935
    %v2945 = vmul.f32 %v2791, %v2918
    %v2946 = vmul.f32 %v2791, %v2919
    %v2947 = vmul.f32 %v2791, %v2920
    %v2948 = vmul.f32 %v2791, %v2921
    %v2949 = vmul.f32 %v2791, %v2922
    %v2950 = vmul.f32 %v2791, %v2923
    %v2951 = vmul.f32 %v2791, %v2924
    %v2952 = vmul.f32 %v2791, %v2925
    %v2953 = vmul.f32 %v2791, %v2926
    %v2954 = vadd.f32 %v2837, %v2945
    %v2955 = vadd.f32 %v2838, %v2946
    %v2956 = vadd.f32 %v2839, %v2947
    %v2957 = vadd.f32 %v2840, %v2948
    %v2958 = vadd.f32 %v2841, %v2949
    %v2959 = vadd.f32 %v2842, %v2950
    %v2960 = vadd.f32 %v2843, %v2951
    %v2961 = vadd.f32 %v2844, %v2952
    %v2962 = vadd.f32 %v2845, %v2953
    %v2963 = vmul.f32 %v2240, %v2918
    %v2964 = vmul.f32 %v2240, %v2919
    %v2965 = vmul.f32 %v2240, %v2920
    %v2966 = vmul.f32 %v2240, %v2921
    %v2967 = vmul.f32 %v2240, %v2922
    %v2968 = vmul.f32 %v2240, %v2923
    %v2969 = vmul.f32 %v2240, %v2924
    %v2970 = vmul.f32 %v2240, %v2925
    %v2971 = vmul.f32 %v2240, %v2926
    %v2972 = vadd.f32 %v2891, %v2963
    %v2973 = vadd.f32 %v2892, %v2964
    %v2974 = vadd.f32 %v2893, %v2965
    %v2975 = vadd.f32 %v2894, %v2966
    %v2976 = vadd.f32 %v2895, %v2967
    %v2977 = vadd.f32 %v2896, %v2968
    %v2978 = vadd.f32 %v2897, %v2969
    %v2979 = vadd.f32 %v2898, %v2970
    %v2980 = vadd.f32 %v2899, %v2971
    %v2981 = vmul.f32 %v2260, %v2918
    %v2982 = vmul.f32 %v2260, %v2919
    %v2983 = vmul.f32 %v2260, %v2920
    %v2984 = vmul.f32 %v2260, %v2921
    %v2985 = vmul.f32 %v2260, %v2922
    %v2986 = vmul.f32 %v2260, %v2923
    %v2987 = vmul.f32 %v2260, %v2924
    %v2988 = vmul.f32 %v2260, %v2925
    %v2989 = vmul.f32 %v2260, %v2926
    %v2990 = vadd.f32 %v2909, %v2981
    %v2991 = vadd.f32 %v2910, %v2982
    %v2992 = vadd.f32 %v2911, %v2983
    %v2993 = vadd.f32 %v2912, %v2984
    %v2994 = vadd.f32 %v2913, %v2985
    %v2995 = vadd.f32 %v2914, %v2986
    %v2996 = vadd.f32 %v2915, %v2987
    %v2997 = vadd.f32 %v2916, %v2988
    %v2998 = vadd.f32 %v2917, %v2989
    %s2999 = scalar_lea.vmem %s0, 656
    %v3000 = vld [vmem:[%s2999] sm:$0xff]
    %v3001 = vld [vmem:[%s2999 + $0x10] sm:$0xff]
    %v3002 = vld [vmem:[%s2999 + $0x20] sm:$0xff]
    %v3003 = vld [vmem:[%s2999 + $0x30] sm:$0xff]
    %v3004 = vld [vmem:[%s2999 + $0x40] sm:$0xff]
    %v3005 = vld [vmem:[%s2999 + $0x50] sm:$0xff]
    %v3006 = vld [vmem:[%s2999 + $0x60] sm:$0xff]
    %v3007 = vld [vmem:[%s2999 + $0x70] sm:$0xff]
    %v3008 = vld [vmem:[%s2999 + $0x80] sm:$0xff]
    %s3009 = sld [smem:[#allocation2 + $0x14]]
    %v3010 = vstv %s3009
    %v3011 = vmul.f32 %v3010, %v3000
    %v3012 = vmul.f32 %v3010, %v3001
    %v3013 = vmul.f32 %v3010, %v3002
    %v3014 = vmul.f32 %v3010, %v3003
    %v3015 = vmul.f32 %v3010, %v3004
    %v3016 = vmul.f32 %v3010, %v3005
    %v3017 = vmul.f32 %v3010, %v3006
    %v3018 = vmul.f32 %v3010, %v3007
    %v3019 = vmul.f32 %v3010, %v3008
    %v3020 = vadd.f32 %v2781, %v3011
    %v3021 = vadd.f32 %v2782, %v3012
    %v3022 = vadd.f32 %v2783, %v3013
    %v3023 = vadd.f32 %v2784, %v3014
    %v3024 = vadd.f32 %v2785, %v3015
    %v3025 = vadd.f32 %v2786, %v3016
    %v3026 = vadd.f32 %v2787, %v3017
    %v3027 = vadd.f32 %v2788, %v3018
    %v3028 = vadd.f32 %v2789, %v3019
    %s3029 = sld [smem:[#allocation2 + $0x38]]
    %v3030 = vstv %s3029
    %v3031 = vmul.f32 %v3030, %v3000
    %v3032 = vmul.f32 %v3030, %v3001
    %v3033 = vmul.f32 %v3030, %v3002
    %v3034 = vmul.f32 %v3030, %v3003
    %v3035 = vmul.f32 %v3030, %v3004
    %v3036 = vmul.f32 %v3030, %v3005
    %v3037 = vmul.f32 %v3030, %v3006
    %v3038 = vmul.f32 %v3030, %v3007
    %v3039 = vmul.f32 %v3030, %v3008
    %v3040 = vadd.f32 %v2801, %v3031
    %v3041 = vadd.f32 %v2802, %v3032
    %v3042 = vadd.f32 %v2803, %v3033
    %v3043 = vadd.f32 %v2804, %v3034
    %v3044 = vadd.f32 %v2805, %v3035
    %v3045 = vadd.f32 %v2806, %v3036
    %v3046 = vadd.f32 %v2807, %v3037
    %v3047 = vadd.f32 %v2808, %v3038
    %v3048 = vadd.f32 %v2809, %v3039
    %v3049 = vmul.f32 %v2371, %v3000
    %v3050 = vmul.f32 %v2371, %v3001
    %v3051 = vmul.f32 %v2371, %v3002
    %v3052 = vmul.f32 %v2371, %v3003
    %v3053 = vmul.f32 %v2371, %v3004
    %v3054 = vmul.f32 %v2371, %v3005
    %v3055 = vmul.f32 %v2371, %v3006
    %v3056 = vmul.f32 %v2371, %v3007
    %v3057 = vmul.f32 %v2371, %v3008
    %v3058 = vadd.f32 %v2855, %v3049
    %v3059 = vadd.f32 %v2856, %v3050
    %v3060 = vadd.f32 %v2857, %v3051
    %v3061 = vadd.f32 %v2858, %v3052
    %v3062 = vadd.f32 %v2859, %v3053
    %v3063 = vadd.f32 %v2860, %v3054
    %v3064 = vadd.f32 %v2861, %v3055
    %v3065 = vadd.f32 %v2862, %v3056
    %v3066 = vadd.f32 %v2863, %v3057
    %v3067 = vmul.f32 %v2391, %v3000
    %v3068 = vmul.f32 %v2391, %v3001
    %v3069 = vmul.f32 %v2391, %v3002
    %v3070 = vmul.f32 %v2391, %v3003
    %v3071 = vmul.f32 %v2391, %v3004
    %v3072 = vmul.f32 %v2391, %v3005
    %v3073 = vmul.f32 %v2391, %v3006
    %v3074 = vmul.f32 %v2391, %v3007
    %v3075 = vmul.f32 %v2391, %v3008
    %v3076 = vadd.f32 %v2873, %v3067
    %v3077 = vadd.f32 %v2874, %v3068
    %v3078 = vadd.f32 %v2875, %v3069
    %v3079 = vadd.f32 %v2876, %v3070
    %v3080 = vadd.f32 %v2877, %v3071
    %v3081 = vadd.f32 %v2878, %v3072
    %v3082 = vadd.f32 %v2879, %v3073
    %v3083 = vadd.f32 %v2880, %v3074
    %v3084 = vadd.f32 %v2881, %v3075
    %s3085 = scalar_lea.vmem %s0, 816
    %v3086 = vld [vmem:[%s3085] sm:$0xff]
    %v3087 = vld [vmem:[%s3085 + $0x10] sm:$0xff]
    %v3088 = vld [vmem:[%s3085 + $0x20] sm:$0xff]
    %v3089 = vld [vmem:[%s3085 + $0x30] sm:$0xff]
    %v3090 = vld [vmem:[%s3085 + $0x40] sm:$0xff]
    %v3091 = vld [vmem:[%s3085 + $0x50] sm:$0xff]
    %v3092 = vld [vmem:[%s3085 + $0x60] sm:$0xff]
    %v3093 = vld [vmem:[%s3085 + $0x70] sm:$0xff]
    %v3094 = vld [vmem:[%s3085 + $0x80] sm:$0xff]
    %s3095 = sld [smem:[#allocation2 + $0x15]]
    %v3096 = vstv %s3095
    %v3097 = vmul.f32 %v3096, %v3086
    %v3098 = vmul.f32 %v3096, %v3087
    %v3099 = vmul.f32 %v3096, %v3088
    %v3100 = vmul.f32 %v3096, %v3089
    %v3101 = vmul.f32 %v3096, %v3090
    %v3102 = vmul.f32 %v3096, %v3091
    %v3103 = vmul.f32 %v3096, %v3092
    %v3104 = vmul.f32 %v3096, %v3093
    %v3105 = vmul.f32 %v3096, %v3094
    %v3106 = vadd.f32 %v3020, %v3097
    %v3107 = vadd.f32 %v3021, %v3098
    %v3108 = vadd.f32 %v3022, %v3099
    %v3109 = vadd.f32 %v3023, %v3100
    %v3110 = vadd.f32 %v3024, %v3101
    %v3111 = vadd.f32 %v3025, %v3102
    %v3112 = vadd.f32 %v3026, %v3103
    %v3113 = vadd.f32 %v3027, %v3104
    %v3114 = vadd.f32 %v3028, %v3105
    %s3115 = sld [smem:[#allocation2 + $0x39]]
    %v3116 = vstv %s3115
    %v3117 = vmul.f32 %v3116, %v3086
    %v3118 = vmul.f32 %v3116, %v3087
    %v3119 = vmul.f32 %v3116, %v3088
    %v3120 = vmul.f32 %v3116, %v3089
    %v3121 = vmul.f32 %v3116, %v3090
    %v3122 = vmul.f32 %v3116, %v3091
    %v3123 = vmul.f32 %v3116, %v3092
    %v3124 = vmul.f32 %v3116, %v3093
    %v3125 = vmul.f32 %v3116, %v3094
    %v3126 = vadd.f32 %v3040, %v3117
    %v3127 = vadd.f32 %v3041, %v3118
    %v3128 = vadd.f32 %v3042, %v3119
    %v3129 = vadd.f32 %v3043, %v3120
    %v3130 = vadd.f32 %v3044, %v3121
    %v3131 = vadd.f32 %v3045, %v3122
    %v3132 = vadd.f32 %v3046, %v3123
    %v3133 = vadd.f32 %v3047, %v3124
    %v3134 = vadd.f32 %v3048, %v3125
    %v3135 = vmul.f32 %v3010, %v3086
    %v3136 = vmul.f32 %v3010, %v3087
    %v3137 = vmul.f32 %v3010, %v3088
    %v3138 = vmul.f32 %v3010, %v3089
    %v3139 = vmul.f32 %v3010, %v3090
    %v3140 = vmul.f32 %v3010, %v3091
    %v3141 = vmul.f32 %v3010, %v3092
    %v3142 = vmul.f32 %v3010, %v3093
    %v3143 = vmul.f32 %v3010, %v3094
    %v3144 = vadd.f32 %v2936, %v3135
    %v3145 = vadd.f32 %v2937, %v3136
    %v3146 = vadd.f32 %v2938, %v3137
    %v3147 = vadd.f32 %v2939, %v3138
    %v3148 = vadd.f32 %v2940, %v3139
    %v3149 = vadd.f32 %v2941, %v3140
    %v3150 = vadd.f32 %v2942, %v3141
    %v3151 = vadd.f32 %v2943, %v3142
    %v3152 = vadd.f32 %v2944, %v3143
    %v3153 = vmul.f32 %v3030, %v3086
    %v3154 = vmul.f32 %v3030, %v3087
    %v3155 = vmul.f32 %v3030, %v3088
    %v3156 = vmul.f32 %v3030, %v3089
    %v3157 = vmul.f32 %v3030, %v3090
    %v3158 = vmul.f32 %v3030, %v3091
    %v3159 = vmul.f32 %v3030, %v3092
    %v3160 = vmul.f32 %v3030, %v3093
    %v3161 = vmul.f32 %v3030, %v3094
    %v3162 = vadd.f32 %v2954, %v3153
    %v3163 = vadd.f32 %v2955, %v3154
    %v3164 = vadd.f32 %v2956, %v3155
    %v3165 = vadd.f32 %v2957, %v3156
    %v3166 = vadd.f32 %v2958, %v3157
    %v3167 = vadd.f32 %v2959, %v3158
    %v3168 = vadd.f32 %v2960, %v3159
    %v3169 = vadd.f32 %v2961, %v3160
    %v3170 = vadd.f32 %v2962, %v3161
    %v3171 = vmul.f32 %v2457, %v3086
    %v3172 = vmul.f32 %v2457, %v3087
    %v3173 = vmul.f32 %v2457, %v3088
    %v3174 = vmul.f32 %v2457, %v3089
    %v3175 = vmul.f32 %v2457, %v3090
    %v3176 = vmul.f32 %v2457, %v3091
    %v3177 = vmul.f32 %v2457, %v3092
    %v3178 = vmul.f32 %v2457, %v3093
    %v3179 = vmul.f32 %v2457, %v3094
    %v3180 = vadd.f32 %v3058, %v3171
    %v3181 = vadd.f32 %v3059, %v3172
    %v3182 = vadd.f32 %v3060, %v3173
    %v3183 = vadd.f32 %v3061, %v3174
    %v3184 = vadd.f32 %v3062, %v3175
    %v3185 = vadd.f32 %v3063, %v3176
    %v3186 = vadd.f32 %v3064, %v3177
    %v3187 = vadd.f32 %v3065, %v3178
    %v3188 = vadd.f32 %v3066, %v3179
    %v3189 = vmul.f32 %v2477, %v3086
    %v3190 = vmul.f32 %v2477, %v3087
    %v3191 = vmul.f32 %v2477, %v3088
    %v3192 = vmul.f32 %v2477, %v3089
    %v3193 = vmul.f32 %v2477, %v3090
    %v3194 = vmul.f32 %v2477, %v3091
    %v3195 = vmul.f32 %v2477, %v3092
    %v3196 = vmul.f32 %v2477, %v3093
    %v3197 = vmul.f32 %v2477, %v3094
    %v3198 = vadd.f32 %v3076, %v3189
    %v3199 = vadd.f32 %v3077, %v3190
    %v3200 = vadd.f32 %v3078, %v3191
    %v3201 = vadd.f32 %v3079, %v3192
    %v3202 = vadd.f32 %v3080, %v3193
    %v3203 = vadd.f32 %v3081, %v3194
    %v3204 = vadd.f32 %v3082, %v3195
    %v3205 = vadd.f32 %v3083, %v3196
    %v3206 = vadd.f32 %v3084, %v3197
    %v3207 = vmul.f32 %v2371, %v3086
    %v3208 = vmul.f32 %v2371, %v3087
    %v3209 = vmul.f32 %v2371, %v3088
    %v3210 = vmul.f32 %v2371, %v3089
    %v3211 = vmul.f32 %v2371, %v3090
    %v3212 = vmul.f32 %v2371, %v3091
    %v3213 = vmul.f32 %v2371, %v3092
    %v3214 = vmul.f32 %v2371, %v3093
    %v3215 = vmul.f32 %v2371, %v3094
    %v3216 = vadd.f32 %v2972, %v3207
    %v3217 = vadd.f32 %v2973, %v3208
    %v3218 = vadd.f32 %v2974, %v3209
    %v3219 = vadd.f32 %v2975, %v3210
    %v3220 = vadd.f32 %v2976, %v3211
    %v3221 = vadd.f32 %v2977, %v3212
    %v3222 = vadd.f32 %v2978, %v3213
    %v3223 = vadd.f32 %v2979, %v3214
    %v3224 = vadd.f32 %v2980, %v3215
    %v3225 = vmul.f32 %v2391, %v3086
    %v3226 = vmul.f32 %v2391, %v3087
    %v3227 = vmul.f32 %v2391, %v3088
    %v3228 = vmul.f32 %v2391, %v3089
    %v3229 = vmul.f32 %v2391, %v3090
    %v3230 = vmul.f32 %v2391, %v3091
    %v3231 = vmul.f32 %v2391, %v3092
    %v3232 = vmul.f32 %v2391, %v3093
    %v3233 = vmul.f32 %v2391, %v3094
    %v3234 = vadd.f32 %v2990, %v3225
    %v3235 = vadd.f32 %v2991, %v3226
    %v3236 = vadd.f32 %v2992, %v3227
    %v3237 = vadd.f32 %v2993, %v3228
    %v3238 = vadd.f32 %v2994, %v3229
    %v3239 = vadd.f32 %v2995, %v3230
    %v3240 = vadd.f32 %v2996, %v3231
    %v3241 = vadd.f32 %v2997, %v3232
    %v3242 = vadd.f32 %v2998, %v3233
    %v3243 = vld [vmem:[%s2999 + $0x1] sm:$0xff]
    %v3244 = vld [vmem:[%s2999 + $0x11] sm:$0xff]
    %v3245 = vld [vmem:[%s2999 + $0x21] sm:$0xff]
    %v3246 = vld [vmem:[%s2999 + $0x31] sm:$0xff]
    %v3247 = vld [vmem:[%s2999 + $0x41] sm:$0xff]
    %v3248 = vld [vmem:[%s2999 + $0x51] sm:$0xff]
    %v3249 = vld [vmem:[%s2999 + $0x61] sm:$0xff]
    %v3250 = vld [vmem:[%s2999 + $0x71] sm:$0xff]
    %v3251 = vld [vmem:[%s2999 + $0x81] sm:$0xff]
    %s3252 = sld [smem:[#allocation2 + $0x16]]
    %v3253 = vstv %s3252
    %v3254 = vmul.f32 %v3253, %v3243
    %v3255 = vmul.f32 %v3253, %v3244
    %v3256 = vmul.f32 %v3253, %v3245
    %v3257 = vmul.f32 %v3253, %v3246
    %v3258 = vmul.f32 %v3253, %v3247
    %v3259 = vmul.f32 %v3253, %v3248
    %v3260 = vmul.f32 %v3253, %v3249
    %v3261 = vmul.f32 %v3253, %v3250
    %v3262 = vmul.f32 %v3253, %v3251
    %v3263 = vadd.f32 %v3106, %v3254
    %v3264 = vadd.f32 %v3107, %v3255
    %v3265 = vadd.f32 %v3108, %v3256
    %v3266 = vadd.f32 %v3109, %v3257
    %v3267 = vadd.f32 %v3110, %v3258
    %v3268 = vadd.f32 %v3111, %v3259
    %v3269 = vadd.f32 %v3112, %v3260
    %v3270 = vadd.f32 %v3113, %v3261
    %v3271 = vadd.f32 %v3114, %v3262
    %s3272 = sld [smem:[#allocation2 + $0x3a]]
    %v3273 = vstv %s3272
    %v3274 = vmul.f32 %v3273, %v3243
    %v3275 = vmul.f32 %v3273, %v3244
    %v3276 = vmul.f32 %v3273, %v3245
    %v3277 = vmul.f32 %v3273, %v3246
    %v3278 = vmul.f32 %v3273, %v3247
    %v3279 = vmul.f32 %v3273, %v3248
    %v3280 = vmul.f32 %v3273, %v3249
    %v3281 = vmul.f32 %v3273, %v3250
    %v3282 = vmul.f32 %v3273, %v3251
    %v3283 = vadd.f32 %v3126, %v3274
    %v3284 = vadd.f32 %v3127, %v3275
    %v3285 = vadd.f32 %v3128, %v3276
    %v3286 = vadd.f32 %v3129, %v3277
    %v3287 = vadd.f32 %v3130, %v3278
    %v3288 = vadd.f32 %v3131, %v3279
    %v3289 = vadd.f32 %v3132, %v3280
    %v3290 = vadd.f32 %v3133, %v3281
    %v3291 = vadd.f32 %v3134, %v3282
    %v3292 = vmul.f32 %v3096, %v3243
    %v3293 = vmul.f32 %v3096, %v3244
    %v3294 = vmul.f32 %v3096, %v3245
    %v3295 = vmul.f32 %v3096, %v3246
    %v3296 = vmul.f32 %v3096, %v3247
    %v3297 = vmul.f32 %v3096, %v3248
    %v3298 = vmul.f32 %v3096, %v3249
    %v3299 = vmul.f32 %v3096, %v3250
    %v3300 = vmul.f32 %v3096, %v3251
    %v3301 = vadd.f32 %v3144, %v3292
    %v3302 = vadd.f32 %v3145, %v3293
    %v3303 = vadd.f32 %v3146, %v3294
    %v3304 = vadd.f32 %v3147, %v3295
    %v3305 = vadd.f32 %v3148, %v3296
    %v3306 = vadd.f32 %v3149, %v3297
    %v3307 = vadd.f32 %v3150, %v3298
    %v3308 = vadd.f32 %v3151, %v3299
    %v3309 = vadd.f32 %v3152, %v3300
    %v3310 = vmul.f32 %v3116, %v3243
    %v3311 = vmul.f32 %v3116, %v3244
    %v3312 = vmul.f32 %v3116, %v3245
    %v3313 = vmul.f32 %v3116, %v3246
    %v3314 = vmul.f32 %v3116, %v3247
    %v3315 = vmul.f32 %v3116, %v3248
    %v3316 = vmul.f32 %v3116, %v3249
    %v3317 = vmul.f32 %v3116, %v3250
    %v3318 = vmul.f32 %v3116, %v3251
    %v3319 = vadd.f32 %v3162, %v3310
    %v3320 = vadd.f32 %v3163, %v3311
    %v3321 = vadd.f32 %v3164, %v3312
    %v3322 = vadd.f32 %v3165, %v3313
    %v3323 = vadd.f32 %v3166, %v3314
    %v3324 = vadd.f32 %v3167, %v3315
    %v3325 = vadd.f32 %v3168, %v3316
    %v3326 = vadd.f32 %v3169, %v3317
    %v3327 = vadd.f32 %v3170, %v3318
    %v3328 = vmul.f32 %v2614, %v3243
    %v3329 = vmul.f32 %v2614, %v3244
    %v3330 = vmul.f32 %v2614, %v3245
    %v3331 = vmul.f32 %v2614, %v3246
    %v3332 = vmul.f32 %v2614, %v3247
    %v3333 = vmul.f32 %v2614, %v3248
    %v3334 = vmul.f32 %v2614, %v3249
    %v3335 = vmul.f32 %v2614, %v3250
    %v3336 = vmul.f32 %v2614, %v3251
    %v3337 = vadd.f32 %v3180, %v3328
    %v3338 = vadd.f32 %v3181, %v3329
    %v3339 = vadd.f32 %v3182, %v3330
    %v3340 = vadd.f32 %v3183, %v3331
    %v3341 = vadd.f32 %v3184, %v3332
    %v3342 = vadd.f32 %v3185, %v3333
    %v3343 = vadd.f32 %v3186, %v3334
    %v3344 = vadd.f32 %v3187, %v3335
    %v3345 = vadd.f32 %v3188, %v3336
    %v3346 = vmul.f32 %v2634, %v3243
    %v3347 = vmul.f32 %v2634, %v3244
    %v3348 = vmul.f32 %v2634, %v3245
    %v3349 = vmul.f32 %v2634, %v3246
    %v3350 = vmul.f32 %v2634, %v3247
    %v3351 = vmul.f32 %v2634, %v3248
    %v3352 = vmul.f32 %v2634, %v3249
    %v3353 = vmul.f32 %v2634, %v3250
    %v3354 = vmul.f32 %v2634, %v3251
    %v3355 = vadd.f32 %v3198, %v3346
    %v3356 = vadd.f32 %v3199, %v3347
    %v3357 = vadd.f32 %v3200, %v3348
    %v3358 = vadd.f32 %v3201, %v3349
    %v3359 = vadd.f32 %v3202, %v3350
    %v3360 = vadd.f32 %v3203, %v3351
    %v3361 = vadd.f32 %v3204, %v3352
    %v3362 = vadd.f32 %v3205, %v3353
    %v3363 = vadd.f32 %v3206, %v3354
    %v3364 = vmul.f32 %v2457, %v3243
    %v3365 = vmul.f32 %v2457, %v3244
    %v3366 = vmul.f32 %v2457, %v3245
    %v3367 = vmul.f32 %v2457, %v3246
    %v3368 = vmul.f32 %v2457, %v3247
    %v3369 = vmul.f32 %v2457, %v3248
    %v3370 = vmul.f32 %v2457, %v3249
    %v3371 = vmul.f32 %v2457, %v3250
    %v3372 = vmul.f32 %v2457, %v3251
    %v3373 = vadd.f32 %v3216, %v3364
    %v3374 = vadd.f32 %v3217, %v3365
    %v3375 = vadd.f32 %v3218, %v3366
    %v3376 = vadd.f32 %v3219, %v3367
    %v3377 = vadd.f32 %v3220, %v3368
    %v3378 = vadd.f32 %v3221, %v3369
    %v3379 = vadd.f32 %v3222, %v3370
    %v3380 = vadd.f32 %v3223, %v3371
    %v3381 = vadd.f32 %v3224, %v3372
    %v3382 = vmul.f32 %v2477, %v3243
    %v3383 = vmul.f32 %v2477, %v3244
    %v3384 = vmul.f32 %v2477, %v3245
    %v3385 = vmul.f32 %v2477, %v3246
    %v3386 = vmul.f32 %v2477, %v3247
    %v3387 = vmul.f32 %v2477, %v3248
    %v3388 = vmul.f32 %v2477, %v3249
    %v3389 = vmul.f32 %v2477, %v3250
    %v3390 = vmul.f32 %v2477, %v3251
    %v3391 = vadd.f32 %v3234, %v3382
    %v3392 = vadd.f32 %v3235, %v3383
    %v3393 = vadd.f32 %v3236, %v3384
    %v3394 = vadd.f32 %v3237, %v3385
    %v3395 = vadd.f32 %v3238, %v3386
    %v3396 = vadd.f32 %v3239, %v3387
    %v3397 = vadd.f32 %v3240, %v3388
    %v3398 = vadd.f32 %v3241, %v3389
    %v3399 = vadd.f32 %v3242, %v3390
    %v3400 = vld [vmem:[%s3085 + $0x1] sm:$0xff]
    %v3401 = vld [vmem:[%s3085 + $0x11] sm:$0xff]
    %v3402 = vld [vmem:[%s3085 + $0x21] sm:$0xff]
    %v3403 = vld [vmem:[%s3085 + $0x31] sm:$0xff]
    %v3404 = vld [vmem:[%s3085 + $0x41] sm:$0xff]
    %v3405 = vld [vmem:[%s3085 + $0x51] sm:$0xff]
    %v3406 = vld [vmem:[%s3085 + $0x61] sm:$0xff]
    %v3407 = vld [vmem:[%s3085 + $0x71] sm:$0xff]
    %v3408 = vld [vmem:[%s3085 + $0x81] sm:$0xff]
    %s3409 = sld [smem:[#allocation2 + $0x17]]
    %v3410 = vstv %s3409
    %v3411 = vmul.f32 %v3410, %v3400
    %v3412 = vmul.f32 %v3410, %v3401
    %v3413 = vmul.f32 %v3410, %v3402
    %v3414 = vmul.f32 %v3410, %v3403
    %v3415 = vmul.f32 %v3410, %v3404
    %v3416 = vmul.f32 %v3410, %v3405
    %v3417 = vmul.f32 %v3410, %v3406
    %v3418 = vmul.f32 %v3410, %v3407
    %v3419 = vmul.f32 %v3410, %v3408
    %v3420 = vadd.f32 %v3263, %v3411
    %v3421 = vadd.f32 %v3264, %v3412
    %v3422 = vadd.f32 %v3265, %v3413
    %v3423 = vadd.f32 %v3266, %v3414
    %v3424 = vadd.f32 %v3267, %v3415
    %v3425 = vadd.f32 %v3268, %v3416
    %v3426 = vadd.f32 %v3269, %v3417
    %v3427 = vadd.f32 %v3270, %v3418
    %v3428 = vadd.f32 %v3271, %v3419
    %s3429 = sld [smem:[#allocation2 + $0x3b]]
    %v3430 = vstv %s3429
    %v3431 = vmul.f32 %v3430, %v3400
    %v3432 = vmul.f32 %v3430, %v3401
    %v3433 = vmul.f32 %v3430, %v3402
    %v3434 = vmul.f32 %v3430, %v3403
    %v3435 = vmul.f32 %v3430, %v3404
    %v3436 = vmul.f32 %v3430, %v3405
    %v3437 = vmul.f32 %v3430, %v3406
    %v3438 = vmul.f32 %v3430, %v3407
    %v3439 = vmul.f32 %v3430, %v3408
    %v3440 = vadd.f32 %v3283, %v3431
    %v3441 = vadd.f32 %v3284, %v3432
    %v3442 = vadd.f32 %v3285, %v3433
    %v3443 = vadd.f32 %v3286, %v3434
    %v3444 = vadd.f32 %v3287, %v3435
    %v3445 = vadd.f32 %v3288, %v3436
    %v3446 = vadd.f32 %v3289, %v3437
    %v3447 = vadd.f32 %v3290, %v3438
    %v3448 = vadd.f32 %v3291, %v3439
    %v3449 = vmul.f32 %v3253, %v3400
    %v3450 = vmul.f32 %v3253, %v3401
    %v3451 = vmul.f32 %v3253, %v3402
    %v3452 = vmul.f32 %v3253, %v3403
    %v3453 = vmul.f32 %v3253, %v3404
    %v3454 = vmul.f32 %v3253, %v3405
    %v3455 = vmul.f32 %v3253, %v3406
    %v3456 = vmul.f32 %v3253, %v3407
    %v3457 = vmul.f32 %v3253, %v3408
    %v3458 = vadd.f32 %v3301, %v3449
    %v3459 = vadd.f32 %v3302, %v3450
    %v3460 = vadd.f32 %v3303, %v3451
    %v3461 = vadd.f32 %v3304, %v3452
    %v3462 = vadd.f32 %v3305, %v3453
    %v3463 = vadd.f32 %v3306, %v3454
    %v3464 = vadd.f32 %v3307, %v3455
    %v3465 = vadd.f32 %v3308, %v3456
    %v3466 = vadd.f32 %v3309, %v3457
    %v3467 = vmul.f32 %v3273, %v3400
    %v3468 = vmul.f32 %v3273, %v3401
    %v3469 = vmul.f32 %v3273, %v3402
    %v3470 = vmul.f32 %v3273, %v3403
    %v3471 = vmul.f32 %v3273, %v3404
    %v3472 = vmul.f32 %v3273, %v3405
    %v3473 = vmul.f32 %v3273, %v3406
    %v3474 = vmul.f32 %v3273, %v3407
    %v3475 = vmul.f32 %v3273, %v3408
    %v3476 = vadd.f32 %v3319, %v3467
    %v3477 = vadd.f32 %v3320, %v3468
    %v3478 = vadd.f32 %v3321, %v3469
    %v3479 = vadd.f32 %v3322, %v3470
    %v3480 = vadd.f32 %v3323, %v3471
    %v3481 = vadd.f32 %v3324, %v3472
    %v3482 = vadd.f32 %v3325, %v3473
    %v3483 = vadd.f32 %v3326, %v3474
    %v3484 = vadd.f32 %v3327, %v3475
    %v3485 = vmul.f32 %v2771, %v3400
    %v3486 = vmul.f32 %v2771, %v3401
    %v3487 = vmul.f32 %v2771, %v3402
    %v3488 = vmul.f32 %v2771, %v3403
    %v3489 = vmul.f32 %v2771, %v3404
    %v3490 = vmul.f32 %v2771, %v3405
    %v3491 = vmul.f32 %v2771, %v3406
    %v3492 = vmul.f32 %v2771, %v3407
    %v3493 = vmul.f32 %v2771, %v3408
    %v3494 = vadd.f32 %v3337, %v3485
    %v3495 = vadd.f32 %v3338, %v3486
    %v3496 = vadd.f32 %v3339, %v3487
    %v3497 = vadd.f32 %v3340, %v3488
    %v3498 = vadd.f32 %v3341, %v3489
    %v3499 = vadd.f32 %v3342, %v3490
    %v3500 = vadd.f32 %v3343, %v3491
    %v3501 = vadd.f32 %v3344, %v3492
    %v3502 = vadd.f32 %v3345, %v3493
    %v3503 = vmul.f32 %v2791, %v3400
    %v3504 = vmul.f32 %v2791, %v3401
    %v3505 = vmul.f32 %v2791, %v3402
    %v3506 = vmul.f32 %v2791, %v3403
    %v3507 = vmul.f32 %v2791, %v3404
    %v3508 = vmul.f32 %v2791, %v3405
    %v3509 = vmul.f32 %v2791, %v3406
    %v3510 = vmul.f32 %v2791, %v3407
    %v3511 = vmul.f32 %v2791, %v3408
    %v3512 = vadd.f32 %v3355, %v3503
    %v3513 = vadd.f32 %v3356, %v3504
    %v3514 = vadd.f32 %v3357, %v3505
    %v3515 = vadd.f32 %v3358, %v3506
    %v3516 = vadd.f32 %v3359, %v3507
    %v3517 = vadd.f32 %v3360, %v3508
    %v3518 = vadd.f32 %v3361, %v3509
    %v3519 = vadd.f32 %v3362, %v3510
    %v3520 = vadd.f32 %v3363, %v3511
    %v3521 = vmul.f32 %v2614, %v3400
    %v3522 = vmul.f32 %v2614, %v3401
    %v3523 = vmul.f32 %v2614, %v3402
    %v3524 = vmul.f32 %v2614, %v3403
    %v3525 = vmul.f32 %v2614, %v3404
    %v3526 = vmul.f32 %v2614, %v3405
    %v3527 = vmul.f32 %v2614, %v3406
    %v3528 = vmul.f32 %v2614, %v3407
    %v3529 = vmul.f32 %v2614, %v3408
    %v3530 = vadd.f32 %v3373, %v3521
    %v3531 = vadd.f32 %v3374, %v3522
    %v3532 = vadd.f32 %v3375, %v3523
    %v3533 = vadd.f32 %v3376, %v3524
    %v3534 = vadd.f32 %v3377, %v3525
    %v3535 = vadd.f32 %v3378, %v3526
    %v3536 = vadd.f32 %v3379, %v3527
    %v3537 = vadd.f32 %v3380, %v3528
    %v3538 = vadd.f32 %v3381, %v3529
    %v3539 = vmul.f32 %v2634, %v3400
    %v3540 = vmul.f32 %v2634, %v3401
    %v3541 = vmul.f32 %v2634, %v3402
    %v3542 = vmul.f32 %v2634, %v3403
    %v3543 = vmul.f32 %v2634, %v3404
    %v3544 = vmul.f32 %v2634, %v3405
    %v3545 = vmul.f32 %v2634, %v3406
    %v3546 = vmul.f32 %v2634, %v3407
    %v3547 = vmul.f32 %v2634, %v3408
    %v3548 = vadd.f32 %v3391, %v3539
    %v3549 = vadd.f32 %v3392, %v3540
    %v3550 = vadd.f32 %v3393, %v3541
    %v3551 = vadd.f32 %v3394, %v3542
    %v3552 = vadd.f32 %v3395, %v3543
    %v3553 = vadd.f32 %v3396, %v3544
    %v3554 = vadd.f32 %v3397, %v3545
    %v3555 = vadd.f32 %v3398, %v3546
    %v3556 = vadd.f32 %v3399, %v3547
    %v3557 = vld [vmem:[%s2999 + $0x2] sm:$0xff]
    %v3558 = vld [vmem:[%s2999 + $0x12] sm:$0xff]
    %v3559 = vld [vmem:[%s2999 + $0x22] sm:$0xff]
    %v3560 = vld [vmem:[%s2999 + $0x32] sm:$0xff]
    %v3561 = vld [vmem:[%s2999 + $0x42] sm:$0xff]
    %v3562 = vld [vmem:[%s2999 + $0x52] sm:$0xff]
    %v3563 = vld [vmem:[%s2999 + $0x62] sm:$0xff]
    %v3564 = vld [vmem:[%s2999 + $0x72] sm:$0xff]
    %v3565 = vld [vmem:[%s2999 + $0x82] sm:$0xff]
    %v3566 = vmul.f32 %v3410, %v3557
    %v3567 = vmul.f32 %v3410, %v3558
    %v3568 = vmul.f32 %v3410, %v3559
    %v3569 = vmul.f32 %v3410, %v3560
    %v3570 = vmul.f32 %v3410, %v3561
    %v3571 = vmul.f32 %v3410, %v3562
    %v3572 = vmul.f32 %v3410, %v3563
    %v3573 = vmul.f32 %v3410, %v3564
    %v3574 = vmul.f32 %v3410, %v3565
    %v3575 = vadd.f32 %v3458, %v3566
    %v3576 = vadd.f32 %v3459, %v3567
    %v3577 = vadd.f32 %v3460, %v3568
    %v3578 = vadd.f32 %v3461, %v3569
    %v3579 = vadd.f32 %v3462, %v3570
    %v3580 = vadd.f32 %v3463, %v3571
    %v3581 = vadd.f32 %v3464, %v3572
    %v3582 = vadd.f32 %v3465, %v3573
    %v3583 = vadd.f32 %v3466, %v3574
    %v3584 = vmul.f32 %v3430, %v3557
    %v3585 = vmul.f32 %v3430, %v3558
    %v3586 = vmul.f32 %v3430, %v3559
    %v3587 = vmul.f32 %v3430, %v3560
    %v3588 = vmul.f32 %v3430, %v3561
    %v3589 = vmul.f32 %v3430, %v3562
    %v3590 = vmul.f32 %v3430, %v3563
    %v3591 = vmul.f32 %v3430, %v3564
    %v3592 = vmul.f32 %v3430, %v3565
    %v3593 = vadd.f32 %v3476, %v3584
    %v3594 = vadd.f32 %v3477, %v3585
    %v3595 = vadd.f32 %v3478, %v3586
    %v3596 = vadd.f32 %v3479, %v3587
    %v3597 = vadd.f32 %v3480, %v3588
    %v3598 = vadd.f32 %v3481, %v3589
    %v3599 = vadd.f32 %v3482, %v3590
    %v3600 = vadd.f32 %v3483, %v3591
    %v3601 = vadd.f32 %v3484, %v3592
    %v3602 = vmul.f32 %v2771, %v3557
    %v3603 = vmul.f32 %v2771, %v3558
    %v3604 = vmul.f32 %v2771, %v3559
    %v3605 = vmul.f32 %v2771, %v3560
    %v3606 = vmul.f32 %v2771, %v3561
    %v3607 = vmul.f32 %v2771, %v3562
    %v3608 = vmul.f32 %v2771, %v3563
    %v3609 = vmul.f32 %v2771, %v3564
    %v3610 = vmul.f32 %v2771, %v3565
    %v3611 = vadd.f32 %v3530, %v3602
    %v3612 = vadd.f32 %v3531, %v3603
    %v3613 = vadd.f32 %v3532, %v3604
    %v3614 = vadd.f32 %v3533, %v3605
    %v3615 = vadd.f32 %v3534, %v3606
    %v3616 = vadd.f32 %v3535, %v3607
    %v3617 = vadd.f32 %v3536, %v3608
    %v3618 = vadd.f32 %v3537, %v3609
    %v3619 = vadd.f32 %v3538, %v3610
    %v3620 = vmul.f32 %v2791, %v3557
    %v3621 = vmul.f32 %v2791, %v3558
    %v3622 = vmul.f32 %v2791, %v3559
    %v3623 = vmul.f32 %v2791, %v3560
    %v3624 = vmul.f32 %v2791, %v3561
    %v3625 = vmul.f32 %v2791, %v3562
    %v3626 = vmul.f32 %v2791, %v3563
    %v3627 = vmul.f32 %v2791, %v3564
    %v3628 = vmul.f32 %v2791, %v3565
    %v3629 = vadd.f32 %v3548, %v3620
    %v3630 = vadd.f32 %v3549, %v3621
    %v3631 = vadd.f32 %v3550, %v3622
    %v3632 = vadd.f32 %v3551, %v3623
    %v3633 = vadd.f32 %v3552, %v3624
    %v3634 = vadd.f32 %v3553, %v3625
    %v3635 = vadd.f32 %v3554, %v3626
    %v3636 = vadd.f32 %v3555, %v3627
    %v3637 = vadd.f32 %v3556, %v3628
    %s3638 = scalar_lea.vmem %s0, 976
    %v3639 = vld [vmem:[%s3638] sm:$0xff]
    %v3640 = vld [vmem:[%s3638 + $0x10] sm:$0xff]
    %v3641 = vld [vmem:[%s3638 + $0x20] sm:$0xff]
    %v3642 = vld [vmem:[%s3638 + $0x30] sm:$0xff]
    %v3643 = vld [vmem:[%s3638 + $0x40] sm:$0xff]
    %v3644 = vld [vmem:[%s3638 + $0x50] sm:$0xff]
    %v3645 = vld [vmem:[%s3638 + $0x60] sm:$0xff]
    %v3646 = vld [vmem:[%s3638 + $0x70] sm:$0xff]
    %v3647 = vld [vmem:[%s3638 + $0x80] sm:$0xff]
    %v3648 = vmul.f32 %v3010, %v3639
    %v3649 = vmul.f32 %v3010, %v3640
    %v3650 = vmul.f32 %v3010, %v3641
    %v3651 = vmul.f32 %v3010, %v3642
    %v3652 = vmul.f32 %v3010, %v3643
    %v3653 = vmul.f32 %v3010, %v3644
    %v3654 = vmul.f32 %v3010, %v3645
    %v3655 = vmul.f32 %v3010, %v3646
    %v3656 = vmul.f32 %v3010, %v3647
    %v3657 = vadd.f32 %v3494, %v3648
    %v3658 = vadd.f32 %v3495, %v3649
    %v3659 = vadd.f32 %v3496, %v3650
    %v3660 = vadd.f32 %v3497, %v3651
    %v3661 = vadd.f32 %v3498, %v3652
    %v3662 = vadd.f32 %v3499, %v3653
    %v3663 = vadd.f32 %v3500, %v3654
    %v3664 = vadd.f32 %v3501, %v3655
    %v3665 = vadd.f32 %v3502, %v3656
    %v3666 = vmul.f32 %v3030, %v3639
    %v3667 = vmul.f32 %v3030, %v3640
    %v3668 = vmul.f32 %v3030, %v3641
    %v3669 = vmul.f32 %v3030, %v3642
    %v3670 = vmul.f32 %v3030, %v3643
    %v3671 = vmul.f32 %v3030, %v3644
    %v3672 = vmul.f32 %v3030, %v3645
    %v3673 = vmul.f32 %v3030, %v3646
    %v3674 = vmul.f32 %v3030, %v3647
    %v3675 = vadd.f32 %v3512, %v3666
    %v3676 = vadd.f32 %v3513, %v3667
    %v3677 = vadd.f32 %v3514, %v3668
    %v3678 = vadd.f32 %v3515, %v3669
    %v3679 = vadd.f32 %v3516, %v3670
    %v3680 = vadd.f32 %v3517, %v3671
    %v3681 = vadd.f32 %v3518, %v3672
    %v3682 = vadd.f32 %v3519, %v3673
    %v3683 = vadd.f32 %v3520, %v3674
    %s3684 = scalar_lea.vmem %s0, 1136
    %v3685 = vld [vmem:[%s3684] sm:$0xff]
    %v3686 = vld [vmem:[%s3684 + $0x10] sm:$0xff]
    %v3687 = vld [vmem:[%s3684 + $0x20] sm:$0xff]
    %v3688 = vld [vmem:[%s3684 + $0x30] sm:$0xff]
    %v3689 = vld [vmem:[%s3684 + $0x40] sm:$0xff]
    %v3690 = vld [vmem:[%s3684 + $0x50] sm:$0xff]
    %v3691 = vld [vmem:[%s3684 + $0x60] sm:$0xff]
    %v3692 = vld [vmem:[%s3684 + $0x70] sm:$0xff]
    %v3693 = vld [vmem:[%s3684 + $0x80] sm:$0xff]
    %v3694 = vmul.f32 %v3096, %v3685
    %v3695 = vmul.f32 %v3096, %v3686
    %v3696 = vmul.f32 %v3096, %v3687
    %v3697 = vmul.f32 %v3096, %v3688
    %v3698 = vmul.f32 %v3096, %v3689
    %v3699 = vmul.f32 %v3096, %v3690
    %v3700 = vmul.f32 %v3096, %v3691
    %v3701 = vmul.f32 %v3096, %v3692
    %v3702 = vmul.f32 %v3096, %v3693
    %v3703 = vadd.f32 %v3657, %v3694
    %v3704 = vadd.f32 %v3658, %v3695
    %v3705 = vadd.f32 %v3659, %v3696
    %v3706 = vadd.f32 %v3660, %v3697
    %v3707 = vadd.f32 %v3661, %v3698
    %v3708 = vadd.f32 %v3662, %v3699
    %v3709 = vadd.f32 %v3663, %v3700
    %v3710 = vadd.f32 %v3664, %v3701
    %v3711 = vadd.f32 %v3665, %v3702
    %v3712 = vmul.f32 %v3116, %v3685
    %v3713 = vmul.f32 %v3116, %v3686
    %v3714 = vmul.f32 %v3116, %v3687
    %v3715 = vmul.f32 %v3116, %v3688
    %v3716 = vmul.f32 %v3116, %v3689
    %v3717 = vmul.f32 %v3116, %v3690
    %v3718 = vmul.f32 %v3116, %v3691
    %v3719 = vmul.f32 %v3116, %v3692
    %v3720 = vmul.f32 %v3116, %v3693
    %v3721 = vadd.f32 %v3675, %v3712
    %v3722 = vadd.f32 %v3676, %v3713
    %v3723 = vadd.f32 %v3677, %v3714
    %v3724 = vadd.f32 %v3678, %v3715
    %v3725 = vadd.f32 %v3679, %v3716
    %v3726 = vadd.f32 %v3680, %v3717
    %v3727 = vadd.f32 %v3681, %v3718
    %v3728 = vadd.f32 %v3682, %v3719
    %v3729 = vadd.f32 %v3683, %v3720
    %v3730 = vmul.f32 %v3010, %v3685
    %v3731 = vmul.f32 %v3010, %v3686
    %v3732 = vmul.f32 %v3010, %v3687
    %v3733 = vmul.f32 %v3010, %v3688
    %v3734 = vmul.f32 %v3010, %v3689
    %v3735 = vmul.f32 %v3010, %v3690
    %v3736 = vmul.f32 %v3010, %v3691
    %v3737 = vmul.f32 %v3010, %v3692
    %v3738 = vmul.f32 %v3010, %v3693
    %v3739 = vadd.f32 %v3611, %v3730
    %v3740 = vadd.f32 %v3612, %v3731
    %v3741 = vadd.f32 %v3613, %v3732
    %v3742 = vadd.f32 %v3614, %v3733
    %v3743 = vadd.f32 %v3615, %v3734
    %v3744 = vadd.f32 %v3616, %v3735
    %v3745 = vadd.f32 %v3617, %v3736
    %v3746 = vadd.f32 %v3618, %v3737
    %v3747 = vadd.f32 %v3619, %v3738
    %v3748 = vmul.f32 %v3030, %v3685
    %v3749 = vmul.f32 %v3030, %v3686
    %v3750 = vmul.f32 %v3030, %v3687
    %v3751 = vmul.f32 %v3030, %v3688
    %v3752 = vmul.f32 %v3030, %v3689
    %v3753 = vmul.f32 %v3030, %v3690
    %v3754 = vmul.f32 %v3030, %v3691
    %v3755 = vmul.f32 %v3030, %v3692
    %v3756 = vmul.f32 %v3030, %v3693
    %v3757 = vadd.f32 %v3629, %v3748
    %v3758 = vadd.f32 %v3630, %v3749
    %v3759 = vadd.f32 %v3631, %v3750
    %v3760 = vadd.f32 %v3632, %v3751
    %v3761 = vadd.f32 %v3633, %v3752
    %v3762 = vadd.f32 %v3634, %v3753
    %v3763 = vadd.f32 %v3635, %v3754
    %v3764 = vadd.f32 %v3636, %v3755
    %v3765 = vadd.f32 %v3637, %v3756
    %v3766 = vld [vmem:[%s3638 + $0x1] sm:$0xff]
    %v3767 = vld [vmem:[%s3638 + $0x11] sm:$0xff]
    %v3768 = vld [vmem:[%s3638 + $0x21] sm:$0xff]
    %v3769 = vld [vmem:[%s3638 + $0x31] sm:$0xff]
    %v3770 = vld [vmem:[%s3638 + $0x41] sm:$0xff]
    %v3771 = vld [vmem:[%s3638 + $0x51] sm:$0xff]
    %v3772 = vld [vmem:[%s3638 + $0x61] sm:$0xff]
    %v3773 = vld [vmem:[%s3638 + $0x71] sm:$0xff]
    %v3774 = vld [vmem:[%s3638 + $0x81] sm:$0xff]
    %v3775 = vmul.f32 %v3253, %v3766
    %v3776 = vmul.f32 %v3253, %v3767
    %v3777 = vmul.f32 %v3253, %v3768
    %v3778 = vmul.f32 %v3253, %v3769
    %v3779 = vmul.f32 %v3253, %v3770
    %v3780 = vmul.f32 %v3253, %v3771
    %v3781 = vmul.f32 %v3253, %v3772
    %v3782 = vmul.f32 %v3253, %v3773
    %v3783 = vmul.f32 %v3253, %v3774
    %v3784 = vadd.f32 %v3703, %v3775
    %v3785 = vadd.f32 %v3704, %v3776
    %v3786 = vadd.f32 %v3705, %v3777
    %v3787 = vadd.f32 %v3706, %v3778
    %v3788 = vadd.f32 %v3707, %v3779
    %v3789 = vadd.f32 %v3708, %v3780
    %v3790 = vadd.f32 %v3709, %v3781
    %v3791 = vadd.f32 %v3710, %v3782
    %v3792 = vadd.f32 %v3711, %v3783
    %v3793 = vmul.f32 %v3273, %v3766
    %v3794 = vmul.f32 %v3273, %v3767
    %v3795 = vmul.f32 %v3273, %v3768
    %v3796 = vmul.f32 %v3273, %v3769
    %v3797 = vmul.f32 %v3273, %v3770
    %v3798 = vmul.f32 %v3273, %v3771
    %v3799 = vmul.f32 %v3273, %v3772
    %v3800 = vmul.f32 %v3273, %v3773
    %v3801 = vmul.f32 %v3273, %v3774
    %v3802 = vadd.f32 %v3721, %v3793
    %v3803 = vadd.f32 %v3722, %v3794
    %v3804 = vadd.f32 %v3723, %v3795
    %v3805 = vadd.f32 %v3724, %v3796
    %v3806 = vadd.f32 %v3725, %v3797
    %v3807 = vadd.f32 %v3726, %v3798
    %v3808 = vadd.f32 %v3727, %v3799
    %v3809 = vadd.f32 %v3728, %v3800
    %v3810 = vadd.f32 %v3729, %v3801
    %v3811 = vmul.f32 %v3096, %v3766
    %v3812 = vmul.f32 %v3096, %v3767
    %v3813 = vmul.f32 %v3096, %v3768
    %v3814 = vmul.f32 %v3096, %v3769
    %v3815 = vmul.f32 %v3096, %v3770
    %v3816 = vmul.f32 %v3096, %v3771
    %v3817 = vmul.f32 %v3096, %v3772
    %v3818 = vmul.f32 %v3096, %v3773
    %v3819 = vmul.f32 %v3096, %v3774
    %v3820 = vadd.f32 %v3739, %v3811
    %v3821 = vadd.f32 %v3740, %v3812
    %v3822 = vadd.f32 %v3741, %v3813
    %v3823 = vadd.f32 %v3742, %v3814
    %v3824 = vadd.f32 %v3743, %v3815
    %v3825 = vadd.f32 %v3744, %v3816
    %v3826 = vadd.f32 %v3745, %v3817
    %v3827 = vadd.f32 %v3746, %v3818
    %v3828 = vadd.f32 %v3747, %v3819
    %v3829 = vmul.f32 %v3116, %v3766
    %v3830 = vmul.f32 %v3116, %v3767
    %v3831 = vmul.f32 %v3116, %v3768
    %v3832 = vmul.f32 %v3116, %v3769
    %v3833 = vmul.f32 %v3116, %v3770
    %v3834 = vmul.f32 %v3116, %v3771
    %v3835 = vmul.f32 %v3116, %v3772
    %v3836 = vmul.f32 %v3116, %v3773
    %v3837 = vmul.f32 %v3116, %v3774
    %v3838 = vadd.f32 %v3757, %v3829
    %v3839 = vadd.f32 %v3758, %v3830
    %v3840 = vadd.f32 %v3759, %v3831
    %v3841 = vadd.f32 %v3760, %v3832
    %v3842 = vadd.f32 %v3761, %v3833
    %v3843 = vadd.f32 %v3762, %v3834
    %v3844 = vadd.f32 %v3763, %v3835
    %v3845 = vadd.f32 %v3764, %v3836
    %v3846 = vadd.f32 %v3765, %v3837
    %v3847 = vld [vmem:[%s3684 + $0x1] sm:$0xff]
    %v3848 = vld [vmem:[%s3684 + $0x11] sm:$0xff]
    %v3849 = vld [vmem:[%s3684 + $0x21] sm:$0xff]
    %v3850 = vld [vmem:[%s3684 + $0x31] sm:$0xff]
    %v3851 = vld [vmem:[%s3684 + $0x41] sm:$0xff]
    %v3852 = vld [vmem:[%s3684 + $0x51] sm:$0xff]
    %v3853 = vld [vmem:[%s3684 + $0x61] sm:$0xff]
    %v3854 = vld [vmem:[%s3684 + $0x71] sm:$0xff]
    %v3855 = vld [vmem:[%s3684 + $0x81] sm:$0xff]
    %v3856 = vmul.f32 %v3410, %v3847
    %v3857 = vmul.f32 %v3410, %v3848
    %v3858 = vmul.f32 %v3410, %v3849
    %v3859 = vmul.f32 %v3410, %v3850
    %v3860 = vmul.f32 %v3410, %v3851
    %v3861 = vmul.f32 %v3410, %v3852
    %v3862 = vmul.f32 %v3410, %v3853
    %v3863 = vmul.f32 %v3410, %v3854
    %v3864 = vmul.f32 %v3410, %v3855
    %v3865 = vadd.f32 %v3784, %v3856
    %v3866 = vadd.f32 %v3785, %v3857
    %v3867 = vadd.f32 %v3786, %v3858
    %v3868 = vadd.f32 %v3787, %v3859
    %v3869 = vadd.f32 %v3788, %v3860
    %v3870 = vadd.f32 %v3789, %v3861
    %v3871 = vadd.f32 %v3790, %v3862
    %v3872 = vadd.f32 %v3791, %v3863
    %v3873 = vadd.f32 %v3792, %v3864
    %v3874 = vmul.f32 %v3430, %v3847
    %v3875 = vmul.f32 %v3430, %v3848
    %v3876 = vmul.f32 %v3430, %v3849
    %v3877 = vmul.f32 %v3430, %v3850
    %v3878 = vmul.f32 %v3430, %v3851
    %v3879 = vmul.f32 %v3430, %v3852
    %v3880 = vmul.f32 %v3430, %v3853
    %v3881 = vmul.f32 %v3430, %v3854
    %v3882 = vmul.f32 %v3430, %v3855
    %v3883 = vadd.f32 %v3802, %v3874
    %v3884 = vadd.f32 %v3803, %v3875
    %v3885 = vadd.f32 %v3804, %v3876
    %v3886 = vadd.f32 %v3805, %v3877
    %v3887 = vadd.f32 %v3806, %v3878
    %v3888 = vadd.f32 %v3807, %v3879
    %v3889 = vadd.f32 %v3808, %v3880
    %v3890 = vadd.f32 %v3809, %v3881
    %v3891 = vadd.f32 %v3810, %v3882
    %v3892 = vmul.f32 %v3253, %v3847
    %v3893 = vmul.f32 %v3253, %v3848
    %v3894 = vmul.f32 %v3253, %v3849
    %v3895 = vmul.f32 %v3253, %v3850
    %v3896 = vmul.f32 %v3253, %v3851
    %v3897 = vmul.f32 %v3253, %v3852
    %v3898 = vmul.f32 %v3253, %v3853
    %v3899 = vmul.f32 %v3253, %v3854
    %v3900 = vmul.f32 %v3253, %v3855
    %v3901 = vadd.f32 %v3820, %v3892
    %v3902 = vadd.f32 %v3821, %v3893
    %v3903 = vadd.f32 %v3822, %v3894
    %v3904 = vadd.f32 %v3823, %v3895
    %v3905 = vadd.f32 %v3824, %v3896
    %v3906 = vadd.f32 %v3825, %v3897
    %v3907 = vadd.f32 %v3826, %v3898
    %v3908 = vadd.f32 %v3827, %v3899
    %v3909 = vadd.f32 %v3828, %v3900
    %v3910 = vmul.f32 %v3273, %v3847
    %v3911 = vmul.f32 %v3273, %v3848
    %v3912 = vmul.f32 %v3273, %v3849
    %v3913 = vmul.f32 %v3273, %v3850
    %v3914 = vmul.f32 %v3273, %v3851
    %v3915 = vmul.f32 %v3273, %v3852
    %v3916 = vmul.f32 %v3273, %v3853
    %v3917 = vmul.f32 %v3273, %v3854
    %v3918 = vmul.f32 %v3273, %v3855
    %v3919 = vadd.f32 %v3838, %v3910
    %v3920 = vadd.f32 %v3839, %v3911
    %v3921 = vadd.f32 %v3840, %v3912
    %v3922 = vadd.f32 %v3841, %v3913
    %v3923 = vadd.f32 %v3842, %v3914
    %v3924 = vadd.f32 %v3843, %v3915
    %v3925 = vadd.f32 %v3844, %v3916
    %v3926 = vadd.f32 %v3845, %v3917
    %v3927 = vadd.f32 %v3846, %v3918
    %v3928 = vld [vmem:[%s3638 + $0x2] sm:$0xff]
    %v3929 = vld [vmem:[%s3638 + $0x12] sm:$0xff]
    %v3930 = vld [vmem:[%s3638 + $0x22] sm:$0xff]
    %v3931 = vld [vmem:[%s3638 + $0x32] sm:$0xff]
    %v3932 = vld [vmem:[%s3638 + $0x42] sm:$0xff]
    %v3933 = vld [vmem:[%s3638 + $0x52] sm:$0xff]
    %v3934 = vld [vmem:[%s3638 + $0x62] sm:$0xff]
    %v3935 = vld [vmem:[%s3638 + $0x72] sm:$0xff]
    %v3936 = vld [vmem:[%s3638 + $0x82] sm:$0xff]
    %v3937 = vmul.f32 %v3410, %v3928
    %v3938 = vmul.f32 %v3410, %v3929
    %v3939 = vmul.f32 %v3410, %v3930
    %v3940 = vmul.f32 %v3410, %v3931
    %v3941 = vmul.f32 %v3410, %v3932
    %v3942 = vmul.f32 %v3410, %v3933
    %v3943 = vmul.f32 %v3410, %v3934
    %v3944 = vmul.f32 %v3410, %v3935
    %v3945 = vmul.f32 %v3410, %v3936
    %v3946 = vadd.f32 %v3901, %v3937
    %v3947 = vadd.f32 %v3902, %v3938
    %v3948 = vadd.f32 %v3903, %v3939
    %v3949 = vadd.f32 %v3904, %v3940
    %v3950 = vadd.f32 %v3905, %v3941
    %v3951 = vadd.f32 %v3906, %v3942
    %v3952 = vadd.f32 %v3907, %v3943
    %v3953 = vadd.f32 %v3908, %v3944
    %v3954 = vadd.f32 %v3909, %v3945
    %v3955 = vmul.f32 %v3430, %v3928
    %v3956 = vmul.f32 %v3430, %v3929
    %v3957 = vmul.f32 %v3430, %v3930
    %v3958 = vmul.f32 %v3430, %v3931
    %v3959 = vmul.f32 %v3430, %v3932
    %v3960 = vmul.f32 %v3430, %v3933
    %v3961 = vmul.f32 %v3430, %v3934
    %v3962 = vmul.f32 %v3430, %v3935
    %v3963 = vmul.f32 %v3430, %v3936
    %v3964 = vadd.f32 %v3919, %v3955
    %v3965 = vadd.f32 %v3920, %v3956
    %v3966 = vadd.f32 %v3921, %v3957
    %v3967 = vadd.f32 %v3922, %v3958
    %v3968 = vadd.f32 %v3923, %v3959
    %v3969 = vadd.f32 %v3924, %v3960
    %v3970 = vadd.f32 %v3925, %v3961
    %v3971 = vadd.f32 %v3926, %v3962
    %v3972 = vadd.f32 %v3927, %v3963
    %s3973 = scalar_lea.vmem %s0, 1280
    %v3974 = vld [vmem:[%s3973] sm:$0xff]
    %v3975 = vld [vmem:[%s3973 + $0x10] sm:$0xff]
    %v3976 = vld [vmem:[%s3973 + $0x20] sm:$0xff]
    %v3977 = vld [vmem:[%s3973 + $0x30] sm:$0xff]
    %v3978 = vld [vmem:[%s3973 + $0x40] sm:$0xff]
    %v3979 = vld [vmem:[%s3973 + $0x50] sm:$0xff]
    %v3980 = vld [vmem:[%s3973 + $0x60] sm:$0xff]
    %v3981 = vld [vmem:[%s3973 + $0x70] sm:$0xff]
    %v3982 = vld [vmem:[%s3973 + $0x80] sm:$0xff]
    %s3983 = sld [smem:[#allocation2 + $0x18]]
    %v3984 = vstv %s3983
    %v3985 = vmul.f32 %v3984, %v3974
    %v3986 = vmul.f32 %v3984, %v3975
    %v3987 = vmul.f32 %v3984, %v3976
    %v3988 = vmul.f32 %v3984, %v3977
    %v3989 = vmul.f32 %v3984, %v3978
    %v3990 = vmul.f32 %v3984, %v3979
    %v3991 = vmul.f32 %v3984, %v3980
    %v3992 = vmul.f32 %v3984, %v3981
    %v3993 = vmul.f32 %v3984, %v3982
    %v3994 = vadd.f32 %v3420, %v3985
    %v3995 = vadd.f32 %v3421, %v3986
    %v3996 = vadd.f32 %v3422, %v3987
    %v3997 = vadd.f32 %v3423, %v3988
    %v3998 = vadd.f32 %v3424, %v3989
    %v3999 = vadd.f32 %v3425, %v3990
    %v4000 = vadd.f32 %v3426, %v3991
    %v4001 = vadd.f32 %v3427, %v3992
    %v4002 = vadd.f32 %v3428, %v3993
    %s4003 = sld [smem:[#allocation2 + $0x3c]]
    %v4004 = vstv %s4003
    %v4005 = vmul.f32 %v4004, %v3974
    %v4006 = vmul.f32 %v4004, %v3975
    %v4007 = vmul.f32 %v4004, %v3976
    %v4008 = vmul.f32 %v4004, %v3977
    %v4009 = vmul.f32 %v4004, %v3978
    %v4010 = vmul.f32 %v4004, %v3979
    %v4011 = vmul.f32 %v4004, %v3980
    %v4012 = vmul.f32 %v4004, %v3981
    %v4013 = vmul.f32 %v4004, %v3982
    %v4014 = vadd.f32 %v3440, %v4005
    %v4015 = vadd.f32 %v3441, %v4006
    %v4016 = vadd.f32 %v3442, %v4007
    %v4017 = vadd.f32 %v3443, %v4008
    %v4018 = vadd.f32 %v3444, %v4009
    %v4019 = vadd.f32 %v3445, %v4010
    %v4020 = vadd.f32 %v3446, %v4011
    %v4021 = vadd.f32 %v3447, %v4012
    %v4022 = vadd.f32 %v3448, %v4013
    %s4023 = scalar_lea.vmem %s0, 1440
    %v4024 = vld [vmem:[%s4023] sm:$0xff]
    %v4025 = vld [vmem:[%s4023 + $0x10] sm:$0xff]
    %v4026 = vld [vmem:[%s4023 + $0x20] sm:$0xff]
    %v4027 = vld [vmem:[%s4023 + $0x30] sm:$0xff]
    %v4028 = vld [vmem:[%s4023 + $0x40] sm:$0xff]
    %v4029 = vld [vmem:[%s4023 + $0x50] sm:$0xff]
    %v4030 = vld [vmem:[%s4023 + $0x60] sm:$0xff]
    %v4031 = vld [vmem:[%s4023 + $0x70] sm:$0xff]
    %v4032 = vld [vmem:[%s4023 + $0x80] sm:$0xff]
    %s4033 = sld [smem:[#allocation2 + $0x19]]
    %v4034 = vstv %s4033
    %v4035 = vmul.f32 %v4034, %v4024
    %v4036 = vmul.f32 %v4034, %v4025
    %v4037 = vmul.f32 %v4034, %v4026
    %v4038 = vmul.f32 %v4034, %v4027
    %v4039 = vmul.f32 %v4034, %v4028
    %v4040 = vmul.f32 %v4034, %v4029
    %v4041 = vmul.f32 %v4034, %v4030
    %v4042 = vmul.f32 %v4034, %v4031
    %v4043 = vmul.f32 %v4034, %v4032
    %v4044 = vadd.f32 %v3994, %v4035
    %v4045 = vadd.f32 %v3995, %v4036
    %v4046 = vadd.f32 %v3996, %v4037
    %v4047 = vadd.f32 %v3997, %v4038
    %v4048 = vadd.f32 %v3998, %v4039
    %v4049 = vadd.f32 %v3999, %v4040
    %v4050 = vadd.f32 %v4000, %v4041
    %v4051 = vadd.f32 %v4001, %v4042
    %v4052 = vadd.f32 %v4002, %v4043
    %s4053 = sld [smem:[#allocation2 + $0x3d]]
    %v4054 = vstv %s4053
    %v4055 = vmul.f32 %v4054, %v4024
    %v4056 = vmul.f32 %v4054, %v4025
    %v4057 = vmul.f32 %v4054, %v4026
    %v4058 = vmul.f32 %v4054, %v4027
    %v4059 = vmul.f32 %v4054, %v4028
    %v4060 = vmul.f32 %v4054, %v4029
    %v4061 = vmul.f32 %v4054, %v4030
    %v4062 = vmul.f32 %v4054, %v4031
    %v4063 = vmul.f32 %v4054, %v4032
    %v4064 = vadd.f32 %v4014, %v4055
    %v4065 = vadd.f32 %v4015, %v4056
    %v4066 = vadd.f32 %v4016, %v4057
    %v4067 = vadd.f32 %v4017, %v4058
    %v4068 = vadd.f32 %v4018, %v4059
    %v4069 = vadd.f32 %v4019, %v4060
    %v4070 = vadd.f32 %v4020, %v4061
    %v4071 = vadd.f32 %v4021, %v4062
    %v4072 = vadd.f32 %v4022, %v4063
    %v4073 = vmul.f32 %v3984, %v4024
    %v4074 = vmul.f32 %v3984, %v4025
    %v4075 = vmul.f32 %v3984, %v4026
    %v4076 = vmul.f32 %v3984, %v4027
    %v4077 = vmul.f32 %v3984, %v4028
    %v4078 = vmul.f32 %v3984, %v4029
    %v4079 = vmul.f32 %v3984, %v4030
    %v4080 = vmul.f32 %v3984, %v4031
    %v4081 = vmul.f32 %v3984, %v4032
    %v4082 = vadd.f32 %v3575, %v4073
    %v4083 = vadd.f32 %v3576, %v4074
    %v4084 = vadd.f32 %v3577, %v4075
    %v4085 = vadd.f32 %v3578, %v4076
    %v4086 = vadd.f32 %v3579, %v4077
    %v4087 = vadd.f32 %v3580, %v4078
    %v4088 = vadd.f32 %v3581, %v4079
    %v4089 = vadd.f32 %v3582, %v4080
    %v4090 = vadd.f32 %v3583, %v4081
    %v4091 = vmul.f32 %v4004, %v4024
    %v4092 = vmul.f32 %v4004, %v4025
    %v4093 = vmul.f32 %v4004, %v4026
    %v4094 = vmul.f32 %v4004, %v4027
    %v4095 = vmul.f32 %v4004, %v4028
    %v4096 = vmul.f32 %v4004, %v4029
    %v4097 = vmul.f32 %v4004, %v4030
    %v4098 = vmul.f32 %v4004, %v4031
    %v4099 = vmul.f32 %v4004, %v4032
    %v4100 = vadd.f32 %v3593, %v4091
    %v4101 = vadd.f32 %v3594, %v4092
    %v4102 = vadd.f32 %v3595, %v4093
    %v4103 = vadd.f32 %v3596, %v4094
    %v4104 = vadd.f32 %v3597, %v4095
    %v4105 = vadd.f32 %v3598, %v4096
    %v4106 = vadd.f32 %v3599, %v4097
    %v4107 = vadd.f32 %v3600, %v4098
    %v4108 = vadd.f32 %v3601, %v4099
    %v4109 = vld [vmem:[%s3973 + $0x1] sm:$0xff]
    %v4110 = vld [vmem:[%s3973 + $0x11] sm:$0xff]
    %v4111 = vld [vmem:[%s3973 + $0x21] sm:$0xff]
    %v4112 = vld [vmem:[%s3973 + $0x31] sm:$0xff]
    %v4113 = vld [vmem:[%s3973 + $0x41] sm:$0xff]
    %v4114 = vld [vmem:[%s3973 + $0x51] sm:$0xff]
    %v4115 = vld [vmem:[%s3973 + $0x61] sm:$0xff]
    %v4116 = vld [vmem:[%s3973 + $0x71] sm:$0xff]
    %v4117 = vld [vmem:[%s3973 + $0x81] sm:$0xff]
    %s4118 = sld [smem:[#allocation2 + $0x1a]]
    %v4119 = vstv %s4118
    %v4120 = vmul.f32 %v4119, %v4109
    %v4121 = vmul.f32 %v4119, %v4110
    %v4122 = vmul.f32 %v4119, %v4111
    %v4123 = vmul.f32 %v4119, %v4112
    %v4124 = vmul.f32 %v4119, %v4113
    %v4125 = vmul.f32 %v4119, %v4114
    %v4126 = vmul.f32 %v4119, %v4115
    %v4127 = vmul.f32 %v4119, %v4116
    %v4128 = vmul.f32 %v4119, %v4117
    %v4129 = vadd.f32 %v4044, %v4120
    %v4130 = vadd.f32 %v4045, %v4121
    %v4131 = vadd.f32 %v4046, %v4122
    %v4132 = vadd.f32 %v4047, %v4123
    %v4133 = vadd.f32 %v4048, %v4124
    %v4134 = vadd.f32 %v4049, %v4125
    %v4135 = vadd.f32 %v4050, %v4126
    %v4136 = vadd.f32 %v4051, %v4127
    %v4137 = vadd.f32 %v4052, %v4128
    %s4138 = sld [smem:[#allocation2 + $0x3e]]
    %v4139 = vstv %s4138
    %v4140 = vmul.f32 %v4139, %v4109
    %v4141 = vmul.f32 %v4139, %v4110
    %v4142 = vmul.f32 %v4139, %v4111
    %v4143 = vmul.f32 %v4139, %v4112
    %v4144 = vmul.f32 %v4139, %v4113
    %v4145 = vmul.f32 %v4139, %v4114
    %v4146 = vmul.f32 %v4139, %v4115
    %v4147 = vmul.f32 %v4139, %v4116
    %v4148 = vmul.f32 %v4139, %v4117
    %v4149 = vadd.f32 %v4064, %v4140
    %v4150 = vadd.f32 %v4065, %v4141
    %v4151 = vadd.f32 %v4066, %v4142
    %v4152 = vadd.f32 %v4067, %v4143
    %v4153 = vadd.f32 %v4068, %v4144
    %v4154 = vadd.f32 %v4069, %v4145
    %v4155 = vadd.f32 %v4070, %v4146
    %v4156 = vadd.f32 %v4071, %v4147
    %v4157 = vadd.f32 %v4072, %v4148
    %v4158 = vmul.f32 %v4034, %v4109
    %v4159 = vmul.f32 %v4034, %v4110
    %v4160 = vmul.f32 %v4034, %v4111
    %v4161 = vmul.f32 %v4034, %v4112
    %v4162 = vmul.f32 %v4034, %v4113
    %v4163 = vmul.f32 %v4034, %v4114
    %v4164 = vmul.f32 %v4034, %v4115
    %v4165 = vmul.f32 %v4034, %v4116
    %v4166 = vmul.f32 %v4034, %v4117
    %v4167 = vadd.f32 %v4082, %v4158
    %v4168 = vadd.f32 %v4083, %v4159
    %v4169 = vadd.f32 %v4084, %v4160
    %v4170 = vadd.f32 %v4085, %v4161
    %v4171 = vadd.f32 %v4086, %v4162
    %v4172 = vadd.f32 %v4087, %v4163
    %v4173 = vadd.f32 %v4088, %v4164
    %v4174 = vadd.f32 %v4089, %v4165
    %v4175 = vadd.f32 %v4090, %v4166
    %v4176 = vmul.f32 %v4054, %v4109
    %v4177 = vmul.f32 %v4054, %v4110
    %v4178 = vmul.f32 %v4054, %v4111
    %v4179 = vmul.f32 %v4054, %v4112
    %v4180 = vmul.f32 %v4054, %v4113
    %v4181 = vmul.f32 %v4054, %v4114
    %v4182 = vmul.f32 %v4054, %v4115
    %v4183 = vmul.f32 %v4054, %v4116
    %v4184 = vmul.f32 %v4054, %v4117
    %v4185 = vadd.f32 %v4100, %v4176
    %v4186 = vadd.f32 %v4101, %v4177
    %v4187 = vadd.f32 %v4102, %v4178
    %v4188 = vadd.f32 %v4103, %v4179
    %v4189 = vadd.f32 %v4104, %v4180
    %v4190 = vadd.f32 %v4105, %v4181
    %v4191 = vadd.f32 %v4106, %v4182
    %v4192 = vadd.f32 %v4107, %v4183
    %v4193 = vadd.f32 %v4108, %v4184
    %v4194 = vld [vmem:[%s4023 + $0x1] sm:$0xff]
    %v4195 = vld [vmem:[%s4023 + $0x11] sm:$0xff]
    %v4196 = vld [vmem:[%s4023 + $0x21] sm:$0xff]
    %v4197 = vld [vmem:[%s4023 + $0x31] sm:$0xff]
    %v4198 = vld [vmem:[%s4023 + $0x41] sm:$0xff]
    %v4199 = vld [vmem:[%s4023 + $0x51] sm:$0xff]
    %v4200 = vld [vmem:[%s4023 + $0x61] sm:$0xff]
    %v4201 = vld [vmem:[%s4023 + $0x71] sm:$0xff]
    %v4202 = vld [vmem:[%s4023 + $0x81] sm:$0xff]
    %s4203 = sld [smem:[#allocation2 + $0x1b]]
    %v4204 = vstv %s4203
    %v4205 = vmul.f32 %v4204, %v4194
    %v4206 = vmul.f32 %v4204, %v4195
    %v4207 = vmul.f32 %v4204, %v4196
    %v4208 = vmul.f32 %v4204, %v4197
    %v4209 = vmul.f32 %v4204, %v4198
    %v4210 = vmul.f32 %v4204, %v4199
    %v4211 = vmul.f32 %v4204, %v4200
    %v4212 = vmul.f32 %v4204, %v4201
    %v4213 = vmul.f32 %v4204, %v4202
    %v4214 = vadd.f32 %v4129, %v4205
    %v4215 = vadd.f32 %v4130, %v4206
    %v4216 = vadd.f32 %v4131, %v4207
    %v4217 = vadd.f32 %v4132, %v4208
    %v4218 = vadd.f32 %v4133, %v4209
    %v4219 = vadd.f32 %v4134, %v4210
    %v4220 = vadd.f32 %v4135, %v4211
    %v4221 = vadd.f32 %v4136, %v4212
    %v4222 = vadd.f32 %v4137, %v4213
    %s4223 = sld [smem:[#allocation2 + $0x3f]]
    %v4224 = vstv %s4223
    %v4225 = vmul.f32 %v4224, %v4194
    %v4226 = vmul.f32 %v4224, %v4195
    %v4227 = vmul.f32 %v4224, %v4196
    %v4228 = vmul.f32 %v4224, %v4197
    %v4229 = vmul.f32 %v4224, %v4198
    %v4230 = vmul.f32 %v4224, %v4199
    %v4231 = vmul.f32 %v4224, %v4200
    %v4232 = vmul.f32 %v4224, %v4201
    %v4233 = vmul.f32 %v4224, %v4202
    %v4234 = vadd.f32 %v4149, %v4225
    %v4235 = vadd.f32 %v4150, %v4226
    %v4236 = vadd.f32 %v4151, %v4227
    %v4237 = vadd.f32 %v4152, %v4228
    %v4238 = vadd.f32 %v4153, %v4229
    %v4239 = vadd.f32 %v4154, %v4230
    %v4240 = vadd.f32 %v4155, %v4231
    %v4241 = vadd.f32 %v4156, %v4232
    %v4242 = vadd.f32 %v4157, %v4233
    %v4243 = vmul.f32 %v4119, %v4194
    %v4244 = vmul.f32 %v4119, %v4195
    %v4245 = vmul.f32 %v4119, %v4196
    %v4246 = vmul.f32 %v4119, %v4197
    %v4247 = vmul.f32 %v4119, %v4198
    %v4248 = vmul.f32 %v4119, %v4199
    %v4249 = vmul.f32 %v4119, %v4200
    %v4250 = vmul.f32 %v4119, %v4201
    %v4251 = vmul.f32 %v4119, %v4202
    %v4252 = vadd.f32 %v4167, %v4243
    %v4253 = vadd.f32 %v4168, %v4244
    %v4254 = vadd.f32 %v4169, %v4245
    %v4255 = vadd.f32 %v4170, %v4246
    %v4256 = vadd.f32 %v4171, %v4247
    %v4257 = vadd.f32 %v4172, %v4248
    %v4258 = vadd.f32 %v4173, %v4249
    %v4259 = vadd.f32 %v4174, %v4250
    %v4260 = vadd.f32 %v4175, %v4251
    %v4261 = vmul.f32 %v4139, %v4194
    %v4262 = vmul.f32 %v4139, %v4195
    %v4263 = vmul.f32 %v4139, %v4196
    %v4264 = vmul.f32 %v4139, %v4197
    %v4265 = vmul.f32 %v4139, %v4198
    %v4266 = vmul.f32 %v4139, %v4199
    %v4267 = vmul.f32 %v4139, %v4200
    %v4268 = vmul.f32 %v4139, %v4201
    %v4269 = vmul.f32 %v4139, %v4202
    %v4270 = vadd.f32 %v4185, %v4261
    %v4271 = vadd.f32 %v4186, %v4262
    %v4272 = vadd.f32 %v4187, %v4263
    %v4273 = vadd.f32 %v4188, %v4264
    %v4274 = vadd.f32 %v4189, %v4265
    %v4275 = vadd.f32 %v4190, %v4266
    %v4276 = vadd.f32 %v4191, %v4267
    %v4277 = vadd.f32 %v4192, %v4268
    %v4278 = vadd.f32 %v4193, %v4269
    %v4279 = vld [vmem:[%s3973 + $0x2] sm:$0xff]
    %v4280 = vld [vmem:[%s3973 + $0x12] sm:$0xff]
    %v4281 = vld [vmem:[%s3973 + $0x22] sm:$0xff]
    %v4282 = vld [vmem:[%s3973 + $0x32] sm:$0xff]
    %v4283 = vld [vmem:[%s3973 + $0x42] sm:$0xff]
    %v4284 = vld [vmem:[%s3973 + $0x52] sm:$0xff]
    %v4285 = vld [vmem:[%s3973 + $0x62] sm:$0xff]
    %v4286 = vld [vmem:[%s3973 + $0x72] sm:$0xff]
    %v4287 = vld [vmem:[%s3973 + $0x82] sm:$0xff]
    %v4288 = vmul.f32 %v4204, %v4279
    %v4289 = vmul.f32 %v4204, %v4280
    %v4290 = vmul.f32 %v4204, %v4281
    %v4291 = vmul.f32 %v4204, %v4282
    %v4292 = vmul.f32 %v4204, %v4283
    %v4293 = vmul.f32 %v4204, %v4284
    %v4294 = vmul.f32 %v4204, %v4285
    %v4295 = vmul.f32 %v4204, %v4286
    %v4296 = vmul.f32 %v4204, %v4287
    %v4297 = vadd.f32 %v4252, %v4288
    %v4298 = vadd.f32 %v4253, %v4289
    %v4299 = vadd.f32 %v4254, %v4290
    %v4300 = vadd.f32 %v4255, %v4291
    %v4301 = vadd.f32 %v4256, %v4292
    %v4302 = vadd.f32 %v4257, %v4293
    %v4303 = vadd.f32 %v4258, %v4294
    %v4304 = vadd.f32 %v4259, %v4295
    %v4305 = vadd.f32 %v4260, %v4296
    %v4306 = vmul.f32 %v4224, %v4279
    %v4307 = vmul.f32 %v4224, %v4280
    %v4308 = vmul.f32 %v4224, %v4281
    %v4309 = vmul.f32 %v4224, %v4282
    %v4310 = vmul.f32 %v4224, %v4283
    %v4311 = vmul.f32 %v4224, %v4284
    %v4312 = vmul.f32 %v4224, %v4285
    %v4313 = vmul.f32 %v4224, %v4286
    %v4314 = vmul.f32 %v4224, %v4287
    %v4315 = vadd.f32 %v4270, %v4306
    %v4316 = vadd.f32 %v4271, %v4307
    %v4317 = vadd.f32 %v4272, %v4308
    %v4318 = vadd.f32 %v4273, %v4309
    %v4319 = vadd.f32 %v4274, %v4310
    %v4320 = vadd.f32 %v4275, %v4311
    %v4321 = vadd.f32 %v4276, %v4312
    %v4322 = vadd.f32 %v4277, %v4313
    %v4323 = vadd.f32 %v4278, %v4314
    %s4324 = scalar_lea.vmem %s0, 1600
    %v4325 = vld [vmem:[%s4324] sm:$0xff]
    %v4326 = vld [vmem:[%s4324 + $0x10] sm:$0xff]
    %v4327 = vld [vmem:[%s4324 + $0x20] sm:$0xff]
    %v4328 = vld [vmem:[%s4324 + $0x30] sm:$0xff]
    %v4329 = vld [vmem:[%s4324 + $0x40] sm:$0xff]
    %v4330 = vld [vmem:[%s4324 + $0x50] sm:$0xff]
    %v4331 = vld [vmem:[%s4324 + $0x60] sm:$0xff]
    %v4332 = vld [vmem:[%s4324 + $0x70] sm:$0xff]
    %v4333 = vld [vmem:[%s4324 + $0x80] sm:$0xff]
    %s4334 = sld [smem:[#allocation2 + $0x1c]]
    %v4335 = vstv %s4334
    %v4336 = vmul.f32 %v4335, %v4325
    %v4337 = vmul.f32 %v4335, %v4326
    %v4338 = vmul.f32 %v4335, %v4327
    %v4339 = vmul.f32 %v4335, %v4328
    %v4340 = vmul.f32 %v4335, %v4329
    %v4341 = vmul.f32 %v4335, %v4330
    %v4342 = vmul.f32 %v4335, %v4331
    %v4343 = vmul.f32 %v4335, %v4332
    %v4344 = vmul.f32 %v4335, %v4333
    %v4345 = vadd.f32 %v4214, %v4336
    %v4346 = vadd.f32 %v4215, %v4337
    %v4347 = vadd.f32 %v4216, %v4338
    %v4348 = vadd.f32 %v4217, %v4339
    %v4349 = vadd.f32 %v4218, %v4340
    %v4350 = vadd.f32 %v4219, %v4341
    %v4351 = vadd.f32 %v4220, %v4342
    %v4352 = vadd.f32 %v4221, %v4343
    %v4353 = vadd.f32 %v4222, %v4344
    %s4354 = sld [smem:[#allocation2 + $0x40]]
    %v4355 = vstv %s4354
    %v4356 = vmul.f32 %v4355, %v4325
    %v4357 = vmul.f32 %v4355, %v4326
    %v4358 = vmul.f32 %v4355, %v4327
    %v4359 = vmul.f32 %v4355, %v4328
    %v4360 = vmul.f32 %v4355, %v4329
    %v4361 = vmul.f32 %v4355, %v4330
    %v4362 = vmul.f32 %v4355, %v4331
    %v4363 = vmul.f32 %v4355, %v4332
    %v4364 = vmul.f32 %v4355, %v4333
    %v4365 = vadd.f32 %v4234, %v4356
    %v4366 = vadd.f32 %v4235, %v4357
    %v4367 = vadd.f32 %v4236, %v4358
    %v4368 = vadd.f32 %v4237, %v4359
    %v4369 = vadd.f32 %v4238, %v4360
    %v4370 = vadd.f32 %v4239, %v4361
    %v4371 = vadd.f32 %v4240, %v4362
    %v4372 = vadd.f32 %v4241, %v4363
    %v4373 = vadd.f32 %v4242, %v4364
    %v4374 = vmul.f32 %v3984, %v4325
    %v4375 = vmul.f32 %v3984, %v4326
    %v4376 = vmul.f32 %v3984, %v4327
    %v4377 = vmul.f32 %v3984, %v4328
    %v4378 = vmul.f32 %v3984, %v4329
    %v4379 = vmul.f32 %v3984, %v4330
    %v4380 = vmul.f32 %v3984, %v4331
    %v4381 = vmul.f32 %v3984, %v4332
    %v4382 = vmul.f32 %v3984, %v4333
    %v4383 = vadd.f32 %v3865, %v4374
    %v4384 = vadd.f32 %v3866, %v4375
    %v4385 = vadd.f32 %v3867, %v4376
    %v4386 = vadd.f32 %v3868, %v4377
    %v4387 = vadd.f32 %v3869, %v4378
    %v4388 = vadd.f32 %v3870, %v4379
    %v4389 = vadd.f32 %v3871, %v4380
    %v4390 = vadd.f32 %v3872, %v4381
    %v4391 = vadd.f32 %v3873, %v4382
    %v4392 = vmul.f32 %v4004, %v4325
    %v4393 = vmul.f32 %v4004, %v4326
    %v4394 = vmul.f32 %v4004, %v4327
    %v4395 = vmul.f32 %v4004, %v4328
    %v4396 = vmul.f32 %v4004, %v4329
    %v4397 = vmul.f32 %v4004, %v4330
    %v4398 = vmul.f32 %v4004, %v4331
    %v4399 = vmul.f32 %v4004, %v4332
    %v4400 = vmul.f32 %v4004, %v4333
    %v4401 = vadd.f32 %v3883, %v4392
    %v4402 = vadd.f32 %v3884, %v4393
    %v4403 = vadd.f32 %v3885, %v4394
    %v4404 = vadd.f32 %v3886, %v4395
    %v4405 = vadd.f32 %v3887, %v4396
    %v4406 = vadd.f32 %v3888, %v4397
    %v4407 = vadd.f32 %v3889, %v4398
    %v4408 = vadd.f32 %v3890, %v4399
    %v4409 = vadd.f32 %v3891, %v4400
    %s4410 = scalar_lea.vmem %s0, 1760
    %v4411 = vld [vmem:[%s4410] sm:$0xff]
    %v4412 = vld [vmem:[%s4410 + $0x10] sm:$0xff]
    %v4413 = vld [vmem:[%s4410 + $0x20] sm:$0xff]
    %v4414 = vld [vmem:[%s4410 + $0x30] sm:$0xff]
    %v4415 = vld [vmem:[%s4410 + $0x40] sm:$0xff]
    %v4416 = vld [vmem:[%s4410 + $0x50] sm:$0xff]
    %v4417 = vld [vmem:[%s4410 + $0x60] sm:$0xff]
    %v4418 = vld [vmem:[%s4410 + $0x70] sm:$0xff]
    %v4419 = vld [vmem:[%s4410 + $0x80] sm:$0xff]
    %s4420 = sld [smem:[#allocation2 + $0x1d]]
    %v4421 = vstv %s4420
    %v4422 = vmul.f32 %v4421, %v4411
    %v4423 = vmul.f32 %v4421, %v4412
    %v4424 = vmul.f32 %v4421, %v4413
    %v4425 = vmul.f32 %v4421, %v4414
    %v4426 = vmul.f32 %v4421, %v4415
    %v4427 = vmul.f32 %v4421, %v4416
    %v4428 = vmul.f32 %v4421, %v4417
    %v4429 = vmul.f32 %v4421, %v4418
    %v4430 = vmul.f32 %v4421, %v4419
    %v4431 = vadd.f32 %v4345, %v4422
    %v4432 = vadd.f32 %v4346, %v4423
    %v4433 = vadd.f32 %v4347, %v4424
    %v4434 = vadd.f32 %v4348, %v4425
    %v4435 = vadd.f32 %v4349, %v4426
    %v4436 = vadd.f32 %v4350, %v4427
    %v4437 = vadd.f32 %v4351, %v4428
    %v4438 = vadd.f32 %v4352, %v4429
    %v4439 = vadd.f32 %v4353, %v4430
    %s4440 = sld [smem:[#allocation2 + $0x41]]
    %v4441 = vstv %s4440
    %v4442 = vmul.f32 %v4441, %v4411
    %v4443 = vmul.f32 %v4441, %v4412
    %v4444 = vmul.f32 %v4441, %v4413
    %v4445 = vmul.f32 %v4441, %v4414
    %v4446 = vmul.f32 %v4441, %v4415
    %v4447 = vmul.f32 %v4441, %v4416
    %v4448 = vmul.f32 %v4441, %v4417
    %v4449 = vmul.f32 %v4441, %v4418
    %v4450 = vmul.f32 %v4441, %v4419
    %v4451 = vadd.f32 %v4365, %v4442
    %v4452 = vadd.f32 %v4366, %v4443
    %v4453 = vadd.f32 %v4367, %v4444
    %v4454 = vadd.f32 %v4368, %v4445
    %v4455 = vadd.f32 %v4369, %v4446
    %v4456 = vadd.f32 %v4370, %v4447
    %v4457 = vadd.f32 %v4371, %v4448
    %v4458 = vadd.f32 %v4372, %v4449
    %v4459 = vadd.f32 %v4373, %v4450
    %v4460 = vmul.f32 %v4335, %v4411
    %v4461 = vmul.f32 %v4335, %v4412
    %v4462 = vmul.f32 %v4335, %v4413
    %v4463 = vmul.f32 %v4335, %v4414
    %v4464 = vmul.f32 %v4335, %v4415
    %v4465 = vmul.f32 %v4335, %v4416
    %v4466 = vmul.f32 %v4335, %v4417
    %v4467 = vmul.f32 %v4335, %v4418
    %v4468 = vmul.f32 %v4335, %v4419
    %v4469 = vadd.f32 %v4297, %v4460
    %v4470 = vadd.f32 %v4298, %v4461
    %v4471 = vadd.f32 %v4299, %v4462
    %v4472 = vadd.f32 %v4300, %v4463
    %v4473 = vadd.f32 %v4301, %v4464
    %v4474 = vadd.f32 %v4302, %v4465
    %v4475 = vadd.f32 %v4303, %v4466
    %v4476 = vadd.f32 %v4304, %v4467
    %v4477 = vadd.f32 %v4305, %v4468
    %v4478 = vmul.f32 %v4355, %v4411
    %v4479 = vmul.f32 %v4355, %v4412
    %v4480 = vmul.f32 %v4355, %v4413
    %v4481 = vmul.f32 %v4355, %v4414
    %v4482 = vmul.f32 %v4355, %v4415
    %v4483 = vmul.f32 %v4355, %v4416
    %v4484 = vmul.f32 %v4355, %v4417
    %v4485 = vmul.f32 %v4355, %v4418
    %v4486 = vmul.f32 %v4355, %v4419
    %v4487 = vadd.f32 %v4315, %v4478
    %v4488 = vadd.f32 %v4316, %v4479
    %v4489 = vadd.f32 %v4317, %v4480
    %v4490 = vadd.f32 %v4318, %v4481
    %v4491 = vadd.f32 %v4319, %v4482
    %v4492 = vadd.f32 %v4320, %v4483
    %v4493 = vadd.f32 %v4321, %v4484
    %v4494 = vadd.f32 %v4322, %v4485
    %v4495 = vadd.f32 %v4323, %v4486
    %v4496 = vmul.f32 %v4034, %v4411
    %v4497 = vmul.f32 %v4034, %v4412
    %v4498 = vmul.f32 %v4034, %v4413
    %v4499 = vmul.f32 %v4034, %v4414
    %v4500 = vmul.f32 %v4034, %v4415
    %v4501 = vmul.f32 %v4034, %v4416
    %v4502 = vmul.f32 %v4034, %v4417
    %v4503 = vmul.f32 %v4034, %v4418
    %v4504 = vmul.f32 %v4034, %v4419
    %v4505 = vadd.f32 %v4383, %v4496
    %v4506 = vadd.f32 %v4384, %v4497
    %v4507 = vadd.f32 %v4385, %v4498
    %v4508 = vadd.f32 %v4386, %v4499
    %v4509 = vadd.f32 %v4387, %v4500
    %v4510 = vadd.f32 %v4388, %v4501
    %v4511 = vadd.f32 %v4389, %v4502
    %v4512 = vadd.f32 %v4390, %v4503
    %v4513 = vadd.f32 %v4391, %v4504
    %v4514 = vmul.f32 %v4054, %v4411
    %v4515 = vmul.f32 %v4054, %v4412
    %v4516 = vmul.f32 %v4054, %v4413
    %v4517 = vmul.f32 %v4054, %v4414
    %v4518 = vmul.f32 %v4054, %v4415
    %v4519 = vmul.f32 %v4054, %v4416
    %v4520 = vmul.f32 %v4054, %v4417
    %v4521 = vmul.f32 %v4054, %v4418
    %v4522 = vmul.f32 %v4054, %v4419
    %v4523 = vadd.f32 %v4401, %v4514
    %v4524 = vadd.f32 %v4402, %v4515
    %v4525 = vadd.f32 %v4403, %v4516
    %v4526 = vadd.f32 %v4404, %v4517
    %v4527 = vadd.f32 %v4405, %v4518
    %v4528 = vadd.f32 %v4406, %v4519
    %v4529 = vadd.f32 %v4407, %v4520
    %v4530 = vadd.f32 %v4408, %v4521
    %v4531 = vadd.f32 %v4409, %v4522
    %v4532 = vmul.f32 %v3984, %v4411
    %v4533 = vmul.f32 %v3984, %v4412
    %v4534 = vmul.f32 %v3984, %v4413
    %v4535 = vmul.f32 %v3984, %v4414
    %v4536 = vmul.f32 %v3984, %v4415
    %v4537 = vmul.f32 %v3984, %v4416
    %v4538 = vmul.f32 %v3984, %v4417
    %v4539 = vmul.f32 %v3984, %v4418
    %v4540 = vmul.f32 %v3984, %v4419
    %v4541 = vadd.f32 %v3946, %v4532
    %v4542 = vadd.f32 %v3947, %v4533
    %v4543 = vadd.f32 %v3948, %v4534
    %v4544 = vadd.f32 %v3949, %v4535
    %v4545 = vadd.f32 %v3950, %v4536
    %v4546 = vadd.f32 %v3951, %v4537
    %v4547 = vadd.f32 %v3952, %v4538
    %v4548 = vadd.f32 %v3953, %v4539
    %v4549 = vadd.f32 %v3954, %v4540
    %v4550 = vmul.f32 %v4004, %v4411
    %v4551 = vmul.f32 %v4004, %v4412
    %v4552 = vmul.f32 %v4004, %v4413
    %v4553 = vmul.f32 %v4004, %v4414
    %v4554 = vmul.f32 %v4004, %v4415
    %v4555 = vmul.f32 %v4004, %v4416
    %v4556 = vmul.f32 %v4004, %v4417
    %v4557 = vmul.f32 %v4004, %v4418
    %v4558 = vmul.f32 %v4004, %v4419
    %v4559 = vadd.f32 %v3964, %v4550
    %v4560 = vadd.f32 %v3965, %v4551
    %v4561 = vadd.f32 %v3966, %v4552
    %v4562 = vadd.f32 %v3967, %v4553
    %v4563 = vadd.f32 %v3968, %v4554
    %v4564 = vadd.f32 %v3969, %v4555
    %v4565 = vadd.f32 %v3970, %v4556
    %v4566 = vadd.f32 %v3971, %v4557
    %v4567 = vadd.f32 %v3972, %v4558
    %v4568 = vld [vmem:[%s4324 + $0x1] sm:$0xff]
    %v4569 = vld [vmem:[%s4324 + $0x11] sm:$0xff]
    %v4570 = vld [vmem:[%s4324 + $0x21] sm:$0xff]
    %v4571 = vld [vmem:[%s4324 + $0x31] sm:$0xff]
    %v4572 = vld [vmem:[%s4324 + $0x41] sm:$0xff]
    %v4573 = vld [vmem:[%s4324 + $0x51] sm:$0xff]
    %v4574 = vld [vmem:[%s4324 + $0x61] sm:$0xff]
    %v4575 = vld [vmem:[%s4324 + $0x71] sm:$0xff]
    %v4576 = vld [vmem:[%s4324 + $0x81] sm:$0xff]
    %s4577 = sld [smem:[#allocation2 + $0x1e]]
    %v4578 = vstv %s4577
    %v4579 = vmul.f32 %v4578, %v4568
    %v4580 = vmul.f32 %v4578, %v4569
    %v4581 = vmul.f32 %v4578, %v4570
    %v4582 = vmul.f32 %v4578, %v4571
    %v4583 = vmul.f32 %v4578, %v4572
    %v4584 = vmul.f32 %v4578, %v4573
    %v4585 = vmul.f32 %v4578, %v4574
    %v4586 = vmul.f32 %v4578, %v4575
    %v4587 = vmul.f32 %v4578, %v4576
    %v4588 = vadd.f32 %v4431, %v4579
    %v4589 = vadd.f32 %v4432, %v4580
    %v4590 = vadd.f32 %v4433, %v4581
    %v4591 = vadd.f32 %v4434, %v4582
    %v4592 = vadd.f32 %v4435, %v4583
    %v4593 = vadd.f32 %v4436, %v4584
    %v4594 = vadd.f32 %v4437, %v4585
    %v4595 = vadd.f32 %v4438, %v4586
    %v4596 = vadd.f32 %v4439, %v4587
    %s4597 = sld [smem:[#allocation2 + $0x42]]
    %v4598 = vstv %s4597
    %v4599 = vmul.f32 %v4598, %v4568
    %v4600 = vmul.f32 %v4598, %v4569
    %v4601 = vmul.f32 %v4598, %v4570
    %v4602 = vmul.f32 %v4598, %v4571
    %v4603 = vmul.f32 %v4598, %v4572
    %v4604 = vmul.f32 %v4598, %v4573
    %v4605 = vmul.f32 %v4598, %v4574
    %v4606 = vmul.f32 %v4598, %v4575
    %v4607 = vmul.f32 %v4598, %v4576
    %v4608 = vadd.f32 %v4451, %v4599
    %v4609 = vadd.f32 %v4452, %v4600
    %v4610 = vadd.f32 %v4453, %v4601
    %v4611 = vadd.f32 %v4454, %v4602
    %v4612 = vadd.f32 %v4455, %v4603
    %v4613 = vadd.f32 %v4456, %v4604
    %v4614 = vadd.f32 %v4457, %v4605
    %v4615 = vadd.f32 %v4458, %v4606
    %v4616 = vadd.f32 %v4459, %v4607
    %v4617 = vmul.f32 %v4421, %v4568
    %v4618 = vmul.f32 %v4421, %v4569
    %v4619 = vmul.f32 %v4421, %v4570
    %v4620 = vmul.f32 %v4421, %v4571
    %v4621 = vmul.f32 %v4421, %v4572
    %v4622 = vmul.f32 %v4421, %v4573
    %v4623 = vmul.f32 %v4421, %v4574
    %v4624 = vmul.f32 %v4421, %v4575
    %v4625 = vmul.f32 %v4421, %v4576
    %v4626 = vadd.f32 %v4469, %v4617
    %v4627 = vadd.f32 %v4470, %v4618
    %v4628 = vadd.f32 %v4471, %v4619
    %v4629 = vadd.f32 %v4472, %v4620
    %v4630 = vadd.f32 %v4473, %v4621
    %v4631 = vadd.f32 %v4474, %v4622
    %v4632 = vadd.f32 %v4475, %v4623
    %v4633 = vadd.f32 %v4476, %v4624
    %v4634 = vadd.f32 %v4477, %v4625
    %v4635 = vmul.f32 %v4441, %v4568
    %v4636 = vmul.f32 %v4441, %v4569
    %v4637 = vmul.f32 %v4441, %v4570
    %v4638 = vmul.f32 %v4441, %v4571
    %v4639 = vmul.f32 %v4441, %v4572
    %v4640 = vmul.f32 %v4441, %v4573
    %v4641 = vmul.f32 %v4441, %v4574
    %v4642 = vmul.f32 %v4441, %v4575
    %v4643 = vmul.f32 %v4441, %v4576
    %v4644 = vadd.f32 %v4487, %v4635
    %v4645 = vadd.f32 %v4488, %v4636
    %v4646 = vadd.f32 %v4489, %v4637
    %v4647 = vadd.f32 %v4490, %v4638
    %v4648 = vadd.f32 %v4491, %v4639
    %v4649 = vadd.f32 %v4492, %v4640
    %v4650 = vadd.f32 %v4493, %v4641
    %v4651 = vadd.f32 %v4494, %v4642
    %v4652 = vadd.f32 %v4495, %v4643
    %v4653 = vmul.f32 %v4119, %v4568
    %v4654 = vmul.f32 %v4119, %v4569
    %v4655 = vmul.f32 %v4119, %v4570
    %v4656 = vmul.f32 %v4119, %v4571
    %v4657 = vmul.f32 %v4119, %v4572
    %v4658 = vmul.f32 %v4119, %v4573
    %v4659 = vmul.f32 %v4119, %v4574
    %v4660 = vmul.f32 %v4119, %v4575
    %v4661 = vmul.f32 %v4119, %v4576
    %v4662 = vadd.f32 %v4505, %v4653
    %v4663 = vadd.f32 %v4506, %v4654
    %v4664 = vadd.f32 %v4507, %v4655
    %v4665 = vadd.f32 %v4508, %v4656
    %v4666 = vadd.f32 %v4509, %v4657
    %v4667 = vadd.f32 %v4510, %v4658
    %v4668 = vadd.f32 %v4511, %v4659
    %v4669 = vadd.f32 %v4512, %v4660
    %v4670 = vadd.f32 %v4513, %v4661
    %v4671 = vmul.f32 %v4139, %v4568
    %v4672 = vmul.f32 %v4139, %v4569
    %v4673 = vmul.f32 %v4139, %v4570
    %v4674 = vmul.f32 %v4139, %v4571
    %v4675 = vmul.f32 %v4139, %v4572
    %v4676 = vmul.f32 %v4139, %v4573
    %v4677 = vmul.f32 %v4139, %v4574
    %v4678 = vmul.f32 %v4139, %v4575
    %v4679 = vmul.f32 %v4139, %v4576
    %v4680 = vadd.f32 %v4523, %v4671
    %v4681 = vadd.f32 %v4524, %v4672
    %v4682 = vadd.f32 %v4525, %v4673
    %v4683 = vadd.f32 %v4526, %v4674
    %v4684 = vadd.f32 %v4527, %v4675
    %v4685 = vadd.f32 %v4528, %v4676
    %v4686 = vadd.f32 %v4529, %v4677
    %v4687 = vadd.f32 %v4530, %v4678
    %v4688 = vadd.f32 %v4531, %v4679
    %v4689 = vmul.f32 %v4034, %v4568
    %v4690 = vmul.f32 %v4034, %v4569
    %v4691 = vmul.f32 %v4034, %v4570
    %v4692 = vmul.f32 %v4034, %v4571
    %v4693 = vmul.f32 %v4034, %v4572
    %v4694 = vmul.f32 %v4034, %v4573
    %v4695 = vmul.f32 %v4034, %v4574
    %v4696 = vmul.f32 %v4034, %v4575
    %v4697 = vmul.f32 %v4034, %v4576
    %v4698 = vadd.f32 %v4541, %v4689
    %v4699 = vadd.f32 %v4542, %v4690
    %v4700 = vadd.f32 %v4543, %v4691
    %v4701 = vadd.f32 %v4544, %v4692
    %v4702 = vadd.f32 %v4545, %v4693
    %v4703 = vadd.f32 %v4546, %v4694
    %v4704 = vadd.f32 %v4547, %v4695
    %v4705 = vadd.f32 %v4548, %v4696
    %v4706 = vadd.f32 %v4549, %v4697
    %v4707 = vmul.f32 %v4054, %v4568
    %v4708 = vmul.f32 %v4054, %v4569
    %v4709 = vmul.f32 %v4054, %v4570
    %v4710 = vmul.f32 %v4054, %v4571
    %v4711 = vmul.f32 %v4054, %v4572
    %v4712 = vmul.f32 %v4054, %v4573
    %v4713 = vmul.f32 %v4054, %v4574
    %v4714 = vmul.f32 %v4054, %v4575
    %v4715 = vmul.f32 %v4054, %v4576
    %v4716 = vadd.f32 %v4559, %v4707
    %v4717 = vadd.f32 %v4560, %v4708
    %v4718 = vadd.f32 %v4561, %v4709
    %v4719 = vadd.f32 %v4562, %v4710
    %v4720 = vadd.f32 %v4563, %v4711
    %v4721 = vadd.f32 %v4564, %v4712
    %v4722 = vadd.f32 %v4565, %v4713
    %v4723 = vadd.f32 %v4566, %v4714
    %v4724 = vadd.f32 %v4567, %v4715
    %v4725 = vld [vmem:[%s4410 + $0x1] sm:$0xff]
    %v4726 = vld [vmem:[%s4410 + $0x11] sm:$0xff]
    %v4727 = vld [vmem:[%s4410 + $0x21] sm:$0xff]
    %v4728 = vld [vmem:[%s4410 + $0x31] sm:$0xff]
    %v4729 = vld [vmem:[%s4410 + $0x41] sm:$0xff]
    %v4730 = vld [vmem:[%s4410 + $0x51] sm:$0xff]
    %v4731 = vld [vmem:[%s4410 + $0x61] sm:$0xff]
    %v4732 = vld [vmem:[%s4410 + $0x71] sm:$0xff]
    %v4733 = vld [vmem:[%s4410 + $0x81] sm:$0xff]
    %s4734 = sld [smem:[#allocation2 + $0x1f]]
    %v4735 = vstv %s4734
    %v4736 = vmul.f32 %v4735, %v4725
    %v4737 = vmul.f32 %v4735, %v4726
    %v4738 = vmul.f32 %v4735, %v4727
    %v4739 = vmul.f32 %v4735, %v4728
    %v4740 = vmul.f32 %v4735, %v4729
    %v4741 = vmul.f32 %v4735, %v4730
    %v4742 = vmul.f32 %v4735, %v4731
    %v4743 = vmul.f32 %v4735, %v4732
    %v4744 = vmul.f32 %v4735, %v4733
    %v4745 = vadd.f32 %v4588, %v4736
    %v4746 = vadd.f32 %v4589, %v4737
    %v4747 = vadd.f32 %v4590, %v4738
    %v4748 = vadd.f32 %v4591, %v4739
    %v4749 = vadd.f32 %v4592, %v4740
    %v4750 = vadd.f32 %v4593, %v4741
    %v4751 = vadd.f32 %v4594, %v4742
    %v4752 = vadd.f32 %v4595, %v4743
    %v4753 = vadd.f32 %v4596, %v4744
    %s4754 = sld [smem:[#allocation2 + $0x43]]
    %v4755 = vstv %s4754
    %v4756 = vmul.f32 %v4755, %v4725
    %v4757 = vmul.f32 %v4755, %v4726
    %v4758 = vmul.f32 %v4755, %v4727
    %v4759 = vmul.f32 %v4755, %v4728
    %v4760 = vmul.f32 %v4755, %v4729
    %v4761 = vmul.f32 %v4755, %v4730
    %v4762 = vmul.f32 %v4755, %v4731
    %v4763 = vmul.f32 %v4755, %v4732
    %v4764 = vmul.f32 %v4755, %v4733
    %v4765 = vadd.f32 %v4608, %v4756
    %v4766 = vadd.f32 %v4609, %v4757
    %v4767 = vadd.f32 %v4610, %v4758
    %v4768 = vadd.f32 %v4611, %v4759
    %v4769 = vadd.f32 %v4612, %v4760
    %v4770 = vadd.f32 %v4613, %v4761
    %v4771 = vadd.f32 %v4614, %v4762
    %v4772 = vadd.f32 %v4615, %v4763
    %v4773 = vadd.f32 %v4616, %v4764
    %v4774 = vmul.f32 %v4578, %v4725
    %v4775 = vmul.f32 %v4578, %v4726
    %v4776 = vmul.f32 %v4578, %v4727
    %v4777 = vmul.f32 %v4578, %v4728
    %v4778 = vmul.f32 %v4578, %v4729
    %v4779 = vmul.f32 %v4578, %v4730
    %v4780 = vmul.f32 %v4578, %v4731
    %v4781 = vmul.f32 %v4578, %v4732
    %v4782 = vmul.f32 %v4578, %v4733
    %v4783 = vadd.f32 %v4626, %v4774
    %v4784 = vadd.f32 %v4627, %v4775
    %v4785 = vadd.f32 %v4628, %v4776
    %v4786 = vadd.f32 %v4629, %v4777
    %v4787 = vadd.f32 %v4630, %v4778
    %v4788 = vadd.f32 %v4631, %v4779
    %v4789 = vadd.f32 %v4632, %v4780
    %v4790 = vadd.f32 %v4633, %v4781
    %v4791 = vadd.f32 %v4634, %v4782
    %v4792 = vmul.f32 %v4598, %v4725
    %v4793 = vmul.f32 %v4598, %v4726
    %v4794 = vmul.f32 %v4598, %v4727
    %v4795 = vmul.f32 %v4598, %v4728
    %v4796 = vmul.f32 %v4598, %v4729
    %v4797 = vmul.f32 %v4598, %v4730
    %v4798 = vmul.f32 %v4598, %v4731
    %v4799 = vmul.f32 %v4598, %v4732
    %v4800 = vmul.f32 %v4598, %v4733
    %v4801 = vadd.f32 %v4644, %v4792
    %v4802 = vadd.f32 %v4645, %v4793
    %v4803 = vadd.f32 %v4646, %v4794
    %v4804 = vadd.f32 %v4647, %v4795
    %v4805 = vadd.f32 %v4648, %v4796
    %v4806 = vadd.f32 %v4649, %v4797
    %v4807 = vadd.f32 %v4650, %v4798
    %v4808 = vadd.f32 %v4651, %v4799
    %v4809 = vadd.f32 %v4652, %v4800
    %v4810 = vmul.f32 %v4204, %v4725
    %v4811 = vmul.f32 %v4204, %v4726
    %v4812 = vmul.f32 %v4204, %v4727
    %v4813 = vmul.f32 %v4204, %v4728
    %v4814 = vmul.f32 %v4204, %v4729
    %v4815 = vmul.f32 %v4204, %v4730
    %v4816 = vmul.f32 %v4204, %v4731
    %v4817 = vmul.f32 %v4204, %v4732
    %v4818 = vmul.f32 %v4204, %v4733
    %v4819 = vadd.f32 %v4662, %v4810
    %v4820 = vadd.f32 %v4663, %v4811
    %v4821 = vadd.f32 %v4664, %v4812
    %v4822 = vadd.f32 %v4665, %v4813
    %v4823 = vadd.f32 %v4666, %v4814
    %v4824 = vadd.f32 %v4667, %v4815
    %v4825 = vadd.f32 %v4668, %v4816
    %v4826 = vadd.f32 %v4669, %v4817
    %v4827 = vadd.f32 %v4670, %v4818
    %v4828 = vmul.f32 %v4224, %v4725
    %v4829 = vmul.f32 %v4224, %v4726
    %v4830 = vmul.f32 %v4224, %v4727
    %v4831 = vmul.f32 %v4224, %v4728
    %v4832 = vmul.f32 %v4224, %v4729
    %v4833 = vmul.f32 %v4224, %v4730
    %v4834 = vmul.f32 %v4224, %v4731
    %v4835 = vmul.f32 %v4224, %v4732
    %v4836 = vmul.f32 %v4224, %v4733
    %v4837 = vadd.f32 %v4680, %v4828
    %v4838 = vadd.f32 %v4681, %v4829
    %v4839 = vadd.f32 %v4682, %v4830
    %v4840 = vadd.f32 %v4683, %v4831
    %v4841 = vadd.f32 %v4684, %v4832
    %v4842 = vadd.f32 %v4685, %v4833
    %v4843 = vadd.f32 %v4686, %v4834
    %v4844 = vadd.f32 %v4687, %v4835
    %v4845 = vadd.f32 %v4688, %v4836
    %v4846 = vmul.f32 %v4119, %v4725
    %v4847 = vmul.f32 %v4119, %v4726
    %v4848 = vmul.f32 %v4119, %v4727
    %v4849 = vmul.f32 %v4119, %v4728
    %v4850 = vmul.f32 %v4119, %v4729
    %v4851 = vmul.f32 %v4119, %v4730
    %v4852 = vmul.f32 %v4119, %v4731
    %v4853 = vmul.f32 %v4119, %v4732
    %v4854 = vmul.f32 %v4119, %v4733
    %v4855 = vadd.f32 %v4698, %v4846
    %v4856 = vadd.f32 %v4699, %v4847
    %v4857 = vadd.f32 %v4700, %v4848
    %v4858 = vadd.f32 %v4701, %v4849
    %v4859 = vadd.f32 %v4702, %v4850
    %v4860 = vadd.f32 %v4703, %v4851
    %v4861 = vadd.f32 %v4704, %v4852
    %v4862 = vadd.f32 %v4705, %v4853
    %v4863 = vadd.f32 %v4706, %v4854
    %v4864 = vmul.f32 %v4139, %v4725
    %v4865 = vmul.f32 %v4139, %v4726
    %v4866 = vmul.f32 %v4139, %v4727
    %v4867 = vmul.f32 %v4139, %v4728
    %v4868 = vmul.f32 %v4139, %v4729
    %v4869 = vmul.f32 %v4139, %v4730
    %v4870 = vmul.f32 %v4139, %v4731
    %v4871 = vmul.f32 %v4139, %v4732
    %v4872 = vmul.f32 %v4139, %v4733
    %v4873 = vadd.f32 %v4716, %v4864
    %v4874 = vadd.f32 %v4717, %v4865
    %v4875 = vadd.f32 %v4718, %v4866
    %v4876 = vadd.f32 %v4719, %v4867
    %v4877 = vadd.f32 %v4720, %v4868
    %v4878 = vadd.f32 %v4721, %v4869
    %v4879 = vadd.f32 %v4722, %v4870
    %v4880 = vadd.f32 %v4723, %v4871
    %v4881 = vadd.f32 %v4724, %v4872
    %v4882 = vld [vmem:[%s4324 + $0x2] sm:$0xff]
    %v4883 = vld [vmem:[%s4324 + $0x12] sm:$0xff]
    %v4884 = vld [vmem:[%s4324 + $0x22] sm:$0xff]
    %v4885 = vld [vmem:[%s4324 + $0x32] sm:$0xff]
    %v4886 = vld [vmem:[%s4324 + $0x42] sm:$0xff]
    %v4887 = vld [vmem:[%s4324 + $0x52] sm:$0xff]
    %v4888 = vld [vmem:[%s4324 + $0x62] sm:$0xff]
    %v4889 = vld [vmem:[%s4324 + $0x72] sm:$0xff]
    %v4890 = vld [vmem:[%s4324 + $0x82] sm:$0xff]
    %v4891 = vmul.f32 %v4735, %v4882
    %v4892 = vmul.f32 %v4735, %v4883
    %v4893 = vmul.f32 %v4735, %v4884
    %v4894 = vmul.f32 %v4735, %v4885
    %v4895 = vmul.f32 %v4735, %v4886
    %v4896 = vmul.f32 %v4735, %v4887
    %v4897 = vmul.f32 %v4735, %v4888
    %v4898 = vmul.f32 %v4735, %v4889
    %v4899 = vmul.f32 %v4735, %v4890
    %v4900 = vadd.f32 %v4783, %v4891
    %v4901 = vadd.f32 %v4784, %v4892
    %v4902 = vadd.f32 %v4785, %v4893
    %v4903 = vadd.f32 %v4786, %v4894
    %v4904 = vadd.f32 %v4787, %v4895
    %v4905 = vadd.f32 %v4788, %v4896
    %v4906 = vadd.f32 %v4789, %v4897
    %v4907 = vadd.f32 %v4790, %v4898
    %v4908 = vadd.f32 %v4791, %v4899
    %v4909 = vmul.f32 %v4755, %v4882
    %v4910 = vmul.f32 %v4755, %v4883
    %v4911 = vmul.f32 %v4755, %v4884
    %v4912 = vmul.f32 %v4755, %v4885
    %v4913 = vmul.f32 %v4755, %v4886
    %v4914 = vmul.f32 %v4755, %v4887
    %v4915 = vmul.f32 %v4755, %v4888
    %v4916 = vmul.f32 %v4755, %v4889
    %v4917 = vmul.f32 %v4755, %v4890
    %v4918 = vadd.f32 %v4801, %v4909
    %v4919 = vadd.f32 %v4802, %v4910
    %v4920 = vadd.f32 %v4803, %v4911
    %v4921 = vadd.f32 %v4804, %v4912
    %v4922 = vadd.f32 %v4805, %v4913
    %v4923 = vadd.f32 %v4806, %v4914
    %v4924 = vadd.f32 %v4807, %v4915
    %v4925 = vadd.f32 %v4808, %v4916
    %v4926 = vadd.f32 %v4809, %v4917
    %v4927 = vmul.f32 %v4204, %v4882
    %v4928 = vmul.f32 %v4204, %v4883
    %v4929 = vmul.f32 %v4204, %v4884
    %v4930 = vmul.f32 %v4204, %v4885
    %v4931 = vmul.f32 %v4204, %v4886
    %v4932 = vmul.f32 %v4204, %v4887
    %v4933 = vmul.f32 %v4204, %v4888
    %v4934 = vmul.f32 %v4204, %v4889
    %v4935 = vmul.f32 %v4204, %v4890
    %v4936 = vadd.f32 %v4855, %v4927
    %v4937 = vadd.f32 %v4856, %v4928
    %v4938 = vadd.f32 %v4857, %v4929
    %v4939 = vadd.f32 %v4858, %v4930
    %v4940 = vadd.f32 %v4859, %v4931
    %v4941 = vadd.f32 %v4860, %v4932
    %v4942 = vadd.f32 %v4861, %v4933
    %v4943 = vadd.f32 %v4862, %v4934
    %v4944 = vadd.f32 %v4863, %v4935
    %v4945 = vmul.f32 %v4224, %v4882
    %v4946 = vmul.f32 %v4224, %v4883
    %v4947 = vmul.f32 %v4224, %v4884
    %v4948 = vmul.f32 %v4224, %v4885
    %v4949 = vmul.f32 %v4224, %v4886
    %v4950 = vmul.f32 %v4224, %v4887
    %v4951 = vmul.f32 %v4224, %v4888
    %v4952 = vmul.f32 %v4224, %v4889
    %v4953 = vmul.f32 %v4224, %v4890
    %v4954 = vadd.f32 %v4873, %v4945
    %v4955 = vadd.f32 %v4874, %v4946
    %v4956 = vadd.f32 %v4875, %v4947
    %v4957 = vadd.f32 %v4876, %v4948
    %v4958 = vadd.f32 %v4877, %v4949
    %v4959 = vadd.f32 %v4878, %v4950
    %v4960 = vadd.f32 %v4879, %v4951
    %v4961 = vadd.f32 %v4880, %v4952
    %v4962 = vadd.f32 %v4881, %v4953
    %s4963 = scalar_lea.vmem %s0, 1296
    %v4964 = vld [vmem:[%s4963] sm:$0xff]
    %v4965 = vld [vmem:[%s4963 + $0x10] sm:$0xff]
    %v4966 = vld [vmem:[%s4963 + $0x20] sm:$0xff]
    %v4967 = vld [vmem:[%s4963 + $0x30] sm:$0xff]
    %v4968 = vld [vmem:[%s4963 + $0x40] sm:$0xff]
    %v4969 = vld [vmem:[%s4963 + $0x50] sm:$0xff]
    %v4970 = vld [vmem:[%s4963 + $0x60] sm:$0xff]
    %v4971 = vld [vmem:[%s4963 + $0x70] sm:$0xff]
    %v4972 = vld [vmem:[%s4963 + $0x80] sm:$0xff]
    %s4973 = sld [smem:[#allocation2 + $0x20]]
    %v4974 = vstv %s4973
    %v4975 = vmul.f32 %v4974, %v4964
    %v4976 = vmul.f32 %v4974, %v4965
    %v4977 = vmul.f32 %v4974, %v4966
    %v4978 = vmul.f32 %v4974, %v4967
    %v4979 = vmul.f32 %v4974, %v4968
    %v4980 = vmul.f32 %v4974, %v4969
    %v4981 = vmul.f32 %v4974, %v4970
    %v4982 = vmul.f32 %v4974, %v4971
    %v4983 = vmul.f32 %v4974, %v4972
    %v4984 = vadd.f32 %v4745, %v4975
    %v4985 = vadd.f32 %v4746, %v4976
    %v4986 = vadd.f32 %v4747, %v4977
    %v4987 = vadd.f32 %v4748, %v4978
    %v4988 = vadd.f32 %v4749, %v4979
    %v4989 = vadd.f32 %v4750, %v4980
    %v4990 = vadd.f32 %v4751, %v4981
    %v4991 = vadd.f32 %v4752, %v4982
    %v4992 = vadd.f32 %v4753, %v4983
    %s4993 = sld [smem:[#allocation2 + $0x44]]
    %v4994 = vstv %s4993
    %v4995 = vmul.f32 %v4994, %v4964
    %v4996 = vmul.f32 %v4994, %v4965
    %v4997 = vmul.f32 %v4994, %v4966
    %v4998 = vmul.f32 %v4994, %v4967
    %v4999 = vmul.f32 %v4994, %v4968
    %v5000 = vmul.f32 %v4994, %v4969
    %v5001 = vmul.f32 %v4994, %v4970
    %v5002 = vmul.f32 %v4994, %v4971
    %v5003 = vmul.f32 %v4994, %v4972
    %v5004 = vadd.f32 %v4765, %v4995
    %v5005 = vadd.f32 %v4766, %v4996
    %v5006 = vadd.f32 %v4767, %v4997
    %v5007 = vadd.f32 %v4768, %v4998
    %v5008 = vadd.f32 %v4769, %v4999
    %v5009 = vadd.f32 %v4770, %v5000
    %v5010 = vadd.f32 %v4771, %v5001
    %v5011 = vadd.f32 %v4772, %v5002
    %v5012 = vadd.f32 %v4773, %v5003
    %v5013 = vmul.f32 %v4335, %v4964
    %v5014 = vmul.f32 %v4335, %v4965
    %v5015 = vmul.f32 %v4335, %v4966
    %v5016 = vmul.f32 %v4335, %v4967
    %v5017 = vmul.f32 %v4335, %v4968
    %v5018 = vmul.f32 %v4335, %v4969
    %v5019 = vmul.f32 %v4335, %v4970
    %v5020 = vmul.f32 %v4335, %v4971
    %v5021 = vmul.f32 %v4335, %v4972
    %v5022 = vadd.f32 %v4819, %v5013
    %v5023 = vadd.f32 %v4820, %v5014
    %v5024 = vadd.f32 %v4821, %v5015
    %v5025 = vadd.f32 %v4822, %v5016
    %v5026 = vadd.f32 %v4823, %v5017
    %v5027 = vadd.f32 %v4824, %v5018
    %v5028 = vadd.f32 %v4825, %v5019
    %v5029 = vadd.f32 %v4826, %v5020
    %v5030 = vadd.f32 %v4827, %v5021
    %v5031 = vmul.f32 %v4355, %v4964
    %v5032 = vmul.f32 %v4355, %v4965
    %v5033 = vmul.f32 %v4355, %v4966
    %v5034 = vmul.f32 %v4355, %v4967
    %v5035 = vmul.f32 %v4355, %v4968
    %v5036 = vmul.f32 %v4355, %v4969
    %v5037 = vmul.f32 %v4355, %v4970
    %v5038 = vmul.f32 %v4355, %v4971
    %v5039 = vmul.f32 %v4355, %v4972
    %v5040 = vadd.f32 %v4837, %v5031
    %v5041 = vadd.f32 %v4838, %v5032
    %v5042 = vadd.f32 %v4839, %v5033
    %v5043 = vadd.f32 %v4840, %v5034
    %v5044 = vadd.f32 %v4841, %v5035
    %v5045 = vadd.f32 %v4842, %v5036
    %v5046 = vadd.f32 %v4843, %v5037
    %v5047 = vadd.f32 %v4844, %v5038
    %v5048 = vadd.f32 %v4845, %v5039
    %s5049 = scalar_lea.vmem %s0, 1456
    %v5050 = vld [vmem:[%s5049] sm:$0xff]
    %v5051 = vld [vmem:[%s5049 + $0x10] sm:$0xff]
    %v5052 = vld [vmem:[%s5049 + $0x20] sm:$0xff]
    %v5053 = vld [vmem:[%s5049 + $0x30] sm:$0xff]
    %v5054 = vld [vmem:[%s5049 + $0x40] sm:$0xff]
    %v5055 = vld [vmem:[%s5049 + $0x50] sm:$0xff]
    %v5056 = vld [vmem:[%s5049 + $0x60] sm:$0xff]
    %v5057 = vld [vmem:[%s5049 + $0x70] sm:$0xff]
    %v5058 = vld [vmem:[%s5049 + $0x80] sm:$0xff]
    %s5059 = sld [smem:[#allocation2 + $0x21]]
    %v5060 = vstv %s5059
    %v5061 = vmul.f32 %v5060, %v5050
    %v5062 = vmul.f32 %v5060, %v5051
    %v5063 = vmul.f32 %v5060, %v5052
    %v5064 = vmul.f32 %v5060, %v5053
    %v5065 = vmul.f32 %v5060, %v5054
    %v5066 = vmul.f32 %v5060, %v5055
    %v5067 = vmul.f32 %v5060, %v5056
    %v5068 = vmul.f32 %v5060, %v5057
    %v5069 = vmul.f32 %v5060, %v5058
    %v5070 = vadd.f32 %v4984, %v5061
    %v5071 = vadd.f32 %v4985, %v5062
    %v5072 = vadd.f32 %v4986, %v5063
    %v5073 = vadd.f32 %v4987, %v5064
    %v5074 = vadd.f32 %v4988, %v5065
    %v5075 = vadd.f32 %v4989, %v5066
    %v5076 = vadd.f32 %v4990, %v5067
    %v5077 = vadd.f32 %v4991, %v5068
    %v5078 = vadd.f32 %v4992, %v5069
    %s5079 = sld [smem:[#allocation2 + $0x45]]
    %v5080 = vstv %s5079
    %v5081 = vmul.f32 %v5080, %v5050
    %v5082 = vmul.f32 %v5080, %v5051
    %v5083 = vmul.f32 %v5080, %v5052
    %v5084 = vmul.f32 %v5080, %v5053
    %v5085 = vmul.f32 %v5080, %v5054
    %v5086 = vmul.f32 %v5080, %v5055
    %v5087 = vmul.f32 %v5080, %v5056
    %v5088 = vmul.f32 %v5080, %v5057
    %v5089 = vmul.f32 %v5080, %v5058
    %v5090 = vadd.f32 %v5004, %v5081
    %v5091 = vadd.f32 %v5005, %v5082
    %v5092 = vadd.f32 %v5006, %v5083
    %v5093 = vadd.f32 %v5007, %v5084
    %v5094 = vadd.f32 %v5008, %v5085
    %v5095 = vadd.f32 %v5009, %v5086
    %v5096 = vadd.f32 %v5010, %v5087
    %v5097 = vadd.f32 %v5011, %v5088
    %v5098 = vadd.f32 %v5012, %v5089
    %v5099 = vmul.f32 %v4974, %v5050
    %v5100 = vmul.f32 %v4974, %v5051
    %v5101 = vmul.f32 %v4974, %v5052
    %v5102 = vmul.f32 %v4974, %v5053
    %v5103 = vmul.f32 %v4974, %v5054
    %v5104 = vmul.f32 %v4974, %v5055
    %v5105 = vmul.f32 %v4974, %v5056
    %v5106 = vmul.f32 %v4974, %v5057
    %v5107 = vmul.f32 %v4974, %v5058
    %v5108 = vadd.f32 %v4900, %v5099
    %v5109 = vadd.f32 %v4901, %v5100
    %v5110 = vadd.f32 %v4902, %v5101
    %v5111 = vadd.f32 %v4903, %v5102
    %v5112 = vadd.f32 %v4904, %v5103
    %v5113 = vadd.f32 %v4905, %v5104
    %v5114 = vadd.f32 %v4906, %v5105
    %v5115 = vadd.f32 %v4907, %v5106
    %v5116 = vadd.f32 %v4908, %v5107
    %v5117 = vmul.f32 %v4994, %v5050
    %v5118 = vmul.f32 %v4994, %v5051
    %v5119 = vmul.f32 %v4994, %v5052
    %v5120 = vmul.f32 %v4994, %v5053
    %v5121 = vmul.f32 %v4994, %v5054
    %v5122 = vmul.f32 %v4994, %v5055
    %v5123 = vmul.f32 %v4994, %v5056
    %v5124 = vmul.f32 %v4994, %v5057
    %v5125 = vmul.f32 %v4994, %v5058
    %v5126 = vadd.f32 %v4918, %v5117
    %v5127 = vadd.f32 %v4919, %v5118
    %v5128 = vadd.f32 %v4920, %v5119
    %v5129 = vadd.f32 %v4921, %v5120
    %v5130 = vadd.f32 %v4922, %v5121
    %v5131 = vadd.f32 %v4923, %v5122
    %v5132 = vadd.f32 %v4924, %v5123
    %v5133 = vadd.f32 %v4925, %v5124
    %v5134 = vadd.f32 %v4926, %v5125
    %v5135 = vmul.f32 %v4421, %v5050
    %v5136 = vmul.f32 %v4421, %v5051
    %v5137 = vmul.f32 %v4421, %v5052
    %v5138 = vmul.f32 %v4421, %v5053
    %v5139 = vmul.f32 %v4421, %v5054
    %v5140 = vmul.f32 %v4421, %v5055
    %v5141 = vmul.f32 %v4421, %v5056
    %v5142 = vmul.f32 %v4421, %v5057
    %v5143 = vmul.f32 %v4421, %v5058
    %v5144 = vadd.f32 %v5022, %v5135
    %v5145 = vadd.f32 %v5023, %v5136
    %v5146 = vadd.f32 %v5024, %v5137
    %v5147 = vadd.f32 %v5025, %v5138
    %v5148 = vadd.f32 %v5026, %v5139
    %v5149 = vadd.f32 %v5027, %v5140
    %v5150 = vadd.f32 %v5028, %v5141
    %v5151 = vadd.f32 %v5029, %v5142
    %v5152 = vadd.f32 %v5030, %v5143
    %v5153 = vmul.f32 %v4441, %v5050
    %v5154 = vmul.f32 %v4441, %v5051
    %v5155 = vmul.f32 %v4441, %v5052
    %v5156 = vmul.f32 %v4441, %v5053
    %v5157 = vmul.f32 %v4441, %v5054
    %v5158 = vmul.f32 %v4441, %v5055
    %v5159 = vmul.f32 %v4441, %v5056
    %v5160 = vmul.f32 %v4441, %v5057
    %v5161 = vmul.f32 %v4441, %v5058
    %v5162 = vadd.f32 %v5040, %v5153
    %v5163 = vadd.f32 %v5041, %v5154
    %v5164 = vadd.f32 %v5042, %v5155
    %v5165 = vadd.f32 %v5043, %v5156
    %v5166 = vadd.f32 %v5044, %v5157
    %v5167 = vadd.f32 %v5045, %v5158
    %v5168 = vadd.f32 %v5046, %v5159
    %v5169 = vadd.f32 %v5047, %v5160
    %v5170 = vadd.f32 %v5048, %v5161
    %v5171 = vmul.f32 %v4335, %v5050
    %v5172 = vmul.f32 %v4335, %v5051
    %v5173 = vmul.f32 %v4335, %v5052
    %v5174 = vmul.f32 %v4335, %v5053
    %v5175 = vmul.f32 %v4335, %v5054
    %v5176 = vmul.f32 %v4335, %v5055
    %v5177 = vmul.f32 %v4335, %v5056
    %v5178 = vmul.f32 %v4335, %v5057
    %v5179 = vmul.f32 %v4335, %v5058
    %v5180 = vadd.f32 %v4936, %v5171
    %v5181 = vadd.f32 %v4937, %v5172
    %v5182 = vadd.f32 %v4938, %v5173
    %v5183 = vadd.f32 %v4939, %v5174
    %v5184 = vadd.f32 %v4940, %v5175
    %v5185 = vadd.f32 %v4941, %v5176
    %v5186 = vadd.f32 %v4942, %v5177
    %v5187 = vadd.f32 %v4943, %v5178
    %v5188 = vadd.f32 %v4944, %v5179
    %v5189 = vmul.f32 %v4355, %v5050
    %v5190 = vmul.f32 %v4355, %v5051
    %v5191 = vmul.f32 %v4355, %v5052
    %v5192 = vmul.f32 %v4355, %v5053
    %v5193 = vmul.f32 %v4355, %v5054
    %v5194 = vmul.f32 %v4355, %v5055
    %v5195 = vmul.f32 %v4355, %v5056
    %v5196 = vmul.f32 %v4355, %v5057
    %v5197 = vmul.f32 %v4355, %v5058
    %v5198 = vadd.f32 %v4954, %v5189
    %v5199 = vadd.f32 %v4955, %v5190
    %v5200 = vadd.f32 %v4956, %v5191
    %v5201 = vadd.f32 %v4957, %v5192
    %v5202 = vadd.f32 %v4958, %v5193
    %v5203 = vadd.f32 %v4959, %v5194
    %v5204 = vadd.f32 %v4960, %v5195
    %v5205 = vadd.f32 %v4961, %v5196
    %v5206 = vadd.f32 %v4962, %v5197
    %v5207 = vld [vmem:[%s4963 + $0x1] sm:$0xff]
    %v5208 = vld [vmem:[%s4963 + $0x11] sm:$0xff]
    %v5209 = vld [vmem:[%s4963 + $0x21] sm:$0xff]
    %v5210 = vld [vmem:[%s4963 + $0x31] sm:$0xff]
    %v5211 = vld [vmem:[%s4963 + $0x41] sm:$0xff]
    %v5212 = vld [vmem:[%s4963 + $0x51] sm:$0xff]
    %v5213 = vld [vmem:[%s4963 + $0x61] sm:$0xff]
    %v5214 = vld [vmem:[%s4963 + $0x71] sm:$0xff]
    %v5215 = vld [vmem:[%s4963 + $0x81] sm:$0xff]
    %s5216 = sld [smem:[#allocation2 + $0x22]]
    %v5217 = vstv %s5216
    %v5218 = vmul.f32 %v5217, %v5207
    %v5219 = vmul.f32 %v5217, %v5208
    %v5220 = vmul.f32 %v5217, %v5209
    %v5221 = vmul.f32 %v5217, %v5210
    %v5222 = vmul.f32 %v5217, %v5211
    %v5223 = vmul.f32 %v5217, %v5212
    %v5224 = vmul.f32 %v5217, %v5213
    %v5225 = vmul.f32 %v5217, %v5214
    %v5226 = vmul.f32 %v5217, %v5215
    %v5227 = vadd.f32 %v5070, %v5218
    %v5228 = vadd.f32 %v5071, %v5219
    %v5229 = vadd.f32 %v5072, %v5220
    %v5230 = vadd.f32 %v5073, %v5221
    %v5231 = vadd.f32 %v5074, %v5222
    %v5232 = vadd.f32 %v5075, %v5223
    %v5233 = vadd.f32 %v5076, %v5224
    %v5234 = vadd.f32 %v5077, %v5225
    %v5235 = vadd.f32 %v5078, %v5226
    %s5236 = sld [smem:[#allocation2 + $0x46]]
    %v5237 = vstv %s5236
    %v5238 = vmul.f32 %v5237, %v5207
    %v5239 = vmul.f32 %v5237, %v5208
    %v5240 = vmul.f32 %v5237, %v5209
    %v5241 = vmul.f32 %v5237, %v5210
    %v5242 = vmul.f32 %v5237, %v5211
    %v5243 = vmul.f32 %v5237, %v5212
    %v5244 = vmul.f32 %v5237, %v5213
    %v5245 = vmul.f32 %v5237, %v5214
    %v5246 = vmul.f32 %v5237, %v5215
    %v5247 = vadd.f32 %v5090, %v5238
    %v5248 = vadd.f32 %v5091, %v5239
    %v5249 = vadd.f32 %v5092, %v5240
    %v5250 = vadd.f32 %v5093, %v5241
    %v5251 = vadd.f32 %v5094, %v5242
    %v5252 = vadd.f32 %v5095, %v5243
    %v5253 = vadd.f32 %v5096, %v5244
    %v5254 = vadd.f32 %v5097, %v5245
    %v5255 = vadd.f32 %v5098, %v5246
    %v5256 = vmul.f32 %v5060, %v5207
    %v5257 = vmul.f32 %v5060, %v5208
    %v5258 = vmul.f32 %v5060, %v5209
    %v5259 = vmul.f32 %v5060, %v5210
    %v5260 = vmul.f32 %v5060, %v5211
    %v5261 = vmul.f32 %v5060, %v5212
    %v5262 = vmul.f32 %v5060, %v5213
    %v5263 = vmul.f32 %v5060, %v5214
    %v5264 = vmul.f32 %v5060, %v5215
    %v5265 = vadd.f32 %v5108, %v5256
    %v5266 = vadd.f32 %v5109, %v5257
    %v5267 = vadd.f32 %v5110, %v5258
    %v5268 = vadd.f32 %v5111, %v5259
    %v5269 = vadd.f32 %v5112, %v5260
    %v5270 = vadd.f32 %v5113, %v5261
    %v5271 = vadd.f32 %v5114, %v5262
    %v5272 = vadd.f32 %v5115, %v5263
    %v5273 = vadd.f32 %v5116, %v5264
    %v5274 = vmul.f32 %v5080, %v5207
    %v5275 = vmul.f32 %v5080, %v5208
    %v5276 = vmul.f32 %v5080, %v5209
    %v5277 = vmul.f32 %v5080, %v5210
    %v5278 = vmul.f32 %v5080, %v5211
    %v5279 = vmul.f32 %v5080, %v5212
    %v5280 = vmul.f32 %v5080, %v5213
    %v5281 = vmul.f32 %v5080, %v5214
    %v5282 = vmul.f32 %v5080, %v5215
    %v5283 = vadd.f32 %v5126, %v5274
    %v5284 = vadd.f32 %v5127, %v5275
    %v5285 = vadd.f32 %v5128, %v5276
    %v5286 = vadd.f32 %v5129, %v5277
    %v5287 = vadd.f32 %v5130, %v5278
    %v5288 = vadd.f32 %v5131, %v5279
    %v5289 = vadd.f32 %v5132, %v5280
    %v5290 = vadd.f32 %v5133, %v5281
    %v5291 = vadd.f32 %v5134, %v5282
    %v5292 = vmul.f32 %v4578, %v5207
    %v5293 = vmul.f32 %v4578, %v5208
    %v5294 = vmul.f32 %v4578, %v5209
    %v5295 = vmul.f32 %v4578, %v5210
    %v5296 = vmul.f32 %v4578, %v5211
    %v5297 = vmul.f32 %v4578, %v5212
    %v5298 = vmul.f32 %v4578, %v5213
    %v5299 = vmul.f32 %v4578, %v5214
    %v5300 = vmul.f32 %v4578, %v5215
    %v5301 = vadd.f32 %v5144, %v5292
    %v5302 = vadd.f32 %v5145, %v5293
    %v5303 = vadd.f32 %v5146, %v5294
    %v5304 = vadd.f32 %v5147, %v5295
    %v5305 = vadd.f32 %v5148, %v5296
    %v5306 = vadd.f32 %v5149, %v5297
    %v5307 = vadd.f32 %v5150, %v5298
    %v5308 = vadd.f32 %v5151, %v5299
    %v5309 = vadd.f32 %v5152, %v5300
    %v5310 = vmul.f32 %v4598, %v5207
    %v5311 = vmul.f32 %v4598, %v5208
    %v5312 = vmul.f32 %v4598, %v5209
    %v5313 = vmul.f32 %v4598, %v5210
    %v5314 = vmul.f32 %v4598, %v5211
    %v5315 = vmul.f32 %v4598, %v5212
    %v5316 = vmul.f32 %v4598, %v5213
    %v5317 = vmul.f32 %v4598, %v5214
    %v5318 = vmul.f32 %v4598, %v5215
    %v5319 = vadd.f32 %v5162, %v5310
    %v5320 = vadd.f32 %v5163, %v5311
    %v5321 = vadd.f32 %v5164, %v5312
    %v5322 = vadd.f32 %v5165, %v5313
    %v5323 = vadd.f32 %v5166, %v5314
    %v5324 = vadd.f32 %v5167, %v5315
    %v5325 = vadd.f32 %v5168, %v5316
    %v5326 = vadd.f32 %v5169, %v5317
    %v5327 = vadd.f32 %v5170, %v5318
    %v5328 = vmul.f32 %v4421, %v5207
    %v5329 = vmul.f32 %v4421, %v5208
    %v5330 = vmul.f32 %v4421, %v5209
    %v5331 = vmul.f32 %v4421, %v5210
    %v5332 = vmul.f32 %v4421, %v5211
    %v5333 = vmul.f32 %v4421, %v5212
    %v5334 = vmul.f32 %v4421, %v5213
    %v5335 = vmul.f32 %v4421, %v5214
    %v5336 = vmul.f32 %v4421, %v5215
    %v5337 = vadd.f32 %v5180, %v5328
    %v5338 = vadd.f32 %v5181, %v5329
    %v5339 = vadd.f32 %v5182, %v5330
    %v5340 = vadd.f32 %v5183, %v5331
    %v5341 = vadd.f32 %v5184, %v5332
    %v5342 = vadd.f32 %v5185, %v5333
    %v5343 = vadd.f32 %v5186, %v5334
    %v5344 = vadd.f32 %v5187, %v5335
    %v5345 = vadd.f32 %v5188, %v5336
    %v5346 = vmul.f32 %v4441, %v5207
    %v5347 = vmul.f32 %v4441, %v5208
    %v5348 = vmul.f32 %v4441, %v5209
    %v5349 = vmul.f32 %v4441, %v5210
    %v5350 = vmul.f32 %v4441, %v5211
    %v5351 = vmul.f32 %v4441, %v5212
    %v5352 = vmul.f32 %v4441, %v5213
    %v5353 = vmul.f32 %v4441, %v5214
    %v5354 = vmul.f32 %v4441, %v5215
    %v5355 = vadd.f32 %v5198, %v5346
    %v5356 = vadd.f32 %v5199, %v5347
    %v5357 = vadd.f32 %v5200, %v5348
    %v5358 = vadd.f32 %v5201, %v5349
    %v5359 = vadd.f32 %v5202, %v5350
    %v5360 = vadd.f32 %v5203, %v5351
    %v5361 = vadd.f32 %v5204, %v5352
    %v5362 = vadd.f32 %v5205, %v5353
    %v5363 = vadd.f32 %v5206, %v5354
    %v5364 = vld [vmem:[%s5049 + $0x1] sm:$0xff]
    %v5365 = vld [vmem:[%s5049 + $0x11] sm:$0xff]
    %v5366 = vld [vmem:[%s5049 + $0x21] sm:$0xff]
    %v5367 = vld [vmem:[%s5049 + $0x31] sm:$0xff]
    %v5368 = vld [vmem:[%s5049 + $0x41] sm:$0xff]
    %v5369 = vld [vmem:[%s5049 + $0x51] sm:$0xff]
    %v5370 = vld [vmem:[%s5049 + $0x61] sm:$0xff]
    %v5371 = vld [vmem:[%s5049 + $0x71] sm:$0xff]
    %v5372 = vld [vmem:[%s5049 + $0x81] sm:$0xff]
    %s5373 = sld [smem:[#allocation2 + $0x23]]
    %v5374 = vstv %s5373
    %v5375 = vmul.f32 %v5374, %v5364
    %v5376 = vmul.f32 %v5374, %v5365
    %v5377 = vmul.f32 %v5374, %v5366
    %v5378 = vmul.f32 %v5374, %v5367
    %v5379 = vmul.f32 %v5374, %v5368
    %v5380 = vmul.f32 %v5374, %v5369
    %v5381 = vmul.f32 %v5374, %v5370
    %v5382 = vmul.f32 %v5374, %v5371
    %v5383 = vmul.f32 %v5374, %v5372
    %v5384 = vadd.f32 %v5227, %v5375
    %v5385 = vadd.f32 %v5228, %v5376
    %v5386 = vadd.f32 %v5229, %v5377
    %v5387 = vadd.f32 %v5230, %v5378
    %v5388 = vadd.f32 %v5231, %v5379
    %v5389 = vadd.f32 %v5232, %v5380
    %v5390 = vadd.f32 %v5233, %v5381
    %v5391 = vadd.f32 %v5234, %v5382
    %v5392 = vadd.f32 %v5235, %v5383
    %s5393 = sld [smem:[#allocation2 + $0x47]]
    %v5394 = vstv %s5393
    %v5395 = vmul.f32 %v5394, %v5364
    %v5396 = vmul.f32 %v5394, %v5365
    %v5397 = vmul.f32 %v5394, %v5366
    %v5398 = vmul.f32 %v5394, %v5367
    %v5399 = vmul.f32 %v5394, %v5368
    %v5400 = vmul.f32 %v5394, %v5369
    %v5401 = vmul.f32 %v5394, %v5370
    %v5402 = vmul.f32 %v5394, %v5371
    %v5403 = vmul.f32 %v5394, %v5372
    %v5404 = vadd.f32 %v5247, %v5395
    %v5405 = vadd.f32 %v5248, %v5396
    %v5406 = vadd.f32 %v5249, %v5397
    %v5407 = vadd.f32 %v5250, %v5398
    %v5408 = vadd.f32 %v5251, %v5399
    %v5409 = vadd.f32 %v5252, %v5400
    %v5410 = vadd.f32 %v5253, %v5401
    %v5411 = vadd.f32 %v5254, %v5402
    %v5412 = vadd.f32 %v5255, %v5403
    %v5413 = vmul.f32 %v5217, %v5364
    %v5414 = vmul.f32 %v5217, %v5365
    %v5415 = vmul.f32 %v5217, %v5366
    %v5416 = vmul.f32 %v5217, %v5367
    %v5417 = vmul.f32 %v5217, %v5368
    %v5418 = vmul.f32 %v5217, %v5369
    %v5419 = vmul.f32 %v5217, %v5370
    %v5420 = vmul.f32 %v5217, %v5371
    %v5421 = vmul.f32 %v5217, %v5372
    %v5422 = vadd.f32 %v5265, %v5413
    %v5423 = vadd.f32 %v5266, %v5414
    %v5424 = vadd.f32 %v5267, %v5415
    %v5425 = vadd.f32 %v5268, %v5416
    %v5426 = vadd.f32 %v5269, %v5417
    %v5427 = vadd.f32 %v5270, %v5418
    %v5428 = vadd.f32 %v5271, %v5419
    %v5429 = vadd.f32 %v5272, %v5420
    %v5430 = vadd.f32 %v5273, %v5421
    %v5431 = vmul.f32 %v5237, %v5364
    %v5432 = vmul.f32 %v5237, %v5365
    %v5433 = vmul.f32 %v5237, %v5366
    %v5434 = vmul.f32 %v5237, %v5367
    %v5435 = vmul.f32 %v5237, %v5368
    %v5436 = vmul.f32 %v5237, %v5369
    %v5437 = vmul.f32 %v5237, %v5370
    %v5438 = vmul.f32 %v5237, %v5371
    %v5439 = vmul.f32 %v5237, %v5372
    %v5440 = vadd.f32 %v5283, %v5431
    %v5441 = vadd.f32 %v5284, %v5432
    %v5442 = vadd.f32 %v5285, %v5433
    %v5443 = vadd.f32 %v5286, %v5434
    %v5444 = vadd.f32 %v5287, %v5435
    %v5445 = vadd.f32 %v5288, %v5436
    %v5446 = vadd.f32 %v5289, %v5437
    %v5447 = vadd.f32 %v5290, %v5438
    %v5448 = vadd.f32 %v5291, %v5439
    %v5449 = vmul.f32 %v4735, %v5364
    %v5450 = vmul.f32 %v4735, %v5365
    %v5451 = vmul.f32 %v4735, %v5366
    %v5452 = vmul.f32 %v4735, %v5367
    %v5453 = vmul.f32 %v4735, %v5368
    %v5454 = vmul.f32 %v4735, %v5369
    %v5455 = vmul.f32 %v4735, %v5370
    %v5456 = vmul.f32 %v4735, %v5371
    %v5457 = vmul.f32 %v4735, %v5372
    %v5458 = vadd.f32 %v5301, %v5449
    %v5459 = vadd.f32 %v5302, %v5450
    %v5460 = vadd.f32 %v5303, %v5451
    %v5461 = vadd.f32 %v5304, %v5452
    %v5462 = vadd.f32 %v5305, %v5453
    %v5463 = vadd.f32 %v5306, %v5454
    %v5464 = vadd.f32 %v5307, %v5455
    %v5465 = vadd.f32 %v5308, %v5456
    %v5466 = vadd.f32 %v5309, %v5457
    %v5467 = vmul.f32 %v4755, %v5364
    %v5468 = vmul.f32 %v4755, %v5365
    %v5469 = vmul.f32 %v4755, %v5366
    %v5470 = vmul.f32 %v4755, %v5367
    %v5471 = vmul.f32 %v4755, %v5368
    %v5472 = vmul.f32 %v4755, %v5369
    %v5473 = vmul.f32 %v4755, %v5370
    %v5474 = vmul.f32 %v4755, %v5371
    %v5475 = vmul.f32 %v4755, %v5372
    %v5476 = vadd.f32 %v5319, %v5467
    %v5477 = vadd.f32 %v5320, %v5468
    %v5478 = vadd.f32 %v5321, %v5469
    %v5479 = vadd.f32 %v5322, %v5470
    %v5480 = vadd.f32 %v5323, %v5471
    %v5481 = vadd.f32 %v5324, %v5472
    %v5482 = vadd.f32 %v5325, %v5473
    %v5483 = vadd.f32 %v5326, %v5474
    %v5484 = vadd.f32 %v5327, %v5475
    %v5485 = vmul.f32 %v4578, %v5364
    %v5486 = vmul.f32 %v4578, %v5365
    %v5487 = vmul.f32 %v4578, %v5366
    %v5488 = vmul.f32 %v4578, %v5367
    %v5489 = vmul.f32 %v4578, %v5368
    %v5490 = vmul.f32 %v4578, %v5369
    %v5491 = vmul.f32 %v4578, %v5370
    %v5492 = vmul.f32 %v4578, %v5371
    %v5493 = vmul.f32 %v4578, %v5372
    %v5494 = vadd.f32 %v5337, %v5485
    %v5495 = vadd.f32 %v5338, %v5486
    %v5496 = vadd.f32 %v5339, %v5487
    %v5497 = vadd.f32 %v5340, %v5488
    %v5498 = vadd.f32 %v5341, %v5489
    %v5499 = vadd.f32 %v5342, %v5490
    %v5500 = vadd.f32 %v5343, %v5491
    %v5501 = vadd.f32 %v5344, %v5492
    %v5502 = vadd.f32 %v5345, %v5493
    %v5503 = vmul.f32 %v4598, %v5364
    %v5504 = vmul.f32 %v4598, %v5365
    %v5505 = vmul.f32 %v4598, %v5366
    %v5506 = vmul.f32 %v4598, %v5367
    %v5507 = vmul.f32 %v4598, %v5368
    %v5508 = vmul.f32 %v4598, %v5369
    %v5509 = vmul.f32 %v4598, %v5370
    %v5510 = vmul.f32 %v4598, %v5371
    %v5511 = vmul.f32 %v4598, %v5372
    %v5512 = vadd.f32 %v5355, %v5503
    %v5513 = vadd.f32 %v5356, %v5504
    %v5514 = vadd.f32 %v5357, %v5505
    %v5515 = vadd.f32 %v5358, %v5506
    %v5516 = vadd.f32 %v5359, %v5507
    %v5517 = vadd.f32 %v5360, %v5508
    %v5518 = vadd.f32 %v5361, %v5509
    %v5519 = vadd.f32 %v5362, %v5510
    %v5520 = vadd.f32 %v5363, %v5511
    %v5521 = vld [vmem:[%s4963 + $0x2] sm:$0xff]
    %v5522 = vld [vmem:[%s4963 + $0x12] sm:$0xff]
    %v5523 = vld [vmem:[%s4963 + $0x22] sm:$0xff]
    %v5524 = vld [vmem:[%s4963 + $0x32] sm:$0xff]
    %v5525 = vld [vmem:[%s4963 + $0x42] sm:$0xff]
    %v5526 = vld [vmem:[%s4963 + $0x52] sm:$0xff]
    %v5527 = vld [vmem:[%s4963 + $0x62] sm:$0xff]
    %v5528 = vld [vmem:[%s4963 + $0x72] sm:$0xff]
    %v5529 = vld [vmem:[%s4963 + $0x82] sm:$0xff]
    %v5530 = vmul.f32 %v5374, %v5521
    %v5531 = vmul.f32 %v5374, %v5522
    %v5532 = vmul.f32 %v5374, %v5523
    %v5533 = vmul.f32 %v5374, %v5524
    %v5534 = vmul.f32 %v5374, %v5525
    %v5535 = vmul.f32 %v5374, %v5526
    %v5536 = vmul.f32 %v5374, %v5527
    %v5537 = vmul.f32 %v5374, %v5528
    %v5538 = vmul.f32 %v5374, %v5529
    %v5539 = vadd.f32 %v5422, %v5530
    %v5540 = vadd.f32 %v5423, %v5531
    %v5541 = vadd.f32 %v5424, %v5532
    %v5542 = vadd.f32 %v5425, %v5533
    %v5543 = vadd.f32 %v5426, %v5534
    %v5544 = vadd.f32 %v5427, %v5535
    %v5545 = vadd.f32 %v5428, %v5536
    %v5546 = vadd.f32 %v5429, %v5537
    %v5547 = vadd.f32 %v5430, %v5538
    %v5548 = vmul.f32 %v5394, %v5521
    %v5549 = vmul.f32 %v5394, %v5522
    %v5550 = vmul.f32 %v5394, %v5523
    %v5551 = vmul.f32 %v5394, %v5524
    %v5552 = vmul.f32 %v5394, %v5525
    %v5553 = vmul.f32 %v5394, %v5526
    %v5554 = vmul.f32 %v5394, %v5527
    %v5555 = vmul.f32 %v5394, %v5528
    %v5556 = vmul.f32 %v5394, %v5529
    %v5557 = vadd.f32 %v5440, %v5548
    %v5558 = vadd.f32 %v5441, %v5549
    %v5559 = vadd.f32 %v5442, %v5550
    %v5560 = vadd.f32 %v5443, %v5551
    %v5561 = vadd.f32 %v5444, %v5552
    %v5562 = vadd.f32 %v5445, %v5553
    %v5563 = vadd.f32 %v5446, %v5554
    %v5564 = vadd.f32 %v5447, %v5555
    %v5565 = vadd.f32 %v5448, %v5556
    %v5566 = vmul.f32 %v4735, %v5521
    %v5567 = vmul.f32 %v4735, %v5522
    %v5568 = vmul.f32 %v4735, %v5523
    %v5569 = vmul.f32 %v4735, %v5524
    %v5570 = vmul.f32 %v4735, %v5525
    %v5571 = vmul.f32 %v4735, %v5526
    %v5572 = vmul.f32 %v4735, %v5527
    %v5573 = vmul.f32 %v4735, %v5528
    %v5574 = vmul.f32 %v4735, %v5529
    %v5575 = vadd.f32 %v5494, %v5566
    %v5576 = vadd.f32 %v5495, %v5567
    %v5577 = vadd.f32 %v5496, %v5568
    %v5578 = vadd.f32 %v5497, %v5569
    %v5579 = vadd.f32 %v5498, %v5570
    %v5580 = vadd.f32 %v5499, %v5571
    %v5581 = vadd.f32 %v5500, %v5572
    %v5582 = vadd.f32 %v5501, %v5573
    %v5583 = vadd.f32 %v5502, %v5574
    %v5584 = vmul.f32 %v4755, %v5521
    %v5585 = vmul.f32 %v4755, %v5522
    %v5586 = vmul.f32 %v4755, %v5523
    %v5587 = vmul.f32 %v4755, %v5524
    %v5588 = vmul.f32 %v4755, %v5525
    %v5589 = vmul.f32 %v4755, %v5526
    %v5590 = vmul.f32 %v4755, %v5527
    %v5591 = vmul.f32 %v4755, %v5528
    %v5592 = vmul.f32 %v4755, %v5529
    %v5593 = vadd.f32 %v5512, %v5584
    %v5594 = vadd.f32 %v5513, %v5585
    %v5595 = vadd.f32 %v5514, %v5586
    %v5596 = vadd.f32 %v5515, %v5587
    %v5597 = vadd.f32 %v5516, %v5588
    %v5598 = vadd.f32 %v5517, %v5589
    %v5599 = vadd.f32 %v5518, %v5590
    %v5600 = vadd.f32 %v5519, %v5591
    %v5601 = vadd.f32 %v5520, %v5592
    %s5602 = scalar_lea.vmem %s0, 1616
    %v5603 = vld [vmem:[%s5602] sm:$0xff]
    %v5604 = vld [vmem:[%s5602 + $0x10] sm:$0xff]
    %v5605 = vld [vmem:[%s5602 + $0x20] sm:$0xff]
    %v5606 = vld [vmem:[%s5602 + $0x30] sm:$0xff]
    %v5607 = vld [vmem:[%s5602 + $0x40] sm:$0xff]
    %v5608 = vld [vmem:[%s5602 + $0x50] sm:$0xff]
    %v5609 = vld [vmem:[%s5602 + $0x60] sm:$0xff]
    %v5610 = vld [vmem:[%s5602 + $0x70] sm:$0xff]
    %v5611 = vld [vmem:[%s5602 + $0x80] sm:$0xff]
    %v5612 = vmul.f32 %v4974, %v5603
    %v5613 = vmul.f32 %v4974, %v5604
    %v5614 = vmul.f32 %v4974, %v5605
    %v5615 = vmul.f32 %v4974, %v5606
    %v5616 = vmul.f32 %v4974, %v5607
    %v5617 = vmul.f32 %v4974, %v5608
    %v5618 = vmul.f32 %v4974, %v5609
    %v5619 = vmul.f32 %v4974, %v5610
    %v5620 = vmul.f32 %v4974, %v5611
    %v5621 = vadd.f32 %v5458, %v5612
    %v5622 = vadd.f32 %v5459, %v5613
    %v5623 = vadd.f32 %v5460, %v5614
    %v5624 = vadd.f32 %v5461, %v5615
    %v5625 = vadd.f32 %v5462, %v5616
    %v5626 = vadd.f32 %v5463, %v5617
    %v5627 = vadd.f32 %v5464, %v5618
    %v5628 = vadd.f32 %v5465, %v5619
    %v5629 = vadd.f32 %v5466, %v5620
    %v5630 = vmul.f32 %v4994, %v5603
    %v5631 = vmul.f32 %v4994, %v5604
    %v5632 = vmul.f32 %v4994, %v5605
    %v5633 = vmul.f32 %v4994, %v5606
    %v5634 = vmul.f32 %v4994, %v5607
    %v5635 = vmul.f32 %v4994, %v5608
    %v5636 = vmul.f32 %v4994, %v5609
    %v5637 = vmul.f32 %v4994, %v5610
    %v5638 = vmul.f32 %v4994, %v5611
    %v5639 = vadd.f32 %v5476, %v5630
    %v5640 = vadd.f32 %v5477, %v5631
    %v5641 = vadd.f32 %v5478, %v5632
    %v5642 = vadd.f32 %v5479, %v5633
    %v5643 = vadd.f32 %v5480, %v5634
    %v5644 = vadd.f32 %v5481, %v5635
    %v5645 = vadd.f32 %v5482, %v5636
    %v5646 = vadd.f32 %v5483, %v5637
    %v5647 = vadd.f32 %v5484, %v5638
    %s5648 = scalar_lea.vmem %s0, 1776
    %v5649 = vld [vmem:[%s5648] sm:$0xff]
    %v5650 = vld [vmem:[%s5648 + $0x10] sm:$0xff]
    %v5651 = vld [vmem:[%s5648 + $0x20] sm:$0xff]
    %v5652 = vld [vmem:[%s5648 + $0x30] sm:$0xff]
    %v5653 = vld [vmem:[%s5648 + $0x40] sm:$0xff]
    %v5654 = vld [vmem:[%s5648 + $0x50] sm:$0xff]
    %v5655 = vld [vmem:[%s5648 + $0x60] sm:$0xff]
    %v5656 = vld [vmem:[%s5648 + $0x70] sm:$0xff]
    %v5657 = vld [vmem:[%s5648 + $0x80] sm:$0xff]
    %v5658 = vmul.f32 %v5060, %v5649
    %v5659 = vmul.f32 %v5060, %v5650
    %v5660 = vmul.f32 %v5060, %v5651
    %v5661 = vmul.f32 %v5060, %v5652
    %v5662 = vmul.f32 %v5060, %v5653
    %v5663 = vmul.f32 %v5060, %v5654
    %v5664 = vmul.f32 %v5060, %v5655
    %v5665 = vmul.f32 %v5060, %v5656
    %v5666 = vmul.f32 %v5060, %v5657
    %v5667 = vadd.f32 %v5621, %v5658
    %v5668 = vadd.f32 %v5622, %v5659
    %v5669 = vadd.f32 %v5623, %v5660
    %v5670 = vadd.f32 %v5624, %v5661
    %v5671 = vadd.f32 %v5625, %v5662
    %v5672 = vadd.f32 %v5626, %v5663
    %v5673 = vadd.f32 %v5627, %v5664
    %v5674 = vadd.f32 %v5628, %v5665
    %v5675 = vadd.f32 %v5629, %v5666
    %v5676 = vmul.f32 %v5080, %v5649
    %v5677 = vmul.f32 %v5080, %v5650
    %v5678 = vmul.f32 %v5080, %v5651
    %v5679 = vmul.f32 %v5080, %v5652
    %v5680 = vmul.f32 %v5080, %v5653
    %v5681 = vmul.f32 %v5080, %v5654
    %v5682 = vmul.f32 %v5080, %v5655
    %v5683 = vmul.f32 %v5080, %v5656
    %v5684 = vmul.f32 %v5080, %v5657
    %v5685 = vadd.f32 %v5639, %v5676
    %v5686 = vadd.f32 %v5640, %v5677
    %v5687 = vadd.f32 %v5641, %v5678
    %v5688 = vadd.f32 %v5642, %v5679
    %v5689 = vadd.f32 %v5643, %v5680
    %v5690 = vadd.f32 %v5644, %v5681
    %v5691 = vadd.f32 %v5645, %v5682
    %v5692 = vadd.f32 %v5646, %v5683
    %v5693 = vadd.f32 %v5647, %v5684
    %v5694 = vmul.f32 %v4974, %v5649
    %v5695 = vmul.f32 %v4974, %v5650
    %v5696 = vmul.f32 %v4974, %v5651
    %v5697 = vmul.f32 %v4974, %v5652
    %v5698 = vmul.f32 %v4974, %v5653
    %v5699 = vmul.f32 %v4974, %v5654
    %v5700 = vmul.f32 %v4974, %v5655
    %v5701 = vmul.f32 %v4974, %v5656
    %v5702 = vmul.f32 %v4974, %v5657
    %v5703 = vadd.f32 %v5575, %v5694
    %v5704 = vadd.f32 %v5576, %v5695
    %v5705 = vadd.f32 %v5577, %v5696
    %v5706 = vadd.f32 %v5578, %v5697
    %v5707 = vadd.f32 %v5579, %v5698
    %v5708 = vadd.f32 %v5580, %v5699
    %v5709 = vadd.f32 %v5581, %v5700
    %v5710 = vadd.f32 %v5582, %v5701
    %v5711 = vadd.f32 %v5583, %v5702
    %v5712 = vmul.f32 %v4994, %v5649
    %v5713 = vmul.f32 %v4994, %v5650
    %v5714 = vmul.f32 %v4994, %v5651
    %v5715 = vmul.f32 %v4994, %v5652
    %v5716 = vmul.f32 %v4994, %v5653
    %v5717 = vmul.f32 %v4994, %v5654
    %v5718 = vmul.f32 %v4994, %v5655
    %v5719 = vmul.f32 %v4994, %v5656
    %v5720 = vmul.f32 %v4994, %v5657
    %v5721 = vadd.f32 %v5593, %v5712
    %v5722 = vadd.f32 %v5594, %v5713
    %v5723 = vadd.f32 %v5595, %v5714
    %v5724 = vadd.f32 %v5596, %v5715
    %v5725 = vadd.f32 %v5597, %v5716
    %v5726 = vadd.f32 %v5598, %v5717
    %v5727 = vadd.f32 %v5599, %v5718
    %v5728 = vadd.f32 %v5600, %v5719
    %v5729 = vadd.f32 %v5601, %v5720
    %v5730 = vld [vmem:[%s5602 + $0x1] sm:$0xff]
    %v5731 = vld [vmem:[%s5602 + $0x11] sm:$0xff]
    %v5732 = vld [vmem:[%s5602 + $0x21] sm:$0xff]
    %v5733 = vld [vmem:[%s5602 + $0x31] sm:$0xff]
    %v5734 = vld [vmem:[%s5602 + $0x41] sm:$0xff]
    %v5735 = vld [vmem:[%s5602 + $0x51] sm:$0xff]
    %v5736 = vld [vmem:[%s5602 + $0x61] sm:$0xff]
    %v5737 = vld [vmem:[%s5602 + $0x71] sm:$0xff]
    %v5738 = vld [vmem:[%s5602 + $0x81] sm:$0xff]
    %v5739 = vmul.f32 %v5217, %v5730
    %v5740 = vmul.f32 %v5217, %v5731
    %v5741 = vmul.f32 %v5217, %v5732
    %v5742 = vmul.f32 %v5217, %v5733
    %v5743 = vmul.f32 %v5217, %v5734
    %v5744 = vmul.f32 %v5217, %v5735
    %v5745 = vmul.f32 %v5217, %v5736
    %v5746 = vmul.f32 %v5217, %v5737
    %v5747 = vmul.f32 %v5217, %v5738
    %v5748 = vadd.f32 %v5667, %v5739
    %v5749 = vadd.f32 %v5668, %v5740
    %v5750 = vadd.f32 %v5669, %v5741
    %v5751 = vadd.f32 %v5670, %v5742
    %v5752 = vadd.f32 %v5671, %v5743
    %v5753 = vadd.f32 %v5672, %v5744
    %v5754 = vadd.f32 %v5673, %v5745
    %v5755 = vadd.f32 %v5674, %v5746
    %v5756 = vadd.f32 %v5675, %v5747
    %v5757 = vmul.f32 %v5237, %v5730
    %v5758 = vmul.f32 %v5237, %v5731
    %v5759 = vmul.f32 %v5237, %v5732
    %v5760 = vmul.f32 %v5237, %v5733
    %v5761 = vmul.f32 %v5237, %v5734
    %v5762 = vmul.f32 %v5237, %v5735
    %v5763 = vmul.f32 %v5237, %v5736
    %v5764 = vmul.f32 %v5237, %v5737
    %v5765 = vmul.f32 %v5237, %v5738
    %v5766 = vadd.f32 %v5685, %v5757
    %v5767 = vadd.f32 %v5686, %v5758
    %v5768 = vadd.f32 %v5687, %v5759
    %v5769 = vadd.f32 %v5688, %v5760
    %v5770 = vadd.f32 %v5689, %v5761
    %v5771 = vadd.f32 %v5690, %v5762
    %v5772 = vadd.f32 %v5691, %v5763
    %v5773 = vadd.f32 %v5692, %v5764
    %v5774 = vadd.f32 %v5693, %v5765
    %v5775 = vmul.f32 %v5060, %v5730
    %v5776 = vmul.f32 %v5060, %v5731
    %v5777 = vmul.f32 %v5060, %v5732
    %v5778 = vmul.f32 %v5060, %v5733
    %v5779 = vmul.f32 %v5060, %v5734
    %v5780 = vmul.f32 %v5060, %v5735
    %v5781 = vmul.f32 %v5060, %v5736
    %v5782 = vmul.f32 %v5060, %v5737
    %v5783 = vmul.f32 %v5060, %v5738
    %v5784 = vadd.f32 %v5703, %v5775
    %v5785 = vadd.f32 %v5704, %v5776
    %v5786 = vadd.f32 %v5705, %v5777
    %v5787 = vadd.f32 %v5706, %v5778
    %v5788 = vadd.f32 %v5707, %v5779
    %v5789 = vadd.f32 %v5708, %v5780
    %v5790 = vadd.f32 %v5709, %v5781
    %v5791 = vadd.f32 %v5710, %v5782
    %v5792 = vadd.f32 %v5711, %v5783
    %v5793 = vmul.f32 %v5080, %v5730
    %v5794 = vmul.f32 %v5080, %v5731
    %v5795 = vmul.f32 %v5080, %v5732
    %v5796 = vmul.f32 %v5080, %v5733
    %v5797 = vmul.f32 %v5080, %v5734
    %v5798 = vmul.f32 %v5080, %v5735
    %v5799 = vmul.f32 %v5080, %v5736
    %v5800 = vmul.f32 %v5080, %v5737
    %v5801 = vmul.f32 %v5080, %v5738
    %v5802 = vadd.f32 %v5721, %v5793
    %v5803 = vadd.f32 %v5722, %v5794
    %v5804 = vadd.f32 %v5723, %v5795
    %v5805 = vadd.f32 %v5724, %v5796
    %v5806 = vadd.f32 %v5725, %v5797
    %v5807 = vadd.f32 %v5726, %v5798
    %v5808 = vadd.f32 %v5727, %v5799
    %v5809 = vadd.f32 %v5728, %v5800
    %v5810 = vadd.f32 %v5729, %v5801
    %v5811 = vld [vmem:[%s5648 + $0x1] sm:$0xff]
    %v5812 = vld [vmem:[%s5648 + $0x11] sm:$0xff]
    %v5813 = vld [vmem:[%s5648 + $0x21] sm:$0xff]
    %v5814 = vld [vmem:[%s5648 + $0x31] sm:$0xff]
    %v5815 = vld [vmem:[%s5648 + $0x41] sm:$0xff]
    %v5816 = vld [vmem:[%s5648 + $0x51] sm:$0xff]
    %v5817 = vld [vmem:[%s5648 + $0x61] sm:$0xff]
    %v5818 = vld [vmem:[%s5648 + $0x71] sm:$0xff]
    %v5819 = vld [vmem:[%s5648 + $0x81] sm:$0xff]
    %v5820 = vmul.f32 %v5374, %v5811
    %v5821 = vmul.f32 %v5374, %v5812
    %v5822 = vmul.f32 %v5374, %v5813
    %v5823 = vmul.f32 %v5374, %v5814
    %v5824 = vmul.f32 %v5374, %v5815
    %v5825 = vmul.f32 %v5374, %v5816
    %v5826 = vmul.f32 %v5374, %v5817
    %v5827 = vmul.f32 %v5374, %v5818
    %v5828 = vmul.f32 %v5374, %v5819
    %v5829 = vadd.f32 %v5748, %v5820
    %v5830 = vadd.f32 %v5749, %v5821
    %v5831 = vadd.f32 %v5750, %v5822
    %v5832 = vadd.f32 %v5751, %v5823
    %v5833 = vadd.f32 %v5752, %v5824
    %v5834 = vadd.f32 %v5753, %v5825
    %v5835 = vadd.f32 %v5754, %v5826
    %v5836 = vadd.f32 %v5755, %v5827
    %v5837 = vadd.f32 %v5756, %v5828
    %v5838 = vmul.f32 %v5394, %v5811
    %v5839 = vmul.f32 %v5394, %v5812
    %v5840 = vmul.f32 %v5394, %v5813
    %v5841 = vmul.f32 %v5394, %v5814
    %v5842 = vmul.f32 %v5394, %v5815
    %v5843 = vmul.f32 %v5394, %v5816
    %v5844 = vmul.f32 %v5394, %v5817
    %v5845 = vmul.f32 %v5394, %v5818
    %v5846 = vmul.f32 %v5394, %v5819
    %v5847 = vadd.f32 %v5766, %v5838
    %v5848 = vadd.f32 %v5767, %v5839
    %v5849 = vadd.f32 %v5768, %v5840
    %v5850 = vadd.f32 %v5769, %v5841
    %v5851 = vadd.f32 %v5770, %v5842
    %v5852 = vadd.f32 %v5771, %v5843
    %v5853 = vadd.f32 %v5772, %v5844
    %v5854 = vadd.f32 %v5773, %v5845
    %v5855 = vadd.f32 %v5774, %v5846
    %v5856 = vmul.f32 %v5217, %v5811
    %v5857 = vmul.f32 %v5217, %v5812
    %v5858 = vmul.f32 %v5217, %v5813
    %v5859 = vmul.f32 %v5217, %v5814
    %v5860 = vmul.f32 %v5217, %v5815
    %v5861 = vmul.f32 %v5217, %v5816
    %v5862 = vmul.f32 %v5217, %v5817
    %v5863 = vmul.f32 %v5217, %v5818
    %v5864 = vmul.f32 %v5217, %v5819
    %v5865 = vadd.f32 %v5784, %v5856
    %v5866 = vadd.f32 %v5785, %v5857
    %v5867 = vadd.f32 %v5786, %v5858
    %v5868 = vadd.f32 %v5787, %v5859
    %v5869 = vadd.f32 %v5788, %v5860
    %v5870 = vadd.f32 %v5789, %v5861
    %v5871 = vadd.f32 %v5790, %v5862
    %v5872 = vadd.f32 %v5791, %v5863
    %v5873 = vadd.f32 %v5792, %v5864
    %v5874 = vmul.f32 %v5237, %v5811
    %v5875 = vmul.f32 %v5237, %v5812
    %v5876 = vmul.f32 %v5237, %v5813
    %v5877 = vmul.f32 %v5237, %v5814
    %v5878 = vmul.f32 %v5237, %v5815
    %v5879 = vmul.f32 %v5237, %v5816
    %v5880 = vmul.f32 %v5237, %v5817
    %v5881 = vmul.f32 %v5237, %v5818
    %v5882 = vmul.f32 %v5237, %v5819
    %v5883 = vadd.f32 %v5802, %v5874
    %v5884 = vadd.f32 %v5803, %v5875
    %v5885 = vadd.f32 %v5804, %v5876
    %v5886 = vadd.f32 %v5805, %v5877
    %v5887 = vadd.f32 %v5806, %v5878
    %v5888 = vadd.f32 %v5807, %v5879
    %v5889 = vadd.f32 %v5808, %v5880
    %v5890 = vadd.f32 %v5809, %v5881
    %v5891 = vadd.f32 %v5810, %v5882
    %v5892 = vld [vmem:[%s5602 + $0x2] sm:$0xff]
    %v5893 = vld [vmem:[%s5602 + $0x12] sm:$0xff]
    %v5894 = vld [vmem:[%s5602 + $0x22] sm:$0xff]
    %v5895 = vld [vmem:[%s5602 + $0x32] sm:$0xff]
    %v5896 = vld [vmem:[%s5602 + $0x42] sm:$0xff]
    %v5897 = vld [vmem:[%s5602 + $0x52] sm:$0xff]
    %v5898 = vld [vmem:[%s5602 + $0x62] sm:$0xff]
    %v5899 = vld [vmem:[%s5602 + $0x72] sm:$0xff]
    %v5900 = vld [vmem:[%s5602 + $0x82] sm:$0xff]
    %v5901 = vmul.f32 %v5374, %v5892
    %v5902 = vmul.f32 %v5374, %v5893
    %v5903 = vmul.f32 %v5374, %v5894
    %v5904 = vmul.f32 %v5374, %v5895
    %v5905 = vmul.f32 %v5374, %v5896
    %v5906 = vmul.f32 %v5374, %v5897
    %v5907 = vmul.f32 %v5374, %v5898
    %v5908 = vmul.f32 %v5374, %v5899
    %v5909 = vmul.f32 %v5374, %v5900
    %v5910 = vadd.f32 %v5865, %v5901
    %v5911 = vadd.f32 %v5866, %v5902
    %v5912 = vadd.f32 %v5867, %v5903
    %v5913 = vadd.f32 %v5868, %v5904
    %v5914 = vadd.f32 %v5869, %v5905
    %v5915 = vadd.f32 %v5870, %v5906
    %v5916 = vadd.f32 %v5871, %v5907
    %v5917 = vadd.f32 %v5872, %v5908
    %v5918 = vadd.f32 %v5873, %v5909
    %v5919 = vmul.f32 %v5394, %v5892
    %v5920 = vmul.f32 %v5394, %v5893
    %v5921 = vmul.f32 %v5394, %v5894
    %v5922 = vmul.f32 %v5394, %v5895
    %v5923 = vmul.f32 %v5394, %v5896
    %v5924 = vmul.f32 %v5394, %v5897
    %v5925 = vmul.f32 %v5394, %v5898
    %v5926 = vmul.f32 %v5394, %v5899
    %v5927 = vmul.f32 %v5394, %v5900
    %v5928 = vadd.f32 %v5883, %v5919
    %v5929 = vadd.f32 %v5884, %v5920
    %v5930 = vadd.f32 %v5885, %v5921
    %v5931 = vadd.f32 %v5886, %v5922
    %v5932 = vadd.f32 %v5887, %v5923
    %v5933 = vadd.f32 %v5888, %v5924
    %v5934 = vadd.f32 %v5889, %v5925
    %v5935 = vadd.f32 %v5890, %v5926
    %v5936 = vadd.f32 %v5891, %v5927
    %v5937 = vld [vmem:[%s1] sm:$0xff]
    %v5938 = vld [vmem:[%s1 + $0x8] sm:$0xff]
    %v5939 = vld [vmem:[%s1 + $0x10] sm:$0xff]
    %v5940 = vld [vmem:[%s1 + $0x18] sm:$0xff]
    %v5941 = vld [vmem:[%s1 + $0x20] sm:$0xff]
    %v5942 = vld [vmem:[%s1 + $0x28] sm:$0xff]
    %v5943 = vld [vmem:[%s1 + $0x30] sm:$0xff]
    %v5944 = vld [vmem:[%s1 + $0x38] sm:$0xff]
    %v5945 = vld [vmem:[%s1 + $0x40] sm:$0xff]
    %v5946 = vxor.u32 %v5384, 2147483648
    %v5947 = vxor.u32 %v5385, 2147483648
    %v5948 = vxor.u32 %v5386, 2147483648
    %v5949 = vxor.u32 %v5387, 2147483648
    %v5950 = vxor.u32 %v5388, 2147483648
    %v5951 = vxor.u32 %v5389, 2147483648
    %v5952 = vxor.u32 %v5390, 2147483648
    %v5953 = vxor.u32 %v5391, 2147483648
    %v5954 = vxor.u32 %v5392, 2147483648
    %v5955 = vmul.f32 %v5946, 1.442695
    %v5956 = vpow.pop %v5955
    %v5957 = vmul.f32 %v5947, 1.442695
    %v5958 = vpow.pop %v5957
    %v5959 = vmul.f32 %v5948, 1.442695
    %v5960 = vpow.pop %v5959
    %v5961 = vmul.f32 %v5949, 1.442695
    %v5962 = vpow.pop %v5961
    %v5963 = vmul.f32 %v5950, 1.442695
    %v5964 = vpow.pop %v5963
    %v5965 = vmul.f32 %v5951, 1.442695
    %v5966 = vpow.pop %v5965
    %v5967 = vmul.f32 %v5952, 1.442695
    %v5968 = vpow.pop %v5967
    %v5969 = vmul.f32 %v5953, 1.442695
    %v5970 = vpow.pop %v5969
    %v5971 = vmul.f32 %v5954, 1.442695
    %v5972 = vpow.pop %v5971
    %v5973 = vadd.f32 %v5956, 1.0
    %v5974 = vadd.f32 %v5958, 1.0
    %v5975 = vadd.f32 %v5960, 1.0
    %v5976 = vadd.f32 %v5962, 1.0
    %v5977 = vadd.f32 %v5964, 1.0
    %v5978 = vadd.f32 %v5966, 1.0
    %v5979 = vadd.f32 %v5968, 1.0
    %v5980 = vadd.f32 %v5970, 1.0
    %v5981 = vadd.f32 %v5972, 1.0
    %v5982 = vrcp.pop %v5973
    %v5983 = vmul.f32 1.0, %v5982
    %v5984 = vrcp.pop %v5974
    %v5985 = vmul.f32 1.0, %v5984
    %v5986 = vrcp.pop %v5975
    %v5987 = vmul.f32 1.0, %v5986
    %v5988 = vrcp.pop %v5976
    %v5989 = vmul.f32 1.0, %v5988
    %v5990 = vrcp.pop %v5977
    %v5991 = vmul.f32 1.0, %v5990
    %v5992 = vrcp.pop %v5978
    %v5993 = vmul.f32 1.0, %v5992
    %v5994 = vrcp.pop %v5979
    %v5995 = vmul.f32 1.0, %v5994
    %v5996 = vrcp.pop %v5980
    %v5997 = vmul.f32 1.0, %v5996
    %v5998 = vrcp.pop %v5981
    %v5999 = vmul.f32 1.0, %v5998
    %6001 = vset.pattern.permute.xlu0 0
    %6002 = vperm.xlu0 %6001, %v5937
    %v6003 = vpop.permute.xlu0 %6002
    %6006 = vset.pattern.permute.xlu0 0
    %6007 = vperm.xlu0 %6006, %v5938
    %v6008 = vpop.permute.xlu0 %6007
    %6011 = vset.pattern.permute.xlu0 0
    %6012 = vperm.xlu0 %6011, %v5939
    %v6013 = vpop.permute.xlu0 %6012
    %6016 = vset.pattern.permute.xlu0 0
    %6017 = vperm.xlu0 %6016, %v5940
    %v6018 = vpop.permute.xlu0 %6017
    %6021 = vset.pattern.permute.xlu0 0
    %6022 = vperm.xlu0 %6021, %v5941
    %v6023 = vpop.permute.xlu0 %6022
    %6026 = vset.pattern.permute.xlu0 0
    %6027 = vperm.xlu0 %6026, %v5942
    %v6028 = vpop.permute.xlu0 %6027
    %6031 = vset.pattern.permute.xlu0 0
    %6032 = vperm.xlu0 %6031, %v5943
    %v6033 = vpop.permute.xlu0 %6032
    %6036 = vset.pattern.permute.xlu0 0
    %6037 = vperm.xlu0 %6036, %v5944
    %v6038 = vpop.permute.xlu0 %6037
    %6041 = vset.pattern.permute.xlu0 0
    %6042 = vperm.xlu0 %6041, %v5945
    %v6043 = vpop.permute.xlu0 %6042
    %v6045 = vmul.f32 %v5983, %v6003
    %v6046 = vmul.f32 %v5985, %v6008
    %v6047 = vmul.f32 %v5987, %v6013
    %v6048 = vmul.f32 %v5989, %v6018
    %v6049 = vmul.f32 %v5991, %v6023
    %v6050 = vmul.f32 %v5993, %v6028
    %v6051 = vmul.f32 %v5995, %v6033
    %v6052 = vmul.f32 %v5997, %v6038
    %v6053 = vmul.f32 %v5999, %v6043
    %v6054 = vxor.u32 %v5404, 2147483648
    %v6055 = vxor.u32 %v5405, 2147483648
    %v6056 = vxor.u32 %v5406, 2147483648
    %v6057 = vxor.u32 %v5407, 2147483648
    %v6058 = vxor.u32 %v5408, 2147483648
    %v6059 = vxor.u32 %v5409, 2147483648
    %v6060 = vxor.u32 %v5410, 2147483648
    %v6061 = vxor.u32 %v5411, 2147483648
    %v6062 = vxor.u32 %v5412, 2147483648
    %v6063 = vmul.f32 %v6054, 1.442695
    %v6064 = vpow.pop %v6063
    %v6065 = vmul.f32 %v6055, 1.442695
    %v6066 = vpow.pop %v6065
    %v6067 = vmul.f32 %v6056, 1.442695
    %v6068 = vpow.pop %v6067
    %v6069 = vmul.f32 %v6057, 1.442695
    %v6070 = vpow.pop %v6069
    %v6071 = vmul.f32 %v6058, 1.442695
    %v6072 = vpow.pop %v6071
    %v6073 = vmul.f32 %v6059, 1.442695
    %v6074 = vpow.pop %v6073
    %v6075 = vmul.f32 %v6060, 1.442695
    %v6076 = vpow.pop %v6075
    %v6077 = vmul.f32 %v6061, 1.442695
    %v6078 = vpow.pop %v6077
    %v6079 = vmul.f32 %v6062, 1.442695
    %v6080 = vpow.pop %v6079
    %v6081 = vadd.f32 %v6064, 1.0
    %v6082 = vadd.f32 %v6066, 1.0
    %v6083 = vadd.f32 %v6068, 1.0
    %v6084 = vadd.f32 %v6070, 1.0
    %v6085 = vadd.f32 %v6072, 1.0
    %v6086 = vadd.f32 %v6074, 1.0
    %v6087 = vadd.f32 %v6076, 1.0
    %v6088 = vadd.f32 %v6078, 1.0
    %v6089 = vadd.f32 %v6080, 1.0
    %v6090 = vrcp.pop %v6081
    %v6091 = vmul.f32 1.0, %v6090
    %v6092 = vrcp.pop %v6082
    %v6093 = vmul.f32 1.0, %v6092
    %v6094 = vrcp.pop %v6083
    %v6095 = vmul.f32 1.0, %v6094
    %v6096 = vrcp.pop %v6084
    %v6097 = vmul.f32 1.0, %v6096
    %v6098 = vrcp.pop %v6085
    %v6099 = vmul.f32 1.0, %v6098
    %v6100 = vrcp.pop %v6086
    %v6101 = vmul.f32 1.0, %v6100
    %v6102 = vrcp.pop %v6087
    %v6103 = vmul.f32 1.0, %v6102
    %v6104 = vrcp.pop %v6088
    %v6105 = vmul.f32 1.0, %v6104
    %v6106 = vrcp.pop %v6089
    %v6107 = vmul.f32 1.0, %v6106
    %v6108 = vmul.f32 %v6091, %v6003
    %v6109 = vmul.f32 %v6093, %v6008
    %v6110 = vmul.f32 %v6095, %v6013
    %v6111 = vmul.f32 %v6097, %v6018
    %v6112 = vmul.f32 %v6099, %v6023
    %v6113 = vmul.f32 %v6101, %v6028
    %v6114 = vmul.f32 %v6103, %v6033
    %v6115 = vmul.f32 %v6105, %v6038
    %v6116 = vmul.f32 %v6107, %v6043
    %s6117 = scalar_lea.vmem %s1, 72
    %v6118 = vld [vmem:[%s6117] sm:$0xff]
    %v6119 = vld [vmem:[%s6117 + $0x8] sm:$0xff]
    %v6120 = vld [vmem:[%s6117 + $0x10] sm:$0xff]
    %v6121 = vld [vmem:[%s6117 + $0x18] sm:$0xff]
    %v6122 = vld [vmem:[%s6117 + $0x20] sm:$0xff]
    %v6123 = vld [vmem:[%s6117 + $0x28] sm:$0xff]
    %v6124 = vld [vmem:[%s6117 + $0x30] sm:$0xff]
    %v6125 = vld [vmem:[%s6117 + $0x38] sm:$0xff]
    %v6126 = vld [vmem:[%s6117 + $0x40] sm:$0xff]
    %v6127 = vxor.u32 %v5539, 2147483648
    %v6128 = vxor.u32 %v5540, 2147483648
    %v6129 = vxor.u32 %v5541, 2147483648
    %v6130 = vxor.u32 %v5542, 2147483648
    %v6131 = vxor.u32 %v5543, 2147483648
    %v6132 = vxor.u32 %v5544, 2147483648
    %v6133 = vxor.u32 %v5545, 2147483648
    %v6134 = vxor.u32 %v5546, 2147483648
    %v6135 = vxor.u32 %v5547, 2147483648
    %v6136 = vmul.f32 %v6127, 1.442695
    %v6137 = vpow.pop %v6136
    %v6138 = vmul.f32 %v6128, 1.442695
    %v6139 = vpow.pop %v6138
    %v6140 = vmul.f32 %v6129, 1.442695
    %v6141 = vpow.pop %v6140
    %v6142 = vmul.f32 %v6130, 1.442695
    %v6143 = vpow.pop %v6142
    %v6144 = vmul.f32 %v6131, 1.442695
    %v6145 = vpow.pop %v6144
    %v6146 = vmul.f32 %v6132, 1.442695
    %v6147 = vpow.pop %v6146
    %v6148 = vmul.f32 %v6133, 1.442695
    %v6149 = vpow.pop %v6148
    %v6150 = vmul.f32 %v6134, 1.442695
    %v6151 = vpow.pop %v6150
    %v6152 = vmul.f32 %v6135, 1.442695
    %v6153 = vpow.pop %v6152
    %v6154 = vadd.f32 %v6137, 1.0
    %v6155 = vadd.f32 %v6139, 1.0
    %v6156 = vadd.f32 %v6141, 1.0
    %v6157 = vadd.f32 %v6143, 1.0
    %v6158 = vadd.f32 %v6145, 1.0
    %v6159 = vadd.f32 %v6147, 1.0
    %v6160 = vadd.f32 %v6149, 1.0
    %v6161 = vadd.f32 %v6151, 1.0
    %v6162 = vadd.f32 %v6153, 1.0
    %v6163 = vrcp.pop %v6154
    %v6164 = vmul.f32 1.0, %v6163
    %v6165 = vrcp.pop %v6155
    %v6166 = vmul.f32 1.0, %v6165
    %v6167 = vrcp.pop %v6156
    %v6168 = vmul.f32 1.0, %v6167
    %v6169 = vrcp.pop %v6157
    %v6170 = vmul.f32 1.0, %v6169
    %v6171 = vrcp.pop %v6158
    %v6172 = vmul.f32 1.0, %v6171
    %v6173 = vrcp.pop %v6159
    %v6174 = vmul.f32 1.0, %v6173
    %v6175 = vrcp.pop %v6160
    %v6176 = vmul.f32 1.0, %v6175
    %v6177 = vrcp.pop %v6161
    %v6178 = vmul.f32 1.0, %v6177
    %v6179 = vrcp.pop %v6162
    %v6180 = vmul.f32 1.0, %v6179
    %6182 = vset.pattern.permute.xlu0 0
    %6183 = vperm.xlu0 %6182, %v6118
    %v6184 = vpop.permute.xlu0 %6183
    %6187 = vset.pattern.permute.xlu0 0
    %6188 = vperm.xlu0 %6187, %v6119
    %v6189 = vpop.permute.xlu0 %6188
    %6192 = vset.pattern.permute.xlu0 0
    %6193 = vperm.xlu0 %6192, %v6120
    %v6194 = vpop.permute.xlu0 %6193
    %6197 = vset.pattern.permute.xlu0 0
    %6198 = vperm.xlu0 %6197, %v6121
    %v6199 = vpop.permute.xlu0 %6198
    %6202 = vset.pattern.permute.xlu0 0
    %6203 = vperm.xlu0 %6202, %v6122
    %v6204 = vpop.permute.xlu0 %6203
    %6207 = vset.pattern.permute.xlu0 0
    %6208 = vperm.xlu0 %6207, %v6123
    %v6209 = vpop.permute.xlu0 %6208
    %6212 = vset.pattern.permute.xlu0 0
    %6213 = vperm.xlu0 %6212, %v6124
    %v6214 = vpop.permute.xlu0 %6213
    %6217 = vset.pattern.permute.xlu0 0
    %6218 = vperm.xlu0 %6217, %v6125
    %v6219 = vpop.permute.xlu0 %6218
    %6222 = vset.pattern.permute.xlu0 0
    %6223 = vperm.xlu0 %6222, %v6126
    %v6224 = vpop.permute.xlu0 %6223
    %v6226 = vmul.f32 %v6164, %v6184
    %v6227 = vmul.f32 %v6166, %v6189
    %v6228 = vmul.f32 %v6168, %v6194
    %v6229 = vmul.f32 %v6170, %v6199
    %v6230 = vmul.f32 %v6172, %v6204
    %v6231 = vmul.f32 %v6174, %v6209
    %v6232 = vmul.f32 %v6176, %v6214
    %v6233 = vmul.f32 %v6178, %v6219
    %v6234 = vmul.f32 %v6180, %v6224
    %v6235 = vmax.f32 %v6045, %v6226
    %v6236 = vmax.f32 %v6046, %v6227
    %v6237 = vmax.f32 %v6047, %v6228
    %v6238 = vmax.f32 %v6048, %v6229
    %v6239 = vmax.f32 %v6049, %v6230
    %v6240 = vmax.f32 %v6050, %v6231
    %v6241 = vmax.f32 %v6051, %v6232
    %v6242 = vmax.f32 %v6052, %v6233
    %v6243 = vmax.f32 %v6053, %v6234
    %v6244 = vxor.u32 %v5557, 2147483648
    %v6245 = vxor.u32 %v5558, 2147483648
    %v6246 = vxor.u32 %v5559, 2147483648
    %v6247 = vxor.u32 %v5560, 2147483648
    %v6248 = vxor.u32 %v5561, 2147483648
    %v6249 = vxor.u32 %v5562, 2147483648
    %v6250 = vxor.u32 %v5563, 2147483648
    %v6251 = vxor.u32 %v5564, 2147483648
    %v6252 = vxor.u32 %v5565, 2147483648
    %v6253 = vmul.f32 %v6244, 1.442695
    %v6254 = vpow.pop %v6253
    %v6255 = vmul.f32 %v6245, 1.442695
    %v6256 = vpow.pop %v6255
    %v6257 = vmul.f32 %v6246, 1.442695
    %v6258 = vpow.pop %v6257
    %v6259 = vmul.f32 %v6247, 1.442695
    %v6260 = vpow.pop %v6259
    %v6261 = vmul.f32 %v6248, 1.442695
    %v6262 = vpow.pop %v6261
    %v6263 = vmul.f32 %v6249, 1.442695
    %v6264 = vpow.pop %v6263
    %v6265 = vmul.f32 %v6250, 1.442695
    %v6266 = vpow.pop %v6265
    %v6267 = vmul.f32 %v6251, 1.442695
    %v6268 = vpow.pop %v6267
    %v6269 = vmul.f32 %v6252, 1.442695
    %v6270 = vpow.pop %v6269
    %v6271 = vadd.f32 %v6254, 1.0
    %v6272 = vadd.f32 %v6256, 1.0
    %v6273 = vadd.f32 %v6258, 1.0
    %v6274 = vadd.f32 %v6260, 1.0
    %v6275 = vadd.f32 %v6262, 1.0
    %v6276 = vadd.f32 %v6264, 1.0
    %v6277 = vadd.f32 %v6266, 1.0
    %v6278 = vadd.f32 %v6268, 1.0
    %v6279 = vadd.f32 %v6270, 1.0
    %v6280 = vrcp.pop %v6271
    %v6281 = vmul.f32 1.0, %v6280
    %v6282 = vrcp.pop %v6272
    %v6283 = vmul.f32 1.0, %v6282
    %v6284 = vrcp.pop %v6273
    %v6285 = vmul.f32 1.0, %v6284
    %v6286 = vrcp.pop %v6274
    %v6287 = vmul.f32 1.0, %v6286
    %v6288 = vrcp.pop %v6275
    %v6289 = vmul.f32 1.0, %v6288
    %v6290 = vrcp.pop %v6276
    %v6291 = vmul.f32 1.0, %v6290
    %v6292 = vrcp.pop %v6277
    %v6293 = vmul.f32 1.0, %v6292
    %v6294 = vrcp.pop %v6278
    %v6295 = vmul.f32 1.0, %v6294
    %v6296 = vrcp.pop %v6279
    %v6297 = vmul.f32 1.0, %v6296
    %v6298 = vmul.f32 %v6281, %v6184
    %v6299 = vmul.f32 %v6283, %v6189
    %v6300 = vmul.f32 %v6285, %v6194
    %v6301 = vmul.f32 %v6287, %v6199
    %v6302 = vmul.f32 %v6289, %v6204
    %v6303 = vmul.f32 %v6291, %v6209
    %v6304 = vmul.f32 %v6293, %v6214
    %v6305 = vmul.f32 %v6295, %v6219
    %v6306 = vmul.f32 %v6297, %v6224
    %v6307 = vmax.f32 %v6108, %v6298
    %v6308 = vmax.f32 %v6109, %v6299
    %v6309 = vmax.f32 %v6110, %v6300
    %v6310 = vmax.f32 %v6111, %v6301
    %v6311 = vmax.f32 %v6112, %v6302
    %v6312 = vmax.f32 %v6113, %v6303
    %v6313 = vmax.f32 %v6114, %v6304
    %v6314 = vmax.f32 %v6115, %v6305
    %v6315 = vmax.f32 %v6116, %v6306
    %s6316 = scalar_lea.vmem %s1, 144
    %v6317 = vld [vmem:[%s6316] sm:$0xff]
    %v6318 = vld [vmem:[%s6316 + $0x8] sm:$0xff]
    %v6319 = vld [vmem:[%s6316 + $0x10] sm:$0xff]
    %v6320 = vld [vmem:[%s6316 + $0x18] sm:$0xff]
    %v6321 = vld [vmem:[%s6316 + $0x20] sm:$0xff]
    %v6322 = vld [vmem:[%s6316 + $0x28] sm:$0xff]
    %v6323 = vld [vmem:[%s6316 + $0x30] sm:$0xff]
    %v6324 = vld [vmem:[%s6316 + $0x38] sm:$0xff]
    %v6325 = vld [vmem:[%s6316 + $0x40] sm:$0xff]
    %v6326 = vxor.u32 %v5829, 2147483648
    %v6327 = vxor.u32 %v5830, 2147483648
    %v6328 = vxor.u32 %v5831, 2147483648
    %v6329 = vxor.u32 %v5832, 2147483648
    %v6330 = vxor.u32 %v5833, 2147483648
    %v6331 = vxor.u32 %v5834, 2147483648
    %v6332 = vxor.u32 %v5835, 2147483648
    %v6333 = vxor.u32 %v5836, 2147483648
    %v6334 = vxor.u32 %v5837, 2147483648
    %v6335 = vmul.f32 %v6326, 1.442695
    %v6336 = vpow.pop %v6335
    %v6337 = vmul.f32 %v6327, 1.442695
    %v6338 = vpow.pop %v6337
    %v6339 = vmul.f32 %v6328, 1.442695
    %v6340 = vpow.pop %v6339
    %v6341 = vmul.f32 %v6329, 1.442695
    %v6342 = vpow.pop %v6341
    %v6343 = vmul.f32 %v6330, 1.442695
    %v6344 = vpow.pop %v6343
    %v6345 = vmul.f32 %v6331, 1.442695
    %v6346 = vpow.pop %v6345
    %v6347 = vmul.f32 %v6332, 1.442695
    %v6348 = vpow.pop %v6347
    %v6349 = vmul.f32 %v6333, 1.442695
    %v6350 = vpow.pop %v6349
    %v6351 = vmul.f32 %v6334, 1.442695
    %v6352 = vpow.pop %v6351
    %v6353 = vadd.f32 %v6336, 1.0
    %v6354 = vadd.f32 %v6338, 1.0
    %v6355 = vadd.f32 %v6340, 1.0
    %v6356 = vadd.f32 %v6342, 1.0
    %v6357 = vadd.f32 %v6344, 1.0
    %v6358 = vadd.f32 %v6346, 1.0
    %v6359 = vadd.f32 %v6348, 1.0
    %v6360 = vadd.f32 %v6350, 1.0
    %v6361 = vadd.f32 %v6352, 1.0
    %v6362 = vrcp.pop %v6353
    %v6363 = vmul.f32 1.0, %v6362
    %v6364 = vrcp.pop %v6354
    %v6365 = vmul.f32 1.0, %v6364
    %v6366 = vrcp.pop %v6355
    %v6367 = vmul.f32 1.0, %v6366
    %v6368 = vrcp.pop %v6356
    %v6369 = vmul.f32 1.0, %v6368
    %v6370 = vrcp.pop %v6357
    %v6371 = vmul.f32 1.0, %v6370
    %v6372 = vrcp.pop %v6358
    %v6373 = vmul.f32 1.0, %v6372
    %v6374 = vrcp.pop %v6359
    %v6375 = vmul.f32 1.0, %v6374
    %v6376 = vrcp.pop %v6360
    %v6377 = vmul.f32 1.0, %v6376
    %v6378 = vrcp.pop %v6361
    %v6379 = vmul.f32 1.0, %v6378
    %6381 = vset.pattern.permute.xlu0 0
    %6382 = vperm.xlu0 %6381, %v6317
    %v6383 = vpop.permute.xlu0 %6382
    %6386 = vset.pattern.permute.xlu0 0
    %6387 = vperm.xlu0 %6386, %v6318
    %v6388 = vpop.permute.xlu0 %6387
    %6391 = vset.pattern.permute.xlu0 0
    %6392 = vperm.xlu0 %6391, %v6319
    %v6393 = vpop.permute.xlu0 %6392
    %6396 = vset.pattern.permute.xlu0 0
    %6397 = vperm.xlu0 %6396, %v6320
    %v6398 = vpop.permute.xlu0 %6397
    %6401 = vset.pattern.permute.xlu0 0
    %6402 = vperm.xlu0 %6401, %v6321
    %v6403 = vpop.permute.xlu0 %6402
    %6406 = vset.pattern.permute.xlu0 0
    %6407 = vperm.xlu0 %6406, %v6322
    %v6408 = vpop.permute.xlu0 %6407
    %6411 = vset.pattern.permute.xlu0 0
    %6412 = vperm.xlu0 %6411, %v6323
    %v6413 = vpop.permute.xlu0 %6412
    %6416 = vset.pattern.permute.xlu0 0
    %6417 = vperm.xlu0 %6416, %v6324
    %v6418 = vpop.permute.xlu0 %6417
    %6421 = vset.pattern.permute.xlu0 0
    %6422 = vperm.xlu0 %6421, %v6325
    %v6423 = vpop.permute.xlu0 %6422
    %v6425 = vmul.f32 %v6363, %v6383
    %v6426 = vmul.f32 %v6365, %v6388
    %v6427 = vmul.f32 %v6367, %v6393
    %v6428 = vmul.f32 %v6369, %v6398
    %v6429 = vmul.f32 %v6371, %v6403
    %v6430 = vmul.f32 %v6373, %v6408
    %v6431 = vmul.f32 %v6375, %v6413
    %v6432 = vmul.f32 %v6377, %v6418
    %v6433 = vmul.f32 %v6379, %v6423
    %v6434 = vmax.f32 %v6235, %v6425
    %v6435 = vmax.f32 %v6236, %v6426
    %v6436 = vmax.f32 %v6237, %v6427
    %v6437 = vmax.f32 %v6238, %v6428
    %v6438 = vmax.f32 %v6239, %v6429
    %v6439 = vmax.f32 %v6240, %v6430
    %v6440 = vmax.f32 %v6241, %v6431
    %v6441 = vmax.f32 %v6242, %v6432
    %v6442 = vmax.f32 %v6243, %v6433
    %v6443 = vxor.u32 %v5847, 2147483648
    %v6444 = vxor.u32 %v5848, 2147483648
    %v6445 = vxor.u32 %v5849, 2147483648
    %v6446 = vxor.u32 %v5850, 2147483648
    %v6447 = vxor.u32 %v5851, 2147483648
    %v6448 = vxor.u32 %v5852, 2147483648
    %v6449 = vxor.u32 %v5853, 2147483648
    %v6450 = vxor.u32 %v5854, 2147483648
    %v6451 = vxor.u32 %v5855, 2147483648
    %v6452 = vmul.f32 %v6443, 1.442695
    %v6453 = vpow.pop %v6452
    %v6454 = vmul.f32 %v6444, 1.442695
    %v6455 = vpow.pop %v6454
    %v6456 = vmul.f32 %v6445, 1.442695
    %v6457 = vpow.pop %v6456
    %v6458 = vmul.f32 %v6446, 1.442695
    %v6459 = vpow.pop %v6458
    %v6460 = vmul.f32 %v6447, 1.442695
    %v6461 = vpow.pop %v6460
    %v6462 = vmul.f32 %v6448, 1.442695
    %v6463 = vpow.pop %v6462
    %v6464 = vmul.f32 %v6449, 1.442695
    %v6465 = vpow.pop %v6464
    %v6466 = vmul.f32 %v6450, 1.442695
    %v6467 = vpow.pop %v6466
    %v6468 = vmul.f32 %v6451, 1.442695
    %v6469 = vpow.pop %v6468
    %v6470 = vadd.f32 %v6453, 1.0
    %v6471 = vadd.f32 %v6455, 1.0
    %v6472 = vadd.f32 %v6457, 1.0
    %v6473 = vadd.f32 %v6459, 1.0
    %v6474 = vadd.f32 %v6461, 1.0
    %v6475 = vadd.f32 %v6463, 1.0
    %v6476 = vadd.f32 %v6465, 1.0
    %v6477 = vadd.f32 %v6467, 1.0
    %v6478 = vadd.f32 %v6469, 1.0
    %v6479 = vrcp.pop %v6470
    %v6480 = vmul.f32 1.0, %v6479
    %v6481 = vrcp.pop %v6471
    %v6482 = vmul.f32 1.0, %v6481
    %v6483 = vrcp.pop %v6472
    %v6484 = vmul.f32 1.0, %v6483
    %v6485 = vrcp.pop %v6473
    %v6486 = vmul.f32 1.0, %v6485
    %v6487 = vrcp.pop %v6474
    %v6488 = vmul.f32 1.0, %v6487
    %v6489 = vrcp.pop %v6475
    %v6490 = vmul.f32 1.0, %v6489
    %v6491 = vrcp.pop %v6476
    %v6492 = vmul.f32 1.0, %v6491
    %v6493 = vrcp.pop %v6477
    %v6494 = vmul.f32 1.0, %v6493
    %v6495 = vrcp.pop %v6478
    %v6496 = vmul.f32 1.0, %v6495
    %v6497 = vmul.f32 %v6480, %v6383
    %v6498 = vmul.f32 %v6482, %v6388
    %v6499 = vmul.f32 %v6484, %v6393
    %v6500 = vmul.f32 %v6486, %v6398
    %v6501 = vmul.f32 %v6488, %v6403
    %v6502 = vmul.f32 %v6490, %v6408
    %v6503 = vmul.f32 %v6492, %v6413
    %v6504 = vmul.f32 %v6494, %v6418
    %v6505 = vmul.f32 %v6496, %v6423
    %v6506 = vmax.f32 %v6307, %v6497
    %v6507 = vmax.f32 %v6308, %v6498
    %v6508 = vmax.f32 %v6309, %v6499
    %v6509 = vmax.f32 %v6310, %v6500
    %v6510 = vmax.f32 %v6311, %v6501
    %v6511 = vmax.f32 %v6312, %v6502
    %v6512 = vmax.f32 %v6313, %v6503
    %v6513 = vmax.f32 %v6314, %v6504
    %v6514 = vmax.f32 %v6315, %v6505
    %s6515 = scalar_lea.vmem %s1, 216
    %v6516 = vld [vmem:[%s6515] sm:$0xff]
    %v6517 = vld [vmem:[%s6515 + $0x8] sm:$0xff]
    %v6518 = vld [vmem:[%s6515 + $0x10] sm:$0xff]
    %v6519 = vld [vmem:[%s6515 + $0x18] sm:$0xff]
    %v6520 = vld [vmem:[%s6515 + $0x20] sm:$0xff]
    %v6521 = vld [vmem:[%s6515 + $0x28] sm:$0xff]
    %v6522 = vld [vmem:[%s6515 + $0x30] sm:$0xff]
    %v6523 = vld [vmem:[%s6515 + $0x38] sm:$0xff]
    %v6524 = vld [vmem:[%s6515 + $0x40] sm:$0xff]
    %v6525 = vxor.u32 %v5910, 2147483648
    %v6526 = vxor.u32 %v5911, 2147483648
    %v6527 = vxor.u32 %v5912, 2147483648
    %v6528 = vxor.u32 %v5913, 2147483648
    %v6529 = vxor.u32 %v5914, 2147483648
    %v6530 = vxor.u32 %v5915, 2147483648
    %v6531 = vxor.u32 %v5916, 2147483648
    %v6532 = vxor.u32 %v5917, 2147483648
    %v6533 = vxor.u32 %v5918, 2147483648
    %v6534 = vmul.f32 %v6525, 1.442695
    %v6535 = vpow.pop %v6534
    %v6536 = vmul.f32 %v6526, 1.442695
    %v6537 = vpow.pop %v6536
    %v6538 = vmul.f32 %v6527, 1.442695
    %v6539 = vpow.pop %v6538
    %v6540 = vmul.f32 %v6528, 1.442695
    %v6541 = vpow.pop %v6540
    %v6542 = vmul.f32 %v6529, 1.442695
    %v6543 = vpow.pop %v6542
    %v6544 = vmul.f32 %v6530, 1.442695
    %v6545 = vpow.pop %v6544
    %v6546 = vmul.f32 %v6531, 1.442695
    %v6547 = vpow.pop %v6546
    %v6548 = vmul.f32 %v6532, 1.442695
    %v6549 = vpow.pop %v6548
    %v6550 = vmul.f32 %v6533, 1.442695
    %v6551 = vpow.pop %v6550
    %v6552 = vadd.f32 %v6535, 1.0
    %v6553 = vadd.f32 %v6537, 1.0
    %v6554 = vadd.f32 %v6539, 1.0
    %v6555 = vadd.f32 %v6541, 1.0
    %v6556 = vadd.f32 %v6543, 1.0
    %v6557 = vadd.f32 %v6545, 1.0
    %v6558 = vadd.f32 %v6547, 1.0
    %v6559 = vadd.f32 %v6549, 1.0
    %v6560 = vadd.f32 %v6551, 1.0
    %v6561 = vrcp.pop %v6552
    %v6562 = vmul.f32 1.0, %v6561
    %v6563 = vrcp.pop %v6553
    %v6564 = vmul.f32 1.0, %v6563
    %v6565 = vrcp.pop %v6554
    %v6566 = vmul.f32 1.0, %v6565
    %v6567 = vrcp.pop %v6555
    %v6568 = vmul.f32 1.0, %v6567
    %v6569 = vrcp.pop %v6556
    %v6570 = vmul.f32 1.0, %v6569
    %v6571 = vrcp.pop %v6557
    %v6572 = vmul.f32 1.0, %v6571
    %v6573 = vrcp.pop %v6558
    %v6574 = vmul.f32 1.0, %v6573
    %v6575 = vrcp.pop %v6559
    %v6576 = vmul.f32 1.0, %v6575
    %v6577 = vrcp.pop %v6560
    %v6578 = vmul.f32 1.0, %v6577
    %6580 = vset.pattern.permute.xlu0 0
    %6581 = vperm.xlu0 %6580, %v6516
    %v6582 = vpop.permute.xlu0 %6581
    %6585 = vset.pattern.permute.xlu0 0
    %6586 = vperm.xlu0 %6585, %v6517
    %v6587 = vpop.permute.xlu0 %6586
    %6590 = vset.pattern.permute.xlu0 0
    %6591 = vperm.xlu0 %6590, %v6518
    %v6592 = vpop.permute.xlu0 %6591
    %6595 = vset.pattern.permute.xlu0 0
    %6596 = vperm.xlu0 %6595, %v6519
    %v6597 = vpop.permute.xlu0 %6596
    %6600 = vset.pattern.permute.xlu0 0
    %6601 = vperm.xlu0 %6600, %v6520
    %v6602 = vpop.permute.xlu0 %6601
    %6605 = vset.pattern.permute.xlu0 0
    %6606 = vperm.xlu0 %6605, %v6521
    %v6607 = vpop.permute.xlu0 %6606
    %6610 = vset.pattern.permute.xlu0 0
    %6611 = vperm.xlu0 %6610, %v6522
    %v6612 = vpop.permute.xlu0 %6611
    %6615 = vset.pattern.permute.xlu0 0
    %6616 = vperm.xlu0 %6615, %v6523
    %v6617 = vpop.permute.xlu0 %6616
    %6620 = vset.pattern.permute.xlu0 0
    %6621 = vperm.xlu0 %6620, %v6524
    %v6622 = vpop.permute.xlu0 %6621
    %v6624 = vmul.f32 %v6562, %v6582
    %v6625 = vmul.f32 %v6564, %v6587
    %v6626 = vmul.f32 %v6566, %v6592
    %v6627 = vmul.f32 %v6568, %v6597
    %v6628 = vmul.f32 %v6570, %v6602
    %v6629 = vmul.f32 %v6572, %v6607
    %v6630 = vmul.f32 %v6574, %v6612
    %v6631 = vmul.f32 %v6576, %v6617
    %v6632 = vmul.f32 %v6578, %v6622
    %v6633 = vmax.f32 %v6434, %v6624
    %v6634 = vmax.f32 %v6435, %v6625
    %v6635 = vmax.f32 %v6436, %v6626
    %v6636 = vmax.f32 %v6437, %v6627
    %v6637 = vmax.f32 %v6438, %v6628
    %v6638 = vmax.f32 %v6439, %v6629
    %v6639 = vmax.f32 %v6440, %v6630
    %v6640 = vmax.f32 %v6441, %v6631
    %v6641 = vmax.f32 %v6442, %v6632
    %v6642 = vxor.u32 %v5928, 2147483648
    %v6643 = vxor.u32 %v5929, 2147483648
    %v6644 = vxor.u32 %v5930, 2147483648
    %v6645 = vxor.u32 %v5931, 2147483648
    %v6646 = vxor.u32 %v5932, 2147483648
    %v6647 = vxor.u32 %v5933, 2147483648
    %v6648 = vxor.u32 %v5934, 2147483648
    %v6649 = vxor.u32 %v5935, 2147483648
    %v6650 = vxor.u32 %v5936, 2147483648
    %v6651 = vmul.f32 %v6642, 1.442695
    %v6652 = vpow.pop %v6651
    %v6653 = vmul.f32 %v6643, 1.442695
    %v6654 = vpow.pop %v6653
    %v6655 = vmul.f32 %v6644, 1.442695
    %v6656 = vpow.pop %v6655
    %v6657 = vmul.f32 %v6645, 1.442695
    %v6658 = vpow.pop %v6657
    %v6659 = vmul.f32 %v6646, 1.442695
    %v6660 = vpow.pop %v6659
    %v6661 = vmul.f32 %v6647, 1.442695
    %v6662 = vpow.pop %v6661
    %v6663 = vmul.f32 %v6648, 1.442695
    %v6664 = vpow.pop %v6663
    %v6665 = vmul.f32 %v6649, 1.442695
    %v6666 = vpow.pop %v6665
    %v6667 = vmul.f32 %v6650, 1.442695
    %v6668 = vpow.pop %v6667
    %v6669 = vadd.f32 %v6652, 1.0
    %v6670 = vadd.f32 %v6654, 1.0
    %v6671 = vadd.f32 %v6656, 1.0
    %v6672 = vadd.f32 %v6658, 1.0
    %v6673 = vadd.f32 %v6660, 1.0
    %v6674 = vadd.f32 %v6662, 1.0
    %v6675 = vadd.f32 %v6664, 1.0
    %v6676 = vadd.f32 %v6666, 1.0
    %v6677 = vadd.f32 %v6668, 1.0
    %v6678 = vrcp.pop %v6669
    %v6679 = vmul.f32 1.0, %v6678
    %v6680 = vrcp.pop %v6670
    %v6681 = vmul.f32 1.0, %v6680
    %v6682 = vrcp.pop %v6671
    %v6683 = vmul.f32 1.0, %v6682
    %v6684 = vrcp.pop %v6672
    %v6685 = vmul.f32 1.0, %v6684
    %v6686 = vrcp.pop %v6673
    %v6687 = vmul.f32 1.0, %v6686
    %v6688 = vrcp.pop %v6674
    %v6689 = vmul.f32 1.0, %v6688
    %v6690 = vrcp.pop %v6675
    %v6691 = vmul.f32 1.0, %v6690
    %v6692 = vrcp.pop %v6676
    %v6693 = vmul.f32 1.0, %v6692
    %v6694 = vrcp.pop %v6677
    %v6695 = vmul.f32 1.0, %v6694
    %v6696 = vmul.f32 %v6679, %v6582
    %v6697 = vmul.f32 %v6681, %v6587
    %v6698 = vmul.f32 %v6683, %v6592
    %v6699 = vmul.f32 %v6685, %v6597
    %v6700 = vmul.f32 %v6687, %v6602
    %v6701 = vmul.f32 %v6689, %v6607
    %v6702 = vmul.f32 %v6691, %v6612
    %v6703 = vmul.f32 %v6693, %v6617
    %v6704 = vmul.f32 %v6695, %v6622
    %v6705 = vmax.f32 %v6506, %v6696
    %v6706 = vmax.f32 %v6507, %v6697
    %v6707 = vmax.f32 %v6508, %v6698
    %v6708 = vmax.f32 %v6509, %v6699
    %v6709 = vmax.f32 %v6510, %v6700
    %v6710 = vmax.f32 %v6511, %v6701
    %v6711 = vmax.f32 %v6512, %v6702
    %v6712 = vmax.f32 %v6513, %v6703
    %v6713 = vmax.f32 %v6514, %v6704
    %vm6714 = vcmask 15360
    %6715 = vst.msk [vmem:[%s4] sm:$0xff] %vm6714, %v6633
    %6716 = vst.msk [vmem:[%s4 + $0x8] sm:$0xff] %vm6714, %v6634
    %6717 = vst.msk [vmem:[%s4 + $0x10] sm:$0xff] %vm6714, %v6635
    %6718 = vst.msk [vmem:[%s4 + $0x18] sm:$0xff] %vm6714, %v6636
    %6719 = vst.msk [vmem:[%s4 + $0x20] sm:$0xff] %vm6714, %v6637
    %6720 = vst.msk [vmem:[%s4 + $0x28] sm:$0xff] %vm6714, %v6638
    %6721 = vst.msk [vmem:[%s4 + $0x30] sm:$0xff] %vm6714, %v6639
    %6722 = vst.msk [vmem:[%s4 + $0x38] sm:$0xff] %vm6714, %v6640
    %6723 = vst.msk [vmem:[%s4 + $0x40] sm:$0xff] %vm6714, %v6641
    %s6724 = scalar_lea.vmem %s4, 72
    %6725 = vst.msk [vmem:[%s6724] sm:$0xff] %vm6714, %v6705
    %6726 = vst.msk [vmem:[%s6724 + $0x8] sm:$0xff] %vm6714, %v6706
    %6727 = vst.msk [vmem:[%s6724 + $0x10] sm:$0xff] %vm6714, %v6707
    %6728 = vst.msk [vmem:[%s6724 + $0x18] sm:$0xff] %vm6714, %v6708
    %6729 = vst.msk [vmem:[%s6724 + $0x20] sm:$0xff] %vm6714, %v6709
    %6730 = vst.msk [vmem:[%s6724 + $0x28] sm:$0xff] %vm6714, %v6710
    %6731 = vst.msk [vmem:[%s6724 + $0x30] sm:$0xff] %vm6714, %v6711
    %6732 = vst.msk [vmem:[%s6724 + $0x38] sm:$0xff] %vm6714, %v6712
    %6733 = vst.msk [vmem:[%s6724 + $0x40] sm:$0xff] %vm6714, %v6713
    // Predicated region
    $region26: #{model_forward.1} parent=1 // pred_check
      _
    $region27: #{model_forward.1} parent=1 // pred_check_branch
      %6735 = sbr.rel (0) target = $region29
    $region28: #{model_forward.1} parent=1 // pred_region
      _
    $region29: #{model_forward.1} parent=1 // pred_fallthru
      _
    // Predicated region
    $region30: #{model_forward.1} parent=1 // pred_check
      _
    $region31: #{model_forward.1} parent=1 // pred_check_branch
      %6737 = sbr.rel (0) target = $region33
    $region32: #{model_forward.1} parent=1 // pred_region
      _
    $region33: #{model_forward.1} parent=1 // pred_fallthru
      _
    %6738 = vsyncpa [#allocation3], 1
    %6739 = vsyncpa [#allocation5], 1

</llo_original>
